<compile_context>
chip_gen: v6e
topology: v6e:2x2x1
jax: 0.10.0
libtpu: 0.0.40
codegen_flags: <defaults>
</compile_context>

<pallas_src>
from typing import List

import jax
import jax.numpy as jnp
from jax.experimental import pallas as pl
from jax.experimental.pallas import tpu as pltpu


# --------------------------- kernel building blocks -------------------------

def _conv_core(x_ref, w_ref, b_ref, xpad_ref):
    """conv3x3(pad=1) + bias + ReLU for one image / one Cout tile.

    x_ref:    (1, H, W, Cin)    activation tile (bf16 or f32)
    w_ref:    (9*Cin, Tc)       weights, taps flattened in (dy, dx, cin) order
    b_ref:    (1, Tc)           bias (f32)
    xpad_ref: (H+2, W+2, Cin)   VMEM scratch holding the zero halo
    returns:  (H*W, Tc) float32 = ReLU(conv + bias)
    """
    _, H, W, Cin = x_ref.shape
    # In-kernel zero halo: no jnp.pad HBM pass in the wrapper.
    xpad_ref[...] = jnp.zeros(xpad_ref.shape, xpad_ref.dtype)
    xpad_ref[pl.ds(1, H), pl.ds(1, W), :] = x_ref[0]

    # im2col: 9 shifted taps concatenated on the lane axis -> ONE MXU matmul
    # with contraction dim K = 9*Cin.
    taps = [xpad_ref[pl.ds(dy, H), pl.ds(dx, W), :]
            for dy in range(3) for dx in range(3)]
    col = jnp.concatenate(taps, axis=-1).reshape(H * W, 9 * Cin)

    acc = jnp.dot(col, w_ref[...], preferred_element_type=jnp.float32)
    acc = acc + b_ref[...].astype(jnp.float32)
    return jnp.maximum(acc, 0.0)


def _maxpool_3x3_s2_p1(y):
    """MaxPool2d(kernel=3, stride=2, padding=1) on y: (H, W, C), y >= 0.

    Stride-free formulation: out[o] = max(y[2o-1], y[2o], y[2o+1]) built from a
    pairwise max (reshape) plus a shifted odd-element max.  Because y is
    post-ReLU (>= 0), zero-fill is equivalent to -inf padding.
    """
    H, W, C = y.shape
    # ---- pool along H ----
    if H % 2:
        y = jnp.concatenate([y, jnp.zeros((1, W, C), y.dtype)], axis=0)
        H += 1
    Ho = H // 2
    y = y.reshape(Ho, 2, W, C)
    pair = jnp.maximum(y[:, 0], y[:, 1])                         # max(y[2o], y[2o+1])
    prev = jnp.concatenate(
        [jnp.zeros((1, W, C), y.dtype), y[:-1, 1]], axis=0)      # y[2o-1] (0 for o=0)
    yh = jnp.maximum(pair, prev)                                 # (Ho, W, C)

    # ---- pool along W ----
    if W % 2:
        yh = jnp.concatenate([yh, jnp.zeros((Ho, 1, C), yh.dtype)], axis=1)
        W += 1
    Wo = W // 2
    yh = yh.reshape(Ho, Wo, 2, C)
    pair = jnp.maximum(yh[:, :, 0], yh[:, :, 1])
    prev = jnp.concatenate(
        [jnp.zeros((Ho, 1, C), yh.dtype), yh[:, :-1, 1]], axis=1)
    return jnp.maximum(pair, prev)                               # (Ho, Wo, C)


def _conv3x3_relu_kernel(x_ref, w_ref, b_ref, o_ref, xpad_ref):
    y = _conv_core(x_ref, w_ref, b_ref, xpad_ref)                # (H*W, Tc) f32
    o_ref[...] = y.reshape(o_ref.shape).astype(o_ref.dtype)


def _conv3x3_relu_pool_kernel(x_ref, w_ref, b_ref, o_ref, xpad_ref):
    _, H, W, _ = x_ref.shape
    tc = o_ref.shape[3]
    y = _conv_core(x_ref, w_ref, b_ref, xpad_ref).reshape(H, W, tc)
    o_ref[...] = _maxpool_3x3_s2_p1(y)[None].astype(o_ref.dtype)


# ------------------------------ pallas wrapper ------------------------------

def vgg_block(x_nhwc, w_kc, b_1c, *, pool: bool):
    """One VGGBlock (conv3x3 pad=1 + ReLU), optionally fused with MaxPool(3,2,1).

    x_nhwc: (N, H, W, Cin);  w_kc: (9*Cin, Cout);  b_1c: (1, Cout) f32.
    """
    N, H, W, Cin = x_nhwc.shape
    K, Cout = w_kc.shape
    assert K == 9 * Cin
    # Cout tile: keep full Cout when small, otherwise 128-wide (MXU width).
    tc = Cout if Cout <= 128 else 128
    assert Cout % tc == 0

    if pool:
        Ho, Wo = (H + 1) // 2, (W + 1) // 2
        out_shape = jax.ShapeDtypeStruct((N, Ho, Wo, Cout), x_nhwc.dtype)
        out_spec = pl.BlockSpec((1, Ho, Wo, tc), lambda n, j: (n, 0, 0, j))
        kernel = _conv3x3_relu_pool_kernel
    else:
        out_shape = jax.ShapeDtypeStruct((N, H, W, Cout), x_nhwc.dtype)
        out_spec = pl.BlockSpec((1, H, W, tc), lambda n, j: (n, 0, 0, j))
        kernel = _conv3x3_relu_kernel

    return pl.pallas_call(
        kernel,
        out_shape=out_shape,
        grid=(N, Cout // tc),
        in_specs=[
            pl.BlockSpec((1, H, W, Cin), lambda n, j: (n, 0, 0, 0)),
            pl.BlockSpec((9 * Cin, tc), lambda n, j: (0, j)),   # weights resident
            pl.BlockSpec((1, tc), lambda n, j: (0, j)),
        ],
        out_specs=out_spec,
        scratch_shapes=[pltpu.VMEM((H + 2, W + 2, Cin), x_nhwc.dtype)],
        compiler_params=pltpu.CompilerParams(
            dimension_semantics=("parallel", "parallel")),
    )(x_nhwc, w_kc, b_1c)


# -------------------------------- VGGBase -----------------------------------

def init_vgg_params(key, n_blocks: List[int], n_channels: List[int],
                    img_channels: int = 3, dtype=jnp.bfloat16):
    """Params per stage: list of (w:(9*Cin,Cout) dtype, b:(1,Cout) f32)."""
    params = []
    pre = img_channels
    for i, channels in enumerate(n_channels):
        stage = []
        io = [(pre, channels)] + [(channels, channels)] * (n_blocks[i] - 1)
        for cin, cout in io:
            key, kw, kb = jax.random.split(key, 3)
            fan_in = 9 * cin
            w = jax.random.normal(kw, (3, 3, cin, cout), jnp.float32)
            w = w * (2.0 / fan_in) ** 0.5
            b = 0.01 * jax.random.normal(kb, (1, cout), jnp.float32)
            stage.append((w.reshape(9 * cin, cout).astype(dtype), b))
        params.append(stage)
        pre = channels
    return params


def vgg_base_forward(x_nchw, params):
    x = jnp.transpose(x_nchw, (0, 2, 3, 1))           # NCHW -> NHWC
    for stage in params:
        last = len(stage) - 1
        for li, (w, b) in enumerate(stage):
            x = vgg_block(x, w, b, pool=(li == last))  # pool fused into last conv
    return jnp.transpose(x, (0, 3, 1, 2))             # NHWC -> NCHW


# ------------------------------ pure-JAX reference ---------------------------

def vgg_base_reference(x_nchw, params):
    x = jnp.transpose(x_nchw, (0, 2, 3, 1))
    for stage in params:
        for li, (w, b) in enumerate(stage):
            cin, cout = w.shape[0] // 9, w.shape[1]
            w_hwio = w.reshape(3, 3, cin, cout)
            y = jax.lax.conv_general_dilated(
                x, w_hwio, window_strides=(1, 1), padding="SAME",
                dimension_numbers=("NHWC", "HWIO", "NHWC"),
                preferred_element_type=jnp.float32)
            y = jnp.maximum(y + b.astype(jnp.float32), 0.0).astype(x.dtype)
            if li == len(stage) - 1:
                y = jax.lax.reduce_window(
                    y, jnp.array(-jnp.inf, y.dtype), jax.lax.max,
                    window_dimensions=(1, 3, 3, 1),
                    window_strides=(1, 2, 2, 1),
                    padding=((0, 0), (1, 1), (1, 1), (0, 0)))
            x = y
    return jnp.transpose(x, (0, 3, 1, 2))


# ---------------------------------- main -------------------------------------

if __name__ == "__main__":
    key = jax.random.PRNGKey(0)
    kx, kp = jax.random.split(key)

    # Small VGGBase: n_blocks=[2, 1], n_channels=[8, 16], img_channels=4
    n_blocks = [2, 1]
    n_channels = [8, 16]
    img_channels = 4

    x = jax.random.normal(kx, (2, img_channels, 16, 16), jnp.float32)
    x = x.astype(jnp.bfloat16)                        # bf16 activations (NCHW)
    params = init_vgg_params(kp, n_blocks, n_channels, img_channels)

    fwd = jax.jit(vgg_base_forward)
    out = jax.block_until_ready(fwd(x, params))
    assert out.shape == (2, n_channels[-1], 4, 4), out.shape

    ref = jax.block_until_ready(vgg_base_reference(x, params))
    err = jnp.max(jnp.abs(out.astype(jnp.float32) - ref.astype(jnp.float32)))
    # bf16 inputs -> exact MXU products with f32 accumulation in both paths;
    # tolerance covers accumulation-order and rare one-ulp bf16 rounding ties.
    assert err <= 2e-2, float(err)

    print("KERNEL_OK")
</pallas_src>

<mosaic_0001>
module attributes {stable_mosaic.version = 11 : i64} {
  func.func @_conv3x3_relu_kernel(%arg0: i32, %arg1: i32, %arg2: memref<1x16x16x4xbf16, #tpu.memory_space<vmem>>, %arg3: memref<36x8xbf16, #tpu.memory_space<vmem>>, %arg4: memref<1x8xf32, #tpu.memory_space<vmem>>, %arg5: memref<1x16x16x8xbf16, #tpu.memory_space<vmem>>, %arg6: memref<18x18x4xbf16, #tpu.memory_space<vmem>>) attributes {dimension_semantics = [#tpu.dimension_semantics<parallel>, #tpu.dimension_semantics<parallel>], iteration_bounds = array<i64: 2, 1>, scalar_prefetch = 0 : i64, scratch_operands = 1 : i64, tpu.core_type = #tpu.core_type<tc>, window_params = [{transform_indices = @transform_0, window_bounds = array<i64: 1, 16, 16, 4>}, {transform_indices = @transform_1, window_bounds = array<i64: 36, 8>}, {transform_indices = @transform_2, window_bounds = array<i64: 1, 8>}, {transform_indices = @transform_3, window_bounds = array<i64: 1, 16, 16, 8>}]} {
    %cst = arith.constant 0.000000e+00 : bf16
    %0 = vector.broadcast %cst : bf16 to vector<18x18x4xbf16>
    %c0 = arith.constant 0 : index
    %c0_0 = arith.constant 0 : index
    %c0_1 = arith.constant 0 : index
    %1 = vector.load %arg6[%c0, %c0_0, %c0_1] : memref<18x18x4xbf16, #tpu.memory_space<vmem>>, vector<18x18x4xbf16>
    tpu.vector_store %arg6[%c0, %c0_0, %c0_1], %0 {strides = array<i32>} : memref<18x18x4xbf16, #tpu.memory_space<vmem>>, vector<18x18x4xbf16>,
    %c0_2 = arith.constant 0 : index
    %c0_3 = arith.constant 0 : index
    %c0_4 = arith.constant 0 : index
    %c0_5 = arith.constant 0 : index
    %2 = vector.load %arg2[%c0_2, %c0_3, %c0_4, %c0_5] : memref<1x16x16x4xbf16, #tpu.memory_space<vmem>>, vector<1x16x16x4xbf16>
    %3 = vector.shape_cast %2 : vector<1x16x16x4xbf16> to vector<16x16x4xbf16>
    %c1 = arith.constant 1 : index
    %c1_6 = arith.constant 1 : index
    %c0_7 = arith.constant 0 : index
    %4 = vector.load %arg6[%c1, %c1_6, %c0_7] : memref<18x18x4xbf16, #tpu.memory_space<vmem>>, vector<16x16x4xbf16>
    tpu.vector_store %arg6[%c1, %c1_6, %c0_7], %3 {strides = array<i32>} : memref<18x18x4xbf16, #tpu.memory_space<vmem>>, vector<16x16x4xbf16>,
    %c0_8 = arith.constant 0 : index
    %c0_9 = arith.constant 0 : index
    %c0_10 = arith.constant 0 : index
    %5 = vector.load %arg6[%c0_8, %c0_9, %c0_10] : memref<18x18x4xbf16, #tpu.memory_space<vmem>>, vector<16x16x4xbf16>
    %c0_11 = arith.constant 0 : index
    %c1_12 = arith.constant 1 : index
    %c0_13 = arith.constant 0 : index
    %6 = vector.load %arg6[%c0_11, %c1_12, %c0_13] : memref<18x18x4xbf16, #tpu.memory_space<vmem>>, vector<16x16x4xbf16>
    %c0_14 = arith.constant 0 : index
    %c2 = arith.constant 2 : index
    %c0_15 = arith.constant 0 : index
    %7 = vector.load %arg6[%c0_14, %c2, %c0_15] : memref<18x18x4xbf16, #tpu.memory_space<vmem>>, vector<16x16x4xbf16>
    %c1_16 = arith.constant 1 : index
    %c0_17 = arith.constant 0 : index
    %c0_18 = arith.constant 0 : index
    %8 = vector.load %arg6[%c1_16, %c0_17, %c0_18] : memref<18x18x4xbf16, #tpu.memory_space<vmem>>, vector<16x16x4xbf16>
    %c1_19 = arith.constant 1 : index
    %c1_20 = arith.constant 1 : index
    %c0_21 = arith.constant 0 : index
    %9 = vector.load %arg6[%c1_19, %c1_20, %c0_21] : memref<18x18x4xbf16, #tpu.memory_space<vmem>>, vector<16x16x4xbf16>
    %c1_22 = arith.constant 1 : index
    %c2_23 = arith.constant 2 : index
    %c0_24 = arith.constant 0 : index
    %10 = vector.load %arg6[%c1_22, %c2_23, %c0_24] : memref<18x18x4xbf16, #tpu.memory_space<vmem>>, vector<16x16x4xbf16>
    %c2_25 = arith.constant 2 : index
    %c0_26 = arith.constant 0 : index
    %c0_27 = arith.constant 0 : index
    %11 = vector.load %arg6[%c2_25, %c0_26, %c0_27] : memref<18x18x4xbf16, #tpu.memory_space<vmem>>, vector<16x16x4xbf16>
    %c2_28 = arith.constant 2 : index
    %c1_29 = arith.constant 1 : index
    %c0_30 = arith.constant 0 : index
    %12 = vector.load %arg6[%c2_28, %c1_29, %c0_30] : memref<18x18x4xbf16, #tpu.memory_space<vmem>>, vector<16x16x4xbf16>
    %c2_31 = arith.constant 2 : index
    %c2_32 = arith.constant 2 : index
    %c0_33 = arith.constant 0 : index
    %13 = vector.load %arg6[%c2_31, %c2_32, %c0_33] : memref<18x18x4xbf16, #tpu.memory_space<vmem>>, vector<16x16x4xbf16>
    %14 = tpu.concatenate %5, %6, %7, %8, %9, %10, %11, %12, %13 in 2 : vector<16x16x4xbf16>, vector<16x16x4xbf16>, vector<16x16x4xbf16>, vector<16x16x4xbf16>, vector<16x16x4xbf16>, vector<16x16x4xbf16>, vector<16x16x4xbf16>, vector<16x16x4xbf16>, vector<16x16x4xbf16> -> vector<16x16x36xbf16>
    %15 = vector.shape_cast %14 : vector<16x16x36xbf16> to vector<256x36xbf16>
    %c0_34 = arith.constant 0 : index
    %c0_35 = arith.constant 0 : index
    %16 = vector.load %arg3[%c0_34, %c0_35] : memref<36x8xbf16, #tpu.memory_space<vmem>>, vector<36x8xbf16>
    %cst_36 = arith.constant dense<0.000000e+00> : vector<256x8xf32>
    %17 = tpu.matmul %15, %16, %cst_36 {dimension_numbers = #tpu.dot_dimension_numbers<[1], [0], [0], [1], [0, 0, 1, 1], [], []>} : vector<256x36xbf16>, vector<36x8xbf16>, vector<256x8xf32> -> vector<256x8xf32>
    %c0_37 = arith.constant 0 : index
    %c0_38 = arith.constant 0 : index
    %18 = vector.load %arg4[%c0_37, %c0_38] : memref<1x8xf32, #tpu.memory_space<vmem>>, vector<1x8xf32>
    %19 = vector.broadcast %18 : vector<1x8xf32> to vector<256x8xf32>
    %20 = arith.addf %17, %19 : vector<256x8xf32>
    %cst_39 = arith.constant 0.000000e+00 : f32
    %21 = vector.broadcast %cst_39 : f32 to vector<256x8xf32>
    %22 = arith.maximumf %20, %21 : vector<256x8xf32>
    %23 = vector.shape_cast %22 : vector<256x8xf32> to vector<1x16x16x8xf32>
    %24 = arith.truncf %23 : vector<1x16x16x8xf32> to vector<1x16x16x8xbf16>
    %c0_40 = arith.constant 0 : index
    %c0_41 = arith.constant 0 : index
    %c0_42 = arith.constant 0 : index
    %c0_43 = arith.constant 0 : index
    %25 = vector.load %arg5[%c0_40, %c0_41, %c0_42, %c0_43] : memref<1x16x16x8xbf16, #tpu.memory_space<vmem>>, vector<1x16x16x8xbf16>
    tpu.vector_store %arg5[%c0_40, %c0_41, %c0_42, %c0_43], %24 {strides = array<i32>} : memref<1x16x16x8xbf16, #tpu.memory_space<vmem>>, vector<1x16x16x8xbf16>,
    return
  }
  func.func @transform_0(%arg0: i32, %arg1: i32) -> (i32, i32, i32, i32) {
    %c0_i32 = arith.constant 0 : i32
    %c0_i32_0 = arith.constant 0 : i32
    %c0_i32_1 = arith.constant 0 : i32
    %c0_i32_2 = arith.constant 0 : i32
    return %arg0, %c0_i32, %c0_i32_0, %c0_i32_1 : i32, i32, i32, i32
  }
  func.func @transform_1(%arg0: i32, %arg1: i32) -> (i32, i32) {
    %c0_i32 = arith.constant 0 : i32
    %c0_i32_0 = arith.constant 0 : i32
    return %c0_i32, %arg1 : i32, i32
  }
  func.func @transform_2(%arg0: i32, %arg1: i32) -> (i32, i32) {
    %c0_i32 = arith.constant 0 : i32
    %c0_i32_0 = arith.constant 0 : i32
    return %c0_i32, %arg1 : i32, i32
  }
  func.func @transform_3(%arg0: i32, %arg1: i32) -> (i32, i32, i32, i32) {
    %c0_i32 = arith.constant 0 : i32
    %c0_i32_0 = arith.constant 0 : i32
    %c0_i32_1 = arith.constant 0 : i32
    return %arg0, %c0_i32, %c0_i32_0, %arg1 : i32, i32, i32, i32
  }
}

module attributes {stable_mosaic.version = 11 : i64} {
  func.func @_conv3x3_relu_pool_kernel(%arg0: i32, %arg1: i32, %arg2: memref<1x16x16x8xbf16, #tpu.memory_space<vmem>>, %arg3: memref<72x8xbf16, #tpu.memory_space<vmem>>, %arg4: memref<1x8xf32, #tpu.memory_space<vmem>>, %arg5: memref<1x8x8x8xbf16, #tpu.memory_space<vmem>>, %arg6: memref<18x18x8xbf16, #tpu.memory_space<vmem>>) attributes {dimension_semantics = [#tpu.dimension_semantics<parallel>, #tpu.dimension_semantics<parallel>], iteration_bounds = array<i64: 2, 1>, scalar_prefetch = 0 : i64, scratch_operands = 1 : i64, tpu.core_type = #tpu.core_type<tc>, window_params = [{transform_indices = @transform_0, window_bounds = array<i64: 1, 16, 16, 8>}, {transform_indices = @transform_1, window_bounds = array<i64: 72, 8>}, {transform_indices = @transform_2, window_bounds = array<i64: 1, 8>}, {transform_indices = @transform_3, window_bounds = array<i64: 1, 8, 8, 8>}]} {
    %cst = arith.constant 0.000000e+00 : bf16
    %0 = vector.broadcast %cst : bf16 to vector<18x18x8xbf16>
    %c0 = arith.constant 0 : index
    %c0_0 = arith.constant 0 : index
    %c0_1 = arith.constant 0 : index
    %1 = vector.load %arg6[%c0, %c0_0, %c0_1] : memref<18x18x8xbf16, #tpu.memory_space<vmem>>, vector<18x18x8xbf16>
    tpu.vector_store %arg6[%c0, %c0_0, %c0_1], %0 {strides = array<i32>} : memref<18x18x8xbf16, #tpu.memory_space<vmem>>, vector<18x18x8xbf16>,
    %c0_2 = arith.constant 0 : index
    %c0_3 = arith.constant 0 : index
    %c0_4 = arith.constant 0 : index
    %c0_5 = arith.constant 0 : index
    %2 = vector.load %arg2[%c0_2, %c0_3, %c0_4, %c0_5] : memref<1x16x16x8xbf16, #tpu.memory_space<vmem>>, vector<1x16x16x8xbf16>
    %3 = vector.shape_cast %2 : vector<1x16x16x8xbf16> to vector<16x16x8xbf16>
    %c1 = arith.constant 1 : index
    %c1_6 = arith.constant 1 : index
    %c0_7 = arith.constant 0 : index
    %4 = vector.load %arg6[%c1, %c1_6, %c0_7] : memref<18x18x8xbf16, #tpu.memory_space<vmem>>, vector<16x16x8xbf16>
    tpu.vector_store %arg6[%c1, %c1_6, %c0_7], %3 {strides = array<i32>} : memref<18x18x8xbf16, #tpu.memory_space<vmem>>, vector<16x16x8xbf16>,
    %c0_8 = arith.constant 0 : index
    %c0_9 = arith.constant 0 : index
    %c0_10 = arith.constant 0 : index
    %5 = vector.load %arg6[%c0_8, %c0_9, %c0_10] : memref<18x18x8xbf16, #tpu.memory_space<vmem>>, vector<16x16x8xbf16>
    %c0_11 = arith.constant 0 : index
    %c1_12 = arith.constant 1 : index
    %c0_13 = arith.constant 0 : index
    %6 = vector.load %arg6[%c0_11, %c1_12, %c0_13] : memref<18x18x8xbf16, #tpu.memory_space<vmem>>, vector<16x16x8xbf16>
    %c0_14 = arith.constant 0 : index
    %c2 = arith.constant 2 : index
    %c0_15 = arith.constant 0 : index
    %7 = vector.load %arg6[%c0_14, %c2, %c0_15] : memref<18x18x8xbf16, #tpu.memory_space<vmem>>, vector<16x16x8xbf16>
    %c1_16 = arith.constant 1 : index
    %c0_17 = arith.constant 0 : index
    %c0_18 = arith.constant 0 : index
    %8 = vector.load %arg6[%c1_16, %c0_17, %c0_18] : memref<18x18x8xbf16, #tpu.memory_space<vmem>>, vector<16x16x8xbf16>
    %c1_19 = arith.constant 1 : index
    %c1_20 = arith.constant 1 : index
    %c0_21 = arith.constant 0 : index
    %9 = vector.load %arg6[%c1_19, %c1_20, %c0_21] : memref<18x18x8xbf16, #tpu.memory_space<vmem>>, vector<16x16x8xbf16>
    %c1_22 = arith.constant 1 : index
    %c2_23 = arith.constant 2 : index
    %c0_24 = arith.constant 0 : index
    %10 = vector.load %arg6[%c1_22, %c2_23, %c0_24] : memref<18x18x8xbf16, #tpu.memory_space<vmem>>, vector<16x16x8xbf16>
    %c2_25 = arith.constant 2 : index
    %c0_26 = arith.constant 0 : index
    %c0_27 = arith.constant 0 : index
    %11 = vector.load %arg6[%c2_25, %c0_26, %c0_27] : memref<18x18x8xbf16, #tpu.memory_space<vmem>>, vector<16x16x8xbf16>
    %c2_28 = arith.constant 2 : index
    %c1_29 = arith.constant 1 : index
    %c0_30 = arith.constant 0 : index
    %12 = vector.load %arg6[%c2_28, %c1_29, %c0_30] : memref<18x18x8xbf16, #tpu.memory_space<vmem>>, vector<16x16x8xbf16>
    %c2_31 = arith.constant 2 : index
    %c2_32 = arith.constant 2 : index
    %c0_33 = arith.constant 0 : index
    %13 = vector.load %arg6[%c2_31, %c2_32, %c0_33] : memref<18x18x8xbf16, #tpu.memory_space<vmem>>, vector<16x16x8xbf16>
    %14 = tpu.concatenate %5, %6, %7, %8, %9, %10, %11, %12, %13 in 2 : vector<16x16x8xbf16>, vector<16x16x8xbf16>, vector<16x16x8xbf16>, vector<16x16x8xbf16>, vector<16x16x8xbf16>, vector<16x16x8xbf16>, vector<16x16x8xbf16>, vector<16x16x8xbf16>, vector<16x16x8xbf16> -> vector<16x16x72xbf16>
    %15 = vector.shape_cast %14 : vector<16x16x72xbf16> to vector<256x72xbf16>
    %c0_34 = arith.constant 0 : index
    %c0_35 = arith.constant 0 : index
    %16 = vector.load %arg3[%c0_34, %c0_35] : memref<72x8xbf16, #tpu.memory_space<vmem>>, vector<72x8xbf16>
    %cst_36 = arith.constant dense<0.000000e+00> : vector<256x8xf32>
    %17 = tpu.matmul %15, %16, %cst_36 {dimension_numbers = #tpu.dot_dimension_numbers<[1], [0], [0], [1], [0, 0, 1, 1], [], []>} : vector<256x72xbf16>, vector<72x8xbf16>, vector<256x8xf32> -> vector<256x8xf32>
    %c0_37 = arith.constant 0 : index
    %c0_38 = arith.constant 0 : index
    %18 = vector.load %arg4[%c0_37, %c0_38] : memref<1x8xf32, #tpu.memory_space<vmem>>, vector<1x8xf32>
    %19 = vector.broadcast %18 : vector<1x8xf32> to vector<256x8xf32>
    %20 = arith.addf %17, %19 : vector<256x8xf32>
    %cst_39 = arith.constant 0.000000e+00 : f32
    %21 = vector.broadcast %cst_39 : f32 to vector<256x8xf32>
    %22 = arith.maximumf %20, %21 : vector<256x8xf32>
    %23 = vector.shape_cast %22 : vector<256x8xf32> to vector<16x16x8xf32>
    %24 = vector.shape_cast %23 : vector<16x16x8xf32> to vector<8x2x16x8xf32>
    %25 = vector.extract_strided_slice %24 {offsets = [0, 0, 0, 0], sizes = [8, 1, 16, 8], strides = [1, 1, 1, 1]} : vector<8x2x16x8xf32> to vector<8x1x16x8xf32>
    %26 = vector.shape_cast %25 : vector<8x1x16x8xf32> to vector<8x16x8xf32>
    %27 = vector.extract_strided_slice %24 {offsets = [0, 1, 0, 0], sizes = [8, 1, 16, 8], strides = [1, 1, 1, 1]} : vector<8x2x16x8xf32> to vector<8x1x16x8xf32>
    %28 = vector.shape_cast %27 : vector<8x1x16x8xf32> to vector<8x16x8xf32>
    %29 = arith.maximumf %26, %28 : vector<8x16x8xf32>
    %cst_40 = arith.constant 0.000000e+00 : f32
    %30 = vector.broadcast %cst_40 : f32 to vector<1x16x8xf32>
    %31 = vector.extract_strided_slice %24 {offsets = [0, 1, 0, 0], sizes = [7, 1, 16, 8], strides = [1, 1, 1, 1]} : vector<8x2x16x8xf32> to vector<7x1x16x8xf32>
    %32 = vector.shape_cast %31 : vector<7x1x16x8xf32> to vector<7x16x8xf32>
    %33 = tpu.concatenate %30, %32 in 0 : vector<1x16x8xf32>, vector<7x16x8xf32> -> vector<8x16x8xf32>
    %34 = arith.maximumf %29, %33 : vector<8x16x8xf32>
    %35 = vector.shape_cast %34 : vector<8x16x8xf32> to vector<8x8x2x8xf32>
    %36 = vector.extract_strided_slice %35 {offsets = [0, 0, 0, 0], sizes = [8, 8, 1, 8], strides = [1, 1, 1, 1]} : vector<8x8x2x8xf32> to vector<8x8x1x8xf32>
    %37 = vector.shape_cast %36 : vector<8x8x1x8xf32> to vector<8x8x8xf32>
    %38 = vector.extract_strided_slice %35 {offsets = [0, 0, 1, 0], sizes = [8, 8, 1, 8], strides = [1, 1, 1, 1]} : vector<8x8x2x8xf32> to vector<8x8x1x8xf32>
    %39 = vector.shape_cast %38 : vector<8x8x1x8xf32> to vector<8x8x8xf32>
    %40 = arith.maximumf %37, %39 : vector<8x8x8xf32>
    %cst_41 = arith.constant 0.000000e+00 : f32
    %41 = vector.broadcast %cst_41 : f32 to vector<8x1x8xf32>
    %42 = vector.extract_strided_slice %35 {offsets = [0, 0, 1, 0], sizes = [8, 7, 1, 8], strides = [1, 1, 1, 1]} : vector<8x8x2x8xf32> to vector<8x7x1x8xf32>
    %43 = vector.shape_cast %42 : vector<8x7x1x8xf32> to vector<8x7x8xf32>
    %44 = tpu.concatenate %41, %43 in 1 : vector<8x1x8xf32>, vector<8x7x8xf32> -> vector<8x8x8xf32>
    %45 = arith.maximumf %40, %44 : vector<8x8x8xf32>
    %46 = vector.shape_cast %45 : vector<8x8x8xf32> to vector<1x8x8x8xf32>
    %47 = arith.truncf %46 : vector<1x8x8x8xf32> to vector<1x8x8x8xbf16>
    %c0_42 = arith.constant 0 : index
    %c0_43 = arith.constant 0 : index
    %c0_44 = arith.constant 0 : index
    %c0_45 = arith.constant 0 : index
    %48 = vector.load %arg5[%c0_42, %c0_43, %c0_44, %c0_45] : memref<1x8x8x8xbf16, #tpu.memory_space<vmem>>, vector<1x8x8x8xbf16>
    tpu.vector_store %arg5[%c0_42, %c0_43, %c0_44, %c0_45], %47 {strides = array<i32>} : memref<1x8x8x8xbf16, #tpu.memory_space<vmem>>, vector<1x8x8x8xbf16>,
    return
  }
  func.func @transform_0(%arg0: i32, %arg1: i32) -> (i32, i32, i32, i32) {
    %c0_i32 = arith.constant 0 : i32
    %c0_i32_0 = arith.constant 0 : i32
    %c0_i32_1 = arith.constant 0 : i32
    %c0_i32_2 = arith.constant 0 : i32
    return %arg0, %c0_i32, %c0_i32_0, %c0_i32_1 : i32, i32, i32, i32
  }
  func.func @transform_1(%arg0: i32, %arg1: i32) -> (i32, i32) {
    %c0_i32 = arith.constant 0 : i32
    %c0_i32_0 = arith.constant 0 : i32
    return %c0_i32, %arg1 : i32, i32
  }
  func.func @transform_2(%arg0: i32, %arg1: i32) -> (i32, i32) {
    %c0_i32 = arith.constant 0 : i32
    %c0_i32_0 = arith.constant 0 : i32
    return %c0_i32, %arg1 : i32, i32
  }
  func.func @transform_3(%arg0: i32, %arg1: i32) -> (i32, i32, i32, i32) {
    %c0_i32 = arith.constant 0 : i32
    %c0_i32_0 = arith.constant 0 : i32
    %c0_i32_1 = arith.constant 0 : i32
    return %arg0, %c0_i32, %c0_i32_0, %arg1 : i32, i32, i32, i32
  }
}

module attributes {stable_mosaic.version = 11 : i64} {
  func.func @_conv3x3_relu_pool_kernel(%arg0: i32, %arg1: i32, %arg2: memref<1x8x8x8xbf16, #tpu.memory_space<vmem>>, %arg3: memref<72x16xbf16, #tpu.memory_space<vmem>>, %arg4: memref<1x16xf32, #tpu.memory_space<vmem>>, %arg5: memref<1x4x4x16xbf16, #tpu.memory_space<vmem>>, %arg6: memref<10x10x8xbf16, #tpu.memory_space<vmem>>) attributes {dimension_semantics = [#tpu.dimension_semantics<parallel>, #tpu.dimension_semantics<parallel>], iteration_bounds = array<i64: 2, 1>, scalar_prefetch = 0 : i64, scratch_operands = 1 : i64, tpu.core_type = #tpu.core_type<tc>, window_params = [{transform_indices = @transform_0, window_bounds = array<i64: 1, 8, 8, 8>}, {transform_indices = @transform_1, window_bounds = array<i64: 72, 16>}, {transform_indices = @transform_2, window_bounds = array<i64: 1, 16>}, {transform_indices = @transform_3, window_bounds = array<i64: 1, 4, 4, 16>}]} {
    %cst = arith.constant 0.000000e+00 : bf16
    %0 = vector.broadcast %cst : bf16 to vector<10x10x8xbf16>
    %c0 = arith.constant 0 : index
    %c0_0 = arith.constant 0 : index
    %c0_1 = arith.constant 0 : index
    %1 = vector.load %arg6[%c0, %c0_0, %c0_1] : memref<10x10x8xbf16, #tpu.memory_space<vmem>>, vector<10x10x8xbf16>
    tpu.vector_store %arg6[%c0, %c0_0, %c0_1], %0 {strides = array<i32>} : memref<10x10x8xbf16, #tpu.memory_space<vmem>>, vector<10x10x8xbf16>,
    %c0_2 = arith.constant 0 : index
    %c0_3 = arith.constant 0 : index
    %c0_4 = arith.constant 0 : index
    %c0_5 = arith.constant 0 : index
    %2 = vector.load %arg2[%c0_2, %c0_3, %c0_4, %c0_5] : memref<1x8x8x8xbf16, #tpu.memory_space<vmem>>, vector<1x8x8x8xbf16>
    %3 = vector.shape_cast %2 : vector<1x8x8x8xbf16> to vector<8x8x8xbf16>
    %c1 = arith.constant 1 : index
    %c1_6 = arith.constant 1 : index
    %c0_7 = arith.constant 0 : index
    %4 = vector.load %arg6[%c1, %c1_6, %c0_7] : memref<10x10x8xbf16, #tpu.memory_space<vmem>>, vector<8x8x8xbf16>
    tpu.vector_store %arg6[%c1, %c1_6, %c0_7], %3 {strides = array<i32>} : memref<10x10x8xbf16, #tpu.memory_space<vmem>>, vector<8x8x8xbf16>,
    %c0_8 = arith.constant 0 : index
    %c0_9 = arith.constant 0 : index
    %c0_10 = arith.constant 0 : index
    %5 = vector.load %arg6[%c0_8, %c0_9, %c0_10] : memref<10x10x8xbf16, #tpu.memory_space<vmem>>, vector<8x8x8xbf16>
    %c0_11 = arith.constant 0 : index
    %c1_12 = arith.constant 1 : index
    %c0_13 = arith.constant 0 : index
    %6 = vector.load %arg6[%c0_11, %c1_12, %c0_13] : memref<10x10x8xbf16, #tpu.memory_space<vmem>>, vector<8x8x8xbf16>
    %c0_14 = arith.constant 0 : index
    %c2 = arith.constant 2 : index
    %c0_15 = arith.constant 0 : index
    %7 = vector.load %arg6[%c0_14, %c2, %c0_15] : memref<10x10x8xbf16, #tpu.memory_space<vmem>>, vector<8x8x8xbf16>
    %c1_16 = arith.constant 1 : index
    %c0_17 = arith.constant 0 : index
    %c0_18 = arith.constant 0 : index
    %8 = vector.load %arg6[%c1_16, %c0_17, %c0_18] : memref<10x10x8xbf16, #tpu.memory_space<vmem>>, vector<8x8x8xbf16>
    %c1_19 = arith.constant 1 : index
    %c1_20 = arith.constant 1 : index
    %c0_21 = arith.constant 0 : index
    %9 = vector.load %arg6[%c1_19, %c1_20, %c0_21] : memref<10x10x8xbf16, #tpu.memory_space<vmem>>, vector<8x8x8xbf16>
    %c1_22 = arith.constant 1 : index
    %c2_23 = arith.constant 2 : index
    %c0_24 = arith.constant 0 : index
    %10 = vector.load %arg6[%c1_22, %c2_23, %c0_24] : memref<10x10x8xbf16, #tpu.memory_space<vmem>>, vector<8x8x8xbf16>
    %c2_25 = arith.constant 2 : index
    %c0_26 = arith.constant 0 : index
    %c0_27 = arith.constant 0 : index
    %11 = vector.load %arg6[%c2_25, %c0_26, %c0_27] : memref<10x10x8xbf16, #tpu.memory_space<vmem>>, vector<8x8x8xbf16>
    %c2_28 = arith.constant 2 : index
    %c1_29 = arith.constant 1 : index
    %c0_30 = arith.constant 0 : index
    %12 = vector.load %arg6[%c2_28, %c1_29, %c0_30] : memref<10x10x8xbf16, #tpu.memory_space<vmem>>, vector<8x8x8xbf16>
    %c2_31 = arith.constant 2 : index
    %c2_32 = arith.constant 2 : index
    %c0_33 = arith.constant 0 : index
    %13 = vector.load %arg6[%c2_31, %c2_32, %c0_33] : memref<10x10x8xbf16, #tpu.memory_space<vmem>>, vector<8x8x8xbf16>
    %14 = tpu.concatenate %5, %6, %7, %8, %9, %10, %11, %12, %13 in 2 : vector<8x8x8xbf16>, vector<8x8x8xbf16>, vector<8x8x8xbf16>, vector<8x8x8xbf16>, vector<8x8x8xbf16>, vector<8x8x8xbf16>, vector<8x8x8xbf16>, vector<8x8x8xbf16>, vector<8x8x8xbf16> -> vector<8x8x72xbf16>
    %15 = vector.shape_cast %14 : vector<8x8x72xbf16> to vector<64x72xbf16>
    %c0_34 = arith.constant 0 : index
    %c0_35 = arith.constant 0 : index
    %16 = vector.load %arg3[%c0_34, %c0_35] : memref<72x16xbf16, #tpu.memory_space<vmem>>, vector<72x16xbf16>
    %cst_36 = arith.constant dense<0.000000e+00> : vector<64x16xf32>
    %17 = tpu.matmul %15, %16, %cst_36 {dimension_numbers = #tpu.dot_dimension_numbers<[1], [0], [0], [1], [0, 0, 1, 1], [], []>} : vector<64x72xbf16>, vector<72x16xbf16>, vector<64x16xf32> -> vector<64x16xf32>
    %c0_37 = arith.constant 0 : index
    %c0_38 = arith.constant 0 : index
    %18 = vector.load %arg4[%c0_37, %c0_38] : memref<1x16xf32, #tpu.memory_space<vmem>>, vector<1x16xf32>
    %19 = vector.broadcast %18 : vector<1x16xf32> to vector<64x16xf32>
    %20 = arith.addf %17, %19 : vector<64x16xf32>
    %cst_39 = arith.constant 0.000000e+00 : f32
    %21 = vector.broadcast %cst_39 : f32 to vector<64x16xf32>
    %22 = arith.maximumf %20, %21 : vector<64x16xf32>
    %23 = vector.shape_cast %22 : vector<64x16xf32> to vector<8x8x16xf32>
    %24 = vector.shape_cast %23 : vector<8x8x16xf32> to vector<4x2x8x16xf32>
    %25 = vector.extract_strided_slice %24 {offsets = [0, 0, 0, 0], sizes = [4, 1, 8, 16], strides = [1, 1, 1, 1]} : vector<4x2x8x16xf32> to vector<4x1x8x16xf32>
    %26 = vector.shape_cast %25 : vector<4x1x8x16xf32> to vector<4x8x16xf32>
    %27 = vector.extract_strided_slice %24 {offsets = [0, 1, 0, 0], sizes = [4, 1, 8, 16], strides = [1, 1, 1, 1]} : vector<4x2x8x16xf32> to vector<4x1x8x16xf32>
    %28 = vector.shape_cast %27 : vector<4x1x8x16xf32> to vector<4x8x16xf32>
    %29 = arith.maximumf %26, %28 : vector<4x8x16xf32>
    %cst_40 = arith.constant 0.000000e+00 : f32
    %30 = vector.broadcast %cst_40 : f32 to vector<1x8x16xf32>
    %31 = vector.extract_strided_slice %24 {offsets = [0, 1, 0, 0], sizes = [3, 1, 8, 16], strides = [1, 1, 1, 1]} : vector<4x2x8x16xf32> to vector<3x1x8x16xf32>
    %32 = vector.shape_cast %31 : vector<3x1x8x16xf32> to vector<3x8x16xf32>
    %33 = tpu.concatenate %30, %32 in 0 : vector<1x8x16xf32>, vector<3x8x16xf32> -> vector<4x8x16xf32>
    %34 = arith.maximumf %29, %33 : vector<4x8x16xf32>
    %35 = vector.shape_cast %34 : vector<4x8x16xf32> to vector<4x4x2x16xf32>
    %36 = vector.extract_strided_slice %35 {offsets = [0, 0, 0, 0], sizes = [4, 4, 1, 16], strides = [1, 1, 1, 1]} : vector<4x4x2x16xf32> to vector<4x4x1x16xf32>
    %37 = vector.shape_cast %36 : vector<4x4x1x16xf32> to vector<4x4x16xf32>
    %38 = vector.extract_strided_slice %35 {offsets = [0, 0, 1, 0], sizes = [4, 4, 1, 16], strides = [1, 1, 1, 1]} : vector<4x4x2x16xf32> to vector<4x4x1x16xf32>
    %39 = vector.shape_cast %38 : vector<4x4x1x16xf32> to vector<4x4x16xf32>
    %40 = arith.maximumf %37, %39 : vector<4x4x16xf32>
    %cst_41 = arith.constant 0.000000e+00 : f32
    %41 = vector.broadcast %cst_41 : f32 to vector<4x1x16xf32>
    %42 = vector.extract_strided_slice %35 {offsets = [0, 0, 1, 0], sizes = [4, 3, 1, 16], strides = [1, 1, 1, 1]} : vector<4x4x2x16xf32> to vector<4x3x1x16xf32>
    %43 = vector.shape_cast %42 : vector<4x3x1x16xf32> to vector<4x3x16xf32>
    %44 = tpu.concatenate %41, %43 in 1 : vector<4x1x16xf32>, vector<4x3x16xf32> -> vector<4x4x16xf32>
    %45 = arith.maximumf %40, %44 : vector<4x4x16xf32>
    %46 = vector.shape_cast %45 : vector<4x4x16xf32> to vector<1x4x4x16xf32>
    %47 = arith.truncf %46 : vector<1x4x4x16xf32> to vector<1x4x4x16xbf16>
    %c0_42 = arith.constant 0 : index
    %c0_43 = arith.constant 0 : index
    %c0_44 = arith.constant 0 : index
    %c0_45 = arith.constant 0 : index
    %48 = vector.load %arg5[%c0_42, %c0_43, %c0_44, %c0_45] : memref<1x4x4x16xbf16, #tpu.memory_space<vmem>>, vector<1x4x4x16xbf16>
    tpu.vector_store %arg5[%c0_42, %c0_43, %c0_44, %c0_45], %47 {strides = array<i32>} : memref<1x4x4x16xbf16, #tpu.memory_space<vmem>>, vector<1x4x4x16xbf16>,
    return
  }
  func.func @transform_0(%arg0: i32, %arg1: i32) -> (i32, i32, i32, i32) {
    %c0_i32 = arith.constant 0 : i32
    %c0_i32_0 = arith.constant 0 : i32
    %c0_i32_1 = arith.constant 0 : i32
    %c0_i32_2 = arith.constant 0 : i32
    return %arg0, %c0_i32, %c0_i32_0, %c0_i32_1 : i32, i32, i32, i32
  }
  func.func @transform_1(%arg0: i32, %arg1: i32) -> (i32, i32) {
    %c0_i32 = arith.constant 0 : i32
    %c0_i32_0 = arith.constant 0 : i32
    return %c0_i32, %arg1 : i32, i32
  }
  func.func @transform_2(%arg0: i32, %arg1: i32) -> (i32, i32) {
    %c0_i32 = arith.constant 0 : i32
    %c0_i32_0 = arith.constant 0 : i32
    return %c0_i32, %arg1 : i32, i32
  }
  func.func @transform_3(%arg0: i32, %arg1: i32) -> (i32, i32, i32, i32) {
    %c0_i32 = arith.constant 0 : i32
    %c0_i32_0 = arith.constant 0 : i32
    %c0_i32_1 = arith.constant 0 : i32
    return %arg0, %c0_i32, %c0_i32_0, %arg1 : i32, i32, i32, i32
  }
}

</mosaic_0001>

<llo_original>
// kernel: vgg_base_forward.5
$region0: #{vgg_base_forward.5}
  #allocation0 [shape = 'u32[]', space=smem, size = 0x4, offset = 0x4, fixed_abs, tag = 'smem constant byte address 0x4 - core index']
  #allocation1 [shape = 'u32[144,128]{1,0:T(1,128)}', space=vmem, size = 0x12000, scoped, tag = 'internal scratch']
  #allocation2 [shape = 'bf16[10,10,8]{2,1,0:T(8,128)(2,1)}', space=vmem, size = 0xa000, scoped, tag = 'scratch operand']
  %s0 = inlined_call_operand.vmem [shape: bf16[2,8,8,8], index: 0, kind: input, shape index: {}]
  %s1 = inlined_call_operand.vmem [shape: bf16[72,16], index: 1, kind: input, shape index: {}]
  %s2 = inlined_call_operand.vmem [shape: f32[1,16], index: 2, kind: input, shape index: {}]
  %s3 = inlined_call_operand.hbm [shape: bf16[2,4,4,16], index: 3, kind: output, shape index: {}]
  %s4 = sld [smem:[#allocation0]]
  $region45: #{vgg_base_forward.5} parent=0
    _
  %s6 = ssub.s32 1, %s4
  %s7 = scalar_select 0, %s6, %s4
  $region1: #{vgg_base_forward.5} parent=0
    #allocation3 [shape = 'u8[8192]{0}', space=vmem, size = 0x2000, scoped, tag = 'output window, operand 0']
    #allocation4 [shape = 's32[2]{0}', space=sflag, size = 0x8, scoped, tag = 'scoped memory for vgg_base_forward.5']
    %8 = vsyncpa [#allocation4], 0
    %s9 = scalar_lea.sflag [#allocation4], 1
    %10 = vsyncpa %s9, 0
    loop: start=0, step=1, limit=4
    $region2: #{vgg_base_forward.5} parent=1 // loop_pre_header
      _
    $region3: #{vgg_base_forward.5} parent=1 // loop_header
      %s12 = sphi 0, %s16
      %p13 = scmp.ge.s32.totalorder %s12, 4
      %s19 = sphi 0, %s31
      %s20 = sphi 0, %s27
      %s21 = sphi 0, %s19
      %s22 = sphi 0, %s20
      %s23 = sphi 0, %s21
      %s24 = sphi 0, %s22
      %s34 = sphi 0, %s36
      %s37 = sphi 0, %s34
      %s38 = sphi 0, %s37
      %s54 = sphi 0, %s38
      %s60 = sphi 0, %s62
      %s63 = sphi 0, %s60
      %s64 = sphi 0, %s63
      %s80 = sphi 0, %s64
      %s86 = sphi 0, %s88
      %s89 = sphi 0, %s86
      %s90 = sphi 0, %s89
      %s106 = sphi 0, %s90
      %s114 = sphi 0, %s116
      %s117 = sphi 0, %s114
      %s118 = sphi 0, %s117
      %s134 = sphi 0, %s118
    $region4: #{vgg_base_forward.5} parent=1 // loop_header_branch
      %15 = sbr.rel (%p13) target = $region8
    $region5: #{vgg_base_forward.5} parent=1 // loop_body
      %s17 = ssub.s32 %s12, 1
      %s18 = ssub.s32 %s12, 2
      %s25 = sadd.s32 1, %s20
      %p26 = scmp.ge.s32.totalorder %s25, 1
      %s27 = scalar_select %p26, 0, %s25
      %s28 = sadd.s32 1, %s19
      %s29 = scalar_select %p26, %s28, %s19
      %p30 = scmp.ge.s32.totalorder %s29, 2
      %s31 = scalar_select %p30, 0, %s29
      %s32 = ssub.s32 %s19, %s31
      %p33 = scmp.eq.s32.totalorder %s32, 0
      %s35 = sadd.s32 %s34, 1
      %s36 = scalar_select %p33, %s34, %s35
      %p39 = pneg %p33
      %p40 = scmp.eq.s32.totalorder %s12, 1
      %p41 = por %p39, %p40
      %p42 = scmp.ne.s32.totalorder %s34, %s37
      %p43 = scmp.eq.s32.totalorder %s12, 0
      %p44 = por %p42, %p43
      %p45 = scmp.ne.s32.totalorder %s34, %s37
      %p46 = scmp.eq.s32.totalorder %s17, 1
      %p47 = por %p45, %p46
      %p48 = scmp.ne.s32.totalorder %s37, %s38
      %p49 = scmp.eq.s32.totalorder %s17, 0
      %p50 = por %p48, %p49
      %p51 = scmp.ne.s32.totalorder %s37, %s38
      %p52 = scmp.eq.s32.totalorder %s18, 1
      %p53 = por %p51, %p52
      %p55 = scmp.ne.s32.totalorder %s38, %s54
      %p56 = scmp.eq.s32.totalorder %s18, 0
      %p57 = por %p55, %p56
      %s58 = ssub.s32 %s20, %s27
      %p59 = scmp.eq.s32.totalorder %s58, 0
      %s61 = sadd.s32 %s60, 1
      %s62 = scalar_select %p59, %s60, %s61
      %p65 = pneg %p59
      %p66 = scmp.eq.s32.totalorder %s12, 1
      %p67 = por %p65, %p66
      %p68 = scmp.ne.s32.totalorder %s60, %s63
      %p69 = scmp.eq.s32.totalorder %s12, 0
      %p70 = por %p68, %p69
      %p71 = scmp.ne.s32.totalorder %s60, %s63
      %p72 = scmp.eq.s32.totalorder %s17, 1
      %p73 = por %p71, %p72
      %p74 = scmp.ne.s32.totalorder %s63, %s64
      %p75 = scmp.eq.s32.totalorder %s17, 0
      %p76 = por %p74, %p75
      %p77 = scmp.ne.s32.totalorder %s63, %s64
      %p78 = scmp.eq.s32.totalorder %s18, 1
      %p79 = por %p77, %p78
      %p81 = scmp.ne.s32.totalorder %s64, %s80
      %p82 = scmp.eq.s32.totalorder %s18, 0
      %p83 = por %p81, %p82
      %s84 = ssub.s32 %s20, %s27
      %p85 = scmp.eq.s32.totalorder %s84, 0
      %s87 = sadd.s32 %s86, 1
      %s88 = scalar_select %p85, %s86, %s87
      %p91 = pneg %p85
      %p92 = scmp.eq.s32.totalorder %s12, 1
      %p93 = por %p91, %p92
      %p94 = scmp.ne.s32.totalorder %s86, %s89
      %p95 = scmp.eq.s32.totalorder %s12, 0
      %p96 = por %p94, %p95
      %p97 = scmp.ne.s32.totalorder %s86, %s89
      %p98 = scmp.eq.s32.totalorder %s17, 1
      %p99 = por %p97, %p98
      %p100 = scmp.ne.s32.totalorder %s89, %s90
      %p101 = scmp.eq.s32.totalorder %s17, 0
      %p102 = por %p100, %p101
      %p103 = scmp.ne.s32.totalorder %s89, %s90
      %p104 = scmp.eq.s32.totalorder %s18, 1
      %p105 = por %p103, %p104
      %p107 = scmp.ne.s32.totalorder %s90, %s106
      %p108 = scmp.eq.s32.totalorder %s18, 0
      %p109 = por %p107, %p108
      %s110 = ssub.s32 %s19, %s31
      %s111 = ssub.s32 %s20, %s27
      %s112 = sor.u32 %s110, %s111
      %p113 = scmp.eq.s32.totalorder %s112, 0
      %s115 = sadd.s32 %s114, 1
      %s116 = scalar_select %p113, %s114, %s115
      %p119 = pneg %p113
      %p120 = scmp.eq.s32.totalorder %s12, 1
      %p121 = por %p119, %p120
      %p122 = scmp.ne.s32.totalorder %s114, %s117
      %p123 = scmp.eq.s32.totalorder %s12, 0
      %p124 = por %p122, %p123
      %p125 = scmp.ne.s32.totalorder %s114, %s117
      %p126 = scmp.eq.s32.totalorder %s17, 1
      %p127 = por %p125, %p126
      %p128 = scmp.ne.s32.totalorder %s117, %s118
      %p129 = scmp.eq.s32.totalorder %s17, 0
      %p130 = por %p128, %p129
      %p131 = scmp.ne.s32.totalorder %s117, %s118
      %p132 = scmp.eq.s32.totalorder %s18, 1
      %p133 = por %p131, %p132
      %p135 = scmp.ne.s32.totalorder %s118, %s134
      %p136 = scmp.eq.s32.totalorder %s18, 0
      %p137 = por %p135, %p136
      %p138 = scmp.le.s32.totalorder 1, %s12
      %p139 = scmp.lt.s32.totalorder %s12, 3
      %p140 = pnand %p138, %p139
      %p141 = pneg %p140
      // Predicated region
      $region9: #{vgg_base_forward.5} parent=5 // pred_check
        _
      $region10: #{vgg_base_forward.5} parent=5 // pred_check_branch
        %143 = sbr.rel (%p140) target = $region12
      $region11: #{vgg_base_forward.5} parent=5 // pred_region
        %s144 = ssub.s32 %s12, 1
        // Predicated region
        $region13: #{vgg_base_forward.5} parent=11 // pred_check
          %p145 = pneg %p76
        $region14: #{vgg_base_forward.5} parent=11 // pred_check_branch
          %147 = sbr.rel (%p145) target = $region16
        $region15: #{vgg_base_forward.5} parent=11 // pred_region
          %p148 = scmp.lt.s32.totalorder %s22, 0
          %s149 = scalar_select %p148, %s22, 0
          %s150 = smul.addr %s149, 4
          %s151 = scalar_lea.vmem %s1, %s150
        $region16: #{vgg_base_forward.5} parent=11 // pred_fallthru
          _
        // Predicated region
        $region17: #{vgg_base_forward.5} parent=11 // pred_check
          %p152 = pneg %p102
        $region18: #{vgg_base_forward.5} parent=11 // pred_check_branch
          %154 = sbr.rel (%p152) target = $region20
        $region19: #{vgg_base_forward.5} parent=11 // pred_region
          %p155 = scmp.lt.s32.totalorder %s22, 0
          %s156 = scalar_select %p155, %s22, 0
          %s157 = scalar_lea.vmem %s2, %s156
        $region20: #{vgg_base_forward.5} parent=11 // pred_fallthru
          _
      $region12: #{vgg_base_forward.5} parent=5 // pred_fallthru
        _
      %p158 = scmp.lt.s32.totalorder %s12, 2
      // Predicated region
      $region21: #{vgg_base_forward.5} parent=5 // pred_check
        %p159 = pneg %p158
      $region22: #{vgg_base_forward.5} parent=5 // pred_check_branch
        %161 = sbr.rel (%p159) target = $region24
      $region23: #{vgg_base_forward.5} parent=5 // pred_region
        // Predicated region
        $region25: #{vgg_base_forward.5} parent=23 // pred_check
          %p162 = pneg %p44
        $region26: #{vgg_base_forward.5} parent=23 // pred_check_branch
          %164 = sbr.rel (%p162) target = $region28
        $region27: #{vgg_base_forward.5} parent=23 // pred_region
          %p165 = scmp.lt.s32.totalorder %s19, 1
          %s166 = scalar_select %p165, %s19, 1
          %s167 = smul.addr %s166, 8
          %s168 = smul.addr %s167, 4
          %s169 = scalar_lea.vmem %s0, %s168
        $region28: #{vgg_base_forward.5} parent=23 // pred_fallthru
          _
      $region24: #{vgg_base_forward.5} parent=5 // pred_fallthru
        _
      %p170 = scmp.le.s32.totalorder 1, %s12
      %p171 = scmp.lt.s32.totalorder %s12, 3
      %p172 = pnand %p170, %p171
      %p173 = pneg %p172
      // Predicated region
      $region29: #{vgg_base_forward.5} parent=5 // pred_check
        _
      $region30: #{vgg_base_forward.5} parent=5 // pred_check_branch
        %175 = sbr.rel (%p172) target = $region32
      $region31: #{vgg_base_forward.5} parent=5 // pred_region
        %s176 = ssub.s32 %s12, 1
        %p177 = scmp.lt.s32.totalorder %s21, 1
        %s178 = scalar_select %p177, %s21, 1
        %s179 = smul.addr %s178, 8
        %s180 = smul.addr %s179, 4
        %s181 = scalar_lea.vmem %s0, %s180
        %p182 = pneg %p50
        %p183 = pneg %p47
        %p184 = scmp.lt.s32.totalorder %s22, 0
        %s185 = scalar_select %p184, %s22, 0
        %s186 = smul.addr %s185, 4
        %s187 = scalar_lea.vmem %s1, %s186
        %p188 = pneg %p76
        %p189 = pneg %p73
        %p190 = scmp.lt.s32.totalorder %s22, 0
        %s191 = scalar_select %p190, %s22, 0
        %s192 = scalar_lea.vmem %s2, %s191
        %p193 = pneg %p102
        %p194 = pneg %p99
        %p195 = pneg %p130
        %p196 = pneg %p127
        %s197 = sand.u32 %s117, 1
        %s198 = scalar_lea.sflag [#allocation4], %s197
        %s199 = sand.u32 %s117, 1
        %s200 = smul.addr %s199, 8
        %s201 = scalar_lea.vmem [#allocation3], %s200
        %p202 = scmp.lt.s32.totalorder %s21, 1
        %s203 = scalar_select %p202, %s21, 1
        %s204 = smul.addr %s203, 8
        %s205 = smul.addr %s204, 4
        %s206 = scalar_lea.vmem %s0, %s205
        %p207 = scmp.lt.s32.totalorder %s22, 0
        %s208 = scalar_select %p207, %s22, 0
        %s209 = smul.addr %s208, 4
        %s210 = scalar_lea.vmem %s1, %s209
        %p211 = scmp.lt.s32.totalorder %s22, 0
        %s212 = scalar_select %p211, %s22, 0
        %s213 = scalar_lea.vmem %s2, %s212
        %vm215 = vcmask 60416
        %216 = vst.msk [vmem:[#allocation2] sm:$0xf] %vm215, 0
        %vm217 = vcmask 57344
        %218 = vst.msk [vmem:[#allocation2 + $0x4] sm:$0x1] %vm217, 0
        %219 = vst.msk [vmem:[#allocation2 + $0x8] sm:$0xf] %vm215, 0
        %220 = vst.msk [vmem:[#allocation2 + $0xc] sm:$0x1] %vm217, 0
        %221 = vst.msk [vmem:[#allocation2 + $0x10] sm:$0xf] %vm215, 0
        %222 = vst.msk [vmem:[#allocation2 + $0x14] sm:$0x1] %vm217, 0
        %223 = vst.msk [vmem:[#allocation2 + $0x18] sm:$0xf] %vm215, 0
        %224 = vst.msk [vmem:[#allocation2 + $0x1c] sm:$0x1] %vm217, 0
        %225 = vst.msk [vmem:[#allocation2 + $0x20] sm:$0xf] %vm215, 0
        %226 = vst.msk [vmem:[#allocation2 + $0x24] sm:$0x1] %vm217, 0
        %227 = vst.msk [vmem:[#allocation2 + $0x28] sm:$0xf] %vm215, 0
        %228 = vst.msk [vmem:[#allocation2 + $0x2c] sm:$0x1] %vm217, 0
        %229 = vst.msk [vmem:[#allocation2 + $0x30] sm:$0xf] %vm215, 0
        %230 = vst.msk [vmem:[#allocation2 + $0x34] sm:$0x1] %vm217, 0
        %231 = vst.msk [vmem:[#allocation2 + $0x38] sm:$0xf] %vm215, 0
        %232 = vst.msk [vmem:[#allocation2 + $0x3c] sm:$0x1] %vm217, 0
        %233 = vst.msk [vmem:[#allocation2 + $0x40] sm:$0xf] %vm215, 0
        %234 = vst.msk [vmem:[#allocation2 + $0x44] sm:$0x1] %vm217, 0
        %235 = vst.msk [vmem:[#allocation2 + $0x48] sm:$0xf] %vm215, 0
        %236 = vst.msk [vmem:[#allocation2 + $0x4c] sm:$0x1] %vm217, 0
        %v237 = vld [vmem:[%s206] sm:$0xf]
        %v238 = vld [vmem:[%s206 + $0x4] sm:$0xf]
        %v239 = vld [vmem:[%s206 + $0x8] sm:$0xf]
        %v240 = vld [vmem:[%s206 + $0xc] sm:$0xf]
        %v241 = vld [vmem:[%s206 + $0x10] sm:$0xf]
        %v242 = vld [vmem:[%s206 + $0x14] sm:$0xf]
        %v243 = vld [vmem:[%s206 + $0x18] sm:$0xf]
        %v244 = vld [vmem:[%s206 + $0x1c] sm:$0xf]
        %v246 = vshrl.u32 %v237, 16
        %v248 = vrot.slane %v246, 7
        %v249 = vshll.u32 %v237, 16
        %v251 = vor.u32 %v248, %v249
        %v252 = vrot.slane %v248, 4
        %v254 = vshrl.u32 %v238, 16
        %v256 = vrot.slane %v254, 7
        %v257 = vshll.u32 %v238, 16
        %v259 = vor.u32 %v256, %v257
        %v260 = vrot.slane %v256, 4
        %v262 = vshrl.u32 %v239, 16
        %v264 = vrot.slane %v262, 7
        %v265 = vshll.u32 %v239, 16
        %v267 = vor.u32 %v264, %v265
        %v268 = vrot.slane %v264, 4
        %v270 = vshrl.u32 %v240, 16
        %v272 = vrot.slane %v270, 7
        %v273 = vshll.u32 %v240, 16
        %v275 = vor.u32 %v272, %v273
        %v276 = vrot.slane %v272, 4
        %v278 = vshrl.u32 %v241, 16
        %v280 = vrot.slane %v278, 7
        %v281 = vshll.u32 %v241, 16
        %v283 = vor.u32 %v280, %v281
        %v284 = vrot.slane %v280, 4
        %v286 = vshrl.u32 %v242, 16
        %v288 = vrot.slane %v286, 7
        %v289 = vshll.u32 %v242, 16
        %v291 = vor.u32 %v288, %v289
        %v292 = vrot.slane %v288, 4
        %v294 = vshrl.u32 %v243, 16
        %v296 = vrot.slane %v294, 7
        %v297 = vshll.u32 %v243, 16
        %v299 = vor.u32 %v296, %v297
        %v300 = vrot.slane %v296, 4
        %v302 = vshrl.u32 %v244, 16
        %v304 = vrot.slane %v302, 7
        %v305 = vshll.u32 %v244, 16
        %v307 = vor.u32 %v304, %v305
        %v308 = vrot.slane %v304, 4
        %s325 = scalar_lea.vmem [#allocation2], 8
        %vm326 = vcmask 60416
        %vm327 = vsmask.f32 7938
        %vm328 = vmand %vm326, %vm327
        %v329 = vld [vmem:[%s325] sm:$0xf]
        %v330 = vsel %vm328, %v251, %v329
        %331 = vst [vmem:[%s325] sm:$0xf] %v330
        %vm332 = vcmask 57344
        %vm333 = vsmask.f32 256
        %vm334 = vmand %vm332, %vm333
        %v335 = vld [vmem:[%s325 + $0x4] sm:$0x1]
        %v336 = vsel %vm334, %v252, %v335
        %337 = vst [vmem:[%s325 + $0x4] sm:$0x1] %v336
        %v338 = vld [vmem:[%s325 + $0x8] sm:$0xf]
        %v339 = vsel %vm328, %v259, %v338
        %340 = vst [vmem:[%s325 + $0x8] sm:$0xf] %v339
        %v341 = vld [vmem:[%s325 + $0xc] sm:$0x1]
        %v342 = vsel %vm334, %v260, %v341
        %343 = vst [vmem:[%s325 + $0xc] sm:$0x1] %v342
        %v344 = vld [vmem:[%s325 + $0x10] sm:$0xf]
        %v345 = vsel %vm328, %v267, %v344
        %346 = vst [vmem:[%s325 + $0x10] sm:$0xf] %v345
        %v347 = vld [vmem:[%s325 + $0x14] sm:$0x1]
        %v348 = vsel %vm334, %v268, %v347
        %349 = vst [vmem:[%s325 + $0x14] sm:$0x1] %v348
        %v350 = vld [vmem:[%s325 + $0x18] sm:$0xf]
        %v351 = vsel %vm328, %v275, %v350
        %352 = vst [vmem:[%s325 + $0x18] sm:$0xf] %v351
        %v353 = vld [vmem:[%s325 + $0x1c] sm:$0x1]
        %v354 = vsel %vm334, %v276, %v353
        %355 = vst [vmem:[%s325 + $0x1c] sm:$0x1] %v354
        %v356 = vld [vmem:[%s325 + $0x20] sm:$0xf]
        %v357 = vsel %vm328, %v283, %v356
        %358 = vst [vmem:[%s325 + $0x20] sm:$0xf] %v357
        %v359 = vld [vmem:[%s325 + $0x24] sm:$0x1]
        %v360 = vsel %vm334, %v284, %v359
        %361 = vst [vmem:[%s325 + $0x24] sm:$0x1] %v360
        %v362 = vld [vmem:[%s325 + $0x28] sm:$0xf]
        %v363 = vsel %vm328, %v291, %v362
        %364 = vst [vmem:[%s325 + $0x28] sm:$0xf] %v363
        %v365 = vld [vmem:[%s325 + $0x2c] sm:$0x1]
        %v366 = vsel %vm334, %v292, %v365
        %367 = vst [vmem:[%s325 + $0x2c] sm:$0x1] %v366
        %v368 = vld [vmem:[%s325 + $0x30] sm:$0xf]
        %v369 = vsel %vm328, %v299, %v368
        %370 = vst [vmem:[%s325 + $0x30] sm:$0xf] %v369
        %v371 = vld [vmem:[%s325 + $0x34] sm:$0x1]
        %v372 = vsel %vm334, %v300, %v371
        %373 = vst [vmem:[%s325 + $0x34] sm:$0x1] %v372
        %v374 = vld [vmem:[%s325 + $0x38] sm:$0xf]
        %v375 = vsel %vm328, %v307, %v374
        %376 = vst [vmem:[%s325 + $0x38] sm:$0xf] %v375
        %v377 = vld [vmem:[%s325 + $0x3c] sm:$0x1]
        %v378 = vsel %vm334, %v308, %v377
        %379 = vst [vmem:[%s325 + $0x3c] sm:$0x1] %v378
        %v380 = vld [vmem:[#allocation2] sm:$0xf]
        %v381 = vld [vmem:[#allocation2 + $0x8] sm:$0xf]
        %v382 = vld [vmem:[#allocation2 + $0x10] sm:$0xf]
        %v383 = vld [vmem:[#allocation2 + $0x18] sm:$0xf]
        %v384 = vld [vmem:[#allocation2 + $0x20] sm:$0xf]
        %v385 = vld [vmem:[#allocation2 + $0x28] sm:$0xf]
        %v386 = vld [vmem:[#allocation2 + $0x30] sm:$0xf]
        %v387 = vld [vmem:[#allocation2 + $0x38] sm:$0xf]
        %v388 = vld [vmem:[#allocation2 + $0x4] sm:$0x1]
        %v389 = vld [vmem:[#allocation2 + $0xc] sm:$0x1]
        %v390 = vld [vmem:[#allocation2 + $0x14] sm:$0x1]
        %v391 = vld [vmem:[#allocation2 + $0x1c] sm:$0x1]
        %v392 = vld [vmem:[#allocation2 + $0x24] sm:$0x1]
        %v393 = vld [vmem:[#allocation2 + $0x2c] sm:$0x1]
        %v394 = vld [vmem:[#allocation2 + $0x34] sm:$0x1]
        %v395 = vld [vmem:[#allocation2 + $0x3c] sm:$0x1]
        %v396 = vld [vmem:[#allocation2] sm:$0xe]
        %v397 = vld [vmem:[#allocation2 + $0x8] sm:$0xe]
        %v398 = vld [vmem:[#allocation2 + $0x10] sm:$0xe]
        %v399 = vld [vmem:[#allocation2 + $0x18] sm:$0xe]
        %v400 = vld [vmem:[#allocation2 + $0x20] sm:$0xe]
        %v401 = vld [vmem:[#allocation2 + $0x28] sm:$0xe]
        %v402 = vld [vmem:[#allocation2 + $0x30] sm:$0xe]
        %v403 = vld [vmem:[#allocation2 + $0x38] sm:$0xe]
        %v404 = vld [vmem:[%s325] sm:$0xf]
        %v405 = vld [vmem:[%s325 + $0x8] sm:$0xf]
        %v406 = vld [vmem:[%s325 + $0x10] sm:$0xf]
        %v407 = vld [vmem:[%s325 + $0x18] sm:$0xf]
        %v408 = vld [vmem:[%s325 + $0x20] sm:$0xf]
        %v409 = vld [vmem:[%s325 + $0x28] sm:$0xf]
        %v410 = vld [vmem:[%s325 + $0x30] sm:$0xf]
        %v411 = vld [vmem:[%s325 + $0x38] sm:$0xf]
        %v412 = vld [vmem:[%s325 + $0x4] sm:$0x1]
        %v413 = vld [vmem:[%s325 + $0xc] sm:$0x1]
        %v414 = vld [vmem:[%s325 + $0x14] sm:$0x1]
        %v415 = vld [vmem:[%s325 + $0x1c] sm:$0x1]
        %v416 = vld [vmem:[%s325 + $0x24] sm:$0x1]
        %v417 = vld [vmem:[%s325 + $0x2c] sm:$0x1]
        %v418 = vld [vmem:[%s325 + $0x34] sm:$0x1]
        %v419 = vld [vmem:[%s325 + $0x3c] sm:$0x1]
        %v420 = vld [vmem:[%s325] sm:$0xe]
        %v421 = vld [vmem:[%s325 + $0x8] sm:$0xe]
        %v422 = vld [vmem:[%s325 + $0x10] sm:$0xe]
        %v423 = vld [vmem:[%s325 + $0x18] sm:$0xe]
        %v424 = vld [vmem:[%s325 + $0x20] sm:$0xe]
        %v425 = vld [vmem:[%s325 + $0x28] sm:$0xe]
        %v426 = vld [vmem:[%s325 + $0x30] sm:$0xe]
        %v427 = vld [vmem:[%s325 + $0x38] sm:$0xe]
        %s428 = scalar_lea.vmem [#allocation2], 16
        %v429 = vld [vmem:[%s428] sm:$0xf]
        %v430 = vld [vmem:[%s428 + $0x8] sm:$0xf]
        %v431 = vld [vmem:[%s428 + $0x10] sm:$0xf]
        %v432 = vld [vmem:[%s428 + $0x18] sm:$0xf]
        %v433 = vld [vmem:[%s428 + $0x20] sm:$0xf]
        %v434 = vld [vmem:[%s428 + $0x28] sm:$0xf]
        %v435 = vld [vmem:[%s428 + $0x30] sm:$0xf]
        %v436 = vld [vmem:[%s428 + $0x38] sm:$0xf]
        %v437 = vld [vmem:[%s428 + $0x4] sm:$0x1]
        %v438 = vld [vmem:[%s428 + $0xc] sm:$0x1]
        %v439 = vld [vmem:[%s428 + $0x14] sm:$0x1]
        %v440 = vld [vmem:[%s428 + $0x1c] sm:$0x1]
        %v441 = vld [vmem:[%s428 + $0x24] sm:$0x1]
        %v442 = vld [vmem:[%s428 + $0x2c] sm:$0x1]
        %v443 = vld [vmem:[%s428 + $0x34] sm:$0x1]
        %v444 = vld [vmem:[%s428 + $0x3c] sm:$0x1]
        %v445 = vld [vmem:[%s428] sm:$0xe]
        %v446 = vld [vmem:[%s428 + $0x8] sm:$0xe]
        %v447 = vld [vmem:[%s428 + $0x10] sm:$0xe]
        %v448 = vld [vmem:[%s428 + $0x18] sm:$0xe]
        %v449 = vld [vmem:[%s428 + $0x20] sm:$0xe]
        %v450 = vld [vmem:[%s428 + $0x28] sm:$0xe]
        %v451 = vld [vmem:[%s428 + $0x30] sm:$0xe]
        %v452 = vld [vmem:[%s428 + $0x38] sm:$0xe]
        %v469 = vunpack.c.l.b16 %v380
        %v470 = vunpack.c.l.b16 %v388
        %v471 = vunpack.c.l.b16 %v381
        %v472 = vunpack.c.l.b16 %v389
        %v473 = vunpack.c.l.b16 %v382
        %v474 = vunpack.c.l.b16 %v390
        %v475 = vunpack.c.l.b16 %v383
        %v476 = vunpack.c.l.b16 %v391
        %v477 = vunpack.c.l.b16 %v384
        %v478 = vunpack.c.l.b16 %v392
        %v479 = vunpack.c.l.b16 %v385
        %v480 = vunpack.c.l.b16 %v393
        %v481 = vunpack.c.l.b16 %v386
        %v482 = vunpack.c.l.b16 %v394
        %v483 = vunpack.c.l.b16 %v387
        %v484 = vunpack.c.l.b16 %v395
        %v485 = vpack.c.b16 %v470, %v469
        %v486 = vpack.c.b16 %v472, %v471
        %v487 = vpack.c.b16 %v474, %v473
        %v488 = vpack.c.b16 %v476, %v475
        %v489 = vpack.c.b16 %v478, %v477
        %v490 = vpack.c.b16 %v480, %v479
        %v491 = vpack.c.b16 %v482, %v481
        %v492 = vpack.c.b16 %v484, %v483
        %v494 = vshrl.u32 %v485, 16
        %v496 = vshll.u32 %v485, 16
        %v498 = vrot.slane %v496, 1
        %v499 = vor.u32 %v494, %v498
        %v501 = vshrl.u32 %v486, 16
        %v503 = vshll.u32 %v486, 16
        %v505 = vrot.slane %v503, 1
        %v506 = vor.u32 %v501, %v505
        %v508 = vshrl.u32 %v487, 16
        %v510 = vshll.u32 %v487, 16
        %v512 = vrot.slane %v510, 1
        %v513 = vor.u32 %v508, %v512
        %v515 = vshrl.u32 %v488, 16
        %v517 = vshll.u32 %v488, 16
        %v519 = vrot.slane %v517, 1
        %v520 = vor.u32 %v515, %v519
        %v522 = vshrl.u32 %v489, 16
        %v524 = vshll.u32 %v489, 16
        %v526 = vrot.slane %v524, 1
        %v527 = vor.u32 %v522, %v526
        %v529 = vshrl.u32 %v490, 16
        %v531 = vshll.u32 %v490, 16
        %v533 = vrot.slane %v531, 1
        %v534 = vor.u32 %v529, %v533
        %v536 = vshrl.u32 %v491, 16
        %v538 = vshll.u32 %v491, 16
        %v540 = vrot.slane %v538, 1
        %v541 = vor.u32 %v536, %v540
        %v543 = vshrl.u32 %v492, 16
        %v545 = vshll.u32 %v492, 16
        %v547 = vrot.slane %v545, 1
        %v548 = vor.u32 %v543, %v547
        %549 = vrot.lane.b32.xlu0 %v499, 8
        %v550 = vpop.permute.xlu0 %549
        %551 = vrot.lane.b32.xlu0 %v506, 8
        %v552 = vpop.permute.xlu0 %551
        %553 = vrot.lane.b32.xlu0 %v513, 8
        %v554 = vpop.permute.xlu0 %553
        %555 = vrot.lane.b32.xlu0 %v520, 8
        %v556 = vpop.permute.xlu0 %555
        %557 = vrot.lane.b32.xlu0 %v527, 8
        %v558 = vpop.permute.xlu0 %557
        %559 = vrot.lane.b32.xlu0 %v534, 8
        %v560 = vpop.permute.xlu0 %559
        %561 = vrot.lane.b32.xlu0 %v541, 8
        %v562 = vpop.permute.xlu0 %561
        %563 = vrot.lane.b32.xlu0 %v548, 8
        %v564 = vpop.permute.xlu0 %563
        %v573 = vunpack.c.l.b16 %v396
        %v574 = vunpack.c.l.b16 %v397
        %v575 = vunpack.c.l.b16 %v398
        %v576 = vunpack.c.l.b16 %v399
        %v577 = vunpack.c.l.b16 %v400
        %v578 = vunpack.c.l.b16 %v401
        %v579 = vunpack.c.l.b16 %v402
        %v580 = vunpack.c.l.b16 %v403
        %v581 = vpack.c.b16 %v470, %v573
        %v582 = vpack.c.b16 %v472, %v574
        %v583 = vpack.c.b16 %v474, %v575
        %v584 = vpack.c.b16 %v476, %v576
        %v585 = vpack.c.b16 %v478, %v577
        %v586 = vpack.c.b16 %v480, %v578
        %v587 = vpack.c.b16 %v482, %v579
        %v588 = vpack.c.b16 %v484, %v580
        %v589 = vrot.slane %v581, 1
        %v590 = vrot.slane %v582, 1
        %v591 = vrot.slane %v583, 1
        %v592 = vrot.slane %v584, 1
        %v593 = vrot.slane %v585, 1
        %v594 = vrot.slane %v586, 1
        %v595 = vrot.slane %v587, 1
        %v596 = vrot.slane %v588, 1
        %597 = vrot.lane.b32.xlu0 %v589, 16
        %v598 = vpop.permute.xlu0 %597
        %599 = vrot.lane.b32.xlu0 %v590, 16
        %v600 = vpop.permute.xlu0 %599
        %601 = vrot.lane.b32.xlu0 %v591, 16
        %v602 = vpop.permute.xlu0 %601
        %603 = vrot.lane.b32.xlu0 %v592, 16
        %v604 = vpop.permute.xlu0 %603
        %605 = vrot.lane.b32.xlu0 %v593, 16
        %v606 = vpop.permute.xlu0 %605
        %607 = vrot.lane.b32.xlu0 %v594, 16
        %v608 = vpop.permute.xlu0 %607
        %609 = vrot.lane.b32.xlu0 %v595, 16
        %v610 = vpop.permute.xlu0 %609
        %611 = vrot.lane.b32.xlu0 %v596, 16
        %v612 = vpop.permute.xlu0 %611
        %v621 = vunpack.c.l.b16 %v404
        %v622 = vunpack.c.l.b16 %v405
        %v623 = vunpack.c.l.b16 %v406
        %v624 = vunpack.c.l.b16 %v407
        %v625 = vunpack.c.l.b16 %v408
        %v626 = vunpack.c.l.b16 %v409
        %v627 = vunpack.c.l.b16 %v410
        %v628 = vunpack.c.l.b16 %v411
        %v629 = vpack.c.b16 %v621, %v621
        %v630 = vpack.c.b16 %v622, %v622
        %v631 = vpack.c.b16 %v623, %v623
        %v632 = vpack.c.b16 %v624, %v624
        %v633 = vpack.c.b16 %v625, %v625
        %v634 = vpack.c.b16 %v626, %v626
        %v635 = vpack.c.b16 %v627, %v627
        %v636 = vpack.c.b16 %v628, %v628
        %637 = vrot.lane.b32.xlu0 %v629, 24
        %v638 = vpop.permute.xlu0 %637
        %639 = vrot.lane.b32.xlu0 %v630, 24
        %v640 = vpop.permute.xlu0 %639
        %641 = vrot.lane.b32.xlu0 %v631, 24
        %v642 = vpop.permute.xlu0 %641
        %643 = vrot.lane.b32.xlu0 %v632, 24
        %v644 = vpop.permute.xlu0 %643
        %645 = vrot.lane.b32.xlu0 %v633, 24
        %v646 = vpop.permute.xlu0 %645
        %647 = vrot.lane.b32.xlu0 %v634, 24
        %v648 = vpop.permute.xlu0 %647
        %649 = vrot.lane.b32.xlu0 %v635, 24
        %v650 = vpop.permute.xlu0 %649
        %651 = vrot.lane.b32.xlu0 %v636, 24
        %v652 = vpop.permute.xlu0 %651
        %v661 = vunpack.c.l.b16 %v412
        %v662 = vunpack.c.l.b16 %v413
        %v663 = vunpack.c.l.b16 %v414
        %v664 = vunpack.c.l.b16 %v415
        %v665 = vunpack.c.l.b16 %v416
        %v666 = vunpack.c.l.b16 %v417
        %v667 = vunpack.c.l.b16 %v418
        %v668 = vunpack.c.l.b16 %v419
        %v669 = vpack.c.b16 %v661, %v621
        %v670 = vpack.c.b16 %v662, %v622
        %v671 = vpack.c.b16 %v663, %v623
        %v672 = vpack.c.b16 %v664, %v624
        %v673 = vpack.c.b16 %v665, %v625
        %v674 = vpack.c.b16 %v666, %v626
        %v675 = vpack.c.b16 %v667, %v627
        %v676 = vpack.c.b16 %v668, %v628
        %v678 = vshrl.u32 %v669, 16
        %v680 = vshll.u32 %v669, 16
        %v682 = vrot.slane %v680, 1
        %v683 = vor.u32 %v678, %v682
        %v685 = vshrl.u32 %v670, 16
        %v687 = vshll.u32 %v670, 16
        %v689 = vrot.slane %v687, 1
        %v690 = vor.u32 %v685, %v689
        %v692 = vshrl.u32 %v671, 16
        %v694 = vshll.u32 %v671, 16
        %v696 = vrot.slane %v694, 1
        %v697 = vor.u32 %v692, %v696
        %v699 = vshrl.u32 %v672, 16
        %v701 = vshll.u32 %v672, 16
        %v703 = vrot.slane %v701, 1
        %v704 = vor.u32 %v699, %v703
        %v706 = vshrl.u32 %v673, 16
        %v708 = vshll.u32 %v673, 16
        %v710 = vrot.slane %v708, 1
        %v711 = vor.u32 %v706, %v710
        %v713 = vshrl.u32 %v674, 16
        %v715 = vshll.u32 %v674, 16
        %v717 = vrot.slane %v715, 1
        %v718 = vor.u32 %v713, %v717
        %v720 = vshrl.u32 %v675, 16
        %v722 = vshll.u32 %v675, 16
        %v724 = vrot.slane %v722, 1
        %v725 = vor.u32 %v720, %v724
        %v727 = vshrl.u32 %v676, 16
        %v729 = vshll.u32 %v676, 16
        %v731 = vrot.slane %v729, 1
        %v732 = vor.u32 %v727, %v731
        %733 = vrot.lane.b32.xlu0 %v683, 32
        %v734 = vpop.permute.xlu0 %733
        %735 = vrot.lane.b32.xlu0 %v690, 32
        %v736 = vpop.permute.xlu0 %735
        %737 = vrot.lane.b32.xlu0 %v697, 32
        %v738 = vpop.permute.xlu0 %737
        %739 = vrot.lane.b32.xlu0 %v704, 32
        %v740 = vpop.permute.xlu0 %739
        %741 = vrot.lane.b32.xlu0 %v711, 32
        %v742 = vpop.permute.xlu0 %741
        %743 = vrot.lane.b32.xlu0 %v718, 32
        %v744 = vpop.permute.xlu0 %743
        %745 = vrot.lane.b32.xlu0 %v725, 32
        %v746 = vpop.permute.xlu0 %745
        %747 = vrot.lane.b32.xlu0 %v732, 32
        %v748 = vpop.permute.xlu0 %747
        %v757 = vunpack.c.l.b16 %v420
        %v758 = vunpack.c.l.b16 %v421
        %v759 = vunpack.c.l.b16 %v422
        %v760 = vunpack.c.l.b16 %v423
        %v761 = vunpack.c.l.b16 %v424
        %v762 = vunpack.c.l.b16 %v425
        %v763 = vunpack.c.l.b16 %v426
        %v764 = vunpack.c.l.b16 %v427
        %v765 = vpack.c.b16 %v661, %v757
        %v766 = vpack.c.b16 %v662, %v758
        %v767 = vpack.c.b16 %v663, %v759
        %v768 = vpack.c.b16 %v664, %v760
        %v769 = vpack.c.b16 %v665, %v761
        %v770 = vpack.c.b16 %v666, %v762
        %v771 = vpack.c.b16 %v667, %v763
        %v772 = vpack.c.b16 %v668, %v764
        %v773 = vrot.slane %v765, 1
        %v774 = vrot.slane %v766, 1
        %v775 = vrot.slane %v767, 1
        %v776 = vrot.slane %v768, 1
        %v777 = vrot.slane %v769, 1
        %v778 = vrot.slane %v770, 1
        %v779 = vrot.slane %v771, 1
        %v780 = vrot.slane %v772, 1
        %781 = vrot.lane.b32.xlu0 %v773, 40
        %v782 = vpop.permute.xlu0 %781
        %783 = vrot.lane.b32.xlu0 %v774, 40
        %v784 = vpop.permute.xlu0 %783
        %785 = vrot.lane.b32.xlu0 %v775, 40
        %v786 = vpop.permute.xlu0 %785
        %787 = vrot.lane.b32.xlu0 %v776, 40
        %v788 = vpop.permute.xlu0 %787
        %789 = vrot.lane.b32.xlu0 %v777, 40
        %v790 = vpop.permute.xlu0 %789
        %791 = vrot.lane.b32.xlu0 %v778, 40
        %v792 = vpop.permute.xlu0 %791
        %793 = vrot.lane.b32.xlu0 %v779, 40
        %v794 = vpop.permute.xlu0 %793
        %795 = vrot.lane.b32.xlu0 %v780, 40
        %v796 = vpop.permute.xlu0 %795
        %v805 = vunpack.c.l.b16 %v429
        %v806 = vunpack.c.l.b16 %v430
        %v807 = vunpack.c.l.b16 %v431
        %v808 = vunpack.c.l.b16 %v432
        %v809 = vunpack.c.l.b16 %v433
        %v810 = vunpack.c.l.b16 %v434
        %v811 = vunpack.c.l.b16 %v435
        %v812 = vunpack.c.l.b16 %v436
        %v813 = vpack.c.b16 %v805, %v805
        %v814 = vpack.c.b16 %v806, %v806
        %v815 = vpack.c.b16 %v807, %v807
        %v816 = vpack.c.b16 %v808, %v808
        %v817 = vpack.c.b16 %v809, %v809
        %v818 = vpack.c.b16 %v810, %v810
        %v819 = vpack.c.b16 %v811, %v811
        %v820 = vpack.c.b16 %v812, %v812
        %821 = vrot.lane.b32.xlu0 %v813, 48
        %v822 = vpop.permute.xlu0 %821
        %823 = vrot.lane.b32.xlu0 %v814, 48
        %v824 = vpop.permute.xlu0 %823
        %825 = vrot.lane.b32.xlu0 %v815, 48
        %v826 = vpop.permute.xlu0 %825
        %827 = vrot.lane.b32.xlu0 %v816, 48
        %v828 = vpop.permute.xlu0 %827
        %829 = vrot.lane.b32.xlu0 %v817, 48
        %v830 = vpop.permute.xlu0 %829
        %831 = vrot.lane.b32.xlu0 %v818, 48
        %v832 = vpop.permute.xlu0 %831
        %833 = vrot.lane.b32.xlu0 %v819, 48
        %v834 = vpop.permute.xlu0 %833
        %835 = vrot.lane.b32.xlu0 %v820, 48
        %v836 = vpop.permute.xlu0 %835
        %v845 = vunpack.c.l.b16 %v437
        %v846 = vunpack.c.l.b16 %v438
        %v847 = vunpack.c.l.b16 %v439
        %v848 = vunpack.c.l.b16 %v440
        %v849 = vunpack.c.l.b16 %v441
        %v850 = vunpack.c.l.b16 %v442
        %v851 = vunpack.c.l.b16 %v443
        %v852 = vunpack.c.l.b16 %v444
        %v853 = vpack.c.b16 %v845, %v805
        %v854 = vpack.c.b16 %v846, %v806
        %v855 = vpack.c.b16 %v847, %v807
        %v856 = vpack.c.b16 %v848, %v808
        %v857 = vpack.c.b16 %v849, %v809
        %v858 = vpack.c.b16 %v850, %v810
        %v859 = vpack.c.b16 %v851, %v811
        %v860 = vpack.c.b16 %v852, %v812
        %v862 = vshrl.u32 %v853, 16
        %v864 = vshll.u32 %v853, 16
        %v866 = vrot.slane %v864, 1
        %v867 = vor.u32 %v862, %v866
        %v869 = vshrl.u32 %v854, 16
        %v871 = vshll.u32 %v854, 16
        %v873 = vrot.slane %v871, 1
        %v874 = vor.u32 %v869, %v873
        %v876 = vshrl.u32 %v855, 16
        %v878 = vshll.u32 %v855, 16
        %v880 = vrot.slane %v878, 1
        %v881 = vor.u32 %v876, %v880
        %v883 = vshrl.u32 %v856, 16
        %v885 = vshll.u32 %v856, 16
        %v887 = vrot.slane %v885, 1
        %v888 = vor.u32 %v883, %v887
        %v890 = vshrl.u32 %v857, 16
        %v892 = vshll.u32 %v857, 16
        %v894 = vrot.slane %v892, 1
        %v895 = vor.u32 %v890, %v894
        %v897 = vshrl.u32 %v858, 16
        %v899 = vshll.u32 %v858, 16
        %v901 = vrot.slane %v899, 1
        %v902 = vor.u32 %v897, %v901
        %v904 = vshrl.u32 %v859, 16
        %v906 = vshll.u32 %v859, 16
        %v908 = vrot.slane %v906, 1
        %v909 = vor.u32 %v904, %v908
        %v911 = vshrl.u32 %v860, 16
        %v913 = vshll.u32 %v860, 16
        %v915 = vrot.slane %v913, 1
        %v916 = vor.u32 %v911, %v915
        %917 = vrot.lane.b32.xlu0 %v867, 56
        %v918 = vpop.permute.xlu0 %917
        %919 = vrot.lane.b32.xlu0 %v874, 56
        %v920 = vpop.permute.xlu0 %919
        %921 = vrot.lane.b32.xlu0 %v881, 56
        %v922 = vpop.permute.xlu0 %921
        %923 = vrot.lane.b32.xlu0 %v888, 56
        %v924 = vpop.permute.xlu0 %923
        %925 = vrot.lane.b32.xlu0 %v895, 56
        %v926 = vpop.permute.xlu0 %925
        %927 = vrot.lane.b32.xlu0 %v902, 56
        %v928 = vpop.permute.xlu0 %927
        %929 = vrot.lane.b32.xlu0 %v909, 56
        %v930 = vpop.permute.xlu0 %929
        %931 = vrot.lane.b32.xlu0 %v916, 56
        %v932 = vpop.permute.xlu0 %931
        %v941 = vunpack.c.l.b16 %v445
        %v942 = vunpack.c.l.b16 %v446
        %v943 = vunpack.c.l.b16 %v447
        %v944 = vunpack.c.l.b16 %v448
        %v945 = vunpack.c.l.b16 %v449
        %v946 = vunpack.c.l.b16 %v450
        %v947 = vunpack.c.l.b16 %v451
        %v948 = vunpack.c.l.b16 %v452
        %v949 = vpack.c.b16 %v845, %v941
        %v950 = vpack.c.b16 %v846, %v942
        %v951 = vpack.c.b16 %v847, %v943
        %v952 = vpack.c.b16 %v848, %v944
        %v953 = vpack.c.b16 %v849, %v945
        %v954 = vpack.c.b16 %v850, %v946
        %v955 = vpack.c.b16 %v851, %v947
        %v956 = vpack.c.b16 %v852, %v948
        %v957 = vrot.slane %v949, 1
        %v958 = vrot.slane %v950, 1
        %v959 = vrot.slane %v951, 1
        %v960 = vrot.slane %v952, 1
        %v961 = vrot.slane %v953, 1
        %v962 = vrot.slane %v954, 1
        %v963 = vrot.slane %v955, 1
        %v964 = vrot.slane %v956, 1
        %965 = vrot.lane.b32.xlu0 %v957, 64
        %v966 = vpop.permute.xlu0 %965
        %967 = vrot.lane.b32.xlu0 %v958, 64
        %v968 = vpop.permute.xlu0 %967
        %969 = vrot.lane.b32.xlu0 %v959, 64
        %v970 = vpop.permute.xlu0 %969
        %971 = vrot.lane.b32.xlu0 %v960, 64
        %v972 = vpop.permute.xlu0 %971
        %973 = vrot.lane.b32.xlu0 %v961, 64
        %v974 = vpop.permute.xlu0 %973
        %975 = vrot.lane.b32.xlu0 %v962, 64
        %v976 = vpop.permute.xlu0 %975
        %977 = vrot.lane.b32.xlu0 %v963, 64
        %v978 = vpop.permute.xlu0 %977
        %979 = vrot.lane.b32.xlu0 %v964, 64
        %v980 = vpop.permute.xlu0 %979
        %vm981 = vcmask 64512
        %v984 = vsel %vm981, %v380, %v550
        %v987 = vsel %vm981, %v381, %v552
        %v990 = vsel %vm981, %v382, %v554
        %v993 = vsel %vm981, %v383, %v556
        %v996 = vsel %vm981, %v384, %v558
        %v999 = vsel %vm981, %v385, %v560
        %v1002 = vsel %vm981, %v386, %v562
        %v1005 = vsel %vm981, %v387, %v564
        %vm1006 = vcmask 130048
        %v1008 = vsel %vm1006, %v984, %v598
        %v1010 = vsel %vm1006, %v987, %v600
        %v1012 = vsel %vm1006, %v990, %v602
        %v1014 = vsel %vm1006, %v993, %v604
        %v1016 = vsel %vm1006, %v996, %v606
        %v1018 = vsel %vm1006, %v999, %v608
        %v1020 = vsel %vm1006, %v1002, %v610
        %v1022 = vsel %vm1006, %v1005, %v612
        %vm1023 = vcmask 195584
        %v1025 = vsel %vm1023, %v1008, %v638
        %v1027 = vsel %vm1023, %v1010, %v640
        %v1029 = vsel %vm1023, %v1012, %v642
        %v1031 = vsel %vm1023, %v1014, %v644
        %v1033 = vsel %vm1023, %v1016, %v646
        %v1035 = vsel %vm1023, %v1018, %v648
        %v1037 = vsel %vm1023, %v1020, %v650
        %v1039 = vsel %vm1023, %v1022, %v652
        %vm1040 = vcmask 261120
        %v1042 = vsel %vm1040, %v1025, %v734
        %v1044 = vsel %vm1040, %v1027, %v736
        %v1046 = vsel %vm1040, %v1029, %v738
        %v1048 = vsel %vm1040, %v1031, %v740
        %v1050 = vsel %vm1040, %v1033, %v742
        %v1052 = vsel %vm1040, %v1035, %v744
        %v1054 = vsel %vm1040, %v1037, %v746
        %v1056 = vsel %vm1040, %v1039, %v748
        %vm1057 = vcmask 326656
        %v1059 = vsel %vm1057, %v1042, %v782
        %v1061 = vsel %vm1057, %v1044, %v784
        %v1063 = vsel %vm1057, %v1046, %v786
        %v1065 = vsel %vm1057, %v1048, %v788
        %v1067 = vsel %vm1057, %v1050, %v790
        %v1069 = vsel %vm1057, %v1052, %v792
        %v1071 = vsel %vm1057, %v1054, %v794
        %v1073 = vsel %vm1057, %v1056, %v796
        %vm1074 = vcmask 392192
        %v1076 = vsel %vm1074, %v1059, %v822
        %v1078 = vsel %vm1074, %v1061, %v824
        %v1080 = vsel %vm1074, %v1063, %v826
        %v1082 = vsel %vm1074, %v1065, %v828
        %v1084 = vsel %vm1074, %v1067, %v830
        %v1086 = vsel %vm1074, %v1069, %v832
        %v1088 = vsel %vm1074, %v1071, %v834
        %v1090 = vsel %vm1074, %v1073, %v836
        %vm1091 = vcmask 457728
        %v1093 = vsel %vm1091, %v1076, %v918
        %v1095 = vsel %vm1091, %v1078, %v920
        %v1097 = vsel %vm1091, %v1080, %v922
        %v1099 = vsel %vm1091, %v1082, %v924
        %v1101 = vsel %vm1091, %v1084, %v926
        %v1103 = vsel %vm1091, %v1086, %v928
        %v1105 = vsel %vm1091, %v1088, %v930
        %v1107 = vsel %vm1091, %v1090, %v932
        %vm1108 = vcmask 523264
        %v1110 = vsel %vm1108, %v1093, %v966
        %v1112 = vsel %vm1108, %v1095, %v968
        %v1114 = vsel %vm1108, %v1097, %v970
        %v1116 = vsel %vm1108, %v1099, %v972
        %v1118 = vsel %vm1108, %v1101, %v974
        %v1120 = vsel %vm1108, %v1103, %v976
        %v1122 = vsel %vm1108, %v1105, %v978
        %v1124 = vsel %vm1108, %v1107, %v980
        %v1125 = vld [vmem:[%s210] sm:$0xf]
        %v1126 = vld [vmem:[%s210 + $0x4] sm:$0xf]
        %v1127 = vld [vmem:[%s210 + $0x8] sm:$0xf]
        %v1128 = vld [vmem:[%s210 + $0xc] sm:$0xf]
        %v1129 = vld [vmem:[%s210 + $0x10] sm:$0xf]
        %v1130 = vld [vmem:[%s210 + $0x14] sm:$0xf]
        %v1131 = vld [vmem:[%s210 + $0x18] sm:$0xf]
        %v1132 = vld [vmem:[%s210 + $0x1c] sm:$0xf]
        %v1133 = vld [vmem:[%s210 + $0x20] sm:$0xf]
        %v1134 = vld [vmem:[%s213] sm:$0x1]
        %v1136 = vlaneseq
        %v1137 = vshrl.u32 %v1136, 7
        %v1138 = vsub.s32 0, %v1137
        %v1139 = vrot.slane %v1134, %v1138
        %v1149 = vunpack.c.l.b16 %v1110
        %v1150 = vunpack.c.l.b16 %v1112
        %v1151 = vunpack.c.l.b16 %v1114
        %v1152 = vunpack.c.l.b16 %v1116
        %v1153 = vunpack.c.l.b16 %v1118
        %v1154 = vunpack.c.l.b16 %v1120
        %v1155 = vunpack.c.l.b16 %v1122
        %v1156 = vunpack.c.l.b16 %v1124
        %v1157 = vpack.c.b16 %v1150, %v1149
        %v1158 = vpack.c.b16 %v1152, %v1151
        %v1159 = vpack.c.b16 %v1154, %v1153
        %v1160 = vpack.c.b16 %v1156, %v1155
        %v1170 = vunpack.c.l.b16 %v1125
        %v1171 = vunpack.c.l.b16 %v1126
        %v1172 = vunpack.c.l.b16 %v1127
        %v1173 = vunpack.c.l.b16 %v1128
        %v1174 = vunpack.c.l.b16 %v1129
        %v1175 = vunpack.c.l.b16 %v1130
        %v1176 = vunpack.c.l.b16 %v1131
        %v1177 = vunpack.c.l.b16 %v1132
        %v1178 = vunpack.c.l.b16 %v1133
        %v1179 = vpack.c.b16 %v1171, %v1170
        %v1180 = vpack.c.b16 %v1173, %v1172
        %v1181 = vpack.c.b16 %v1175, %v1174
        %v1182 = vpack.c.b16 %v1177, %v1176
        %v1183 = vpack.c.b16 %v1178, %v1178
        %vm1188 = vcmask 588800
        %v1190 = vsel %vm1188, %v1157, 0
        %v1193 = vsel %vm1188, %v1158, 0
        %v1196 = vsel %vm1188, %v1159, 0
        %v1199 = vsel %vm1188, %v1160, 0
        %vm1201 = vcmask 1043456
        %v1203 = vsel %vm1201, %v1183, 0
        %1205 = vmatprep.subr.bf16.mxu0 0
        %1206 = vmatpush1.bf16.msra.mxu0 0
        %1207 = vmatprep.subr.bf16.mxu0 0
        %1208 = vmatpush1.bf16.msra.mxu0 0
        %1209 = vmatprep.subr.bf16.mxu0 0
        %1210 = vmatpush1.bf16.msra.mxu0 0
        %1211 = vmatprep.subr.bf16.mxu0 0
        %1212 = vmatpush1.bf16.msra.mxu0 %v1203
        %1213 = vmatprep.subr.bf16.mxu0 0
        %1214 = vmatpush1.bf16.msra.mxu0 %v1182
        %1215 = vmatprep.subr.bf16.mxu0 0
        %1216 = vmatpush1.bf16.msra.mxu0 %v1181
        %1217 = vmatprep.subr.bf16.mxu0 0
        %1218 = vmatpush1.bf16.msra.mxu0 %v1180
        %1219 = vmatprep.subr.bf16.mxu0 0
        %1220 = vmatpush1.bf16.msra.mxu0 %v1179
        %1221 = vmatprep.subr.bf16.mxu0 0
        %1222 = vmatpush2.bf16.msra.mxu0 0
        %1223 = vmatprep.subr.bf16.mxu0 0
        %1224 = vmatpush2.bf16.msra.mxu0 0
        %1225 = vmatprep.subr.bf16.mxu0 0
        %1226 = vmatpush2.bf16.msra.mxu0 0
        %1227 = vmatprep.subr.bf16.mxu0 0
        %1228 = vmatpush2.bf16.msra.mxu0 0
        %1229 = vmatprep.subr.bf16.mxu0 0
        %1230 = vmatpush2.bf16.msra.mxu0 0
        %1231 = vmatprep.subr.bf16.mxu0 0
        %1232 = vmatpush2.bf16.msra.mxu0 0
        %1233 = vmatprep.subr.bf16.mxu0 0
        %1234 = vmatpush2.bf16.msra.mxu0 0
        %1235 = vmatprep.subr.bf16.mxu0 0
        %1236 = vmatpush2.bf16.msra.mxu0 0
        %1237 = vmatprep.mubr.bf16.mxu0 0
        %1238 = vmatmul.mubr.bf16.gmra.mxu0 %v1190
        %v1239 = vpop.f32.mrf.mxu0
        %v1240 = vadd.f32 %v1139, %v1239
        %v1241 = vpop.f32.mrf.mxu0
        %v1242 = vpop.f32.mrf.mxu0
        %v1243 = vadd.f32 %v1139, %v1242
        %v1244 = vpop.f32.mrf.mxu0
        %1245 = vmatprep.mubr.bf16.mxu0 0
        %1246 = vmatmul.mubr.bf16.gmra.mxu0 %v1193
        %v1247 = vpop.f32.mrf.mxu0
        %v1248 = vadd.f32 %v1139, %v1247
        %v1249 = vpop.f32.mrf.mxu0
        %v1250 = vpop.f32.mrf.mxu0
        %v1251 = vadd.f32 %v1139, %v1250
        %v1252 = vpop.f32.mrf.mxu0
        %1253 = vmatprep.mubr.bf16.mxu0 0
        %1254 = vmatmul.mubr.bf16.gmra.mxu0 %v1196
        %v1255 = vpop.f32.mrf.mxu0
        %v1256 = vadd.f32 %v1139, %v1255
        %v1257 = vpop.f32.mrf.mxu0
        %v1258 = vpop.f32.mrf.mxu0
        %v1259 = vadd.f32 %v1139, %v1258
        %v1260 = vpop.f32.mrf.mxu0
        %1261 = vmatprep.mubr.bf16.mxu0 0
        %1262 = vmatmul.mubr.bf16.gmra.mxu0 %v1199
        %v1263 = vpop.f32.mrf.mxu0
        %v1264 = vadd.f32 %v1139, %v1263
        %v1265 = vpop.f32.mrf.mxu0
        %v1266 = vpop.f32.mrf.mxu0
        %v1267 = vadd.f32 %v1139, %v1266
        %v1268 = vpop.f32.mrf.mxu0
        %1269 = vdwg.mxu0
        %v1270 = vmax.f32 %v1240, 0.0
        %v1271 = vmax.f32 %v1243, 0.0
        %v1272 = vmax.f32 %v1248, 0.0
        %v1273 = vmax.f32 %v1251, 0.0
        %v1274 = vmax.f32 %v1256, 0.0
        %v1275 = vmax.f32 %v1259, 0.0
        %v1276 = vmax.f32 %v1264, 0.0
        %v1277 = vmax.f32 %v1267, 0.0
        %v1278 = vmax.f32 %v1270, %v1271
        %v1279 = vmax.f32 %v1272, %v1273
        %v1280 = vmax.f32 %v1274, %v1275
        %v1281 = vmax.f32 %v1276, %v1277
        %v1282 = vmax.f32 %v1278, 0.0
        %v1283 = vmax.f32 %v1279, %v1271
        %v1284 = vmax.f32 %v1280, %v1273
        %v1285 = vmax.f32 %v1281, %v1275
        %v1290 = vcombine.high %v1282, %v1282
        %v1292 = vunpack.c.l.s4 1983009808
        %v1293 = vunpack.c.0.s8 %v1292
        %v1294 = vlaneseq
        %v1295 = vshrl.u32 %v1294, 7
        %v1296 = vsub.s32 %v1293, %v1295
        %v1297 = vrot.slane %v1282, %v1296
        %v1299 = vunpack.c.l.s4 1983009808
        %v1300 = vunpack.c.0.s8 %v1299
        %v1301 = vlaneseq
        %v1302 = vshrl.u32 %v1301, 7
        %v1303 = vsub.s32 %v1300, %v1302
        %v1304 = vrot.slane %v1290, %v1303
        %v1305 = vcombine.high %v1297, %v1297
        %v1306 = vcombine.high %v1304, %v1304
        %v1307 = vcombine.high %v1283, %v1283
        %v1309 = vunpack.c.l.s4 1983009808
        %v1310 = vunpack.c.0.s8 %v1309
        %v1311 = vlaneseq
        %v1312 = vshrl.u32 %v1311, 7
        %v1313 = vsub.s32 %v1310, %v1312
        %v1314 = vrot.slane %v1283, %v1313
        %v1316 = vunpack.c.l.s4 1983009808
        %v1317 = vunpack.c.0.s8 %v1316
        %v1318 = vlaneseq
        %v1319 = vshrl.u32 %v1318, 7
        %v1320 = vsub.s32 %v1317, %v1319
        %v1321 = vrot.slane %v1307, %v1320
        %v1322 = vcombine.high %v1314, %v1314
        %v1323 = vcombine.high %v1321, %v1321
        %v1324 = vcombine.high %v1284, %v1284
        %v1326 = vunpack.c.l.s4 1983009808
        %v1327 = vunpack.c.0.s8 %v1326
        %v1328 = vlaneseq
        %v1329 = vshrl.u32 %v1328, 7
        %v1330 = vsub.s32 %v1327, %v1329
        %v1331 = vrot.slane %v1284, %v1330
        %v1333 = vunpack.c.l.s4 1983009808
        %v1334 = vunpack.c.0.s8 %v1333
        %v1335 = vlaneseq
        %v1336 = vshrl.u32 %v1335, 7
        %v1337 = vsub.s32 %v1334, %v1336
        %v1338 = vrot.slane %v1324, %v1337
        %v1339 = vcombine.high %v1331, %v1331
        %v1340 = vcombine.high %v1338, %v1338
        %v1341 = vcombine.high %v1285, %v1285
        %v1343 = vunpack.c.l.s4 1983009808
        %v1344 = vunpack.c.0.s8 %v1343
        %v1345 = vlaneseq
        %v1346 = vshrl.u32 %v1345, 7
        %v1347 = vsub.s32 %v1344, %v1346
        %v1348 = vrot.slane %v1285, %v1347
        %v1350 = vunpack.c.l.s4 1983009808
        %v1351 = vunpack.c.0.s8 %v1350
        %v1352 = vlaneseq
        %v1353 = vshrl.u32 %v1352, 7
        %v1354 = vsub.s32 %v1351, %v1353
        %v1355 = vrot.slane %v1341, %v1354
        %v1356 = vcombine.high %v1348, %v1348
        %v1357 = vcombine.high %v1355, %v1355
        %v1374 = vrot.slane %v1297, 7
        %v1375 = vrot.slane %v1374, 2
        %v1376 = vrot.slane %v1305, 7
        %v1377 = vrot.slane %v1376, 2
        %v1378 = vrot.slane %v1304, 7
        %v1379 = vrot.slane %v1378, 2
        %v1380 = vrot.slane %v1306, 7
        %v1381 = vrot.slane %v1380, 2
        %v1382 = vrot.slane %v1314, 7
        %v1383 = vrot.slane %v1382, 2
        %v1384 = vrot.slane %v1322, 7
        %v1385 = vrot.slane %v1384, 2
        %v1386 = vrot.slane %v1321, 7
        %v1387 = vrot.slane %v1386, 2
        %v1388 = vrot.slane %v1323, 7
        %v1389 = vrot.slane %v1388, 2
        %v1390 = vrot.slane %v1331, 7
        %v1391 = vrot.slane %v1390, 2
        %v1392 = vrot.slane %v1339, 7
        %v1393 = vrot.slane %v1392, 2
        %v1394 = vrot.slane %v1338, 7
        %v1395 = vrot.slane %v1394, 2
        %v1396 = vrot.slane %v1340, 7
        %v1397 = vrot.slane %v1396, 2
        %v1398 = vrot.slane %v1348, 7
        %v1399 = vrot.slane %v1398, 2
        %v1400 = vrot.slane %v1356, 7
        %v1401 = vrot.slane %v1400, 2
        %v1402 = vrot.slane %v1355, 7
        %v1403 = vrot.slane %v1402, 2
        %v1404 = vrot.slane %v1357, 7
        %v1405 = vrot.slane %v1404, 2
        %v1422 = vmax.f32 %v1297, %v1375
        %v1423 = vmax.f32 %v1305, %v1377
        %v1424 = vmax.f32 %v1304, %v1379
        %v1425 = vmax.f32 %v1306, %v1381
        %v1426 = vmax.f32 %v1314, %v1383
        %v1427 = vmax.f32 %v1322, %v1385
        %v1428 = vmax.f32 %v1321, %v1387
        %v1429 = vmax.f32 %v1323, %v1389
        %v1430 = vmax.f32 %v1331, %v1391
        %v1431 = vmax.f32 %v1339, %v1393
        %v1432 = vmax.f32 %v1338, %v1395
        %v1433 = vmax.f32 %v1340, %v1397
        %v1434 = vmax.f32 %v1348, %v1399
        %v1435 = vmax.f32 %v1356, %v1401
        %v1436 = vmax.f32 %v1355, %v1403
        %v1437 = vmax.f32 %v1357, %v1405
        %v1438 = vlaneseq
        %v1439 = vshrl.u32 %v1438, 7
        %v1440 = vsub.s32 1, %v1439
        %v1441 = vrot.slane %v1297, %v1440
        %v1442 = vlaneseq
        %v1443 = vshrl.u32 %v1442, 7
        %v1444 = vsub.s32 1, %v1443
        %v1445 = vrot.slane %v1305, %v1444
        %v1446 = vlaneseq
        %v1447 = vshrl.u32 %v1446, 7
        %v1448 = vsub.s32 1, %v1447
        %v1449 = vrot.slane %v1304, %v1448
        %v1450 = vlaneseq
        %v1451 = vshrl.u32 %v1450, 7
        %v1452 = vsub.s32 1, %v1451
        %v1453 = vrot.slane %v1314, %v1452
        %v1454 = vlaneseq
        %v1455 = vshrl.u32 %v1454, 7
        %v1456 = vsub.s32 1, %v1455
        %v1457 = vrot.slane %v1322, %v1456
        %v1458 = vlaneseq
        %v1459 = vshrl.u32 %v1458, 7
        %v1460 = vsub.s32 1, %v1459
        %v1461 = vrot.slane %v1321, %v1460
        %v1462 = vlaneseq
        %v1463 = vshrl.u32 %v1462, 7
        %v1464 = vsub.s32 1, %v1463
        %v1465 = vrot.slane %v1331, %v1464
        %v1466 = vlaneseq
        %v1467 = vshrl.u32 %v1466, 7
        %v1468 = vsub.s32 1, %v1467
        %v1469 = vrot.slane %v1339, %v1468
        %v1470 = vlaneseq
        %v1471 = vshrl.u32 %v1470, 7
        %v1472 = vsub.s32 1, %v1471
        %v1473 = vrot.slane %v1338, %v1472
        %v1474 = vlaneseq
        %v1475 = vshrl.u32 %v1474, 7
        %v1476 = vsub.s32 1, %v1475
        %v1477 = vrot.slane %v1348, %v1476
        %v1478 = vlaneseq
        %v1479 = vshrl.u32 %v1478, 7
        %v1480 = vsub.s32 1, %v1479
        %v1481 = vrot.slane %v1356, %v1480
        %v1482 = vlaneseq
        %v1483 = vshrl.u32 %v1482, 7
        %v1484 = vsub.s32 1, %v1483
        %v1485 = vrot.slane %v1355, %v1484
        %vm1486 = vcmask 1042434
        %v1487 = vsel %vm1486, %v1445, %v1441
        %vm1488 = vcmask 1043459
        %v1489 = vsel %vm1488, %v1449, %v1487
        %v1490 = vsel %vm1486, %v1457, %v1453
        %v1491 = vsel %vm1488, %v1461, %v1490
        %v1492 = vsel %vm1486, %v1469, %v1465
        %v1493 = vsel %vm1488, %v1473, %v1492
        %v1494 = vsel %vm1486, %v1481, %v1477
        %v1495 = vsel %vm1488, %v1485, %v1494
        %vm1500 = vcmask 1040384
        %v1501 = vsel %vm1500, 0.0, %v1489
        %v1502 = vsel %vm1500, 0.0, %v1491
        %v1503 = vsel %vm1500, 0.0, %v1493
        %v1504 = vsel %vm1500, 0.0, %v1495
        %v1510 = vunpack.c.l.s4 1983009808
        %v1511 = vunpack.c.0.s8 %v1510
        %v1512 = vlaneseq
        %v1513 = vshrl.u32 %v1512, 7
        %v1514 = vsub.s32 %v1511, %v1513
        %v1515 = vrot.slane %v1501, %v1514
        %v1516 = vcombine.high %v1515, %v1515
        %v1518 = vunpack.c.l.s4 1983009808
        %v1519 = vunpack.c.0.s8 %v1518
        %v1520 = vlaneseq
        %v1521 = vshrl.u32 %v1520, 7
        %v1522 = vsub.s32 %v1519, %v1521
        %v1523 = vrot.slane %v1502, %v1522
        %v1524 = vcombine.high %v1523, %v1523
        %v1526 = vunpack.c.l.s4 1983009808
        %v1527 = vunpack.c.0.s8 %v1526
        %v1528 = vlaneseq
        %v1529 = vshrl.u32 %v1528, 7
        %v1530 = vsub.s32 %v1527, %v1529
        %v1531 = vrot.slane %v1503, %v1530
        %v1532 = vcombine.high %v1531, %v1531
        %v1534 = vunpack.c.l.s4 1983009808
        %v1535 = vunpack.c.0.s8 %v1534
        %v1536 = vlaneseq
        %v1537 = vshrl.u32 %v1536, 7
        %v1538 = vsub.s32 %v1535, %v1537
        %v1539 = vrot.slane %v1504, %v1538
        %v1540 = vcombine.high %v1539, %v1539
        %v1541 = vrot.slane %v1515, 1
        %v1542 = vrot.slane %v1516, 1
        %v1543 = vrot.slane %v1523, 1
        %v1544 = vrot.slane %v1524, 1
        %v1545 = vrot.slane %v1531, 1
        %v1546 = vrot.slane %v1532, 1
        %v1547 = vrot.slane %v1539, 1
        %v1548 = vrot.slane %v1540, 1
        %v1565 = vmax.f32 %v1422, %v1515
        %v1566 = vmax.f32 %v1423, %v1541
        %v1567 = vmax.f32 %v1424, %v1516
        %v1568 = vmax.f32 %v1425, %v1542
        %v1569 = vmax.f32 %v1426, %v1523
        %v1570 = vmax.f32 %v1427, %v1543
        %v1571 = vmax.f32 %v1428, %v1524
        %v1572 = vmax.f32 %v1429, %v1544
        %v1573 = vmax.f32 %v1430, %v1531
        %v1574 = vmax.f32 %v1431, %v1545
        %v1575 = vmax.f32 %v1432, %v1532
        %v1576 = vmax.f32 %v1433, %v1546
        %v1577 = vmax.f32 %v1434, %v1539
        %v1578 = vmax.f32 %v1435, %v1547
        %v1579 = vmax.f32 %v1436, %v1540
        %v1580 = vmax.f32 %v1437, %v1548
        %v1581 = vpack.c.bf16 %v1565, %v1565
        %v1582 = vpack.c.bf16 %v1566, %v1566
        %v1583 = vpack.c.bf16 %v1567, %v1567
        %v1584 = vpack.c.bf16 %v1568, %v1568
        %v1585 = vpack.c.bf16 %v1569, %v1569
        %v1586 = vpack.c.bf16 %v1570, %v1570
        %v1587 = vpack.c.bf16 %v1571, %v1571
        %v1588 = vpack.c.bf16 %v1572, %v1572
        %v1589 = vpack.c.bf16 %v1573, %v1573
        %v1590 = vpack.c.bf16 %v1574, %v1574
        %v1591 = vpack.c.bf16 %v1575, %v1575
        %v1592 = vpack.c.bf16 %v1576, %v1576
        %v1593 = vpack.c.bf16 %v1577, %v1577
        %v1594 = vpack.c.bf16 %v1578, %v1578
        %v1595 = vpack.c.bf16 %v1579, %v1579
        %v1596 = vpack.c.bf16 %v1580, %v1580
        %v1614 = vunpack.c.l.s4 1983009808
        %v1615 = vunpack.c.0.s8 %v1614
        %v1616 = vlaneseq
        %v1617 = vshrl.u32 %v1616, 7
        %v1618 = vsub.s32 %v1615, %v1617
        %v1619 = vrot.slane %v1581, %v1618
        %v1621 = vunpack.c.l.s4 1983009808
        %v1622 = vunpack.c.0.s8 %v1621
        %v1623 = vlaneseq
        %v1624 = vshrl.u32 %v1623, 7
        %v1625 = vsub.s32 %v1622, %v1624
        %v1626 = vrot.slane %v1582, %v1625
        %v1628 = vunpack.c.l.s4 1983009808
        %v1629 = vunpack.c.0.s8 %v1628
        %v1630 = vlaneseq
        %v1631 = vshrl.u32 %v1630, 7
        %v1632 = vsub.s32 %v1629, %v1631
        %v1633 = vrot.slane %v1583, %v1632
        %v1635 = vunpack.c.l.s4 1983009808
        %v1636 = vunpack.c.0.s8 %v1635
        %v1637 = vlaneseq
        %v1638 = vshrl.u32 %v1637, 7
        %v1639 = vsub.s32 %v1636, %v1638
        %v1640 = vrot.slane %v1584, %v1639
        %v1642 = vunpack.c.l.s4 1983009808
        %v1643 = vunpack.c.0.s8 %v1642
        %v1644 = vlaneseq
        %v1645 = vshrl.u32 %v1644, 7
        %v1646 = vsub.s32 %v1643, %v1645
        %v1647 = vrot.slane %v1585, %v1646
        %v1649 = vunpack.c.l.s4 1983009808
        %v1650 = vunpack.c.0.s8 %v1649
        %v1651 = vlaneseq
        %v1652 = vshrl.u32 %v1651, 7
        %v1653 = vsub.s32 %v1650, %v1652
        %v1654 = vrot.slane %v1586, %v1653
        %v1656 = vunpack.c.l.s4 1983009808
        %v1657 = vunpack.c.0.s8 %v1656
        %v1658 = vlaneseq
        %v1659 = vshrl.u32 %v1658, 7
        %v1660 = vsub.s32 %v1657, %v1659
        %v1661 = vrot.slane %v1587, %v1660
        %v1663 = vunpack.c.l.s4 1983009808
        %v1664 = vunpack.c.0.s8 %v1663
        %v1665 = vlaneseq
        %v1666 = vshrl.u32 %v1665, 7
        %v1667 = vsub.s32 %v1664, %v1666
        %v1668 = vrot.slane %v1588, %v1667
        %v1670 = vunpack.c.l.s4 1983009808
        %v1671 = vunpack.c.0.s8 %v1670
        %v1672 = vlaneseq
        %v1673 = vshrl.u32 %v1672, 7
        %v1674 = vsub.s32 %v1671, %v1673
        %v1675 = vrot.slane %v1589, %v1674
        %v1677 = vunpack.c.l.s4 1983009808
        %v1678 = vunpack.c.0.s8 %v1677
        %v1679 = vlaneseq
        %v1680 = vshrl.u32 %v1679, 7
        %v1681 = vsub.s32 %v1678, %v1680
        %v1682 = vrot.slane %v1590, %v1681
        %v1684 = vunpack.c.l.s4 1983009808
        %v1685 = vunpack.c.0.s8 %v1684
        %v1686 = vlaneseq
        %v1687 = vshrl.u32 %v1686, 7
        %v1688 = vsub.s32 %v1685, %v1687
        %v1689 = vrot.slane %v1591, %v1688
        %v1691 = vunpack.c.l.s4 1983009808
        %v1692 = vunpack.c.0.s8 %v1691
        %v1693 = vlaneseq
        %v1694 = vshrl.u32 %v1693, 7
        %v1695 = vsub.s32 %v1692, %v1694
        %v1696 = vrot.slane %v1592, %v1695
        %v1698 = vunpack.c.l.s4 1983009808
        %v1699 = vunpack.c.0.s8 %v1698
        %v1700 = vlaneseq
        %v1701 = vshrl.u32 %v1700, 7
        %v1702 = vsub.s32 %v1699, %v1701
        %v1703 = vrot.slane %v1593, %v1702
        %v1705 = vunpack.c.l.s4 1983009808
        %v1706 = vunpack.c.0.s8 %v1705
        %v1707 = vlaneseq
        %v1708 = vshrl.u32 %v1707, 7
        %v1709 = vsub.s32 %v1706, %v1708
        %v1710 = vrot.slane %v1594, %v1709
        %v1712 = vunpack.c.l.s4 1983009808
        %v1713 = vunpack.c.0.s8 %v1712
        %v1714 = vlaneseq
        %v1715 = vshrl.u32 %v1714, 7
        %v1716 = vsub.s32 %v1713, %v1715
        %v1717 = vrot.slane %v1595, %v1716
        %v1719 = vunpack.c.l.s4 1983009808
        %v1720 = vunpack.c.0.s8 %v1719
        %v1721 = vlaneseq
        %v1722 = vshrl.u32 %v1721, 7
        %v1723 = vsub.s32 %v1720, %v1722
        %v1724 = vrot.slane %v1596, %v1723
        %v1726 = vunpack.c.l.s4 1983009808
        %v1727 = vunpack.c.0.s8 %v1726
        %v1728 = vlaneseq
        %v1729 = vshrl.u32 %v1728, 7
        %v1730 = vsub.s32 %v1727, %v1729
        %v1731 = vrot.slane %v1619, %v1730
        %v1733 = vunpack.c.l.s4 1983009808
        %v1734 = vunpack.c.0.s8 %v1733
        %v1735 = vlaneseq
        %v1736 = vshrl.u32 %v1735, 7
        %v1737 = vsub.s32 %v1734, %v1736
        %v1738 = vrot.slane %v1626, %v1737
        %v1740 = vunpack.c.l.s4 1983009808
        %v1741 = vunpack.c.0.s8 %v1740
        %v1742 = vlaneseq
        %v1743 = vshrl.u32 %v1742, 7
        %v1744 = vsub.s32 %v1741, %v1743
        %v1745 = vrot.slane %v1633, %v1744
        %v1747 = vunpack.c.l.s4 1983009808
        %v1748 = vunpack.c.0.s8 %v1747
        %v1749 = vlaneseq
        %v1750 = vshrl.u32 %v1749, 7
        %v1751 = vsub.s32 %v1748, %v1750
        %v1752 = vrot.slane %v1640, %v1751
        %v1754 = vunpack.c.l.s4 1983009808
        %v1755 = vunpack.c.0.s8 %v1754
        %v1756 = vlaneseq
        %v1757 = vshrl.u32 %v1756, 7
        %v1758 = vsub.s32 %v1755, %v1757
        %v1759 = vrot.slane %v1647, %v1758
        %v1761 = vunpack.c.l.s4 1983009808
        %v1762 = vunpack.c.0.s8 %v1761
        %v1763 = vlaneseq
        %v1764 = vshrl.u32 %v1763, 7
        %v1765 = vsub.s32 %v1762, %v1764
        %v1766 = vrot.slane %v1654, %v1765
        %v1768 = vunpack.c.l.s4 1983009808
        %v1769 = vunpack.c.0.s8 %v1768
        %v1770 = vlaneseq
        %v1771 = vshrl.u32 %v1770, 7
        %v1772 = vsub.s32 %v1769, %v1771
        %v1773 = vrot.slane %v1661, %v1772
        %v1775 = vunpack.c.l.s4 1983009808
        %v1776 = vunpack.c.0.s8 %v1775
        %v1777 = vlaneseq
        %v1778 = vshrl.u32 %v1777, 7
        %v1779 = vsub.s32 %v1776, %v1778
        %v1780 = vrot.slane %v1668, %v1779
        %v1782 = vunpack.c.l.s4 1983009808
        %v1783 = vunpack.c.0.s8 %v1782
        %v1784 = vlaneseq
        %v1785 = vshrl.u32 %v1784, 7
        %v1786 = vsub.s32 %v1783, %v1785
        %v1787 = vrot.slane %v1675, %v1786
        %v1789 = vunpack.c.l.s4 1983009808
        %v1790 = vunpack.c.0.s8 %v1789
        %v1791 = vlaneseq
        %v1792 = vshrl.u32 %v1791, 7
        %v1793 = vsub.s32 %v1790, %v1792
        %v1794 = vrot.slane %v1682, %v1793
        %v1796 = vunpack.c.l.s4 1983009808
        %v1797 = vunpack.c.0.s8 %v1796
        %v1798 = vlaneseq
        %v1799 = vshrl.u32 %v1798, 7
        %v1800 = vsub.s32 %v1797, %v1799
        %v1801 = vrot.slane %v1689, %v1800
        %v1803 = vunpack.c.l.s4 1983009808
        %v1804 = vunpack.c.0.s8 %v1803
        %v1805 = vlaneseq
        %v1806 = vshrl.u32 %v1805, 7
        %v1807 = vsub.s32 %v1804, %v1806
        %v1808 = vrot.slane %v1696, %v1807
        %v1810 = vunpack.c.l.s4 1983009808
        %v1811 = vunpack.c.0.s8 %v1810
        %v1812 = vlaneseq
        %v1813 = vshrl.u32 %v1812, 7
        %v1814 = vsub.s32 %v1811, %v1813
        %v1815 = vrot.slane %v1703, %v1814
        %v1817 = vunpack.c.l.s4 1983009808
        %v1818 = vunpack.c.0.s8 %v1817
        %v1819 = vlaneseq
        %v1820 = vshrl.u32 %v1819, 7
        %v1821 = vsub.s32 %v1818, %v1820
        %v1822 = vrot.slane %v1710, %v1821
        %v1824 = vunpack.c.l.s4 1983009808
        %v1825 = vunpack.c.0.s8 %v1824
        %v1826 = vlaneseq
        %v1827 = vshrl.u32 %v1826, 7
        %v1828 = vsub.s32 %v1825, %v1827
        %v1829 = vrot.slane %v1717, %v1828
        %v1831 = vunpack.c.l.s4 1983009808
        %v1832 = vunpack.c.0.s8 %v1831
        %v1833 = vlaneseq
        %v1834 = vshrl.u32 %v1833, 7
        %v1835 = vsub.s32 %v1832, %v1834
        %v1836 = vrot.slane %v1724, %v1835
        %v1837 = vunpack.c.l.b16 %v1731
        %v1838 = vunpack.c.l.b16 %v1738
        %v1839 = vunpack.c.l.b16 %v1745
        %v1840 = vunpack.c.l.b16 %v1752
        %v1841 = vunpack.c.l.b16 %v1759
        %v1842 = vunpack.c.l.b16 %v1766
        %v1843 = vunpack.c.l.b16 %v1773
        %v1844 = vunpack.c.l.b16 %v1780
        %v1845 = vunpack.c.l.b16 %v1787
        %v1846 = vunpack.c.l.b16 %v1794
        %v1847 = vunpack.c.l.b16 %v1801
        %v1848 = vunpack.c.l.b16 %v1808
        %v1849 = vunpack.c.l.b16 %v1815
        %v1850 = vunpack.c.l.b16 %v1822
        %v1851 = vunpack.c.l.b16 %v1829
        %v1852 = vunpack.c.l.b16 %v1836
        %v1853 = vrot.slane %v1838, 7
        %vm1854 = vcmask 1041409
        %v1855 = vsel %vm1854, %v1853, %v1837
        %v1856 = vrot.slane %v1839, 6
        %v1857 = vsel %vm1486, %v1856, %v1855
        %v1858 = vrot.slane %v1840, 5
        %v1859 = vsel %vm1488, %v1858, %v1857
        %v1860 = vrot.slane %v1842, 7
        %v1861 = vsel %vm1854, %v1860, %v1841
        %v1862 = vrot.slane %v1843, 6
        %v1863 = vsel %vm1486, %v1862, %v1861
        %v1864 = vrot.slane %v1844, 5
        %v1865 = vsel %vm1488, %v1864, %v1863
        %v1866 = vrot.slane %v1846, 7
        %v1867 = vsel %vm1854, %v1866, %v1845
        %v1868 = vrot.slane %v1847, 6
        %v1869 = vsel %vm1486, %v1868, %v1867
        %v1870 = vrot.slane %v1848, 5
        %v1871 = vsel %vm1488, %v1870, %v1869
        %v1872 = vrot.slane %v1850, 7
        %v1873 = vsel %vm1854, %v1872, %v1849
        %v1874 = vrot.slane %v1851, 6
        %v1875 = vsel %vm1486, %v1874, %v1873
        %v1876 = vrot.slane %v1852, 5
        %v1877 = vsel %vm1488, %v1876, %v1875
        %v1878 = vpack.c.b16 %v1859, %v1859
        %v1879 = vpack.c.b16 %v1865, %v1865
        %v1880 = vpack.c.b16 %v1871, %v1871
        %v1881 = vpack.c.b16 %v1877, %v1877
        %v1883 = vunpack.c.l.s4 1983009808
        %v1884 = vunpack.c.0.s8 %v1883
        %v1885 = vlaneseq
        %v1886 = vshrl.u32 %v1885, 7
        %v1887 = vsub.s32 %v1884, %v1886
        %v1888 = vrot.slane %v1878, %v1887
        %v1890 = vunpack.c.l.s4 1983009808
        %v1891 = vunpack.c.0.s8 %v1890
        %v1892 = vlaneseq
        %v1893 = vshrl.u32 %v1892, 7
        %v1894 = vsub.s32 %v1891, %v1893
        %v1895 = vrot.slane %v1879, %v1894
        %v1897 = vunpack.c.l.s4 1983009808
        %v1898 = vunpack.c.0.s8 %v1897
        %v1899 = vlaneseq
        %v1900 = vshrl.u32 %v1899, 7
        %v1901 = vsub.s32 %v1898, %v1900
        %v1902 = vrot.slane %v1880, %v1901
        %v1904 = vunpack.c.l.s4 1983009808
        %v1905 = vunpack.c.0.s8 %v1904
        %v1906 = vlaneseq
        %v1907 = vshrl.u32 %v1906, 7
        %v1908 = vsub.s32 %v1905, %v1907
        %v1909 = vrot.slane %v1881, %v1908
        %vm1914 = vcmask 123904
        %1915 = vst.msk [vmem:[%s201] sm:$0x3] %vm1914, %v1888
        %1916 = vst.msk [vmem:[%s201 + $0x2] sm:$0x3] %vm1914, %v1895
        %1917 = vst.msk [vmem:[%s201 + $0x4] sm:$0x3] %vm1914, %v1902
        %1918 = vst.msk [vmem:[%s201 + $0x6] sm:$0x3] %vm1914, %v1909
        %s1919 = sand.u32 %s117, 1
        %s1920 = scalar_lea.sflag [#allocation4], %s1919
        %s1921 = sand.u32 %s117, 1
        %s1922 = smul.addr %s1921, 8
        %s1923 = scalar_lea.vmem [#allocation3], %s1922
        // Predicated region
        $region33: #{vgg_base_forward.5} parent=31 // pred_check
          %p1924 = pneg %p127
        $region34: #{vgg_base_forward.5} parent=31 // pred_check_branch
          %1926 = sbr.rel (%p1924) target = $region36
        $region35: #{vgg_base_forward.5} parent=31 // pred_region
          %s1928 = ssub.s32 128, 128
          %1929 = vsyncadd %s1920, %s1928
          %s1930 = smul.addr %s21, 4
          %s1931 = sadd.s32 %s22, %s1930
          %s1932 = smul.addr %s1931, 32
          %s1933 = scalar_lea.hbm %s3, %s1932
          %s1934 = sshll.u32 %s1923, 4
          %s1935 = int_to_ptr.vmem [resolvable:$true] %s1934
          %1940 = dma.vmem_to_hbm [thread:$0]  %s1935, 128, %s1933, %s1920, 32, 32, 2
        $region36: #{vgg_base_forward.5} parent=31 // pred_fallthru
          _
      $region32: #{vgg_base_forward.5} parent=5 // pred_fallthru
        _
      %p1941 = scmp.le.s32.totalorder 2, %s12
      // Predicated region
      $region37: #{vgg_base_forward.5} parent=5 // pred_check
        %p1942 = pneg %p1941
      $region38: #{vgg_base_forward.5} parent=5 // pred_check_branch
        %1944 = sbr.rel (%p1942) target = $region40
      $region39: #{vgg_base_forward.5} parent=5 // pred_region
        %s1945 = ssub.s32 %s12, 2
        // Predicated region
        $region41: #{vgg_base_forward.5} parent=39 // pred_check
          %p1946 = pneg %p133
        $region42: #{vgg_base_forward.5} parent=39 // pred_check_branch
          %1948 = sbr.rel (%p1946) target = $region44
        $region43: #{vgg_base_forward.5} parent=39 // pred_region
          %s1949 = sand.u32 %s118, 1
          %s1950 = scalar_lea.sflag [#allocation4], %s1949
          %s1951 = sand.u32 %s118, 1
          %s1952 = smul.addr %s1951, 8
          %s1953 = scalar_lea.vmem [#allocation3], %s1952
          %1954 = dma.done %s1950, 128
        $region44: #{vgg_base_forward.5} parent=39 // pred_fallthru
          _
      $region40: #{vgg_base_forward.5} parent=5 // pred_fallthru
        _
    $region6: #{vgg_base_forward.5} parent=1 // loop_footer
      %s16 = sadd.s32 1, %s12
    $region7: #{vgg_base_forward.5} parent=1 // loop_footer_branch
      %11 = sbr.rel target = $region3
    $region8: #{vgg_base_forward.5} parent=1 // loop_exit
      _
    %1955 = vsyncpa [#allocation4], 1
    %s1956 = scalar_lea.sflag [#allocation4], 1
    %1957 = vsyncpa %s1956, 1

// kernel: vgg_base_forward.4
$region0: #{vgg_base_forward.4}
  #allocation0 [shape = 'u32[]', space=smem, size = 0x4, offset = 0x4, fixed_abs, tag = 'smem constant byte address 0x4 - core index']
  #allocation1 [shape = 'u32[144,128]{1,0:T(1,128)}', space=vmem, size = 0x12000, scoped, tag = 'internal scratch']
  #allocation2 [shape = 'bf16[18,18,8]{2,1,0:T(8,128)(2,1)}', space=vmem, size = 0x1b000, scoped, tag = 'scratch operand']
  %s0 = inlined_call_operand.vmem [shape: bf16[2,16,16,8], index: 0, kind: input, shape index: {}]
  %s1 = inlined_call_operand.vmem [shape: bf16[72,8], index: 1, kind: input, shape index: {}]
  %s2 = inlined_call_operand.vmem [shape: f32[1,8], index: 2, kind: input, shape index: {}]
  %s3 = inlined_call_operand.vmem [shape: bf16[2,8,8,8], index: 3, kind: output, shape index: {}]
  %s4 = sld [smem:[#allocation0]]
  $region45: #{vgg_base_forward.4} parent=0
    _
  %s6 = ssub.s32 1, %s4
  %s7 = scalar_select 0, %s6, %s4
  loop: start=0, step=1, limit=4
  $region2: #{vgg_base_forward.4} parent=0 // loop_pre_header
    _
  $region3: #{vgg_base_forward.4} parent=0 // loop_header
    %s9 = sphi 0, %s13
    %p10 = scmp.ge.s32.totalorder %s9, 4
    %s16 = sphi 0, %s28
    %s17 = sphi 0, %s24
    %s18 = sphi 0, %s16
    %s19 = sphi 0, %s17
    %s20 = sphi 0, %s18
    %s21 = sphi 0, %s19
    %s31 = sphi 0, %s33
    %s34 = sphi 0, %s31
    %s35 = sphi 0, %s34
    %s51 = sphi 0, %s35
    %s57 = sphi 0, %s59
    %s60 = sphi 0, %s57
    %s61 = sphi 0, %s60
    %s77 = sphi 0, %s61
    %s83 = sphi 0, %s85
    %s86 = sphi 0, %s83
    %s87 = sphi 0, %s86
    %s103 = sphi 0, %s87
    %s111 = sphi 0, %s113
    %s114 = sphi 0, %s111
    %s115 = sphi 0, %s114
    %s131 = sphi 0, %s115
  $region4: #{vgg_base_forward.4} parent=0 // loop_header_branch
    %12 = sbr.rel (%p10) target = $region8
  $region5: #{vgg_base_forward.4} parent=0 // loop_body
    %s14 = ssub.s32 %s9, 1
    %s15 = ssub.s32 %s9, 2
    %s22 = sadd.s32 1, %s17
    %p23 = scmp.ge.s32.totalorder %s22, 1
    %s24 = scalar_select %p23, 0, %s22
    %s25 = sadd.s32 1, %s16
    %s26 = scalar_select %p23, %s25, %s16
    %p27 = scmp.ge.s32.totalorder %s26, 2
    %s28 = scalar_select %p27, 0, %s26
    %s29 = ssub.s32 %s16, %s28
    %p30 = scmp.eq.s32.totalorder %s29, 0
    %s32 = sadd.s32 %s31, 1
    %s33 = scalar_select %p30, %s31, %s32
    %p36 = pneg %p30
    %p37 = scmp.eq.s32.totalorder %s9, 1
    %p38 = por %p36, %p37
    %p39 = scmp.ne.s32.totalorder %s31, %s34
    %p40 = scmp.eq.s32.totalorder %s9, 0
    %p41 = por %p39, %p40
    %p42 = scmp.ne.s32.totalorder %s31, %s34
    %p43 = scmp.eq.s32.totalorder %s14, 1
    %p44 = por %p42, %p43
    %p45 = scmp.ne.s32.totalorder %s34, %s35
    %p46 = scmp.eq.s32.totalorder %s14, 0
    %p47 = por %p45, %p46
    %p48 = scmp.ne.s32.totalorder %s34, %s35
    %p49 = scmp.eq.s32.totalorder %s15, 1
    %p50 = por %p48, %p49
    %p52 = scmp.ne.s32.totalorder %s35, %s51
    %p53 = scmp.eq.s32.totalorder %s15, 0
    %p54 = por %p52, %p53
    %s55 = ssub.s32 %s17, %s24
    %p56 = scmp.eq.s32.totalorder %s55, 0
    %s58 = sadd.s32 %s57, 1
    %s59 = scalar_select %p56, %s57, %s58
    %p62 = pneg %p56
    %p63 = scmp.eq.s32.totalorder %s9, 1
    %p64 = por %p62, %p63
    %p65 = scmp.ne.s32.totalorder %s57, %s60
    %p66 = scmp.eq.s32.totalorder %s9, 0
    %p67 = por %p65, %p66
    %p68 = scmp.ne.s32.totalorder %s57, %s60
    %p69 = scmp.eq.s32.totalorder %s14, 1
    %p70 = por %p68, %p69
    %p71 = scmp.ne.s32.totalorder %s60, %s61
    %p72 = scmp.eq.s32.totalorder %s14, 0
    %p73 = por %p71, %p72
    %p74 = scmp.ne.s32.totalorder %s60, %s61
    %p75 = scmp.eq.s32.totalorder %s15, 1
    %p76 = por %p74, %p75
    %p78 = scmp.ne.s32.totalorder %s61, %s77
    %p79 = scmp.eq.s32.totalorder %s15, 0
    %p80 = por %p78, %p79
    %s81 = ssub.s32 %s17, %s24
    %p82 = scmp.eq.s32.totalorder %s81, 0
    %s84 = sadd.s32 %s83, 1
    %s85 = scalar_select %p82, %s83, %s84
    %p88 = pneg %p82
    %p89 = scmp.eq.s32.totalorder %s9, 1
    %p90 = por %p88, %p89
    %p91 = scmp.ne.s32.totalorder %s83, %s86
    %p92 = scmp.eq.s32.totalorder %s9, 0
    %p93 = por %p91, %p92
    %p94 = scmp.ne.s32.totalorder %s83, %s86
    %p95 = scmp.eq.s32.totalorder %s14, 1
    %p96 = por %p94, %p95
    %p97 = scmp.ne.s32.totalorder %s86, %s87
    %p98 = scmp.eq.s32.totalorder %s14, 0
    %p99 = por %p97, %p98
    %p100 = scmp.ne.s32.totalorder %s86, %s87
    %p101 = scmp.eq.s32.totalorder %s15, 1
    %p102 = por %p100, %p101
    %p104 = scmp.ne.s32.totalorder %s87, %s103
    %p105 = scmp.eq.s32.totalorder %s15, 0
    %p106 = por %p104, %p105
    %s107 = ssub.s32 %s16, %s28
    %s108 = ssub.s32 %s17, %s24
    %s109 = sor.u32 %s107, %s108
    %p110 = scmp.eq.s32.totalorder %s109, 0
    %s112 = sadd.s32 %s111, 1
    %s113 = scalar_select %p110, %s111, %s112
    %p116 = pneg %p110
    %p117 = scmp.eq.s32.totalorder %s9, 1
    %p118 = por %p116, %p117
    %p119 = scmp.ne.s32.totalorder %s111, %s114
    %p120 = scmp.eq.s32.totalorder %s9, 0
    %p121 = por %p119, %p120
    %p122 = scmp.ne.s32.totalorder %s111, %s114
    %p123 = scmp.eq.s32.totalorder %s14, 1
    %p124 = por %p122, %p123
    %p125 = scmp.ne.s32.totalorder %s114, %s115
    %p126 = scmp.eq.s32.totalorder %s14, 0
    %p127 = por %p125, %p126
    %p128 = scmp.ne.s32.totalorder %s114, %s115
    %p129 = scmp.eq.s32.totalorder %s15, 1
    %p130 = por %p128, %p129
    %p132 = scmp.ne.s32.totalorder %s115, %s131
    %p133 = scmp.eq.s32.totalorder %s15, 0
    %p134 = por %p132, %p133
    %p135 = scmp.le.s32.totalorder 1, %s9
    %p136 = scmp.lt.s32.totalorder %s9, 3
    %p137 = pnand %p135, %p136
    %p138 = pneg %p137
    // Predicated region
    $region9: #{vgg_base_forward.4} parent=5 // pred_check
      _
    $region10: #{vgg_base_forward.4} parent=5 // pred_check_branch
      %140 = sbr.rel (%p137) target = $region12
    $region11: #{vgg_base_forward.4} parent=5 // pred_region
      %s141 = ssub.s32 %s9, 1
      // Predicated region
      $region13: #{vgg_base_forward.4} parent=11 // pred_check
        %p142 = pneg %p73
      $region14: #{vgg_base_forward.4} parent=11 // pred_check_branch
        %144 = sbr.rel (%p142) target = $region16
      $region15: #{vgg_base_forward.4} parent=11 // pred_region
        %p145 = scmp.lt.s32.totalorder %s19, 0
        %s146 = scalar_select %p145, %s19, 0
        %s147 = smul.addr %s146, 4
        %s148 = scalar_lea.vmem %s1, %s147
      $region16: #{vgg_base_forward.4} parent=11 // pred_fallthru
        _
      // Predicated region
      $region17: #{vgg_base_forward.4} parent=11 // pred_check
        %p149 = pneg %p99
      $region18: #{vgg_base_forward.4} parent=11 // pred_check_branch
        %151 = sbr.rel (%p149) target = $region20
      $region19: #{vgg_base_forward.4} parent=11 // pred_region
        %p152 = scmp.lt.s32.totalorder %s19, 0
        %s153 = scalar_select %p152, %s19, 0
        %s154 = scalar_lea.vmem %s2, %s153
      $region20: #{vgg_base_forward.4} parent=11 // pred_fallthru
        _
    $region12: #{vgg_base_forward.4} parent=5 // pred_fallthru
      _
    %p155 = scmp.lt.s32.totalorder %s9, 2
    // Predicated region
    $region21: #{vgg_base_forward.4} parent=5 // pred_check
      %p156 = pneg %p155
    $region22: #{vgg_base_forward.4} parent=5 // pred_check_branch
      %158 = sbr.rel (%p156) target = $region24
    $region23: #{vgg_base_forward.4} parent=5 // pred_region
      // Predicated region
      $region25: #{vgg_base_forward.4} parent=23 // pred_check
        %p159 = pneg %p41
      $region26: #{vgg_base_forward.4} parent=23 // pred_check_branch
        %161 = sbr.rel (%p159) target = $region28
      $region27: #{vgg_base_forward.4} parent=23 // pred_region
        %p162 = scmp.lt.s32.totalorder %s16, 1
        %s163 = scalar_select %p162, %s16, 1
        %s164 = smul.addr %s163, 32
        %s165 = smul.addr %s164, 4
        %s166 = scalar_lea.vmem %s0, %s165
      $region28: #{vgg_base_forward.4} parent=23 // pred_fallthru
        _
    $region24: #{vgg_base_forward.4} parent=5 // pred_fallthru
      _
    %p167 = scmp.le.s32.totalorder 1, %s9
    %p168 = scmp.lt.s32.totalorder %s9, 3
    %p169 = pnand %p167, %p168
    %p170 = pneg %p169
    // Predicated region
    $region29: #{vgg_base_forward.4} parent=5 // pred_check
      _
    $region30: #{vgg_base_forward.4} parent=5 // pred_check_branch
      %172 = sbr.rel (%p169) target = $region32
    $region31: #{vgg_base_forward.4} parent=5 // pred_region
      %s173 = ssub.s32 %s9, 1
      %p174 = scmp.lt.s32.totalorder %s18, 1
      %s175 = scalar_select %p174, %s18, 1
      %s176 = smul.addr %s175, 32
      %s177 = smul.addr %s176, 4
      %s178 = scalar_lea.vmem %s0, %s177
      %p179 = pneg %p47
      %p180 = pneg %p44
      %p181 = scmp.lt.s32.totalorder %s19, 0
      %s182 = scalar_select %p181, %s19, 0
      %s183 = smul.addr %s182, 4
      %s184 = scalar_lea.vmem %s1, %s183
      %p185 = pneg %p73
      %p186 = pneg %p70
      %p187 = scmp.lt.s32.totalorder %s19, 0
      %s188 = scalar_select %p187, %s19, 0
      %s189 = scalar_lea.vmem %s2, %s188
      %p190 = pneg %p99
      %p191 = pneg %p96
      %p192 = pneg %p127
      %p193 = pneg %p124
      %p194 = scmp.lt.s32.totalorder %s18, 1
      %s195 = scalar_select %p194, %s18, 1
      %p196 = scmp.lt.s32.totalorder %s19, 0
      %s197 = scalar_select %p196, %s19, 0
      %s198 = smul.addr %s195, 8
      %s199 = sadd.s32 %s197, %s198
      %s200 = smul.addr %s199, 4
      %s201 = scalar_lea.vmem %s3, %s200
      %p202 = scmp.lt.s32.totalorder %s18, 1
      %s203 = scalar_select %p202, %s18, 1
      %s204 = smul.addr %s203, 32
      %s205 = smul.addr %s204, 4
      %s206 = scalar_lea.vmem %s0, %s205
      %p207 = scmp.lt.s32.totalorder %s19, 0
      %s208 = scalar_select %p207, %s19, 0
      %s209 = smul.addr %s208, 4
      %s210 = scalar_lea.vmem %s1, %s209
      %p211 = scmp.lt.s32.totalorder %s19, 0
      %s212 = scalar_select %p211, %s19, 0
      %s213 = scalar_lea.vmem %s2, %s212
      %p214 = scmp.lt.s32.totalorder %s18, 1
      %s215 = scalar_select %p214, %s18, 1
      %p216 = scmp.lt.s32.totalorder %s19, 0
      %s217 = scalar_select %p216, %s19, 0
      %s218 = smul.addr %s215, 8
      %s219 = sadd.s32 %s217, %s218
      %s220 = smul.addr %s219, 4
      %s221 = scalar_lea.vmem %s3, %s220
      %vm223 = vcmask 60416
      %224 = vst.msk [vmem:[#allocation2] sm:$0xf] %vm223, 0
      %225 = vst.msk [vmem:[#allocation2 + $0x4] sm:$0xf] %vm223, 0
      %vm226 = vcmask 57344
      %227 = vst.msk [vmem:[#allocation2 + $0x8] sm:$0x1] %vm226, 0
      %228 = vst.msk [vmem:[#allocation2 + $0xc] sm:$0xf] %vm223, 0
      %229 = vst.msk [vmem:[#allocation2 + $0x10] sm:$0xf] %vm223, 0
      %230 = vst.msk [vmem:[#allocation2 + $0x14] sm:$0x1] %vm226, 0
      %231 = vst.msk [vmem:[#allocation2 + $0x18] sm:$0xf] %vm223, 0
      %232 = vst.msk [vmem:[#allocation2 + $0x1c] sm:$0xf] %vm223, 0
      %233 = vst.msk [vmem:[#allocation2 + $0x20] sm:$0x1] %vm226, 0
      %234 = vst.msk [vmem:[#allocation2 + $0x24] sm:$0xf] %vm223, 0
      %235 = vst.msk [vmem:[#allocation2 + $0x28] sm:$0xf] %vm223, 0
      %236 = vst.msk [vmem:[#allocation2 + $0x2c] sm:$0x1] %vm226, 0
      %237 = vst.msk [vmem:[#allocation2 + $0x30] sm:$0xf] %vm223, 0
      %238 = vst.msk [vmem:[#allocation2 + $0x34] sm:$0xf] %vm223, 0
      %239 = vst.msk [vmem:[#allocation2 + $0x38] sm:$0x1] %vm226, 0
      %240 = vst.msk [vmem:[#allocation2 + $0x3c] sm:$0xf] %vm223, 0
      %241 = vst.msk [vmem:[#allocation2 + $0x40] sm:$0xf] %vm223, 0
      %242 = vst.msk [vmem:[#allocation2 + $0x44] sm:$0x1] %vm226, 0
      %243 = vst.msk [vmem:[#allocation2 + $0x48] sm:$0xf] %vm223, 0
      %244 = vst.msk [vmem:[#allocation2 + $0x4c] sm:$0xf] %vm223, 0
      %245 = vst.msk [vmem:[#allocation2 + $0x50] sm:$0x1] %vm226, 0
      %246 = vst.msk [vmem:[#allocation2 + $0x54] sm:$0xf] %vm223, 0
      %247 = vst.msk [vmem:[#allocation2 + $0x58] sm:$0xf] %vm223, 0
      %248 = vst.msk [vmem:[#allocation2 + $0x5c] sm:$0x1] %vm226, 0
      %249 = vst.msk [vmem:[#allocation2 + $0x60] sm:$0xf] %vm223, 0
      %250 = vst.msk [vmem:[#allocation2 + $0x64] sm:$0xf] %vm223, 0
      %251 = vst.msk [vmem:[#allocation2 + $0x68] sm:$0x1] %vm226, 0
      %252 = vst.msk [vmem:[#allocation2 + $0x6c] sm:$0xf] %vm223, 0
      %253 = vst.msk [vmem:[#allocation2 + $0x70] sm:$0xf] %vm223, 0
      %254 = vst.msk [vmem:[#allocation2 + $0x74] sm:$0x1] %vm226, 0
      %255 = vst.msk [vmem:[#allocation2 + $0x78] sm:$0xf] %vm223, 0
      %256 = vst.msk [vmem:[#allocation2 + $0x7c] sm:$0xf] %vm223, 0
      %257 = vst.msk [vmem:[#allocation2 + $0x80] sm:$0x1] %vm226, 0
      %258 = vst.msk [vmem:[#allocation2 + $0x84] sm:$0xf] %vm223, 0
      %259 = vst.msk [vmem:[#allocation2 + $0x88] sm:$0xf] %vm223, 0
      %260 = vst.msk [vmem:[#allocation2 + $0x8c] sm:$0x1] %vm226, 0
      %261 = vst.msk [vmem:[#allocation2 + $0x90] sm:$0xf] %vm223, 0
      %262 = vst.msk [vmem:[#allocation2 + $0x94] sm:$0xf] %vm223, 0
      %263 = vst.msk [vmem:[#allocation2 + $0x98] sm:$0x1] %vm226, 0
      %264 = vst.msk [vmem:[#allocation2 + $0x9c] sm:$0xf] %vm223, 0
      %265 = vst.msk [vmem:[#allocation2 + $0xa0] sm:$0xf] %vm223, 0
      %266 = vst.msk [vmem:[#allocation2 + $0xa4] sm:$0x1] %vm226, 0
      %267 = vst.msk [vmem:[#allocation2 + $0xa8] sm:$0xf] %vm223, 0
      %268 = vst.msk [vmem:[#allocation2 + $0xac] sm:$0xf] %vm223, 0
      %269 = vst.msk [vmem:[#allocation2 + $0xb0] sm:$0x1] %vm226, 0
      %270 = vst.msk [vmem:[#allocation2 + $0xb4] sm:$0xf] %vm223, 0
      %271 = vst.msk [vmem:[#allocation2 + $0xb8] sm:$0xf] %vm223, 0
      %272 = vst.msk [vmem:[#allocation2 + $0xbc] sm:$0x1] %vm226, 0
      %273 = vst.msk [vmem:[#allocation2 + $0xc0] sm:$0xf] %vm223, 0
      %274 = vst.msk [vmem:[#allocation2 + $0xc4] sm:$0xf] %vm223, 0
      %275 = vst.msk [vmem:[#allocation2 + $0xc8] sm:$0x1] %vm226, 0
      %276 = vst.msk [vmem:[#allocation2 + $0xcc] sm:$0xf] %vm223, 0
      %277 = vst.msk [vmem:[#allocation2 + $0xd0] sm:$0xf] %vm223, 0
      %278 = vst.msk [vmem:[#allocation2 + $0xd4] sm:$0x1] %vm226, 0
      %v279 = vld [vmem:[%s206] sm:$0xf]
      %v280 = vld [vmem:[%s206 + $0x4] sm:$0xf]
      %v281 = vld [vmem:[%s206 + $0x8] sm:$0xf]
      %v282 = vld [vmem:[%s206 + $0xc] sm:$0xf]
      %v283 = vld [vmem:[%s206 + $0x10] sm:$0xf]
      %v284 = vld [vmem:[%s206 + $0x14] sm:$0xf]
      %v285 = vld [vmem:[%s206 + $0x18] sm:$0xf]
      %v286 = vld [vmem:[%s206 + $0x1c] sm:$0xf]
      %v287 = vld [vmem:[%s206 + $0x20] sm:$0xf]
      %v288 = vld [vmem:[%s206 + $0x24] sm:$0xf]
      %v289 = vld [vmem:[%s206 + $0x28] sm:$0xf]
      %v290 = vld [vmem:[%s206 + $0x2c] sm:$0xf]
      %v291 = vld [vmem:[%s206 + $0x30] sm:$0xf]
      %v292 = vld [vmem:[%s206 + $0x34] sm:$0xf]
      %v293 = vld [vmem:[%s206 + $0x38] sm:$0xf]
      %v294 = vld [vmem:[%s206 + $0x3c] sm:$0xf]
      %v295 = vld [vmem:[%s206 + $0x40] sm:$0xf]
      %v296 = vld [vmem:[%s206 + $0x44] sm:$0xf]
      %v297 = vld [vmem:[%s206 + $0x48] sm:$0xf]
      %v298 = vld [vmem:[%s206 + $0x4c] sm:$0xf]
      %v299 = vld [vmem:[%s206 + $0x50] sm:$0xf]
      %v300 = vld [vmem:[%s206 + $0x54] sm:$0xf]
      %v301 = vld [vmem:[%s206 + $0x58] sm:$0xf]
      %v302 = vld [vmem:[%s206 + $0x5c] sm:$0xf]
      %v303 = vld [vmem:[%s206 + $0x60] sm:$0xf]
      %v304 = vld [vmem:[%s206 + $0x64] sm:$0xf]
      %v305 = vld [vmem:[%s206 + $0x68] sm:$0xf]
      %v306 = vld [vmem:[%s206 + $0x6c] sm:$0xf]
      %v307 = vld [vmem:[%s206 + $0x70] sm:$0xf]
      %v308 = vld [vmem:[%s206 + $0x74] sm:$0xf]
      %v309 = vld [vmem:[%s206 + $0x78] sm:$0xf]
      %v310 = vld [vmem:[%s206 + $0x7c] sm:$0xf]
      %vm311 = vsmask.f32 256
      %vm312 = vsmask.f32 4368
      %vm313 = vmor %vm311, %vm312
      %v315 = vshrl.u32 %v279, 16
      %v317 = vrot.slane %v315, 7
      %v318 = vshll.u32 %v279, 16
      %v320 = vor.u32 %v317, %v318
      %v321 = vrot.slane %v317, 4
      %v323 = vshrl.u32 %v280, 16
      %v325 = vrot.slane %v323, 7
      %v326 = vshll.u32 %v280, 16
      %v328 = vor.u32 %v325, %v326
      %v329 = vsel %vm313, %v321, %v328
      %v330 = vrot.slane %v325, 4
      %v332 = vshrl.u32 %v281, 16
      %v334 = vrot.slane %v332, 7
      %v335 = vshll.u32 %v281, 16
      %v337 = vor.u32 %v334, %v335
      %v338 = vrot.slane %v334, 4
      %v340 = vshrl.u32 %v282, 16
      %v342 = vrot.slane %v340, 7
      %v343 = vshll.u32 %v282, 16
      %v345 = vor.u32 %v342, %v343
      %v346 = vsel %vm313, %v338, %v345
      %v347 = vrot.slane %v342, 4
      %v349 = vshrl.u32 %v283, 16
      %v351 = vrot.slane %v349, 7
      %v352 = vshll.u32 %v283, 16
      %v354 = vor.u32 %v351, %v352
      %v355 = vrot.slane %v351, 4
      %v357 = vshrl.u32 %v284, 16
      %v359 = vrot.slane %v357, 7
      %v360 = vshll.u32 %v284, 16
      %v362 = vor.u32 %v359, %v360
      %v363 = vsel %vm313, %v355, %v362
      %v364 = vrot.slane %v359, 4
      %v366 = vshrl.u32 %v285, 16
      %v368 = vrot.slane %v366, 7
      %v369 = vshll.u32 %v285, 16
      %v371 = vor.u32 %v368, %v369
      %v372 = vrot.slane %v368, 4
      %v374 = vshrl.u32 %v286, 16
      %v376 = vrot.slane %v374, 7
      %v377 = vshll.u32 %v286, 16
      %v379 = vor.u32 %v376, %v377
      %v380 = vsel %vm313, %v372, %v379
      %v381 = vrot.slane %v376, 4
      %v383 = vshrl.u32 %v287, 16
      %v385 = vrot.slane %v383, 7
      %v386 = vshll.u32 %v287, 16
      %v388 = vor.u32 %v385, %v386
      %v389 = vrot.slane %v385, 4
      %v391 = vshrl.u32 %v288, 16
      %v393 = vrot.slane %v391, 7
      %v394 = vshll.u32 %v288, 16
      %v396 = vor.u32 %v393, %v394
      %v397 = vsel %vm313, %v389, %v396
      %v398 = vrot.slane %v393, 4
      %v400 = vshrl.u32 %v289, 16
      %v402 = vrot.slane %v400, 7
      %v403 = vshll.u32 %v289, 16
      %v405 = vor.u32 %v402, %v403
      %v406 = vrot.slane %v402, 4
      %v408 = vshrl.u32 %v290, 16
      %v410 = vrot.slane %v408, 7
      %v411 = vshll.u32 %v290, 16
      %v413 = vor.u32 %v410, %v411
      %v414 = vsel %vm313, %v406, %v413
      %v415 = vrot.slane %v410, 4
      %v417 = vshrl.u32 %v291, 16
      %v419 = vrot.slane %v417, 7
      %v420 = vshll.u32 %v291, 16
      %v422 = vor.u32 %v419, %v420
      %v423 = vrot.slane %v419, 4
      %v425 = vshrl.u32 %v292, 16
      %v427 = vrot.slane %v425, 7
      %v428 = vshll.u32 %v292, 16
      %v430 = vor.u32 %v427, %v428
      %v431 = vsel %vm313, %v423, %v430
      %v432 = vrot.slane %v427, 4
      %v434 = vshrl.u32 %v293, 16
      %v436 = vrot.slane %v434, 7
      %v437 = vshll.u32 %v293, 16
      %v439 = vor.u32 %v436, %v437
      %v440 = vrot.slane %v436, 4
      %v442 = vshrl.u32 %v294, 16
      %v444 = vrot.slane %v442, 7
      %v445 = vshll.u32 %v294, 16
      %v447 = vor.u32 %v444, %v445
      %v448 = vsel %vm313, %v440, %v447
      %v449 = vrot.slane %v444, 4
      %v451 = vshrl.u32 %v295, 16
      %v453 = vrot.slane %v451, 7
      %v454 = vshll.u32 %v295, 16
      %v456 = vor.u32 %v453, %v454
      %v457 = vrot.slane %v453, 4
      %v459 = vshrl.u32 %v296, 16
      %v461 = vrot.slane %v459, 7
      %v462 = vshll.u32 %v296, 16
      %v464 = vor.u32 %v461, %v462
      %v465 = vsel %vm313, %v457, %v464
      %v466 = vrot.slane %v461, 4
      %v468 = vshrl.u32 %v297, 16
      %v470 = vrot.slane %v468, 7
      %v471 = vshll.u32 %v297, 16
      %v473 = vor.u32 %v470, %v471
      %v474 = vrot.slane %v470, 4
      %v476 = vshrl.u32 %v298, 16
      %v478 = vrot.slane %v476, 7
      %v479 = vshll.u32 %v298, 16
      %v481 = vor.u32 %v478, %v479
      %v482 = vsel %vm313, %v474, %v481
      %v483 = vrot.slane %v478, 4
      %v485 = vshrl.u32 %v299, 16
      %v487 = vrot.slane %v485, 7
      %v488 = vshll.u32 %v299, 16
      %v490 = vor.u32 %v487, %v488
      %v491 = vrot.slane %v487, 4
      %v493 = vshrl.u32 %v300, 16
      %v495 = vrot.slane %v493, 7
      %v496 = vshll.u32 %v300, 16
      %v498 = vor.u32 %v495, %v496
      %v499 = vsel %vm313, %v491, %v498
      %v500 = vrot.slane %v495, 4
      %v502 = vshrl.u32 %v301, 16
      %v504 = vrot.slane %v502, 7
      %v505 = vshll.u32 %v301, 16
      %v507 = vor.u32 %v504, %v505
      %v508 = vrot.slane %v504, 4
      %v510 = vshrl.u32 %v302, 16
      %v512 = vrot.slane %v510, 7
      %v513 = vshll.u32 %v302, 16
      %v515 = vor.u32 %v512, %v513
      %v516 = vsel %vm313, %v508, %v515
      %v517 = vrot.slane %v512, 4
      %v519 = vshrl.u32 %v303, 16
      %v521 = vrot.slane %v519, 7
      %v522 = vshll.u32 %v303, 16
      %v524 = vor.u32 %v521, %v522
      %v525 = vrot.slane %v521, 4
      %v527 = vshrl.u32 %v304, 16
      %v529 = vrot.slane %v527, 7
      %v530 = vshll.u32 %v304, 16
      %v532 = vor.u32 %v529, %v530
      %v533 = vsel %vm313, %v525, %v532
      %v534 = vrot.slane %v529, 4
      %v536 = vshrl.u32 %v305, 16
      %v538 = vrot.slane %v536, 7
      %v539 = vshll.u32 %v305, 16
      %v541 = vor.u32 %v538, %v539
      %v542 = vrot.slane %v538, 4
      %v544 = vshrl.u32 %v306, 16
      %v546 = vrot.slane %v544, 7
      %v547 = vshll.u32 %v306, 16
      %v549 = vor.u32 %v546, %v547
      %v550 = vsel %vm313, %v542, %v549
      %v551 = vrot.slane %v546, 4
      %v553 = vshrl.u32 %v307, 16
      %v555 = vrot.slane %v553, 7
      %v556 = vshll.u32 %v307, 16
      %v558 = vor.u32 %v555, %v556
      %v559 = vrot.slane %v555, 4
      %v561 = vshrl.u32 %v308, 16
      %v563 = vrot.slane %v561, 7
      %v564 = vshll.u32 %v308, 16
      %v566 = vor.u32 %v563, %v564
      %v567 = vsel %vm313, %v559, %v566
      %v568 = vrot.slane %v563, 4
      %v570 = vshrl.u32 %v309, 16
      %v572 = vrot.slane %v570, 7
      %v573 = vshll.u32 %v309, 16
      %v575 = vor.u32 %v572, %v573
      %v576 = vrot.slane %v572, 4
      %v578 = vshrl.u32 %v310, 16
      %v580 = vrot.slane %v578, 7
      %v581 = vshll.u32 %v310, 16
      %v583 = vor.u32 %v580, %v581
      %v584 = vsel %vm313, %v576, %v583
      %v585 = vrot.slane %v580, 4
      %s634 = scalar_lea.vmem [#allocation2], 12
      %vm635 = vcmask 60416
      %vm636 = vsmask.f32 7938
      %vm637 = vmand %vm635, %vm636
      %v638 = vld [vmem:[%s634] sm:$0xf]
      %v639 = vsel %vm637, %v320, %v638
      %640 = vst [vmem:[%s634] sm:$0xf] %v639
      %641 = vst.msk [vmem:[%s634 + $0x4] sm:$0xf] %vm223, %v329
      %vm642 = vcmask 57344
      %vm643 = vmand %vm642, %vm311
      %v644 = vld [vmem:[%s634 + $0x8] sm:$0x1]
      %v645 = vsel %vm643, %v330, %v644
      %646 = vst [vmem:[%s634 + $0x8] sm:$0x1] %v645
      %v647 = vld [vmem:[%s634 + $0xc] sm:$0xf]
      %v648 = vsel %vm637, %v337, %v647
      %649 = vst [vmem:[%s634 + $0xc] sm:$0xf] %v648
      %650 = vst.msk [vmem:[%s634 + $0x10] sm:$0xf] %vm223, %v346
      %v651 = vld [vmem:[%s634 + $0x14] sm:$0x1]
      %v652 = vsel %vm643, %v347, %v651
      %653 = vst [vmem:[%s634 + $0x14] sm:$0x1] %v652
      %v654 = vld [vmem:[%s634 + $0x18] sm:$0xf]
      %v655 = vsel %vm637, %v354, %v654
      %656 = vst [vmem:[%s634 + $0x18] sm:$0xf] %v655
      %657 = vst.msk [vmem:[%s634 + $0x1c] sm:$0xf] %vm223, %v363
      %v658 = vld [vmem:[%s634 + $0x20] sm:$0x1]
      %v659 = vsel %vm643, %v364, %v658
      %660 = vst [vmem:[%s634 + $0x20] sm:$0x1] %v659
      %v661 = vld [vmem:[%s634 + $0x24] sm:$0xf]
      %v662 = vsel %vm637, %v371, %v661
      %663 = vst [vmem:[%s634 + $0x24] sm:$0xf] %v662
      %664 = vst.msk [vmem:[%s634 + $0x28] sm:$0xf] %vm223, %v380
      %v665 = vld [vmem:[%s634 + $0x2c] sm:$0x1]
      %v666 = vsel %vm643, %v381, %v665
      %667 = vst [vmem:[%s634 + $0x2c] sm:$0x1] %v666
      %v668 = vld [vmem:[%s634 + $0x30] sm:$0xf]
      %v669 = vsel %vm637, %v388, %v668
      %670 = vst [vmem:[%s634 + $0x30] sm:$0xf] %v669
      %671 = vst.msk [vmem:[%s634 + $0x34] sm:$0xf] %vm223, %v397
      %v672 = vld [vmem:[%s634 + $0x38] sm:$0x1]
      %v673 = vsel %vm643, %v398, %v672
      %674 = vst [vmem:[%s634 + $0x38] sm:$0x1] %v673
      %v675 = vld [vmem:[%s634 + $0x3c] sm:$0xf]
      %v676 = vsel %vm637, %v405, %v675
      %677 = vst [vmem:[%s634 + $0x3c] sm:$0xf] %v676
      %678 = vst.msk [vmem:[%s634 + $0x40] sm:$0xf] %vm223, %v414
      %v679 = vld [vmem:[%s634 + $0x44] sm:$0x1]
      %v680 = vsel %vm643, %v415, %v679
      %681 = vst [vmem:[%s634 + $0x44] sm:$0x1] %v680
      %v682 = vld [vmem:[%s634 + $0x48] sm:$0xf]
      %v683 = vsel %vm637, %v422, %v682
      %684 = vst [vmem:[%s634 + $0x48] sm:$0xf] %v683
      %685 = vst.msk [vmem:[%s634 + $0x4c] sm:$0xf] %vm223, %v431
      %v686 = vld [vmem:[%s634 + $0x50] sm:$0x1]
      %v687 = vsel %vm643, %v432, %v686
      %688 = vst [vmem:[%s634 + $0x50] sm:$0x1] %v687
      %v689 = vld [vmem:[%s634 + $0x54] sm:$0xf]
      %v690 = vsel %vm637, %v439, %v689
      %691 = vst [vmem:[%s634 + $0x54] sm:$0xf] %v690
      %692 = vst.msk [vmem:[%s634 + $0x58] sm:$0xf] %vm223, %v448
      %v693 = vld [vmem:[%s634 + $0x5c] sm:$0x1]
      %v694 = vsel %vm643, %v449, %v693
      %695 = vst [vmem:[%s634 + $0x5c] sm:$0x1] %v694
      %v696 = vld [vmem:[%s634 + $0x60] sm:$0xf]
      %v697 = vsel %vm637, %v456, %v696
      %698 = vst [vmem:[%s634 + $0x60] sm:$0xf] %v697
      %699 = vst.msk [vmem:[%s634 + $0x64] sm:$0xf] %vm223, %v465
      %v700 = vld [vmem:[%s634 + $0x68] sm:$0x1]
      %v701 = vsel %vm643, %v466, %v700
      %702 = vst [vmem:[%s634 + $0x68] sm:$0x1] %v701
      %v703 = vld [vmem:[%s634 + $0x6c] sm:$0xf]
      %v704 = vsel %vm637, %v473, %v703
      %705 = vst [vmem:[%s634 + $0x6c] sm:$0xf] %v704
      %706 = vst.msk [vmem:[%s634 + $0x70] sm:$0xf] %vm223, %v482
      %v707 = vld [vmem:[%s634 + $0x74] sm:$0x1]
      %v708 = vsel %vm643, %v483, %v707
      %709 = vst [vmem:[%s634 + $0x74] sm:$0x1] %v708
      %v710 = vld [vmem:[%s634 + $0x78] sm:$0xf]
      %v711 = vsel %vm637, %v490, %v710
      %712 = vst [vmem:[%s634 + $0x78] sm:$0xf] %v711
      %713 = vst.msk [vmem:[%s634 + $0x7c] sm:$0xf] %vm223, %v499
      %v714 = vld [vmem:[%s634 + $0x80] sm:$0x1]
      %v715 = vsel %vm643, %v500, %v714
      %716 = vst [vmem:[%s634 + $0x80] sm:$0x1] %v715
      %v717 = vld [vmem:[%s634 + $0x84] sm:$0xf]
      %v718 = vsel %vm637, %v507, %v717
      %719 = vst [vmem:[%s634 + $0x84] sm:$0xf] %v718
      %720 = vst.msk [vmem:[%s634 + $0x88] sm:$0xf] %vm223, %v516
      %v721 = vld [vmem:[%s634 + $0x8c] sm:$0x1]
      %v722 = vsel %vm643, %v517, %v721
      %723 = vst [vmem:[%s634 + $0x8c] sm:$0x1] %v722
      %v724 = vld [vmem:[%s634 + $0x90] sm:$0xf]
      %v725 = vsel %vm637, %v524, %v724
      %726 = vst [vmem:[%s634 + $0x90] sm:$0xf] %v725
      %727 = vst.msk [vmem:[%s634 + $0x94] sm:$0xf] %vm223, %v533
      %v728 = vld [vmem:[%s634 + $0x98] sm:$0x1]
      %v729 = vsel %vm643, %v534, %v728
      %730 = vst [vmem:[%s634 + $0x98] sm:$0x1] %v729
      %v731 = vld [vmem:[%s634 + $0x9c] sm:$0xf]
      %v732 = vsel %vm637, %v541, %v731
      %733 = vst [vmem:[%s634 + $0x9c] sm:$0xf] %v732
      %734 = vst.msk [vmem:[%s634 + $0xa0] sm:$0xf] %vm223, %v550
      %v735 = vld [vmem:[%s634 + $0xa4] sm:$0x1]
      %v736 = vsel %vm643, %v551, %v735
      %737 = vst [vmem:[%s634 + $0xa4] sm:$0x1] %v736
      %v738 = vld [vmem:[%s634 + $0xa8] sm:$0xf]
      %v739 = vsel %vm637, %v558, %v738
      %740 = vst [vmem:[%s634 + $0xa8] sm:$0xf] %v739
      %741 = vst.msk [vmem:[%s634 + $0xac] sm:$0xf] %vm223, %v567
      %v742 = vld [vmem:[%s634 + $0xb0] sm:$0x1]
      %v743 = vsel %vm643, %v568, %v742
      %744 = vst [vmem:[%s634 + $0xb0] sm:$0x1] %v743
      %v745 = vld [vmem:[%s634 + $0xb4] sm:$0xf]
      %v746 = vsel %vm637, %v575, %v745
      %747 = vst [vmem:[%s634 + $0xb4] sm:$0xf] %v746
      %748 = vst.msk [vmem:[%s634 + $0xb8] sm:$0xf] %vm223, %v584
      %v749 = vld [vmem:[%s634 + $0xbc] sm:$0x1]
      %v750 = vsel %vm643, %v585, %v749
      %751 = vst [vmem:[%s634 + $0xbc] sm:$0x1] %v750
      %v752 = vld [vmem:[#allocation2] sm:$0xf]
      %v753 = vld [vmem:[#allocation2 + $0x4] sm:$0xf]
      %v754 = vld [vmem:[#allocation2 + $0xc] sm:$0xf]
      %v755 = vld [vmem:[#allocation2 + $0x10] sm:$0xf]
      %v756 = vld [vmem:[#allocation2 + $0x18] sm:$0xf]
      %v757 = vld [vmem:[#allocation2 + $0x1c] sm:$0xf]
      %v758 = vld [vmem:[#allocation2 + $0x24] sm:$0xf]
      %v759 = vld [vmem:[#allocation2 + $0x28] sm:$0xf]
      %v760 = vld [vmem:[#allocation2 + $0x30] sm:$0xf]
      %v761 = vld [vmem:[#allocation2 + $0x34] sm:$0xf]
      %v762 = vld [vmem:[#allocation2 + $0x3c] sm:$0xf]
      %v763 = vld [vmem:[#allocation2 + $0x40] sm:$0xf]
      %v764 = vld [vmem:[#allocation2 + $0x48] sm:$0xf]
      %v765 = vld [vmem:[#allocation2 + $0x4c] sm:$0xf]
      %v766 = vld [vmem:[#allocation2 + $0x54] sm:$0xf]
      %v767 = vld [vmem:[#allocation2 + $0x58] sm:$0xf]
      %v768 = vld [vmem:[#allocation2 + $0x60] sm:$0xf]
      %v769 = vld [vmem:[#allocation2 + $0x64] sm:$0xf]
      %v770 = vld [vmem:[#allocation2 + $0x6c] sm:$0xf]
      %v771 = vld [vmem:[#allocation2 + $0x70] sm:$0xf]
      %v772 = vld [vmem:[#allocation2 + $0x78] sm:$0xf]
      %v773 = vld [vmem:[#allocation2 + $0x7c] sm:$0xf]
      %v774 = vld [vmem:[#allocation2 + $0x84] sm:$0xf]
      %v775 = vld [vmem:[#allocation2 + $0x88] sm:$0xf]
      %v776 = vld [vmem:[#allocation2 + $0x90] sm:$0xf]
      %v777 = vld [vmem:[#allocation2 + $0x94] sm:$0xf]
      %v778 = vld [vmem:[#allocation2 + $0x9c] sm:$0xf]
      %v779 = vld [vmem:[#allocation2 + $0xa0] sm:$0xf]
      %v780 = vld [vmem:[#allocation2 + $0xa8] sm:$0xf]
      %v781 = vld [vmem:[#allocation2 + $0xac] sm:$0xf]
      %v782 = vld [vmem:[#allocation2 + $0xb4] sm:$0xf]
      %v783 = vld [vmem:[#allocation2 + $0xb8] sm:$0xf]
      %v784 = vld [vmem:[#allocation2 + $0x8] sm:$0x1]
      %v785 = vld [vmem:[#allocation2 + $0x14] sm:$0x1]
      %v786 = vld [vmem:[#allocation2 + $0x20] sm:$0x1]
      %v787 = vld [vmem:[#allocation2 + $0x2c] sm:$0x1]
      %v788 = vld [vmem:[#allocation2 + $0x38] sm:$0x1]
      %v789 = vld [vmem:[#allocation2 + $0x44] sm:$0x1]
      %v790 = vld [vmem:[#allocation2 + $0x50] sm:$0x1]
      %v791 = vld [vmem:[#allocation2 + $0x5c] sm:$0x1]
      %v792 = vld [vmem:[#allocation2 + $0x68] sm:$0x1]
      %v793 = vld [vmem:[#allocation2 + $0x74] sm:$0x1]
      %v794 = vld [vmem:[#allocation2 + $0x80] sm:$0x1]
      %v795 = vld [vmem:[#allocation2 + $0x8c] sm:$0x1]
      %v796 = vld [vmem:[#allocation2 + $0x98] sm:$0x1]
      %v797 = vld [vmem:[#allocation2 + $0xa4] sm:$0x1]
      %v798 = vld [vmem:[#allocation2 + $0xb0] sm:$0x1]
      %v799 = vld [vmem:[#allocation2 + $0xbc] sm:$0x1]
      %v800 = vld [vmem:[#allocation2] sm:$0xe]
      %v801 = vld [vmem:[#allocation2 + $0xc] sm:$0xe]
      %v802 = vld [vmem:[#allocation2 + $0x18] sm:$0xe]
      %v803 = vld [vmem:[#allocation2 + $0x24] sm:$0xe]
      %v804 = vld [vmem:[#allocation2 + $0x30] sm:$0xe]
      %v805 = vld [vmem:[#allocation2 + $0x3c] sm:$0xe]
      %v806 = vld [vmem:[#allocation2 + $0x48] sm:$0xe]
      %v807 = vld [vmem:[#allocation2 + $0x54] sm:$0xe]
      %v808 = vld [vmem:[#allocation2 + $0x60] sm:$0xe]
      %v809 = vld [vmem:[#allocation2 + $0x6c] sm:$0xe]
      %v810 = vld [vmem:[#allocation2 + $0x78] sm:$0xe]
      %v811 = vld [vmem:[#allocation2 + $0x84] sm:$0xe]
      %v812 = vld [vmem:[#allocation2 + $0x90] sm:$0xe]
      %v813 = vld [vmem:[#allocation2 + $0x9c] sm:$0xe]
      %v814 = vld [vmem:[#allocation2 + $0xa8] sm:$0xe]
      %v815 = vld [vmem:[#allocation2 + $0xb4] sm:$0xe]
      %v816 = vld [vmem:[%s634] sm:$0xf]
      %v817 = vld [vmem:[%s634 + $0x4] sm:$0xf]
      %v818 = vld [vmem:[%s634 + $0xc] sm:$0xf]
      %v819 = vld [vmem:[%s634 + $0x10] sm:$0xf]
      %v820 = vld [vmem:[%s634 + $0x18] sm:$0xf]
      %v821 = vld [vmem:[%s634 + $0x1c] sm:$0xf]
      %v822 = vld [vmem:[%s634 + $0x24] sm:$0xf]
      %v823 = vld [vmem:[%s634 + $0x28] sm:$0xf]
      %v824 = vld [vmem:[%s634 + $0x30] sm:$0xf]
      %v825 = vld [vmem:[%s634 + $0x34] sm:$0xf]
      %v826 = vld [vmem:[%s634 + $0x3c] sm:$0xf]
      %v827 = vld [vmem:[%s634 + $0x40] sm:$0xf]
      %v828 = vld [vmem:[%s634 + $0x48] sm:$0xf]
      %v829 = vld [vmem:[%s634 + $0x4c] sm:$0xf]
      %v830 = vld [vmem:[%s634 + $0x54] sm:$0xf]
      %v831 = vld [vmem:[%s634 + $0x58] sm:$0xf]
      %v832 = vld [vmem:[%s634 + $0x60] sm:$0xf]
      %v833 = vld [vmem:[%s634 + $0x64] sm:$0xf]
      %v834 = vld [vmem:[%s634 + $0x6c] sm:$0xf]
      %v835 = vld [vmem:[%s634 + $0x70] sm:$0xf]
      %v836 = vld [vmem:[%s634 + $0x78] sm:$0xf]
      %v837 = vld [vmem:[%s634 + $0x7c] sm:$0xf]
      %v838 = vld [vmem:[%s634 + $0x84] sm:$0xf]
      %v839 = vld [vmem:[%s634 + $0x88] sm:$0xf]
      %v840 = vld [vmem:[%s634 + $0x90] sm:$0xf]
      %v841 = vld [vmem:[%s634 + $0x94] sm:$0xf]
      %v842 = vld [vmem:[%s634 + $0x9c] sm:$0xf]
      %v843 = vld [vmem:[%s634 + $0xa0] sm:$0xf]
      %v844 = vld [vmem:[%s634 + $0xa8] sm:$0xf]
      %v845 = vld [vmem:[%s634 + $0xac] sm:$0xf]
      %v846 = vld [vmem:[%s634 + $0xb4] sm:$0xf]
      %v847 = vld [vmem:[%s634 + $0xb8] sm:$0xf]
      %v848 = vld [vmem:[%s634 + $0x8] sm:$0x1]
      %v849 = vld [vmem:[%s634 + $0x14] sm:$0x1]
      %v850 = vld [vmem:[%s634 + $0x20] sm:$0x1]
      %v851 = vld [vmem:[%s634 + $0x2c] sm:$0x1]
      %v852 = vld [vmem:[%s634 + $0x38] sm:$0x1]
      %v853 = vld [vmem:[%s634 + $0x44] sm:$0x1]
      %v854 = vld [vmem:[%s634 + $0x50] sm:$0x1]
      %v855 = vld [vmem:[%s634 + $0x5c] sm:$0x1]
      %v856 = vld [vmem:[%s634 + $0x68] sm:$0x1]
      %v857 = vld [vmem:[%s634 + $0x74] sm:$0x1]
      %v858 = vld [vmem:[%s634 + $0x80] sm:$0x1]
      %v859 = vld [vmem:[%s634 + $0x8c] sm:$0x1]
      %v860 = vld [vmem:[%s634 + $0x98] sm:$0x1]
      %v861 = vld [vmem:[%s634 + $0xa4] sm:$0x1]
      %v862 = vld [vmem:[%s634 + $0xb0] sm:$0x1]
      %v863 = vld [vmem:[%s634 + $0xbc] sm:$0x1]
      %v864 = vld [vmem:[%s634] sm:$0xe]
      %v865 = vld [vmem:[%s634 + $0xc] sm:$0xe]
      %v866 = vld [vmem:[%s634 + $0x18] sm:$0xe]
      %v867 = vld [vmem:[%s634 + $0x24] sm:$0xe]
      %v868 = vld [vmem:[%s634 + $0x30] sm:$0xe]
      %v869 = vld [vmem:[%s634 + $0x3c] sm:$0xe]
      %v870 = vld [vmem:[%s634 + $0x48] sm:$0xe]
      %v871 = vld [vmem:[%s634 + $0x54] sm:$0xe]
      %v872 = vld [vmem:[%s634 + $0x60] sm:$0xe]
      %v873 = vld [vmem:[%s634 + $0x6c] sm:$0xe]
      %v874 = vld [vmem:[%s634 + $0x78] sm:$0xe]
      %v875 = vld [vmem:[%s634 + $0x84] sm:$0xe]
      %v876 = vld [vmem:[%s634 + $0x90] sm:$0xe]
      %v877 = vld [vmem:[%s634 + $0x9c] sm:$0xe]
      %v878 = vld [vmem:[%s634 + $0xa8] sm:$0xe]
      %v879 = vld [vmem:[%s634 + $0xb4] sm:$0xe]
      %s880 = scalar_lea.vmem [#allocation2], 24
      %v881 = vld [vmem:[%s880] sm:$0xf]
      %v882 = vld [vmem:[%s880 + $0x4] sm:$0xf]
      %v883 = vld [vmem:[%s880 + $0xc] sm:$0xf]
      %v884 = vld [vmem:[%s880 + $0x10] sm:$0xf]
      %v885 = vld [vmem:[%s880 + $0x18] sm:$0xf]
      %v886 = vld [vmem:[%s880 + $0x1c] sm:$0xf]
      %v887 = vld [vmem:[%s880 + $0x24] sm:$0xf]
      %v888 = vld [vmem:[%s880 + $0x28] sm:$0xf]
      %v889 = vld [vmem:[%s880 + $0x30] sm:$0xf]
      %v890 = vld [vmem:[%s880 + $0x34] sm:$0xf]
      %v891 = vld [vmem:[%s880 + $0x3c] sm:$0xf]
      %v892 = vld [vmem:[%s880 + $0x40] sm:$0xf]
      %v893 = vld [vmem:[%s880 + $0x48] sm:$0xf]
      %v894 = vld [vmem:[%s880 + $0x4c] sm:$0xf]
      %v895 = vld [vmem:[%s880 + $0x54] sm:$0xf]
      %v896 = vld [vmem:[%s880 + $0x58] sm:$0xf]
      %v897 = vld [vmem:[%s880 + $0x60] sm:$0xf]
      %v898 = vld [vmem:[%s880 + $0x64] sm:$0xf]
      %v899 = vld [vmem:[%s880 + $0x6c] sm:$0xf]
      %v900 = vld [vmem:[%s880 + $0x70] sm:$0xf]
      %v901 = vld [vmem:[%s880 + $0x78] sm:$0xf]
      %v902 = vld [vmem:[%s880 + $0x7c] sm:$0xf]
      %v903 = vld [vmem:[%s880 + $0x84] sm:$0xf]
      %v904 = vld [vmem:[%s880 + $0x88] sm:$0xf]
      %v905 = vld [vmem:[%s880 + $0x90] sm:$0xf]
      %v906 = vld [vmem:[%s880 + $0x94] sm:$0xf]
      %v907 = vld [vmem:[%s880 + $0x9c] sm:$0xf]
      %v908 = vld [vmem:[%s880 + $0xa0] sm:$0xf]
      %v909 = vld [vmem:[%s880 + $0xa8] sm:$0xf]
      %v910 = vld [vmem:[%s880 + $0xac] sm:$0xf]
      %v911 = vld [vmem:[%s880 + $0xb4] sm:$0xf]
      %v912 = vld [vmem:[%s880 + $0xb8] sm:$0xf]
      %v913 = vld [vmem:[%s880 + $0x8] sm:$0x1]
      %v914 = vld [vmem:[%s880 + $0x14] sm:$0x1]
      %v915 = vld [vmem:[%s880 + $0x20] sm:$0x1]
      %v916 = vld [vmem:[%s880 + $0x2c] sm:$0x1]
      %v917 = vld [vmem:[%s880 + $0x38] sm:$0x1]
      %v918 = vld [vmem:[%s880 + $0x44] sm:$0x1]
      %v919 = vld [vmem:[%s880 + $0x50] sm:$0x1]
      %v920 = vld [vmem:[%s880 + $0x5c] sm:$0x1]
      %v921 = vld [vmem:[%s880 + $0x68] sm:$0x1]
      %v922 = vld [vmem:[%s880 + $0x74] sm:$0x1]
      %v923 = vld [vmem:[%s880 + $0x80] sm:$0x1]
      %v924 = vld [vmem:[%s880 + $0x8c] sm:$0x1]
      %v925 = vld [vmem:[%s880 + $0x98] sm:$0x1]
      %v926 = vld [vmem:[%s880 + $0xa4] sm:$0x1]
      %v927 = vld [vmem:[%s880 + $0xb0] sm:$0x1]
      %v928 = vld [vmem:[%s880 + $0xbc] sm:$0x1]
      %v929 = vld [vmem:[%s880] sm:$0xe]
      %v930 = vld [vmem:[%s880 + $0xc] sm:$0xe]
      %v931 = vld [vmem:[%s880 + $0x18] sm:$0xe]
      %v932 = vld [vmem:[%s880 + $0x24] sm:$0xe]
      %v933 = vld [vmem:[%s880 + $0x30] sm:$0xe]
      %v934 = vld [vmem:[%s880 + $0x3c] sm:$0xe]
      %v935 = vld [vmem:[%s880 + $0x48] sm:$0xe]
      %v936 = vld [vmem:[%s880 + $0x54] sm:$0xe]
      %v937 = vld [vmem:[%s880 + $0x60] sm:$0xe]
      %v938 = vld [vmem:[%s880 + $0x6c] sm:$0xe]
      %v939 = vld [vmem:[%s880 + $0x78] sm:$0xe]
      %v940 = vld [vmem:[%s880 + $0x84] sm:$0xe]
      %v941 = vld [vmem:[%s880 + $0x90] sm:$0xe]
      %v942 = vld [vmem:[%s880 + $0x9c] sm:$0xe]
      %v943 = vld [vmem:[%s880 + $0xa8] sm:$0xe]
      %v944 = vld [vmem:[%s880 + $0xb4] sm:$0xe]
      %v977 = vunpack.c.l.b16 %v752
      %v978 = vunpack.c.l.b16 %v753
      %v979 = vunpack.c.l.b16 %v754
      %v980 = vunpack.c.l.b16 %v755
      %v981 = vunpack.c.l.b16 %v756
      %v982 = vunpack.c.l.b16 %v757
      %v983 = vunpack.c.l.b16 %v758
      %v984 = vunpack.c.l.b16 %v759
      %v985 = vunpack.c.l.b16 %v760
      %v986 = vunpack.c.l.b16 %v761
      %v987 = vunpack.c.l.b16 %v762
      %v988 = vunpack.c.l.b16 %v763
      %v989 = vunpack.c.l.b16 %v764
      %v990 = vunpack.c.l.b16 %v765
      %v991 = vunpack.c.l.b16 %v766
      %v992 = vunpack.c.l.b16 %v767
      %v993 = vunpack.c.l.b16 %v768
      %v994 = vunpack.c.l.b16 %v769
      %v995 = vunpack.c.l.b16 %v770
      %v996 = vunpack.c.l.b16 %v771
      %v997 = vunpack.c.l.b16 %v772
      %v998 = vunpack.c.l.b16 %v773
      %v999 = vunpack.c.l.b16 %v774
      %v1000 = vunpack.c.l.b16 %v775
      %v1001 = vunpack.c.l.b16 %v776
      %v1002 = vunpack.c.l.b16 %v777
      %v1003 = vunpack.c.l.b16 %v778
      %v1004 = vunpack.c.l.b16 %v779
      %v1005 = vunpack.c.l.b16 %v780
      %v1006 = vunpack.c.l.b16 %v781
      %v1007 = vunpack.c.l.b16 %v782
      %v1008 = vunpack.c.l.b16 %v783
      %v1009 = vpack.c.b16 %v978, %v977
      %v1010 = vpack.c.b16 %v980, %v979
      %v1011 = vpack.c.b16 %v982, %v981
      %v1012 = vpack.c.b16 %v984, %v983
      %v1013 = vpack.c.b16 %v986, %v985
      %v1014 = vpack.c.b16 %v988, %v987
      %v1015 = vpack.c.b16 %v990, %v989
      %v1016 = vpack.c.b16 %v992, %v991
      %v1017 = vpack.c.b16 %v994, %v993
      %v1018 = vpack.c.b16 %v996, %v995
      %v1019 = vpack.c.b16 %v998, %v997
      %v1020 = vpack.c.b16 %v1000, %v999
      %v1021 = vpack.c.b16 %v1002, %v1001
      %v1022 = vpack.c.b16 %v1004, %v1003
      %v1023 = vpack.c.b16 %v1006, %v1005
      %v1024 = vpack.c.b16 %v1008, %v1007
      %v1041 = vunpack.c.l.b16 %v784
      %v1042 = vunpack.c.l.b16 %v785
      %v1043 = vunpack.c.l.b16 %v786
      %v1044 = vunpack.c.l.b16 %v787
      %v1045 = vunpack.c.l.b16 %v788
      %v1046 = vunpack.c.l.b16 %v789
      %v1047 = vunpack.c.l.b16 %v790
      %v1048 = vunpack.c.l.b16 %v791
      %v1049 = vunpack.c.l.b16 %v792
      %v1050 = vunpack.c.l.b16 %v793
      %v1051 = vunpack.c.l.b16 %v794
      %v1052 = vunpack.c.l.b16 %v795
      %v1053 = vunpack.c.l.b16 %v796
      %v1054 = vunpack.c.l.b16 %v797
      %v1055 = vunpack.c.l.b16 %v798
      %v1056 = vunpack.c.l.b16 %v799
      %v1057 = vpack.c.b16 %v1041, %v1041
      %v1058 = vpack.c.b16 %v1042, %v1042
      %v1059 = vpack.c.b16 %v1043, %v1043
      %v1060 = vpack.c.b16 %v1044, %v1044
      %v1061 = vpack.c.b16 %v1045, %v1045
      %v1062 = vpack.c.b16 %v1046, %v1046
      %v1063 = vpack.c.b16 %v1047, %v1047
      %v1064 = vpack.c.b16 %v1048, %v1048
      %v1065 = vpack.c.b16 %v1049, %v1049
      %v1066 = vpack.c.b16 %v1050, %v1050
      %v1067 = vpack.c.b16 %v1051, %v1051
      %v1068 = vpack.c.b16 %v1052, %v1052
      %v1069 = vpack.c.b16 %v1053, %v1053
      %v1070 = vpack.c.b16 %v1054, %v1054
      %v1071 = vpack.c.b16 %v1055, %v1055
      %v1072 = vpack.c.b16 %v1056, %v1056
      %vm1073 = vsmask.f32 7424
      %v1075 = vshrl.u32 %v1009, 16
      %v1077 = vshll.u32 %v1009, 16
      %v1079 = vrot.slane %v1077, 1
      %v1080 = vor.u32 %v1075, %v1079
      %v1082 = vshll.u32 %v1057, 16
      %v1084 = vrot.slane %v1082, 1
      %v1085 = vsel %vm1073, %v1080, %v1084
      %v1087 = vshrl.u32 %v1010, 16
      %v1089 = vshll.u32 %v1010, 16
      %v1091 = vrot.slane %v1089, 1
      %v1092 = vor.u32 %v1087, %v1091
      %v1094 = vshll.u32 %v1058, 16
      %v1096 = vrot.slane %v1094, 1
      %v1097 = vsel %vm1073, %v1092, %v1096
      %v1099 = vshrl.u32 %v1011, 16
      %v1101 = vshll.u32 %v1011, 16
      %v1103 = vrot.slane %v1101, 1
      %v1104 = vor.u32 %v1099, %v1103
      %v1106 = vshll.u32 %v1059, 16
      %v1108 = vrot.slane %v1106, 1
      %v1109 = vsel %vm1073, %v1104, %v1108
      %v1111 = vshrl.u32 %v1012, 16
      %v1113 = vshll.u32 %v1012, 16
      %v1115 = vrot.slane %v1113, 1
      %v1116 = vor.u32 %v1111, %v1115
      %v1118 = vshll.u32 %v1060, 16
      %v1120 = vrot.slane %v1118, 1
      %v1121 = vsel %vm1073, %v1116, %v1120
      %v1123 = vshrl.u32 %v1013, 16
      %v1125 = vshll.u32 %v1013, 16
      %v1127 = vrot.slane %v1125, 1
      %v1128 = vor.u32 %v1123, %v1127
      %v1130 = vshll.u32 %v1061, 16
      %v1132 = vrot.slane %v1130, 1
      %v1133 = vsel %vm1073, %v1128, %v1132
      %v1135 = vshrl.u32 %v1014, 16
      %v1137 = vshll.u32 %v1014, 16
      %v1139 = vrot.slane %v1137, 1
      %v1140 = vor.u32 %v1135, %v1139
      %v1142 = vshll.u32 %v1062, 16
      %v1144 = vrot.slane %v1142, 1
      %v1145 = vsel %vm1073, %v1140, %v1144
      %v1147 = vshrl.u32 %v1015, 16
      %v1149 = vshll.u32 %v1015, 16
      %v1151 = vrot.slane %v1149, 1
      %v1152 = vor.u32 %v1147, %v1151
      %v1154 = vshll.u32 %v1063, 16
      %v1156 = vrot.slane %v1154, 1
      %v1157 = vsel %vm1073, %v1152, %v1156
      %v1159 = vshrl.u32 %v1016, 16
      %v1161 = vshll.u32 %v1016, 16
      %v1163 = vrot.slane %v1161, 1
      %v1164 = vor.u32 %v1159, %v1163
      %v1166 = vshll.u32 %v1064, 16
      %v1168 = vrot.slane %v1166, 1
      %v1169 = vsel %vm1073, %v1164, %v1168
      %v1171 = vshrl.u32 %v1017, 16
      %v1173 = vshll.u32 %v1017, 16
      %v1175 = vrot.slane %v1173, 1
      %v1176 = vor.u32 %v1171, %v1175
      %v1178 = vshll.u32 %v1065, 16
      %v1180 = vrot.slane %v1178, 1
      %v1181 = vsel %vm1073, %v1176, %v1180
      %v1183 = vshrl.u32 %v1018, 16
      %v1185 = vshll.u32 %v1018, 16
      %v1187 = vrot.slane %v1185, 1
      %v1188 = vor.u32 %v1183, %v1187
      %v1190 = vshll.u32 %v1066, 16
      %v1192 = vrot.slane %v1190, 1
      %v1193 = vsel %vm1073, %v1188, %v1192
      %v1195 = vshrl.u32 %v1019, 16
      %v1197 = vshll.u32 %v1019, 16
      %v1199 = vrot.slane %v1197, 1
      %v1200 = vor.u32 %v1195, %v1199
      %v1202 = vshll.u32 %v1067, 16
      %v1204 = vrot.slane %v1202, 1
      %v1205 = vsel %vm1073, %v1200, %v1204
      %v1207 = vshrl.u32 %v1020, 16
      %v1209 = vshll.u32 %v1020, 16
      %v1211 = vrot.slane %v1209, 1
      %v1212 = vor.u32 %v1207, %v1211
      %v1214 = vshll.u32 %v1068, 16
      %v1216 = vrot.slane %v1214, 1
      %v1217 = vsel %vm1073, %v1212, %v1216
      %v1219 = vshrl.u32 %v1021, 16
      %v1221 = vshll.u32 %v1021, 16
      %v1223 = vrot.slane %v1221, 1
      %v1224 = vor.u32 %v1219, %v1223
      %v1226 = vshll.u32 %v1069, 16
      %v1228 = vrot.slane %v1226, 1
      %v1229 = vsel %vm1073, %v1224, %v1228
      %v1231 = vshrl.u32 %v1022, 16
      %v1233 = vshll.u32 %v1022, 16
      %v1235 = vrot.slane %v1233, 1
      %v1236 = vor.u32 %v1231, %v1235
      %v1238 = vshll.u32 %v1070, 16
      %v1240 = vrot.slane %v1238, 1
      %v1241 = vsel %vm1073, %v1236, %v1240
      %v1243 = vshrl.u32 %v1023, 16
      %v1245 = vshll.u32 %v1023, 16
      %v1247 = vrot.slane %v1245, 1
      %v1248 = vor.u32 %v1243, %v1247
      %v1250 = vshll.u32 %v1071, 16
      %v1252 = vrot.slane %v1250, 1
      %v1253 = vsel %vm1073, %v1248, %v1252
      %v1255 = vshrl.u32 %v1024, 16
      %v1257 = vshll.u32 %v1024, 16
      %v1259 = vrot.slane %v1257, 1
      %v1260 = vor.u32 %v1255, %v1259
      %v1262 = vshll.u32 %v1072, 16
      %v1264 = vrot.slane %v1262, 1
      %v1265 = vsel %vm1073, %v1260, %v1264
      %1266 = vrot.lane.b32.xlu0 %v1085, 8
      %v1267 = vpop.permute.xlu0 %1266
      %1268 = vrot.lane.b32.xlu0 %v1097, 8
      %v1269 = vpop.permute.xlu0 %1268
      %1270 = vrot.lane.b32.xlu0 %v1109, 8
      %v1271 = vpop.permute.xlu0 %1270
      %1272 = vrot.lane.b32.xlu0 %v1121, 8
      %v1273 = vpop.permute.xlu0 %1272
      %1274 = vrot.lane.b32.xlu0 %v1133, 8
      %v1275 = vpop.permute.xlu0 %1274
      %1276 = vrot.lane.b32.xlu0 %v1145, 8
      %v1277 = vpop.permute.xlu0 %1276
      %1278 = vrot.lane.b32.xlu0 %v1157, 8
      %v1279 = vpop.permute.xlu0 %1278
      %1280 = vrot.lane.b32.xlu0 %v1169, 8
      %v1281 = vpop.permute.xlu0 %1280
      %1282 = vrot.lane.b32.xlu0 %v1181, 8
      %v1283 = vpop.permute.xlu0 %1282
      %1284 = vrot.lane.b32.xlu0 %v1193, 8
      %v1285 = vpop.permute.xlu0 %1284
      %1286 = vrot.lane.b32.xlu0 %v1205, 8
      %v1287 = vpop.permute.xlu0 %1286
      %1288 = vrot.lane.b32.xlu0 %v1217, 8
      %v1289 = vpop.permute.xlu0 %1288
      %1290 = vrot.lane.b32.xlu0 %v1229, 8
      %v1291 = vpop.permute.xlu0 %1290
      %1292 = vrot.lane.b32.xlu0 %v1241, 8
      %v1293 = vpop.permute.xlu0 %1292
      %1294 = vrot.lane.b32.xlu0 %v1253, 8
      %v1295 = vpop.permute.xlu0 %1294
      %1296 = vrot.lane.b32.xlu0 %v1265, 8
      %v1297 = vpop.permute.xlu0 %1296
      %v1314 = vunpack.c.l.b16 %v800
      %v1315 = vunpack.c.l.b16 %v801
      %v1316 = vunpack.c.l.b16 %v802
      %v1317 = vunpack.c.l.b16 %v803
      %v1318 = vunpack.c.l.b16 %v804
      %v1319 = vunpack.c.l.b16 %v805
      %v1320 = vunpack.c.l.b16 %v806
      %v1321 = vunpack.c.l.b16 %v807
      %v1322 = vunpack.c.l.b16 %v808
      %v1323 = vunpack.c.l.b16 %v809
      %v1324 = vunpack.c.l.b16 %v810
      %v1325 = vunpack.c.l.b16 %v811
      %v1326 = vunpack.c.l.b16 %v812
      %v1327 = vunpack.c.l.b16 %v813
      %v1328 = vunpack.c.l.b16 %v814
      %v1329 = vunpack.c.l.b16 %v815
      %v1330 = vpack.c.b16 %v978, %v1314
      %v1331 = vpack.c.b16 %v980, %v1315
      %v1332 = vpack.c.b16 %v982, %v1316
      %v1333 = vpack.c.b16 %v984, %v1317
      %v1334 = vpack.c.b16 %v986, %v1318
      %v1335 = vpack.c.b16 %v988, %v1319
      %v1336 = vpack.c.b16 %v990, %v1320
      %v1337 = vpack.c.b16 %v992, %v1321
      %v1338 = vpack.c.b16 %v994, %v1322
      %v1339 = vpack.c.b16 %v996, %v1323
      %v1340 = vpack.c.b16 %v998, %v1324
      %v1341 = vpack.c.b16 %v1000, %v1325
      %v1342 = vpack.c.b16 %v1002, %v1326
      %v1343 = vpack.c.b16 %v1004, %v1327
      %v1344 = vpack.c.b16 %v1006, %v1328
      %v1345 = vpack.c.b16 %v1008, %v1329
      %vm1346 = vcmask 1046528
      %v1347 = vrot.slane %v1330, 1
      %v1348 = vrot.slane %v1057, 1
      %v1349 = vsel %vm1346, %v1347, %v1348
      %v1350 = vrot.slane %v1331, 1
      %v1351 = vrot.slane %v1058, 1
      %v1352 = vsel %vm1346, %v1350, %v1351
      %v1353 = vrot.slane %v1332, 1
      %v1354 = vrot.slane %v1059, 1
      %v1355 = vsel %vm1346, %v1353, %v1354
      %v1356 = vrot.slane %v1333, 1
      %v1357 = vrot.slane %v1060, 1
      %v1358 = vsel %vm1346, %v1356, %v1357
      %v1359 = vrot.slane %v1334, 1
      %v1360 = vrot.slane %v1061, 1
      %v1361 = vsel %vm1346, %v1359, %v1360
      %v1362 = vrot.slane %v1335, 1
      %v1363 = vrot.slane %v1062, 1
      %v1364 = vsel %vm1346, %v1362, %v1363
      %v1365 = vrot.slane %v1336, 1
      %v1366 = vrot.slane %v1063, 1
      %v1367 = vsel %vm1346, %v1365, %v1366
      %v1368 = vrot.slane %v1337, 1
      %v1369 = vrot.slane %v1064, 1
      %v1370 = vsel %vm1346, %v1368, %v1369
      %v1371 = vrot.slane %v1338, 1
      %v1372 = vrot.slane %v1065, 1
      %v1373 = vsel %vm1346, %v1371, %v1372
      %v1374 = vrot.slane %v1339, 1
      %v1375 = vrot.slane %v1066, 1
      %v1376 = vsel %vm1346, %v1374, %v1375
      %v1377 = vrot.slane %v1340, 1
      %v1378 = vrot.slane %v1067, 1
      %v1379 = vsel %vm1346, %v1377, %v1378
      %v1380 = vrot.slane %v1341, 1
      %v1381 = vrot.slane %v1068, 1
      %v1382 = vsel %vm1346, %v1380, %v1381
      %v1383 = vrot.slane %v1342, 1
      %v1384 = vrot.slane %v1069, 1
      %v1385 = vsel %vm1346, %v1383, %v1384
      %v1386 = vrot.slane %v1343, 1
      %v1387 = vrot.slane %v1070, 1
      %v1388 = vsel %vm1346, %v1386, %v1387
      %v1389 = vrot.slane %v1344, 1
      %v1390 = vrot.slane %v1071, 1
      %v1391 = vsel %vm1346, %v1389, %v1390
      %v1392 = vrot.slane %v1345, 1
      %v1393 = vrot.slane %v1072, 1
      %v1394 = vsel %vm1346, %v1392, %v1393
      %1395 = vrot.lane.b32.xlu0 %v1349, 16
      %v1396 = vpop.permute.xlu0 %1395
      %1397 = vrot.lane.b32.xlu0 %v1352, 16
      %v1398 = vpop.permute.xlu0 %1397
      %1399 = vrot.lane.b32.xlu0 %v1355, 16
      %v1400 = vpop.permute.xlu0 %1399
      %1401 = vrot.lane.b32.xlu0 %v1358, 16
      %v1402 = vpop.permute.xlu0 %1401
      %1403 = vrot.lane.b32.xlu0 %v1361, 16
      %v1404 = vpop.permute.xlu0 %1403
      %1405 = vrot.lane.b32.xlu0 %v1364, 16
      %v1406 = vpop.permute.xlu0 %1405
      %1407 = vrot.lane.b32.xlu0 %v1367, 16
      %v1408 = vpop.permute.xlu0 %1407
      %1409 = vrot.lane.b32.xlu0 %v1370, 16
      %v1410 = vpop.permute.xlu0 %1409
      %1411 = vrot.lane.b32.xlu0 %v1373, 16
      %v1412 = vpop.permute.xlu0 %1411
      %1413 = vrot.lane.b32.xlu0 %v1376, 16
      %v1414 = vpop.permute.xlu0 %1413
      %1415 = vrot.lane.b32.xlu0 %v1379, 16
      %v1416 = vpop.permute.xlu0 %1415
      %1417 = vrot.lane.b32.xlu0 %v1382, 16
      %v1418 = vpop.permute.xlu0 %1417
      %1419 = vrot.lane.b32.xlu0 %v1385, 16
      %v1420 = vpop.permute.xlu0 %1419
      %1421 = vrot.lane.b32.xlu0 %v1388, 16
      %v1422 = vpop.permute.xlu0 %1421
      %1423 = vrot.lane.b32.xlu0 %v1391, 16
      %v1424 = vpop.permute.xlu0 %1423
      %1425 = vrot.lane.b32.xlu0 %v1394, 16
      %v1426 = vpop.permute.xlu0 %1425
      %v1459 = vunpack.c.l.b16 %v816
      %v1460 = vunpack.c.l.b16 %v817
      %v1461 = vunpack.c.l.b16 %v818
      %v1462 = vunpack.c.l.b16 %v819
      %v1463 = vunpack.c.l.b16 %v820
      %v1464 = vunpack.c.l.b16 %v821
      %v1465 = vunpack.c.l.b16 %v822
      %v1466 = vunpack.c.l.b16 %v823
      %v1467 = vunpack.c.l.b16 %v824
      %v1468 = vunpack.c.l.b16 %v825
      %v1469 = vunpack.c.l.b16 %v826
      %v1470 = vunpack.c.l.b16 %v827
      %v1471 = vunpack.c.l.b16 %v828
      %v1472 = vunpack.c.l.b16 %v829
      %v1473 = vunpack.c.l.b16 %v830
      %v1474 = vunpack.c.l.b16 %v831
      %v1475 = vunpack.c.l.b16 %v832
      %v1476 = vunpack.c.l.b16 %v833
      %v1477 = vunpack.c.l.b16 %v834
      %v1478 = vunpack.c.l.b16 %v835
      %v1479 = vunpack.c.l.b16 %v836
      %v1480 = vunpack.c.l.b16 %v837
      %v1481 = vunpack.c.l.b16 %v838
      %v1482 = vunpack.c.l.b16 %v839
      %v1483 = vunpack.c.l.b16 %v840
      %v1484 = vunpack.c.l.b16 %v841
      %v1485 = vunpack.c.l.b16 %v842
      %v1486 = vunpack.c.l.b16 %v843
      %v1487 = vunpack.c.l.b16 %v844
      %v1488 = vunpack.c.l.b16 %v845
      %v1489 = vunpack.c.l.b16 %v846
      %v1490 = vunpack.c.l.b16 %v847
      %v1491 = vpack.c.b16 %v1460, %v1459
      %v1492 = vpack.c.b16 %v1462, %v1461
      %v1493 = vpack.c.b16 %v1464, %v1463
      %v1494 = vpack.c.b16 %v1466, %v1465
      %v1495 = vpack.c.b16 %v1468, %v1467
      %v1496 = vpack.c.b16 %v1470, %v1469
      %v1497 = vpack.c.b16 %v1472, %v1471
      %v1498 = vpack.c.b16 %v1474, %v1473
      %v1499 = vpack.c.b16 %v1476, %v1475
      %v1500 = vpack.c.b16 %v1478, %v1477
      %v1501 = vpack.c.b16 %v1480, %v1479
      %v1502 = vpack.c.b16 %v1482, %v1481
      %v1503 = vpack.c.b16 %v1484, %v1483
      %v1504 = vpack.c.b16 %v1486, %v1485
      %v1505 = vpack.c.b16 %v1488, %v1487
      %v1506 = vpack.c.b16 %v1490, %v1489
      %1507 = vrot.lane.b32.xlu0 %v1491, 24
      %v1508 = vpop.permute.xlu0 %1507
      %1509 = vrot.lane.b32.xlu0 %v1492, 24
      %v1510 = vpop.permute.xlu0 %1509
      %1511 = vrot.lane.b32.xlu0 %v1493, 24
      %v1512 = vpop.permute.xlu0 %1511
      %1513 = vrot.lane.b32.xlu0 %v1494, 24
      %v1514 = vpop.permute.xlu0 %1513
      %1515 = vrot.lane.b32.xlu0 %v1495, 24
      %v1516 = vpop.permute.xlu0 %1515
      %1517 = vrot.lane.b32.xlu0 %v1496, 24
      %v1518 = vpop.permute.xlu0 %1517
      %1519 = vrot.lane.b32.xlu0 %v1497, 24
      %v1520 = vpop.permute.xlu0 %1519
      %1521 = vrot.lane.b32.xlu0 %v1498, 24
      %v1522 = vpop.permute.xlu0 %1521
      %1523 = vrot.lane.b32.xlu0 %v1499, 24
      %v1524 = vpop.permute.xlu0 %1523
      %1525 = vrot.lane.b32.xlu0 %v1500, 24
      %v1526 = vpop.permute.xlu0 %1525
      %1527 = vrot.lane.b32.xlu0 %v1501, 24
      %v1528 = vpop.permute.xlu0 %1527
      %1529 = vrot.lane.b32.xlu0 %v1502, 24
      %v1530 = vpop.permute.xlu0 %1529
      %1531 = vrot.lane.b32.xlu0 %v1503, 24
      %v1532 = vpop.permute.xlu0 %1531
      %1533 = vrot.lane.b32.xlu0 %v1504, 24
      %v1534 = vpop.permute.xlu0 %1533
      %1535 = vrot.lane.b32.xlu0 %v1505, 24
      %v1536 = vpop.permute.xlu0 %1535
      %1537 = vrot.lane.b32.xlu0 %v1506, 24
      %v1538 = vpop.permute.xlu0 %1537
      %v1555 = vunpack.c.l.b16 %v848
      %v1556 = vunpack.c.l.b16 %v849
      %v1557 = vunpack.c.l.b16 %v850
      %v1558 = vunpack.c.l.b16 %v851
      %v1559 = vunpack.c.l.b16 %v852
      %v1560 = vunpack.c.l.b16 %v853
      %v1561 = vunpack.c.l.b16 %v854
      %v1562 = vunpack.c.l.b16 %v855
      %v1563 = vunpack.c.l.b16 %v856
      %v1564 = vunpack.c.l.b16 %v857
      %v1565 = vunpack.c.l.b16 %v858
      %v1566 = vunpack.c.l.b16 %v859
      %v1567 = vunpack.c.l.b16 %v860
      %v1568 = vunpack.c.l.b16 %v861
      %v1569 = vunpack.c.l.b16 %v862
      %v1570 = vunpack.c.l.b16 %v863
      %v1571 = vpack.c.b16 %v1555, %v1555
      %v1572 = vpack.c.b16 %v1556, %v1556
      %v1573 = vpack.c.b16 %v1557, %v1557
      %v1574 = vpack.c.b16 %v1558, %v1558
      %v1575 = vpack.c.b16 %v1559, %v1559
      %v1576 = vpack.c.b16 %v1560, %v1560
      %v1577 = vpack.c.b16 %v1561, %v1561
      %v1578 = vpack.c.b16 %v1562, %v1562
      %v1579 = vpack.c.b16 %v1563, %v1563
      %v1580 = vpack.c.b16 %v1564, %v1564
      %v1581 = vpack.c.b16 %v1565, %v1565
      %v1582 = vpack.c.b16 %v1566, %v1566
      %v1583 = vpack.c.b16 %v1567, %v1567
      %v1584 = vpack.c.b16 %v1568, %v1568
      %v1585 = vpack.c.b16 %v1569, %v1569
      %v1586 = vpack.c.b16 %v1570, %v1570
      %v1588 = vshrl.u32 %v1491, 16
      %v1590 = vshll.u32 %v1491, 16
      %v1592 = vrot.slane %v1590, 1
      %v1593 = vor.u32 %v1588, %v1592
      %v1595 = vshll.u32 %v1571, 16
      %v1597 = vrot.slane %v1595, 1
      %v1598 = vsel %vm1073, %v1593, %v1597
      %v1600 = vshrl.u32 %v1492, 16
      %v1602 = vshll.u32 %v1492, 16
      %v1604 = vrot.slane %v1602, 1
      %v1605 = vor.u32 %v1600, %v1604
      %v1607 = vshll.u32 %v1572, 16
      %v1609 = vrot.slane %v1607, 1
      %v1610 = vsel %vm1073, %v1605, %v1609
      %v1612 = vshrl.u32 %v1493, 16
      %v1614 = vshll.u32 %v1493, 16
      %v1616 = vrot.slane %v1614, 1
      %v1617 = vor.u32 %v1612, %v1616
      %v1619 = vshll.u32 %v1573, 16
      %v1621 = vrot.slane %v1619, 1
      %v1622 = vsel %vm1073, %v1617, %v1621
      %v1624 = vshrl.u32 %v1494, 16
      %v1626 = vshll.u32 %v1494, 16
      %v1628 = vrot.slane %v1626, 1
      %v1629 = vor.u32 %v1624, %v1628
      %v1631 = vshll.u32 %v1574, 16
      %v1633 = vrot.slane %v1631, 1
      %v1634 = vsel %vm1073, %v1629, %v1633
      %v1636 = vshrl.u32 %v1495, 16
      %v1638 = vshll.u32 %v1495, 16
      %v1640 = vrot.slane %v1638, 1
      %v1641 = vor.u32 %v1636, %v1640
      %v1643 = vshll.u32 %v1575, 16
      %v1645 = vrot.slane %v1643, 1
      %v1646 = vsel %vm1073, %v1641, %v1645
      %v1648 = vshrl.u32 %v1496, 16
      %v1650 = vshll.u32 %v1496, 16
      %v1652 = vrot.slane %v1650, 1
      %v1653 = vor.u32 %v1648, %v1652
      %v1655 = vshll.u32 %v1576, 16
      %v1657 = vrot.slane %v1655, 1
      %v1658 = vsel %vm1073, %v1653, %v1657
      %v1660 = vshrl.u32 %v1497, 16
      %v1662 = vshll.u32 %v1497, 16
      %v1664 = vrot.slane %v1662, 1
      %v1665 = vor.u32 %v1660, %v1664
      %v1667 = vshll.u32 %v1577, 16
      %v1669 = vrot.slane %v1667, 1
      %v1670 = vsel %vm1073, %v1665, %v1669
      %v1672 = vshrl.u32 %v1498, 16
      %v1674 = vshll.u32 %v1498, 16
      %v1676 = vrot.slane %v1674, 1
      %v1677 = vor.u32 %v1672, %v1676
      %v1679 = vshll.u32 %v1578, 16
      %v1681 = vrot.slane %v1679, 1
      %v1682 = vsel %vm1073, %v1677, %v1681
      %v1684 = vshrl.u32 %v1499, 16
      %v1686 = vshll.u32 %v1499, 16
      %v1688 = vrot.slane %v1686, 1
      %v1689 = vor.u32 %v1684, %v1688
      %v1691 = vshll.u32 %v1579, 16
      %v1693 = vrot.slane %v1691, 1
      %v1694 = vsel %vm1073, %v1689, %v1693
      %v1696 = vshrl.u32 %v1500, 16
      %v1698 = vshll.u32 %v1500, 16
      %v1700 = vrot.slane %v1698, 1
      %v1701 = vor.u32 %v1696, %v1700
      %v1703 = vshll.u32 %v1580, 16
      %v1705 = vrot.slane %v1703, 1
      %v1706 = vsel %vm1073, %v1701, %v1705
      %v1708 = vshrl.u32 %v1501, 16
      %v1710 = vshll.u32 %v1501, 16
      %v1712 = vrot.slane %v1710, 1
      %v1713 = vor.u32 %v1708, %v1712
      %v1715 = vshll.u32 %v1581, 16
      %v1717 = vrot.slane %v1715, 1
      %v1718 = vsel %vm1073, %v1713, %v1717
      %v1720 = vshrl.u32 %v1502, 16
      %v1722 = vshll.u32 %v1502, 16
      %v1724 = vrot.slane %v1722, 1
      %v1725 = vor.u32 %v1720, %v1724
      %v1727 = vshll.u32 %v1582, 16
      %v1729 = vrot.slane %v1727, 1
      %v1730 = vsel %vm1073, %v1725, %v1729
      %v1732 = vshrl.u32 %v1503, 16
      %v1734 = vshll.u32 %v1503, 16
      %v1736 = vrot.slane %v1734, 1
      %v1737 = vor.u32 %v1732, %v1736
      %v1739 = vshll.u32 %v1583, 16
      %v1741 = vrot.slane %v1739, 1
      %v1742 = vsel %vm1073, %v1737, %v1741
      %v1744 = vshrl.u32 %v1504, 16
      %v1746 = vshll.u32 %v1504, 16
      %v1748 = vrot.slane %v1746, 1
      %v1749 = vor.u32 %v1744, %v1748
      %v1751 = vshll.u32 %v1584, 16
      %v1753 = vrot.slane %v1751, 1
      %v1754 = vsel %vm1073, %v1749, %v1753
      %v1756 = vshrl.u32 %v1505, 16
      %v1758 = vshll.u32 %v1505, 16
      %v1760 = vrot.slane %v1758, 1
      %v1761 = vor.u32 %v1756, %v1760
      %v1763 = vshll.u32 %v1585, 16
      %v1765 = vrot.slane %v1763, 1
      %v1766 = vsel %vm1073, %v1761, %v1765
      %v1768 = vshrl.u32 %v1506, 16
      %v1770 = vshll.u32 %v1506, 16
      %v1772 = vrot.slane %v1770, 1
      %v1773 = vor.u32 %v1768, %v1772
      %v1775 = vshll.u32 %v1586, 16
      %v1777 = vrot.slane %v1775, 1
      %v1778 = vsel %vm1073, %v1773, %v1777
      %1779 = vrot.lane.b32.xlu0 %v1598, 32
      %v1780 = vpop.permute.xlu0 %1779
      %1781 = vrot.lane.b32.xlu0 %v1610, 32
      %v1782 = vpop.permute.xlu0 %1781
      %1783 = vrot.lane.b32.xlu0 %v1622, 32
      %v1784 = vpop.permute.xlu0 %1783
      %1785 = vrot.lane.b32.xlu0 %v1634, 32
      %v1786 = vpop.permute.xlu0 %1785
      %1787 = vrot.lane.b32.xlu0 %v1646, 32
      %v1788 = vpop.permute.xlu0 %1787
      %1789 = vrot.lane.b32.xlu0 %v1658, 32
      %v1790 = vpop.permute.xlu0 %1789
      %1791 = vrot.lane.b32.xlu0 %v1670, 32
      %v1792 = vpop.permute.xlu0 %1791
      %1793 = vrot.lane.b32.xlu0 %v1682, 32
      %v1794 = vpop.permute.xlu0 %1793
      %1795 = vrot.lane.b32.xlu0 %v1694, 32
      %v1796 = vpop.permute.xlu0 %1795
      %1797 = vrot.lane.b32.xlu0 %v1706, 32
      %v1798 = vpop.permute.xlu0 %1797
      %1799 = vrot.lane.b32.xlu0 %v1718, 32
      %v1800 = vpop.permute.xlu0 %1799
      %1801 = vrot.lane.b32.xlu0 %v1730, 32
      %v1802 = vpop.permute.xlu0 %1801
      %1803 = vrot.lane.b32.xlu0 %v1742, 32
      %v1804 = vpop.permute.xlu0 %1803
      %1805 = vrot.lane.b32.xlu0 %v1754, 32
      %v1806 = vpop.permute.xlu0 %1805
      %1807 = vrot.lane.b32.xlu0 %v1766, 32
      %v1808 = vpop.permute.xlu0 %1807
      %1809 = vrot.lane.b32.xlu0 %v1778, 32
      %v1810 = vpop.permute.xlu0 %1809
      %v1827 = vunpack.c.l.b16 %v864
      %v1828 = vunpack.c.l.b16 %v865
      %v1829 = vunpack.c.l.b16 %v866
      %v1830 = vunpack.c.l.b16 %v867
      %v1831 = vunpack.c.l.b16 %v868
      %v1832 = vunpack.c.l.b16 %v869
      %v1833 = vunpack.c.l.b16 %v870
      %v1834 = vunpack.c.l.b16 %v871
      %v1835 = vunpack.c.l.b16 %v872
      %v1836 = vunpack.c.l.b16 %v873
      %v1837 = vunpack.c.l.b16 %v874
      %v1838 = vunpack.c.l.b16 %v875
      %v1839 = vunpack.c.l.b16 %v876
      %v1840 = vunpack.c.l.b16 %v877
      %v1841 = vunpack.c.l.b16 %v878
      %v1842 = vunpack.c.l.b16 %v879
      %v1843 = vpack.c.b16 %v1460, %v1827
      %v1844 = vpack.c.b16 %v1462, %v1828
      %v1845 = vpack.c.b16 %v1464, %v1829
      %v1846 = vpack.c.b16 %v1466, %v1830
      %v1847 = vpack.c.b16 %v1468, %v1831
      %v1848 = vpack.c.b16 %v1470, %v1832
      %v1849 = vpack.c.b16 %v1472, %v1833
      %v1850 = vpack.c.b16 %v1474, %v1834
      %v1851 = vpack.c.b16 %v1476, %v1835
      %v1852 = vpack.c.b16 %v1478, %v1836
      %v1853 = vpack.c.b16 %v1480, %v1837
      %v1854 = vpack.c.b16 %v1482, %v1838
      %v1855 = vpack.c.b16 %v1484, %v1839
      %v1856 = vpack.c.b16 %v1486, %v1840
      %v1857 = vpack.c.b16 %v1488, %v1841
      %v1858 = vpack.c.b16 %v1490, %v1842
      %v1859 = vrot.slane %v1843, 1
      %v1860 = vrot.slane %v1571, 1
      %v1861 = vsel %vm1346, %v1859, %v1860
      %v1862 = vrot.slane %v1844, 1
      %v1863 = vrot.slane %v1572, 1
      %v1864 = vsel %vm1346, %v1862, %v1863
      %v1865 = vrot.slane %v1845, 1
      %v1866 = vrot.slane %v1573, 1
      %v1867 = vsel %vm1346, %v1865, %v1866
      %v1868 = vrot.slane %v1846, 1
      %v1869 = vrot.slane %v1574, 1
      %v1870 = vsel %vm1346, %v1868, %v1869
      %v1871 = vrot.slane %v1847, 1
      %v1872 = vrot.slane %v1575, 1
      %v1873 = vsel %vm1346, %v1871, %v1872
      %v1874 = vrot.slane %v1848, 1
      %v1875 = vrot.slane %v1576, 1
      %v1876 = vsel %vm1346, %v1874, %v1875
      %v1877 = vrot.slane %v1849, 1
      %v1878 = vrot.slane %v1577, 1
      %v1879 = vsel %vm1346, %v1877, %v1878
      %v1880 = vrot.slane %v1850, 1
      %v1881 = vrot.slane %v1578, 1
      %v1882 = vsel %vm1346, %v1880, %v1881
      %v1883 = vrot.slane %v1851, 1
      %v1884 = vrot.slane %v1579, 1
      %v1885 = vsel %vm1346, %v1883, %v1884
      %v1886 = vrot.slane %v1852, 1
      %v1887 = vrot.slane %v1580, 1
      %v1888 = vsel %vm1346, %v1886, %v1887
      %v1889 = vrot.slane %v1853, 1
      %v1890 = vrot.slane %v1581, 1
      %v1891 = vsel %vm1346, %v1889, %v1890
      %v1892 = vrot.slane %v1854, 1
      %v1893 = vrot.slane %v1582, 1
      %v1894 = vsel %vm1346, %v1892, %v1893
      %v1895 = vrot.slane %v1855, 1
      %v1896 = vrot.slane %v1583, 1
      %v1897 = vsel %vm1346, %v1895, %v1896
      %v1898 = vrot.slane %v1856, 1
      %v1899 = vrot.slane %v1584, 1
      %v1900 = vsel %vm1346, %v1898, %v1899
      %v1901 = vrot.slane %v1857, 1
      %v1902 = vrot.slane %v1585, 1
      %v1903 = vsel %vm1346, %v1901, %v1902
      %v1904 = vrot.slane %v1858, 1
      %v1905 = vrot.slane %v1586, 1
      %v1906 = vsel %vm1346, %v1904, %v1905
      %1907 = vrot.lane.b32.xlu0 %v1861, 40
      %v1908 = vpop.permute.xlu0 %1907
      %1909 = vrot.lane.b32.xlu0 %v1864, 40
      %v1910 = vpop.permute.xlu0 %1909
      %1911 = vrot.lane.b32.xlu0 %v1867, 40
      %v1912 = vpop.permute.xlu0 %1911
      %1913 = vrot.lane.b32.xlu0 %v1870, 40
      %v1914 = vpop.permute.xlu0 %1913
      %1915 = vrot.lane.b32.xlu0 %v1873, 40
      %v1916 = vpop.permute.xlu0 %1915
      %1917 = vrot.lane.b32.xlu0 %v1876, 40
      %v1918 = vpop.permute.xlu0 %1917
      %1919 = vrot.lane.b32.xlu0 %v1879, 40
      %v1920 = vpop.permute.xlu0 %1919
      %1921 = vrot.lane.b32.xlu0 %v1882, 40
      %v1922 = vpop.permute.xlu0 %1921
      %1923 = vrot.lane.b32.xlu0 %v1885, 40
      %v1924 = vpop.permute.xlu0 %1923
      %1925 = vrot.lane.b32.xlu0 %v1888, 40
      %v1926 = vpop.permute.xlu0 %1925
      %1927 = vrot.lane.b32.xlu0 %v1891, 40
      %v1928 = vpop.permute.xlu0 %1927
      %1929 = vrot.lane.b32.xlu0 %v1894, 40
      %v1930 = vpop.permute.xlu0 %1929
      %1931 = vrot.lane.b32.xlu0 %v1897, 40
      %v1932 = vpop.permute.xlu0 %1931
      %1933 = vrot.lane.b32.xlu0 %v1900, 40
      %v1934 = vpop.permute.xlu0 %1933
      %1935 = vrot.lane.b32.xlu0 %v1903, 40
      %v1936 = vpop.permute.xlu0 %1935
      %1937 = vrot.lane.b32.xlu0 %v1906, 40
      %v1938 = vpop.permute.xlu0 %1937
      %v1971 = vunpack.c.l.b16 %v881
      %v1972 = vunpack.c.l.b16 %v882
      %v1973 = vunpack.c.l.b16 %v883
      %v1974 = vunpack.c.l.b16 %v884
      %v1975 = vunpack.c.l.b16 %v885
      %v1976 = vunpack.c.l.b16 %v886
      %v1977 = vunpack.c.l.b16 %v887
      %v1978 = vunpack.c.l.b16 %v888
      %v1979 = vunpack.c.l.b16 %v889
      %v1980 = vunpack.c.l.b16 %v890
      %v1981 = vunpack.c.l.b16 %v891
      %v1982 = vunpack.c.l.b16 %v892
      %v1983 = vunpack.c.l.b16 %v893
      %v1984 = vunpack.c.l.b16 %v894
      %v1985 = vunpack.c.l.b16 %v895
      %v1986 = vunpack.c.l.b16 %v896
      %v1987 = vunpack.c.l.b16 %v897
      %v1988 = vunpack.c.l.b16 %v898
      %v1989 = vunpack.c.l.b16 %v899
      %v1990 = vunpack.c.l.b16 %v900
      %v1991 = vunpack.c.l.b16 %v901
      %v1992 = vunpack.c.l.b16 %v902
      %v1993 = vunpack.c.l.b16 %v903
      %v1994 = vunpack.c.l.b16 %v904
      %v1995 = vunpack.c.l.b16 %v905
      %v1996 = vunpack.c.l.b16 %v906
      %v1997 = vunpack.c.l.b16 %v907
      %v1998 = vunpack.c.l.b16 %v908
      %v1999 = vunpack.c.l.b16 %v909
      %v2000 = vunpack.c.l.b16 %v910
      %v2001 = vunpack.c.l.b16 %v911
      %v2002 = vunpack.c.l.b16 %v912
      %v2003 = vpack.c.b16 %v1972, %v1971
      %v2004 = vpack.c.b16 %v1974, %v1973
      %v2005 = vpack.c.b16 %v1976, %v1975
      %v2006 = vpack.c.b16 %v1978, %v1977
      %v2007 = vpack.c.b16 %v1980, %v1979
      %v2008 = vpack.c.b16 %v1982, %v1981
      %v2009 = vpack.c.b16 %v1984, %v1983
      %v2010 = vpack.c.b16 %v1986, %v1985
      %v2011 = vpack.c.b16 %v1988, %v1987
      %v2012 = vpack.c.b16 %v1990, %v1989
      %v2013 = vpack.c.b16 %v1992, %v1991
      %v2014 = vpack.c.b16 %v1994, %v1993
      %v2015 = vpack.c.b16 %v1996, %v1995
      %v2016 = vpack.c.b16 %v1998, %v1997
      %v2017 = vpack.c.b16 %v2000, %v1999
      %v2018 = vpack.c.b16 %v2002, %v2001
      %2019 = vrot.lane.b32.xlu0 %v2003, 48
      %v2020 = vpop.permute.xlu0 %2019
      %2021 = vrot.lane.b32.xlu0 %v2004, 48
      %v2022 = vpop.permute.xlu0 %2021
      %2023 = vrot.lane.b32.xlu0 %v2005, 48
      %v2024 = vpop.permute.xlu0 %2023
      %2025 = vrot.lane.b32.xlu0 %v2006, 48
      %v2026 = vpop.permute.xlu0 %2025
      %2027 = vrot.lane.b32.xlu0 %v2007, 48
      %v2028 = vpop.permute.xlu0 %2027
      %2029 = vrot.lane.b32.xlu0 %v2008, 48
      %v2030 = vpop.permute.xlu0 %2029
      %2031 = vrot.lane.b32.xlu0 %v2009, 48
      %v2032 = vpop.permute.xlu0 %2031
      %2033 = vrot.lane.b32.xlu0 %v2010, 48
      %v2034 = vpop.permute.xlu0 %2033
      %2035 = vrot.lane.b32.xlu0 %v2011, 48
      %v2036 = vpop.permute.xlu0 %2035
      %2037 = vrot.lane.b32.xlu0 %v2012, 48
      %v2038 = vpop.permute.xlu0 %2037
      %2039 = vrot.lane.b32.xlu0 %v2013, 48
      %v2040 = vpop.permute.xlu0 %2039
      %2041 = vrot.lane.b32.xlu0 %v2014, 48
      %v2042 = vpop.permute.xlu0 %2041
      %2043 = vrot.lane.b32.xlu0 %v2015, 48
      %v2044 = vpop.permute.xlu0 %2043
      %2045 = vrot.lane.b32.xlu0 %v2016, 48
      %v2046 = vpop.permute.xlu0 %2045
      %2047 = vrot.lane.b32.xlu0 %v2017, 48
      %v2048 = vpop.permute.xlu0 %2047
      %2049 = vrot.lane.b32.xlu0 %v2018, 48
      %v2050 = vpop.permute.xlu0 %2049
      %v2067 = vunpack.c.l.b16 %v913
      %v2068 = vunpack.c.l.b16 %v914
      %v2069 = vunpack.c.l.b16 %v915
      %v2070 = vunpack.c.l.b16 %v916
      %v2071 = vunpack.c.l.b16 %v917
      %v2072 = vunpack.c.l.b16 %v918
      %v2073 = vunpack.c.l.b16 %v919
      %v2074 = vunpack.c.l.b16 %v920
      %v2075 = vunpack.c.l.b16 %v921
      %v2076 = vunpack.c.l.b16 %v922
      %v2077 = vunpack.c.l.b16 %v923
      %v2078 = vunpack.c.l.b16 %v924
      %v2079 = vunpack.c.l.b16 %v925
      %v2080 = vunpack.c.l.b16 %v926
      %v2081 = vunpack.c.l.b16 %v927
      %v2082 = vunpack.c.l.b16 %v928
      %v2083 = vpack.c.b16 %v2067, %v2067
      %v2084 = vpack.c.b16 %v2068, %v2068
      %v2085 = vpack.c.b16 %v2069, %v2069
      %v2086 = vpack.c.b16 %v2070, %v2070
      %v2087 = vpack.c.b16 %v2071, %v2071
      %v2088 = vpack.c.b16 %v2072, %v2072
      %v2089 = vpack.c.b16 %v2073, %v2073
      %v2090 = vpack.c.b16 %v2074, %v2074
      %v2091 = vpack.c.b16 %v2075, %v2075
      %v2092 = vpack.c.b16 %v2076, %v2076
      %v2093 = vpack.c.b16 %v2077, %v2077
      %v2094 = vpack.c.b16 %v2078, %v2078
      %v2095 = vpack.c.b16 %v2079, %v2079
      %v2096 = vpack.c.b16 %v2080, %v2080
      %v2097 = vpack.c.b16 %v2081, %v2081
      %v2098 = vpack.c.b16 %v2082, %v2082
      %v2100 = vshrl.u32 %v2003, 16
      %v2102 = vshll.u32 %v2003, 16
      %v2104 = vrot.slane %v2102, 1
      %v2105 = vor.u32 %v2100, %v2104
      %v2107 = vshll.u32 %v2083, 16
      %v2109 = vrot.slane %v2107, 1
      %v2110 = vsel %vm1073, %v2105, %v2109
      %v2112 = vshrl.u32 %v2004, 16
      %v2114 = vshll.u32 %v2004, 16
      %v2116 = vrot.slane %v2114, 1
      %v2117 = vor.u32 %v2112, %v2116
      %v2119 = vshll.u32 %v2084, 16
      %v2121 = vrot.slane %v2119, 1
      %v2122 = vsel %vm1073, %v2117, %v2121
      %v2124 = vshrl.u32 %v2005, 16
      %v2126 = vshll.u32 %v2005, 16
      %v2128 = vrot.slane %v2126, 1
      %v2129 = vor.u32 %v2124, %v2128
      %v2131 = vshll.u32 %v2085, 16
      %v2133 = vrot.slane %v2131, 1
      %v2134 = vsel %vm1073, %v2129, %v2133
      %v2136 = vshrl.u32 %v2006, 16
      %v2138 = vshll.u32 %v2006, 16
      %v2140 = vrot.slane %v2138, 1
      %v2141 = vor.u32 %v2136, %v2140
      %v2143 = vshll.u32 %v2086, 16
      %v2145 = vrot.slane %v2143, 1
      %v2146 = vsel %vm1073, %v2141, %v2145
      %v2148 = vshrl.u32 %v2007, 16
      %v2150 = vshll.u32 %v2007, 16
      %v2152 = vrot.slane %v2150, 1
      %v2153 = vor.u32 %v2148, %v2152
      %v2155 = vshll.u32 %v2087, 16
      %v2157 = vrot.slane %v2155, 1
      %v2158 = vsel %vm1073, %v2153, %v2157
      %v2160 = vshrl.u32 %v2008, 16
      %v2162 = vshll.u32 %v2008, 16
      %v2164 = vrot.slane %v2162, 1
      %v2165 = vor.u32 %v2160, %v2164
      %v2167 = vshll.u32 %v2088, 16
      %v2169 = vrot.slane %v2167, 1
      %v2170 = vsel %vm1073, %v2165, %v2169
      %v2172 = vshrl.u32 %v2009, 16
      %v2174 = vshll.u32 %v2009, 16
      %v2176 = vrot.slane %v2174, 1
      %v2177 = vor.u32 %v2172, %v2176
      %v2179 = vshll.u32 %v2089, 16
      %v2181 = vrot.slane %v2179, 1
      %v2182 = vsel %vm1073, %v2177, %v2181
      %v2184 = vshrl.u32 %v2010, 16
      %v2186 = vshll.u32 %v2010, 16
      %v2188 = vrot.slane %v2186, 1
      %v2189 = vor.u32 %v2184, %v2188
      %v2191 = vshll.u32 %v2090, 16
      %v2193 = vrot.slane %v2191, 1
      %v2194 = vsel %vm1073, %v2189, %v2193
      %v2196 = vshrl.u32 %v2011, 16
      %v2198 = vshll.u32 %v2011, 16
      %v2200 = vrot.slane %v2198, 1
      %v2201 = vor.u32 %v2196, %v2200
      %v2203 = vshll.u32 %v2091, 16
      %v2205 = vrot.slane %v2203, 1
      %v2206 = vsel %vm1073, %v2201, %v2205
      %v2208 = vshrl.u32 %v2012, 16
      %v2210 = vshll.u32 %v2012, 16
      %v2212 = vrot.slane %v2210, 1
      %v2213 = vor.u32 %v2208, %v2212
      %v2215 = vshll.u32 %v2092, 16
      %v2217 = vrot.slane %v2215, 1
      %v2218 = vsel %vm1073, %v2213, %v2217
      %v2220 = vshrl.u32 %v2013, 16
      %v2222 = vshll.u32 %v2013, 16
      %v2224 = vrot.slane %v2222, 1
      %v2225 = vor.u32 %v2220, %v2224
      %v2227 = vshll.u32 %v2093, 16
      %v2229 = vrot.slane %v2227, 1
      %v2230 = vsel %vm1073, %v2225, %v2229
      %v2232 = vshrl.u32 %v2014, 16
      %v2234 = vshll.u32 %v2014, 16
      %v2236 = vrot.slane %v2234, 1
      %v2237 = vor.u32 %v2232, %v2236
      %v2239 = vshll.u32 %v2094, 16
      %v2241 = vrot.slane %v2239, 1
      %v2242 = vsel %vm1073, %v2237, %v2241
      %v2244 = vshrl.u32 %v2015, 16
      %v2246 = vshll.u32 %v2015, 16
      %v2248 = vrot.slane %v2246, 1
      %v2249 = vor.u32 %v2244, %v2248
      %v2251 = vshll.u32 %v2095, 16
      %v2253 = vrot.slane %v2251, 1
      %v2254 = vsel %vm1073, %v2249, %v2253
      %v2256 = vshrl.u32 %v2016, 16
      %v2258 = vshll.u32 %v2016, 16
      %v2260 = vrot.slane %v2258, 1
      %v2261 = vor.u32 %v2256, %v2260
      %v2263 = vshll.u32 %v2096, 16
      %v2265 = vrot.slane %v2263, 1
      %v2266 = vsel %vm1073, %v2261, %v2265
      %v2268 = vshrl.u32 %v2017, 16
      %v2270 = vshll.u32 %v2017, 16
      %v2272 = vrot.slane %v2270, 1
      %v2273 = vor.u32 %v2268, %v2272
      %v2275 = vshll.u32 %v2097, 16
      %v2277 = vrot.slane %v2275, 1
      %v2278 = vsel %vm1073, %v2273, %v2277
      %v2280 = vshrl.u32 %v2018, 16
      %v2282 = vshll.u32 %v2018, 16
      %v2284 = vrot.slane %v2282, 1
      %v2285 = vor.u32 %v2280, %v2284
      %v2287 = vshll.u32 %v2098, 16
      %v2289 = vrot.slane %v2287, 1
      %v2290 = vsel %vm1073, %v2285, %v2289
      %2291 = vrot.lane.b32.xlu0 %v2110, 56
      %v2292 = vpop.permute.xlu0 %2291
      %2293 = vrot.lane.b32.xlu0 %v2122, 56
      %v2294 = vpop.permute.xlu0 %2293
      %2295 = vrot.lane.b32.xlu0 %v2134, 56
      %v2296 = vpop.permute.xlu0 %2295
      %2297 = vrot.lane.b32.xlu0 %v2146, 56
      %v2298 = vpop.permute.xlu0 %2297
      %2299 = vrot.lane.b32.xlu0 %v2158, 56
      %v2300 = vpop.permute.xlu0 %2299
      %2301 = vrot.lane.b32.xlu0 %v2170, 56
      %v2302 = vpop.permute.xlu0 %2301
      %2303 = vrot.lane.b32.xlu0 %v2182, 56
      %v2304 = vpop.permute.xlu0 %2303
      %2305 = vrot.lane.b32.xlu0 %v2194, 56
      %v2306 = vpop.permute.xlu0 %2305
      %2307 = vrot.lane.b32.xlu0 %v2206, 56
      %v2308 = vpop.permute.xlu0 %2307
      %2309 = vrot.lane.b32.xlu0 %v2218, 56
      %v2310 = vpop.permute.xlu0 %2309
      %2311 = vrot.lane.b32.xlu0 %v2230, 56
      %v2312 = vpop.permute.xlu0 %2311
      %2313 = vrot.lane.b32.xlu0 %v2242, 56
      %v2314 = vpop.permute.xlu0 %2313
      %2315 = vrot.lane.b32.xlu0 %v2254, 56
      %v2316 = vpop.permute.xlu0 %2315
      %2317 = vrot.lane.b32.xlu0 %v2266, 56
      %v2318 = vpop.permute.xlu0 %2317
      %2319 = vrot.lane.b32.xlu0 %v2278, 56
      %v2320 = vpop.permute.xlu0 %2319
      %2321 = vrot.lane.b32.xlu0 %v2290, 56
      %v2322 = vpop.permute.xlu0 %2321
      %v2339 = vunpack.c.l.b16 %v929
      %v2340 = vunpack.c.l.b16 %v930
      %v2341 = vunpack.c.l.b16 %v931
      %v2342 = vunpack.c.l.b16 %v932
      %v2343 = vunpack.c.l.b16 %v933
      %v2344 = vunpack.c.l.b16 %v934
      %v2345 = vunpack.c.l.b16 %v935
      %v2346 = vunpack.c.l.b16 %v936
      %v2347 = vunpack.c.l.b16 %v937
      %v2348 = vunpack.c.l.b16 %v938
      %v2349 = vunpack.c.l.b16 %v939
      %v2350 = vunpack.c.l.b16 %v940
      %v2351 = vunpack.c.l.b16 %v941
      %v2352 = vunpack.c.l.b16 %v942
      %v2353 = vunpack.c.l.b16 %v943
      %v2354 = vunpack.c.l.b16 %v944
      %v2355 = vpack.c.b16 %v1972, %v2339
      %v2356 = vpack.c.b16 %v1974, %v2340
      %v2357 = vpack.c.b16 %v1976, %v2341
      %v2358 = vpack.c.b16 %v1978, %v2342
      %v2359 = vpack.c.b16 %v1980, %v2343
      %v2360 = vpack.c.b16 %v1982, %v2344
      %v2361 = vpack.c.b16 %v1984, %v2345
      %v2362 = vpack.c.b16 %v1986, %v2346
      %v2363 = vpack.c.b16 %v1988, %v2347
      %v2364 = vpack.c.b16 %v1990, %v2348
      %v2365 = vpack.c.b16 %v1992, %v2349
      %v2366 = vpack.c.b16 %v1994, %v2350
      %v2367 = vpack.c.b16 %v1996, %v2351
      %v2368 = vpack.c.b16 %v1998, %v2352
      %v2369 = vpack.c.b16 %v2000, %v2353
      %v2370 = vpack.c.b16 %v2002, %v2354
      %v2371 = vrot.slane %v2355, 1
      %v2372 = vrot.slane %v2083, 1
      %v2373 = vsel %vm1346, %v2371, %v2372
      %v2374 = vrot.slane %v2356, 1
      %v2375 = vrot.slane %v2084, 1
      %v2376 = vsel %vm1346, %v2374, %v2375
      %v2377 = vrot.slane %v2357, 1
      %v2378 = vrot.slane %v2085, 1
      %v2379 = vsel %vm1346, %v2377, %v2378
      %v2380 = vrot.slane %v2358, 1
      %v2381 = vrot.slane %v2086, 1
      %v2382 = vsel %vm1346, %v2380, %v2381
      %v2383 = vrot.slane %v2359, 1
      %v2384 = vrot.slane %v2087, 1
      %v2385 = vsel %vm1346, %v2383, %v2384
      %v2386 = vrot.slane %v2360, 1
      %v2387 = vrot.slane %v2088, 1
      %v2388 = vsel %vm1346, %v2386, %v2387
      %v2389 = vrot.slane %v2361, 1
      %v2390 = vrot.slane %v2089, 1
      %v2391 = vsel %vm1346, %v2389, %v2390
      %v2392 = vrot.slane %v2362, 1
      %v2393 = vrot.slane %v2090, 1
      %v2394 = vsel %vm1346, %v2392, %v2393
      %v2395 = vrot.slane %v2363, 1
      %v2396 = vrot.slane %v2091, 1
      %v2397 = vsel %vm1346, %v2395, %v2396
      %v2398 = vrot.slane %v2364, 1
      %v2399 = vrot.slane %v2092, 1
      %v2400 = vsel %vm1346, %v2398, %v2399
      %v2401 = vrot.slane %v2365, 1
      %v2402 = vrot.slane %v2093, 1
      %v2403 = vsel %vm1346, %v2401, %v2402
      %v2404 = vrot.slane %v2366, 1
      %v2405 = vrot.slane %v2094, 1
      %v2406 = vsel %vm1346, %v2404, %v2405
      %v2407 = vrot.slane %v2367, 1
      %v2408 = vrot.slane %v2095, 1
      %v2409 = vsel %vm1346, %v2407, %v2408
      %v2410 = vrot.slane %v2368, 1
      %v2411 = vrot.slane %v2096, 1
      %v2412 = vsel %vm1346, %v2410, %v2411
      %v2413 = vrot.slane %v2369, 1
      %v2414 = vrot.slane %v2097, 1
      %v2415 = vsel %vm1346, %v2413, %v2414
      %v2416 = vrot.slane %v2370, 1
      %v2417 = vrot.slane %v2098, 1
      %v2418 = vsel %vm1346, %v2416, %v2417
      %2419 = vrot.lane.b32.xlu0 %v2373, 64
      %v2420 = vpop.permute.xlu0 %2419
      %2421 = vrot.lane.b32.xlu0 %v2376, 64
      %v2422 = vpop.permute.xlu0 %2421
      %2423 = vrot.lane.b32.xlu0 %v2379, 64
      %v2424 = vpop.permute.xlu0 %2423
      %2425 = vrot.lane.b32.xlu0 %v2382, 64
      %v2426 = vpop.permute.xlu0 %2425
      %2427 = vrot.lane.b32.xlu0 %v2385, 64
      %v2428 = vpop.permute.xlu0 %2427
      %2429 = vrot.lane.b32.xlu0 %v2388, 64
      %v2430 = vpop.permute.xlu0 %2429
      %2431 = vrot.lane.b32.xlu0 %v2391, 64
      %v2432 = vpop.permute.xlu0 %2431
      %2433 = vrot.lane.b32.xlu0 %v2394, 64
      %v2434 = vpop.permute.xlu0 %2433
      %2435 = vrot.lane.b32.xlu0 %v2397, 64
      %v2436 = vpop.permute.xlu0 %2435
      %2437 = vrot.lane.b32.xlu0 %v2400, 64
      %v2438 = vpop.permute.xlu0 %2437
      %2439 = vrot.lane.b32.xlu0 %v2403, 64
      %v2440 = vpop.permute.xlu0 %2439
      %2441 = vrot.lane.b32.xlu0 %v2406, 64
      %v2442 = vpop.permute.xlu0 %2441
      %2443 = vrot.lane.b32.xlu0 %v2409, 64
      %v2444 = vpop.permute.xlu0 %2443
      %2445 = vrot.lane.b32.xlu0 %v2412, 64
      %v2446 = vpop.permute.xlu0 %2445
      %2447 = vrot.lane.b32.xlu0 %v2415, 64
      %v2448 = vpop.permute.xlu0 %2447
      %2449 = vrot.lane.b32.xlu0 %v2418, 64
      %v2450 = vpop.permute.xlu0 %2449
      %vm2451 = vcmask 64512
      %v2453 = vsel %vm2451, %v1009, %v1267
      %v2455 = vsel %vm2451, %v1010, %v1269
      %v2457 = vsel %vm2451, %v1011, %v1271
      %v2459 = vsel %vm2451, %v1012, %v1273
      %v2461 = vsel %vm2451, %v1013, %v1275
      %v2463 = vsel %vm2451, %v1014, %v1277
      %v2465 = vsel %vm2451, %v1015, %v1279
      %v2467 = vsel %vm2451, %v1016, %v1281
      %v2469 = vsel %vm2451, %v1017, %v1283
      %v2471 = vsel %vm2451, %v1018, %v1285
      %v2473 = vsel %vm2451, %v1019, %v1287
      %v2475 = vsel %vm2451, %v1020, %v1289
      %v2477 = vsel %vm2451, %v1021, %v1291
      %v2479 = vsel %vm2451, %v1022, %v1293
      %v2481 = vsel %vm2451, %v1023, %v1295
      %v2483 = vsel %vm2451, %v1024, %v1297
      %vm2484 = vcmask 130048
      %v2486 = vsel %vm2484, %v2453, %v1396
      %v2488 = vsel %vm2484, %v2455, %v1398
      %v2490 = vsel %vm2484, %v2457, %v1400
      %v2492 = vsel %vm2484, %v2459, %v1402
      %v2494 = vsel %vm2484, %v2461, %v1404
      %v2496 = vsel %vm2484, %v2463, %v1406
      %v2498 = vsel %vm2484, %v2465, %v1408
      %v2500 = vsel %vm2484, %v2467, %v1410
      %v2502 = vsel %vm2484, %v2469, %v1412
      %v2504 = vsel %vm2484, %v2471, %v1414
      %v2506 = vsel %vm2484, %v2473, %v1416
      %v2508 = vsel %vm2484, %v2475, %v1418
      %v2510 = vsel %vm2484, %v2477, %v1420
      %v2512 = vsel %vm2484, %v2479, %v1422
      %v2514 = vsel %vm2484, %v2481, %v1424
      %v2516 = vsel %vm2484, %v2483, %v1426
      %vm2517 = vcmask 195584
      %v2519 = vsel %vm2517, %v2486, %v1508
      %v2521 = vsel %vm2517, %v2488, %v1510
      %v2523 = vsel %vm2517, %v2490, %v1512
      %v2525 = vsel %vm2517, %v2492, %v1514
      %v2527 = vsel %vm2517, %v2494, %v1516
      %v2529 = vsel %vm2517, %v2496, %v1518
      %v2531 = vsel %vm2517, %v2498, %v1520
      %v2533 = vsel %vm2517, %v2500, %v1522
      %v2535 = vsel %vm2517, %v2502, %v1524
      %v2537 = vsel %vm2517, %v2504, %v1526
      %v2539 = vsel %vm2517, %v2506, %v1528
      %v2541 = vsel %vm2517, %v2508, %v1530
      %v2543 = vsel %vm2517, %v2510, %v1532
      %v2545 = vsel %vm2517, %v2512, %v1534
      %v2547 = vsel %vm2517, %v2514, %v1536
      %v2549 = vsel %vm2517, %v2516, %v1538
      %vm2550 = vcmask 261120
      %v2552 = vsel %vm2550, %v2519, %v1780
      %v2554 = vsel %vm2550, %v2521, %v1782
      %v2556 = vsel %vm2550, %v2523, %v1784
      %v2558 = vsel %vm2550, %v2525, %v1786
      %v2560 = vsel %vm2550, %v2527, %v1788
      %v2562 = vsel %vm2550, %v2529, %v1790
      %v2564 = vsel %vm2550, %v2531, %v1792
      %v2566 = vsel %vm2550, %v2533, %v1794
      %v2568 = vsel %vm2550, %v2535, %v1796
      %v2570 = vsel %vm2550, %v2537, %v1798
      %v2572 = vsel %vm2550, %v2539, %v1800
      %v2574 = vsel %vm2550, %v2541, %v1802
      %v2576 = vsel %vm2550, %v2543, %v1804
      %v2578 = vsel %vm2550, %v2545, %v1806
      %v2580 = vsel %vm2550, %v2547, %v1808
      %v2582 = vsel %vm2550, %v2549, %v1810
      %vm2583 = vcmask 326656
      %v2585 = vsel %vm2583, %v2552, %v1908
      %v2587 = vsel %vm2583, %v2554, %v1910
      %v2589 = vsel %vm2583, %v2556, %v1912
      %v2591 = vsel %vm2583, %v2558, %v1914
      %v2593 = vsel %vm2583, %v2560, %v1916
      %v2595 = vsel %vm2583, %v2562, %v1918
      %v2597 = vsel %vm2583, %v2564, %v1920
      %v2599 = vsel %vm2583, %v2566, %v1922
      %v2601 = vsel %vm2583, %v2568, %v1924
      %v2603 = vsel %vm2583, %v2570, %v1926
      %v2605 = vsel %vm2583, %v2572, %v1928
      %v2607 = vsel %vm2583, %v2574, %v1930
      %v2609 = vsel %vm2583, %v2576, %v1932
      %v2611 = vsel %vm2583, %v2578, %v1934
      %v2613 = vsel %vm2583, %v2580, %v1936
      %v2615 = vsel %vm2583, %v2582, %v1938
      %vm2616 = vcmask 392192
      %v2618 = vsel %vm2616, %v2585, %v2020
      %v2620 = vsel %vm2616, %v2587, %v2022
      %v2622 = vsel %vm2616, %v2589, %v2024
      %v2624 = vsel %vm2616, %v2591, %v2026
      %v2626 = vsel %vm2616, %v2593, %v2028
      %v2628 = vsel %vm2616, %v2595, %v2030
      %v2630 = vsel %vm2616, %v2597, %v2032
      %v2632 = vsel %vm2616, %v2599, %v2034
      %v2634 = vsel %vm2616, %v2601, %v2036
      %v2636 = vsel %vm2616, %v2603, %v2038
      %v2638 = vsel %vm2616, %v2605, %v2040
      %v2640 = vsel %vm2616, %v2607, %v2042
      %v2642 = vsel %vm2616, %v2609, %v2044
      %v2644 = vsel %vm2616, %v2611, %v2046
      %v2646 = vsel %vm2616, %v2613, %v2048
      %v2648 = vsel %vm2616, %v2615, %v2050
      %vm2649 = vcmask 457728
      %v2651 = vsel %vm2649, %v2618, %v2292
      %v2653 = vsel %vm2649, %v2620, %v2294
      %v2655 = vsel %vm2649, %v2622, %v2296
      %v2657 = vsel %vm2649, %v2624, %v2298
      %v2659 = vsel %vm2649, %v2626, %v2300
      %v2661 = vsel %vm2649, %v2628, %v2302
      %v2663 = vsel %vm2649, %v2630, %v2304
      %v2665 = vsel %vm2649, %v2632, %v2306
      %v2667 = vsel %vm2649, %v2634, %v2308
      %v2669 = vsel %vm2649, %v2636, %v2310
      %v2671 = vsel %vm2649, %v2638, %v2312
      %v2673 = vsel %vm2649, %v2640, %v2314
      %v2675 = vsel %vm2649, %v2642, %v2316
      %v2677 = vsel %vm2649, %v2644, %v2318
      %v2679 = vsel %vm2649, %v2646, %v2320
      %v2681 = vsel %vm2649, %v2648, %v2322
      %vm2682 = vcmask 523264
      %v2684 = vsel %vm2682, %v2651, %v2420
      %v2686 = vsel %vm2682, %v2653, %v2422
      %v2688 = vsel %vm2682, %v2655, %v2424
      %v2690 = vsel %vm2682, %v2657, %v2426
      %v2692 = vsel %vm2682, %v2659, %v2428
      %v2694 = vsel %vm2682, %v2661, %v2430
      %v2696 = vsel %vm2682, %v2663, %v2432
      %v2698 = vsel %vm2682, %v2665, %v2434
      %v2700 = vsel %vm2682, %v2667, %v2436
      %v2702 = vsel %vm2682, %v2669, %v2438
      %v2704 = vsel %vm2682, %v2671, %v2440
      %v2706 = vsel %vm2682, %v2673, %v2442
      %v2708 = vsel %vm2682, %v2675, %v2444
      %v2710 = vsel %vm2682, %v2677, %v2446
      %v2712 = vsel %vm2682, %v2679, %v2448
      %v2714 = vsel %vm2682, %v2681, %v2450
      %v2715 = vld [vmem:[%s210] sm:$0xf]
      %v2716 = vld [vmem:[%s210 + $0x4] sm:$0xf]
      %v2717 = vld [vmem:[%s210 + $0x8] sm:$0xf]
      %v2718 = vld [vmem:[%s210 + $0xc] sm:$0xf]
      %v2719 = vld [vmem:[%s210 + $0x10] sm:$0xf]
      %v2720 = vld [vmem:[%s210 + $0x14] sm:$0xf]
      %v2721 = vld [vmem:[%s210 + $0x18] sm:$0xf]
      %v2722 = vld [vmem:[%s210 + $0x1c] sm:$0xf]
      %v2723 = vld [vmem:[%s210 + $0x20] sm:$0xf]
      %v2724 = vld [vmem:[%s213] sm:$0x1]
      %v2726 = vlaneseq
      %v2727 = vshrl.u32 %v2726, 7
      %v2728 = vsub.s32 0, %v2727
      %v2729 = vrot.slane %v2724, %v2728
      %v2740 = vunpack.c.l.b16 %v2715
      %v2741 = vunpack.c.l.b16 %v2716
      %v2742 = vunpack.c.l.b16 %v2717
      %v2743 = vunpack.c.l.b16 %v2718
      %v2744 = vunpack.c.l.b16 %v2719
      %v2745 = vunpack.c.l.b16 %v2720
      %v2746 = vunpack.c.l.b16 %v2721
      %v2747 = vunpack.c.l.b16 %v2722
      %v2748 = vunpack.c.l.b16 %v2723
      %v2749 = vpack.c.b16 %v2741, %v2740
      %v2750 = vpack.c.b16 %v2743, %v2742
      %v2751 = vpack.c.b16 %v2745, %v2744
      %v2752 = vpack.c.b16 %v2747, %v2746
      %v2753 = vpack.c.b16 %v2748, %v2748
      %vm2758 = vcmask 588800
      %v2759 = vsel %vm2758, %v2684, 0
      %v2761 = vsel %vm2758, %v2686, 0
      %v2763 = vsel %vm2758, %v2688, 0
      %v2765 = vsel %vm2758, %v2690, 0
      %v2767 = vsel %vm2758, %v2692, 0
      %v2769 = vsel %vm2758, %v2694, 0
      %v2771 = vsel %vm2758, %v2696, 0
      %v2773 = vsel %vm2758, %v2698, 0
      %v2775 = vsel %vm2758, %v2700, 0
      %v2777 = vsel %vm2758, %v2702, 0
      %v2779 = vsel %vm2758, %v2704, 0
      %v2781 = vsel %vm2758, %v2706, 0
      %v2783 = vsel %vm2758, %v2708, 0
      %v2785 = vsel %vm2758, %v2710, 0
      %v2787 = vsel %vm2758, %v2712, 0
      %v2789 = vsel %vm2758, %v2714, 0
      %vm2791 = vcmask 1043456
      %v2793 = vsel %vm2791, %v2753, 0
      %2795 = vmatprep.subr.bf16.mxu0 0
      %2796 = vmatpush1.bf16.msra.mxu0 0
      %2797 = vmatprep.subr.bf16.mxu0 0
      %2798 = vmatpush1.bf16.msra.mxu0 0
      %2799 = vmatprep.subr.bf16.mxu0 0
      %2800 = vmatpush1.bf16.msra.mxu0 0
      %2801 = vmatprep.subr.bf16.mxu0 0
      %2802 = vmatpush1.bf16.msra.mxu0 %v2793
      %2803 = vmatprep.subr.bf16.mxu0 0
      %2804 = vmatpush1.bf16.msra.mxu0 %v2752
      %2805 = vmatprep.subr.bf16.mxu0 0
      %2806 = vmatpush1.bf16.msra.mxu0 %v2751
      %2807 = vmatprep.subr.bf16.mxu0 0
      %2808 = vmatpush1.bf16.msra.mxu0 %v2750
      %2809 = vmatprep.subr.bf16.mxu0 0
      %2810 = vmatpush1.bf16.msra.mxu0 %v2749
      %2811 = vmatprep.subr.bf16.mxu0 0
      %2812 = vmatpush2.bf16.msra.mxu0 0
      %2813 = vmatprep.subr.bf16.mxu0 0
      %2814 = vmatpush2.bf16.msra.mxu0 0
      %2815 = vmatprep.subr.bf16.mxu0 0
      %2816 = vmatpush2.bf16.msra.mxu0 0
      %2817 = vmatprep.subr.bf16.mxu0 0
      %2818 = vmatpush2.bf16.msra.mxu0 0
      %2819 = vmatprep.subr.bf16.mxu0 0
      %2820 = vmatpush2.bf16.msra.mxu0 0
      %2821 = vmatprep.subr.bf16.mxu0 0
      %2822 = vmatpush2.bf16.msra.mxu0 0
      %2823 = vmatprep.subr.bf16.mxu0 0
      %2824 = vmatpush2.bf16.msra.mxu0 0
      %2825 = vmatprep.subr.bf16.mxu0 0
      %2826 = vmatpush2.bf16.msra.mxu0 0
      %2827 = vmatprep.mubr.bf16.mxu0 0
      %2828 = vmatmul.mubr.bf16.gmra.mxu0 %v2759
      %v2829 = vpop.f32.mrf.mxu0
      %v2830 = vadd.f32 %v2729, %v2829
      %v2831 = vpop.f32.mrf.mxu0
      %v2832 = vpop.f32.mrf.mxu0
      %v2833 = vadd.f32 %v2729, %v2832
      %v2834 = vpop.f32.mrf.mxu0
      %2835 = vmatprep.mubr.bf16.mxu0 0
      %2836 = vmatmul.mubr.bf16.gmra.mxu0 %v2761
      %v2837 = vpop.f32.mrf.mxu0
      %v2838 = vadd.f32 %v2729, %v2837
      %v2839 = vpop.f32.mrf.mxu0
      %v2840 = vpop.f32.mrf.mxu0
      %v2841 = vadd.f32 %v2729, %v2840
      %v2842 = vpop.f32.mrf.mxu0
      %2843 = vmatprep.mubr.bf16.mxu0 0
      %2844 = vmatmul.mubr.bf16.gmra.mxu0 %v2763
      %v2845 = vpop.f32.mrf.mxu0
      %v2846 = vadd.f32 %v2729, %v2845
      %v2847 = vpop.f32.mrf.mxu0
      %v2848 = vpop.f32.mrf.mxu0
      %v2849 = vadd.f32 %v2729, %v2848
      %v2850 = vpop.f32.mrf.mxu0
      %2851 = vmatprep.mubr.bf16.mxu0 0
      %2852 = vmatmul.mubr.bf16.gmra.mxu0 %v2765
      %v2853 = vpop.f32.mrf.mxu0
      %v2854 = vadd.f32 %v2729, %v2853
      %v2855 = vpop.f32.mrf.mxu0
      %v2856 = vpop.f32.mrf.mxu0
      %v2857 = vadd.f32 %v2729, %v2856
      %v2858 = vpop.f32.mrf.mxu0
      %2859 = vmatprep.mubr.bf16.mxu0 0
      %2860 = vmatmul.mubr.bf16.gmra.mxu0 %v2767
      %v2861 = vpop.f32.mrf.mxu0
      %v2862 = vadd.f32 %v2729, %v2861
      %v2863 = vpop.f32.mrf.mxu0
      %v2864 = vpop.f32.mrf.mxu0
      %v2865 = vadd.f32 %v2729, %v2864
      %v2866 = vpop.f32.mrf.mxu0
      %2867 = vmatprep.mubr.bf16.mxu0 0
      %2868 = vmatmul.mubr.bf16.gmra.mxu0 %v2769
      %v2869 = vpop.f32.mrf.mxu0
      %v2870 = vadd.f32 %v2729, %v2869
      %v2871 = vpop.f32.mrf.mxu0
      %v2872 = vpop.f32.mrf.mxu0
      %v2873 = vadd.f32 %v2729, %v2872
      %v2874 = vpop.f32.mrf.mxu0
      %2875 = vmatprep.mubr.bf16.mxu0 0
      %2876 = vmatmul.mubr.bf16.gmra.mxu0 %v2771
      %v2877 = vpop.f32.mrf.mxu0
      %v2878 = vadd.f32 %v2729, %v2877
      %v2879 = vpop.f32.mrf.mxu0
      %v2880 = vpop.f32.mrf.mxu0
      %v2881 = vadd.f32 %v2729, %v2880
      %v2882 = vpop.f32.mrf.mxu0
      %2883 = vmatprep.mubr.bf16.mxu0 0
      %2884 = vmatmul.mubr.bf16.gmra.mxu0 %v2773
      %v2885 = vpop.f32.mrf.mxu0
      %v2886 = vadd.f32 %v2729, %v2885
      %v2887 = vpop.f32.mrf.mxu0
      %v2888 = vpop.f32.mrf.mxu0
      %v2889 = vadd.f32 %v2729, %v2888
      %v2890 = vpop.f32.mrf.mxu0
      %2891 = vmatprep.mubr.bf16.mxu0 0
      %2892 = vmatmul.mubr.bf16.gmra.mxu0 %v2775
      %v2893 = vpop.f32.mrf.mxu0
      %v2894 = vadd.f32 %v2729, %v2893
      %v2895 = vpop.f32.mrf.mxu0
      %v2896 = vpop.f32.mrf.mxu0
      %v2897 = vadd.f32 %v2729, %v2896
      %v2898 = vpop.f32.mrf.mxu0
      %2899 = vmatprep.mubr.bf16.mxu0 0
      %2900 = vmatmul.mubr.bf16.gmra.mxu0 %v2777
      %v2901 = vpop.f32.mrf.mxu0
      %v2902 = vadd.f32 %v2729, %v2901
      %v2903 = vpop.f32.mrf.mxu0
      %v2904 = vpop.f32.mrf.mxu0
      %v2905 = vadd.f32 %v2729, %v2904
      %v2906 = vpop.f32.mrf.mxu0
      %2907 = vmatprep.mubr.bf16.mxu0 0
      %2908 = vmatmul.mubr.bf16.gmra.mxu0 %v2779
      %v2909 = vpop.f32.mrf.mxu0
      %v2910 = vadd.f32 %v2729, %v2909
      %v2911 = vpop.f32.mrf.mxu0
      %v2912 = vpop.f32.mrf.mxu0
      %v2913 = vadd.f32 %v2729, %v2912
      %v2914 = vpop.f32.mrf.mxu0
      %2915 = vmatprep.mubr.bf16.mxu0 0
      %2916 = vmatmul.mubr.bf16.gmra.mxu0 %v2781
      %v2917 = vpop.f32.mrf.mxu0
      %v2918 = vadd.f32 %v2729, %v2917
      %v2919 = vpop.f32.mrf.mxu0
      %v2920 = vpop.f32.mrf.mxu0
      %v2921 = vadd.f32 %v2729, %v2920
      %v2922 = vpop.f32.mrf.mxu0
      %2923 = vmatprep.mubr.bf16.mxu0 0
      %2924 = vmatmul.mubr.bf16.gmra.mxu0 %v2783
      %v2925 = vpop.f32.mrf.mxu0
      %v2926 = vadd.f32 %v2729, %v2925
      %v2927 = vpop.f32.mrf.mxu0
      %v2928 = vpop.f32.mrf.mxu0
      %v2929 = vadd.f32 %v2729, %v2928
      %v2930 = vpop.f32.mrf.mxu0
      %2931 = vmatprep.mubr.bf16.mxu0 0
      %2932 = vmatmul.mubr.bf16.gmra.mxu0 %v2785
      %v2933 = vpop.f32.mrf.mxu0
      %v2934 = vadd.f32 %v2729, %v2933
      %v2935 = vpop.f32.mrf.mxu0
      %v2936 = vpop.f32.mrf.mxu0
      %v2937 = vadd.f32 %v2729, %v2936
      %v2938 = vpop.f32.mrf.mxu0
      %2939 = vmatprep.mubr.bf16.mxu0 0
      %2940 = vmatmul.mubr.bf16.gmra.mxu0 %v2787
      %v2941 = vpop.f32.mrf.mxu0
      %v2942 = vadd.f32 %v2729, %v2941
      %v2943 = vpop.f32.mrf.mxu0
      %v2944 = vpop.f32.mrf.mxu0
      %v2945 = vadd.f32 %v2729, %v2944
      %v2946 = vpop.f32.mrf.mxu0
      %2947 = vmatprep.mubr.bf16.mxu0 0
      %2948 = vmatmul.mubr.bf16.gmra.mxu0 %v2789
      %v2949 = vpop.f32.mrf.mxu0
      %v2950 = vadd.f32 %v2729, %v2949
      %v2951 = vpop.f32.mrf.mxu0
      %v2952 = vpop.f32.mrf.mxu0
      %v2953 = vadd.f32 %v2729, %v2952
      %v2954 = vpop.f32.mrf.mxu0
      %2955 = vdwg.mxu0
      %v2956 = vmax.f32 %v2830, 0.0
      %v2957 = vmax.f32 %v2833, 0.0
      %v2958 = vmax.f32 %v2838, 0.0
      %v2959 = vmax.f32 %v2841, 0.0
      %v2960 = vmax.f32 %v2846, 0.0
      %v2961 = vmax.f32 %v2849, 0.0
      %v2962 = vmax.f32 %v2854, 0.0
      %v2963 = vmax.f32 %v2857, 0.0
      %v2964 = vmax.f32 %v2862, 0.0
      %v2965 = vmax.f32 %v2865, 0.0
      %v2966 = vmax.f32 %v2870, 0.0
      %v2967 = vmax.f32 %v2873, 0.0
      %v2968 = vmax.f32 %v2878, 0.0
      %v2969 = vmax.f32 %v2881, 0.0
      %v2970 = vmax.f32 %v2886, 0.0
      %v2971 = vmax.f32 %v2889, 0.0
      %v2972 = vmax.f32 %v2894, 0.0
      %v2973 = vmax.f32 %v2897, 0.0
      %v2974 = vmax.f32 %v2902, 0.0
      %v2975 = vmax.f32 %v2905, 0.0
      %v2976 = vmax.f32 %v2910, 0.0
      %v2977 = vmax.f32 %v2913, 0.0
      %v2978 = vmax.f32 %v2918, 0.0
      %v2979 = vmax.f32 %v2921, 0.0
      %v2980 = vmax.f32 %v2926, 0.0
      %v2981 = vmax.f32 %v2929, 0.0
      %v2982 = vmax.f32 %v2934, 0.0
      %v2983 = vmax.f32 %v2937, 0.0
      %v2984 = vmax.f32 %v2942, 0.0
      %v2985 = vmax.f32 %v2945, 0.0
      %v2986 = vmax.f32 %v2950, 0.0
      %v2987 = vmax.f32 %v2953, 0.0
      %v2988 = vmax.f32 %v2956, %v2958
      %v2989 = vmax.f32 %v2957, %v2959
      %v2990 = vmax.f32 %v2960, %v2962
      %v2991 = vmax.f32 %v2961, %v2963
      %v2992 = vmax.f32 %v2964, %v2966
      %v2993 = vmax.f32 %v2965, %v2967
      %v2994 = vmax.f32 %v2968, %v2970
      %v2995 = vmax.f32 %v2969, %v2971
      %v2996 = vmax.f32 %v2972, %v2974
      %v2997 = vmax.f32 %v2973, %v2975
      %v2998 = vmax.f32 %v2976, %v2978
      %v2999 = vmax.f32 %v2977, %v2979
      %v3000 = vmax.f32 %v2980, %v2982
      %v3001 = vmax.f32 %v2981, %v2983
      %v3002 = vmax.f32 %v2984, %v2986
      %v3003 = vmax.f32 %v2985, %v2987
      %v3004 = vmax.f32 %v2988, 0.0
      %v3005 = vmax.f32 %v2989, 0.0
      %v3006 = vmax.f32 %v2990, %v2958
      %v3007 = vmax.f32 %v2991, %v2959
      %v3008 = vmax.f32 %v2992, %v2962
      %v3009 = vmax.f32 %v2993, %v2963
      %v3010 = vmax.f32 %v2994, %v2966
      %v3011 = vmax.f32 %v2995, %v2967
      %v3012 = vmax.f32 %v2996, %v2970
      %v3013 = vmax.f32 %v2997, %v2971
      %v3014 = vmax.f32 %v2998, %v2974
      %v3015 = vmax.f32 %v2999, %v2975
      %v3016 = vmax.f32 %v3000, %v2978
      %v3017 = vmax.f32 %v3001, %v2979
      %v3018 = vmax.f32 %v3002, %v2982
      %v3019 = vmax.f32 %v3003, %v2983
      %v3036 = vcombine.high %v3004, %v3004
      %v3038 = vunpack.c.l.s4 1983009808
      %v3039 = vunpack.c.0.s8 %v3038
      %v3040 = vlaneseq
      %v3041 = vshrl.u32 %v3040, 7
      %v3042 = vsub.s32 %v3039, %v3041
      %v3043 = vrot.slane %v3004, %v3042
      %v3045 = vunpack.c.l.s4 1983009808
      %v3046 = vunpack.c.0.s8 %v3045
      %v3047 = vlaneseq
      %v3048 = vshrl.u32 %v3047, 7
      %v3049 = vsub.s32 %v3046, %v3048
      %v3050 = vrot.slane %v3036, %v3049
      %v3051 = vcombine.high %v3043, %v3043
      %v3052 = vcombine.high %v3050, %v3050
      %v3053 = vcombine.high %v3005, %v3005
      %v3055 = vunpack.c.l.s4 1983009808
      %v3056 = vunpack.c.0.s8 %v3055
      %v3057 = vlaneseq
      %v3058 = vshrl.u32 %v3057, 7
      %v3059 = vsub.s32 %v3056, %v3058
      %v3060 = vrot.slane %v3005, %v3059
      %v3062 = vunpack.c.l.s4 1983009808
      %v3063 = vunpack.c.0.s8 %v3062
      %v3064 = vlaneseq
      %v3065 = vshrl.u32 %v3064, 7
      %v3066 = vsub.s32 %v3063, %v3065
      %v3067 = vrot.slane %v3053, %v3066
      %v3068 = vcombine.high %v3060, %v3060
      %v3069 = vcombine.high %v3067, %v3067
      %v3070 = vcombine.high %v3006, %v3006
      %v3072 = vunpack.c.l.s4 1983009808
      %v3073 = vunpack.c.0.s8 %v3072
      %v3074 = vlaneseq
      %v3075 = vshrl.u32 %v3074, 7
      %v3076 = vsub.s32 %v3073, %v3075
      %v3077 = vrot.slane %v3006, %v3076
      %v3079 = vunpack.c.l.s4 1983009808
      %v3080 = vunpack.c.0.s8 %v3079
      %v3081 = vlaneseq
      %v3082 = vshrl.u32 %v3081, 7
      %v3083 = vsub.s32 %v3080, %v3082
      %v3084 = vrot.slane %v3070, %v3083
      %v3085 = vcombine.high %v3077, %v3077
      %v3086 = vcombine.high %v3084, %v3084
      %v3087 = vcombine.high %v3007, %v3007
      %v3089 = vunpack.c.l.s4 1983009808
      %v3090 = vunpack.c.0.s8 %v3089
      %v3091 = vlaneseq
      %v3092 = vshrl.u32 %v3091, 7
      %v3093 = vsub.s32 %v3090, %v3092
      %v3094 = vrot.slane %v3007, %v3093
      %v3096 = vunpack.c.l.s4 1983009808
      %v3097 = vunpack.c.0.s8 %v3096
      %v3098 = vlaneseq
      %v3099 = vshrl.u32 %v3098, 7
      %v3100 = vsub.s32 %v3097, %v3099
      %v3101 = vrot.slane %v3087, %v3100
      %v3102 = vcombine.high %v3094, %v3094
      %v3103 = vcombine.high %v3101, %v3101
      %v3104 = vcombine.high %v3008, %v3008
      %v3106 = vunpack.c.l.s4 1983009808
      %v3107 = vunpack.c.0.s8 %v3106
      %v3108 = vlaneseq
      %v3109 = vshrl.u32 %v3108, 7
      %v3110 = vsub.s32 %v3107, %v3109
      %v3111 = vrot.slane %v3008, %v3110
      %v3113 = vunpack.c.l.s4 1983009808
      %v3114 = vunpack.c.0.s8 %v3113
      %v3115 = vlaneseq
      %v3116 = vshrl.u32 %v3115, 7
      %v3117 = vsub.s32 %v3114, %v3116
      %v3118 = vrot.slane %v3104, %v3117
      %v3119 = vcombine.high %v3111, %v3111
      %v3120 = vcombine.high %v3118, %v3118
      %v3121 = vcombine.high %v3009, %v3009
      %v3123 = vunpack.c.l.s4 1983009808
      %v3124 = vunpack.c.0.s8 %v3123
      %v3125 = vlaneseq
      %v3126 = vshrl.u32 %v3125, 7
      %v3127 = vsub.s32 %v3124, %v3126
      %v3128 = vrot.slane %v3009, %v3127
      %v3130 = vunpack.c.l.s4 1983009808
      %v3131 = vunpack.c.0.s8 %v3130
      %v3132 = vlaneseq
      %v3133 = vshrl.u32 %v3132, 7
      %v3134 = vsub.s32 %v3131, %v3133
      %v3135 = vrot.slane %v3121, %v3134
      %v3136 = vcombine.high %v3128, %v3128
      %v3137 = vcombine.high %v3135, %v3135
      %v3138 = vcombine.high %v3010, %v3010
      %v3140 = vunpack.c.l.s4 1983009808
      %v3141 = vunpack.c.0.s8 %v3140
      %v3142 = vlaneseq
      %v3143 = vshrl.u32 %v3142, 7
      %v3144 = vsub.s32 %v3141, %v3143
      %v3145 = vrot.slane %v3010, %v3144
      %v3147 = vunpack.c.l.s4 1983009808
      %v3148 = vunpack.c.0.s8 %v3147
      %v3149 = vlaneseq
      %v3150 = vshrl.u32 %v3149, 7
      %v3151 = vsub.s32 %v3148, %v3150
      %v3152 = vrot.slane %v3138, %v3151
      %v3153 = vcombine.high %v3145, %v3145
      %v3154 = vcombine.high %v3152, %v3152
      %v3155 = vcombine.high %v3011, %v3011
      %v3157 = vunpack.c.l.s4 1983009808
      %v3158 = vunpack.c.0.s8 %v3157
      %v3159 = vlaneseq
      %v3160 = vshrl.u32 %v3159, 7
      %v3161 = vsub.s32 %v3158, %v3160
      %v3162 = vrot.slane %v3011, %v3161
      %v3164 = vunpack.c.l.s4 1983009808
      %v3165 = vunpack.c.0.s8 %v3164
      %v3166 = vlaneseq
      %v3167 = vshrl.u32 %v3166, 7
      %v3168 = vsub.s32 %v3165, %v3167
      %v3169 = vrot.slane %v3155, %v3168
      %v3170 = vcombine.high %v3162, %v3162
      %v3171 = vcombine.high %v3169, %v3169
      %v3172 = vcombine.high %v3012, %v3012
      %v3174 = vunpack.c.l.s4 1983009808
      %v3175 = vunpack.c.0.s8 %v3174
      %v3176 = vlaneseq
      %v3177 = vshrl.u32 %v3176, 7
      %v3178 = vsub.s32 %v3175, %v3177
      %v3179 = vrot.slane %v3012, %v3178
      %v3181 = vunpack.c.l.s4 1983009808
      %v3182 = vunpack.c.0.s8 %v3181
      %v3183 = vlaneseq
      %v3184 = vshrl.u32 %v3183, 7
      %v3185 = vsub.s32 %v3182, %v3184
      %v3186 = vrot.slane %v3172, %v3185
      %v3187 = vcombine.high %v3179, %v3179
      %v3188 = vcombine.high %v3186, %v3186
      %v3189 = vcombine.high %v3013, %v3013
      %v3191 = vunpack.c.l.s4 1983009808
      %v3192 = vunpack.c.0.s8 %v3191
      %v3193 = vlaneseq
      %v3194 = vshrl.u32 %v3193, 7
      %v3195 = vsub.s32 %v3192, %v3194
      %v3196 = vrot.slane %v3013, %v3195
      %v3198 = vunpack.c.l.s4 1983009808
      %v3199 = vunpack.c.0.s8 %v3198
      %v3200 = vlaneseq
      %v3201 = vshrl.u32 %v3200, 7
      %v3202 = vsub.s32 %v3199, %v3201
      %v3203 = vrot.slane %v3189, %v3202
      %v3204 = vcombine.high %v3196, %v3196
      %v3205 = vcombine.high %v3203, %v3203
      %v3206 = vcombine.high %v3014, %v3014
      %v3208 = vunpack.c.l.s4 1983009808
      %v3209 = vunpack.c.0.s8 %v3208
      %v3210 = vlaneseq
      %v3211 = vshrl.u32 %v3210, 7
      %v3212 = vsub.s32 %v3209, %v3211
      %v3213 = vrot.slane %v3014, %v3212
      %v3215 = vunpack.c.l.s4 1983009808
      %v3216 = vunpack.c.0.s8 %v3215
      %v3217 = vlaneseq
      %v3218 = vshrl.u32 %v3217, 7
      %v3219 = vsub.s32 %v3216, %v3218
      %v3220 = vrot.slane %v3206, %v3219
      %v3221 = vcombine.high %v3213, %v3213
      %v3222 = vcombine.high %v3220, %v3220
      %v3223 = vcombine.high %v3015, %v3015
      %v3225 = vunpack.c.l.s4 1983009808
      %v3226 = vunpack.c.0.s8 %v3225
      %v3227 = vlaneseq
      %v3228 = vshrl.u32 %v3227, 7
      %v3229 = vsub.s32 %v3226, %v3228
      %v3230 = vrot.slane %v3015, %v3229
      %v3232 = vunpack.c.l.s4 1983009808
      %v3233 = vunpack.c.0.s8 %v3232
      %v3234 = vlaneseq
      %v3235 = vshrl.u32 %v3234, 7
      %v3236 = vsub.s32 %v3233, %v3235
      %v3237 = vrot.slane %v3223, %v3236
      %v3238 = vcombine.high %v3230, %v3230
      %v3239 = vcombine.high %v3237, %v3237
      %v3240 = vcombine.high %v3016, %v3016
      %v3242 = vunpack.c.l.s4 1983009808
      %v3243 = vunpack.c.0.s8 %v3242
      %v3244 = vlaneseq
      %v3245 = vshrl.u32 %v3244, 7
      %v3246 = vsub.s32 %v3243, %v3245
      %v3247 = vrot.slane %v3016, %v3246
      %v3249 = vunpack.c.l.s4 1983009808
      %v3250 = vunpack.c.0.s8 %v3249
      %v3251 = vlaneseq
      %v3252 = vshrl.u32 %v3251, 7
      %v3253 = vsub.s32 %v3250, %v3252
      %v3254 = vrot.slane %v3240, %v3253
      %v3255 = vcombine.high %v3247, %v3247
      %v3256 = vcombine.high %v3254, %v3254
      %v3257 = vcombine.high %v3017, %v3017
      %v3259 = vunpack.c.l.s4 1983009808
      %v3260 = vunpack.c.0.s8 %v3259
      %v3261 = vlaneseq
      %v3262 = vshrl.u32 %v3261, 7
      %v3263 = vsub.s32 %v3260, %v3262
      %v3264 = vrot.slane %v3017, %v3263
      %v3266 = vunpack.c.l.s4 1983009808
      %v3267 = vunpack.c.0.s8 %v3266
      %v3268 = vlaneseq
      %v3269 = vshrl.u32 %v3268, 7
      %v3270 = vsub.s32 %v3267, %v3269
      %v3271 = vrot.slane %v3257, %v3270
      %v3272 = vcombine.high %v3264, %v3264
      %v3273 = vcombine.high %v3271, %v3271
      %v3274 = vcombine.high %v3018, %v3018
      %v3276 = vunpack.c.l.s4 1983009808
      %v3277 = vunpack.c.0.s8 %v3276
      %v3278 = vlaneseq
      %v3279 = vshrl.u32 %v3278, 7
      %v3280 = vsub.s32 %v3277, %v3279
      %v3281 = vrot.slane %v3018, %v3280
      %v3283 = vunpack.c.l.s4 1983009808
      %v3284 = vunpack.c.0.s8 %v3283
      %v3285 = vlaneseq
      %v3286 = vshrl.u32 %v3285, 7
      %v3287 = vsub.s32 %v3284, %v3286
      %v3288 = vrot.slane %v3274, %v3287
      %v3289 = vcombine.high %v3281, %v3281
      %v3290 = vcombine.high %v3288, %v3288
      %v3291 = vcombine.high %v3019, %v3019
      %v3293 = vunpack.c.l.s4 1983009808
      %v3294 = vunpack.c.0.s8 %v3293
      %v3295 = vlaneseq
      %v3296 = vshrl.u32 %v3295, 7
      %v3297 = vsub.s32 %v3294, %v3296
      %v3298 = vrot.slane %v3019, %v3297
      %v3300 = vunpack.c.l.s4 1983009808
      %v3301 = vunpack.c.0.s8 %v3300
      %v3302 = vlaneseq
      %v3303 = vshrl.u32 %v3302, 7
      %v3304 = vsub.s32 %v3301, %v3303
      %v3305 = vrot.slane %v3291, %v3304
      %v3306 = vcombine.high %v3298, %v3298
      %v3307 = vcombine.high %v3305, %v3305
      %v3372 = vrot.slane %v3043, 7
      %v3373 = vrot.slane %v3372, 2
      %v3374 = vrot.slane %v3051, 7
      %v3375 = vrot.slane %v3374, 2
      %v3376 = vrot.slane %v3050, 7
      %v3377 = vrot.slane %v3376, 2
      %v3378 = vrot.slane %v3052, 7
      %v3379 = vrot.slane %v3378, 2
      %v3380 = vrot.slane %v3060, 7
      %v3381 = vrot.slane %v3380, 2
      %v3382 = vrot.slane %v3068, 7
      %v3383 = vrot.slane %v3382, 2
      %v3384 = vrot.slane %v3067, 7
      %v3385 = vrot.slane %v3384, 2
      %v3386 = vrot.slane %v3069, 7
      %v3387 = vrot.slane %v3386, 2
      %v3388 = vrot.slane %v3077, 7
      %v3389 = vrot.slane %v3388, 2
      %v3390 = vrot.slane %v3085, 7
      %v3391 = vrot.slane %v3390, 2
      %v3392 = vrot.slane %v3084, 7
      %v3393 = vrot.slane %v3392, 2
      %v3394 = vrot.slane %v3086, 7
      %v3395 = vrot.slane %v3394, 2
      %v3396 = vrot.slane %v3094, 7
      %v3397 = vrot.slane %v3396, 2
      %v3398 = vrot.slane %v3102, 7
      %v3399 = vrot.slane %v3398, 2
      %v3400 = vrot.slane %v3101, 7
      %v3401 = vrot.slane %v3400, 2
      %v3402 = vrot.slane %v3103, 7
      %v3403 = vrot.slane %v3402, 2
      %v3404 = vrot.slane %v3111, 7
      %v3405 = vrot.slane %v3404, 2
      %v3406 = vrot.slane %v3119, 7
      %v3407 = vrot.slane %v3406, 2
      %v3408 = vrot.slane %v3118, 7
      %v3409 = vrot.slane %v3408, 2
      %v3410 = vrot.slane %v3120, 7
      %v3411 = vrot.slane %v3410, 2
      %v3412 = vrot.slane %v3128, 7
      %v3413 = vrot.slane %v3412, 2
      %v3414 = vrot.slane %v3136, 7
      %v3415 = vrot.slane %v3414, 2
      %v3416 = vrot.slane %v3135, 7
      %v3417 = vrot.slane %v3416, 2
      %v3418 = vrot.slane %v3137, 7
      %v3419 = vrot.slane %v3418, 2
      %v3420 = vrot.slane %v3145, 7
      %v3421 = vrot.slane %v3420, 2
      %v3422 = vrot.slane %v3153, 7
      %v3423 = vrot.slane %v3422, 2
      %v3424 = vrot.slane %v3152, 7
      %v3425 = vrot.slane %v3424, 2
      %v3426 = vrot.slane %v3154, 7
      %v3427 = vrot.slane %v3426, 2
      %v3428 = vrot.slane %v3162, 7
      %v3429 = vrot.slane %v3428, 2
      %v3430 = vrot.slane %v3170, 7
      %v3431 = vrot.slane %v3430, 2
      %v3432 = vrot.slane %v3169, 7
      %v3433 = vrot.slane %v3432, 2
      %v3434 = vrot.slane %v3171, 7
      %v3435 = vrot.slane %v3434, 2
      %v3436 = vrot.slane %v3179, 7
      %v3437 = vrot.slane %v3436, 2
      %v3438 = vrot.slane %v3187, 7
      %v3439 = vrot.slane %v3438, 2
      %v3440 = vrot.slane %v3186, 7
      %v3441 = vrot.slane %v3440, 2
      %v3442 = vrot.slane %v3188, 7
      %v3443 = vrot.slane %v3442, 2
      %v3444 = vrot.slane %v3196, 7
      %v3445 = vrot.slane %v3444, 2
      %v3446 = vrot.slane %v3204, 7
      %v3447 = vrot.slane %v3446, 2
      %v3448 = vrot.slane %v3203, 7
      %v3449 = vrot.slane %v3448, 2
      %v3450 = vrot.slane %v3205, 7
      %v3451 = vrot.slane %v3450, 2
      %v3452 = vrot.slane %v3213, 7
      %v3453 = vrot.slane %v3452, 2
      %v3454 = vrot.slane %v3221, 7
      %v3455 = vrot.slane %v3454, 2
      %v3456 = vrot.slane %v3220, 7
      %v3457 = vrot.slane %v3456, 2
      %v3458 = vrot.slane %v3222, 7
      %v3459 = vrot.slane %v3458, 2
      %v3460 = vrot.slane %v3230, 7
      %v3461 = vrot.slane %v3460, 2
      %v3462 = vrot.slane %v3238, 7
      %v3463 = vrot.slane %v3462, 2
      %v3464 = vrot.slane %v3237, 7
      %v3465 = vrot.slane %v3464, 2
      %v3466 = vrot.slane %v3239, 7
      %v3467 = vrot.slane %v3466, 2
      %v3468 = vrot.slane %v3247, 7
      %v3469 = vrot.slane %v3468, 2
      %v3470 = vrot.slane %v3255, 7
      %v3471 = vrot.slane %v3470, 2
      %v3472 = vrot.slane %v3254, 7
      %v3473 = vrot.slane %v3472, 2
      %v3474 = vrot.slane %v3256, 7
      %v3475 = vrot.slane %v3474, 2
      %v3476 = vrot.slane %v3264, 7
      %v3477 = vrot.slane %v3476, 2
      %v3478 = vrot.slane %v3272, 7
      %v3479 = vrot.slane %v3478, 2
      %v3480 = vrot.slane %v3271, 7
      %v3481 = vrot.slane %v3480, 2
      %v3482 = vrot.slane %v3273, 7
      %v3483 = vrot.slane %v3482, 2
      %v3484 = vrot.slane %v3281, 7
      %v3485 = vrot.slane %v3484, 2
      %v3486 = vrot.slane %v3289, 7
      %v3487 = vrot.slane %v3486, 2
      %v3488 = vrot.slane %v3288, 7
      %v3489 = vrot.slane %v3488, 2
      %v3490 = vrot.slane %v3290, 7
      %v3491 = vrot.slane %v3490, 2
      %v3492 = vrot.slane %v3298, 7
      %v3493 = vrot.slane %v3492, 2
      %v3494 = vrot.slane %v3306, 7
      %v3495 = vrot.slane %v3494, 2
      %v3496 = vrot.slane %v3305, 7
      %v3497 = vrot.slane %v3496, 2
      %v3498 = vrot.slane %v3307, 7
      %v3499 = vrot.slane %v3498, 2
      %v3564 = vmax.f32 %v3043, %v3373
      %v3565 = vmax.f32 %v3051, %v3375
      %v3566 = vmax.f32 %v3050, %v3377
      %v3567 = vmax.f32 %v3052, %v3379
      %v3568 = vmax.f32 %v3060, %v3381
      %v3569 = vmax.f32 %v3068, %v3383
      %v3570 = vmax.f32 %v3067, %v3385
      %v3571 = vmax.f32 %v3069, %v3387
      %v3572 = vmax.f32 %v3077, %v3389
      %v3573 = vmax.f32 %v3085, %v3391
      %v3574 = vmax.f32 %v3084, %v3393
      %v3575 = vmax.f32 %v3086, %v3395
      %v3576 = vmax.f32 %v3094, %v3397
      %v3577 = vmax.f32 %v3102, %v3399
      %v3578 = vmax.f32 %v3101, %v3401
      %v3579 = vmax.f32 %v3103, %v3403
      %v3580 = vmax.f32 %v3111, %v3405
      %v3581 = vmax.f32 %v3119, %v3407
      %v3582 = vmax.f32 %v3118, %v3409
      %v3583 = vmax.f32 %v3120, %v3411
      %v3584 = vmax.f32 %v3128, %v3413
      %v3585 = vmax.f32 %v3136, %v3415
      %v3586 = vmax.f32 %v3135, %v3417
      %v3587 = vmax.f32 %v3137, %v3419
      %v3588 = vmax.f32 %v3145, %v3421
      %v3589 = vmax.f32 %v3153, %v3423
      %v3590 = vmax.f32 %v3152, %v3425
      %v3591 = vmax.f32 %v3154, %v3427
      %v3592 = vmax.f32 %v3162, %v3429
      %v3593 = vmax.f32 %v3170, %v3431
      %v3594 = vmax.f32 %v3169, %v3433
      %v3595 = vmax.f32 %v3171, %v3435
      %v3596 = vmax.f32 %v3179, %v3437
      %v3597 = vmax.f32 %v3187, %v3439
      %v3598 = vmax.f32 %v3186, %v3441
      %v3599 = vmax.f32 %v3188, %v3443
      %v3600 = vmax.f32 %v3196, %v3445
      %v3601 = vmax.f32 %v3204, %v3447
      %v3602 = vmax.f32 %v3203, %v3449
      %v3603 = vmax.f32 %v3205, %v3451
      %v3604 = vmax.f32 %v3213, %v3453
      %v3605 = vmax.f32 %v3221, %v3455
      %v3606 = vmax.f32 %v3220, %v3457
      %v3607 = vmax.f32 %v3222, %v3459
      %v3608 = vmax.f32 %v3230, %v3461
      %v3609 = vmax.f32 %v3238, %v3463
      %v3610 = vmax.f32 %v3237, %v3465
      %v3611 = vmax.f32 %v3239, %v3467
      %v3612 = vmax.f32 %v3247, %v3469
      %v3613 = vmax.f32 %v3255, %v3471
      %v3614 = vmax.f32 %v3254, %v3473
      %v3615 = vmax.f32 %v3256, %v3475
      %v3616 = vmax.f32 %v3264, %v3477
      %v3617 = vmax.f32 %v3272, %v3479
      %v3618 = vmax.f32 %v3271, %v3481
      %v3619 = vmax.f32 %v3273, %v3483
      %v3620 = vmax.f32 %v3281, %v3485
      %v3621 = vmax.f32 %v3289, %v3487
      %v3622 = vmax.f32 %v3288, %v3489
      %v3623 = vmax.f32 %v3290, %v3491
      %v3624 = vmax.f32 %v3298, %v3493
      %v3625 = vmax.f32 %v3306, %v3495
      %v3626 = vmax.f32 %v3305, %v3497
      %v3627 = vmax.f32 %v3307, %v3499
      %v3628 = vlaneseq
      %v3629 = vshrl.u32 %v3628, 7
      %v3630 = vsub.s32 1, %v3629
      %v3631 = vrot.slane %v3043, %v3630
      %v3632 = vlaneseq
      %v3633 = vshrl.u32 %v3632, 7
      %v3634 = vsub.s32 1, %v3633
      %v3635 = vrot.slane %v3051, %v3634
      %v3636 = vlaneseq
      %v3637 = vshrl.u32 %v3636, 7
      %v3638 = vsub.s32 1, %v3637
      %v3639 = vrot.slane %v3050, %v3638
      %v3640 = vlaneseq
      %v3641 = vshrl.u32 %v3640, 7
      %v3642 = vsub.s32 1, %v3641
      %v3643 = vrot.slane %v3052, %v3642
      %v3644 = vlaneseq
      %v3645 = vshrl.u32 %v3644, 7
      %v3646 = vsub.s32 1, %v3645
      %v3647 = vrot.slane %v3060, %v3646
      %v3648 = vlaneseq
      %v3649 = vshrl.u32 %v3648, 7
      %v3650 = vsub.s32 1, %v3649
      %v3651 = vrot.slane %v3068, %v3650
      %v3652 = vlaneseq
      %v3653 = vshrl.u32 %v3652, 7
      %v3654 = vsub.s32 1, %v3653
      %v3655 = vrot.slane %v3067, %v3654
      %v3656 = vlaneseq
      %v3657 = vshrl.u32 %v3656, 7
      %v3658 = vsub.s32 1, %v3657
      %v3659 = vrot.slane %v3077, %v3658
      %v3660 = vlaneseq
      %v3661 = vshrl.u32 %v3660, 7
      %v3662 = vsub.s32 1, %v3661
      %v3663 = vrot.slane %v3085, %v3662
      %v3664 = vlaneseq
      %v3665 = vshrl.u32 %v3664, 7
      %v3666 = vsub.s32 1, %v3665
      %v3667 = vrot.slane %v3084, %v3666
      %v3668 = vlaneseq
      %v3669 = vshrl.u32 %v3668, 7
      %v3670 = vsub.s32 1, %v3669
      %v3671 = vrot.slane %v3086, %v3670
      %v3672 = vlaneseq
      %v3673 = vshrl.u32 %v3672, 7
      %v3674 = vsub.s32 1, %v3673
      %v3675 = vrot.slane %v3094, %v3674
      %v3676 = vlaneseq
      %v3677 = vshrl.u32 %v3676, 7
      %v3678 = vsub.s32 1, %v3677
      %v3679 = vrot.slane %v3102, %v3678
      %v3680 = vlaneseq
      %v3681 = vshrl.u32 %v3680, 7
      %v3682 = vsub.s32 1, %v3681
      %v3683 = vrot.slane %v3101, %v3682
      %v3684 = vlaneseq
      %v3685 = vshrl.u32 %v3684, 7
      %v3686 = vsub.s32 1, %v3685
      %v3687 = vrot.slane %v3111, %v3686
      %v3688 = vlaneseq
      %v3689 = vshrl.u32 %v3688, 7
      %v3690 = vsub.s32 1, %v3689
      %v3691 = vrot.slane %v3119, %v3690
      %v3692 = vlaneseq
      %v3693 = vshrl.u32 %v3692, 7
      %v3694 = vsub.s32 1, %v3693
      %v3695 = vrot.slane %v3118, %v3694
      %v3696 = vlaneseq
      %v3697 = vshrl.u32 %v3696, 7
      %v3698 = vsub.s32 1, %v3697
      %v3699 = vrot.slane %v3120, %v3698
      %v3700 = vlaneseq
      %v3701 = vshrl.u32 %v3700, 7
      %v3702 = vsub.s32 1, %v3701
      %v3703 = vrot.slane %v3128, %v3702
      %v3704 = vlaneseq
      %v3705 = vshrl.u32 %v3704, 7
      %v3706 = vsub.s32 1, %v3705
      %v3707 = vrot.slane %v3136, %v3706
      %v3708 = vlaneseq
      %v3709 = vshrl.u32 %v3708, 7
      %v3710 = vsub.s32 1, %v3709
      %v3711 = vrot.slane %v3135, %v3710
      %v3712 = vlaneseq
      %v3713 = vshrl.u32 %v3712, 7
      %v3714 = vsub.s32 1, %v3713
      %v3715 = vrot.slane %v3145, %v3714
      %v3716 = vlaneseq
      %v3717 = vshrl.u32 %v3716, 7
      %v3718 = vsub.s32 1, %v3717
      %v3719 = vrot.slane %v3153, %v3718
      %v3720 = vlaneseq
      %v3721 = vshrl.u32 %v3720, 7
      %v3722 = vsub.s32 1, %v3721
      %v3723 = vrot.slane %v3152, %v3722
      %v3724 = vlaneseq
      %v3725 = vshrl.u32 %v3724, 7
      %v3726 = vsub.s32 1, %v3725
      %v3727 = vrot.slane %v3154, %v3726
      %v3728 = vlaneseq
      %v3729 = vshrl.u32 %v3728, 7
      %v3730 = vsub.s32 1, %v3729
      %v3731 = vrot.slane %v3162, %v3730
      %v3732 = vlaneseq
      %v3733 = vshrl.u32 %v3732, 7
      %v3734 = vsub.s32 1, %v3733
      %v3735 = vrot.slane %v3170, %v3734
      %v3736 = vlaneseq
      %v3737 = vshrl.u32 %v3736, 7
      %v3738 = vsub.s32 1, %v3737
      %v3739 = vrot.slane %v3169, %v3738
      %v3740 = vlaneseq
      %v3741 = vshrl.u32 %v3740, 7
      %v3742 = vsub.s32 1, %v3741
      %v3743 = vrot.slane %v3179, %v3742
      %v3744 = vlaneseq
      %v3745 = vshrl.u32 %v3744, 7
      %v3746 = vsub.s32 1, %v3745
      %v3747 = vrot.slane %v3187, %v3746
      %v3748 = vlaneseq
      %v3749 = vshrl.u32 %v3748, 7
      %v3750 = vsub.s32 1, %v3749
      %v3751 = vrot.slane %v3186, %v3750
      %v3752 = vlaneseq
      %v3753 = vshrl.u32 %v3752, 7
      %v3754 = vsub.s32 1, %v3753
      %v3755 = vrot.slane %v3188, %v3754
      %v3756 = vlaneseq
      %v3757 = vshrl.u32 %v3756, 7
      %v3758 = vsub.s32 1, %v3757
      %v3759 = vrot.slane %v3196, %v3758
      %v3760 = vlaneseq
      %v3761 = vshrl.u32 %v3760, 7
      %v3762 = vsub.s32 1, %v3761
      %v3763 = vrot.slane %v3204, %v3762
      %v3764 = vlaneseq
      %v3765 = vshrl.u32 %v3764, 7
      %v3766 = vsub.s32 1, %v3765
      %v3767 = vrot.slane %v3203, %v3766
      %v3768 = vlaneseq
      %v3769 = vshrl.u32 %v3768, 7
      %v3770 = vsub.s32 1, %v3769
      %v3771 = vrot.slane %v3213, %v3770
      %v3772 = vlaneseq
      %v3773 = vshrl.u32 %v3772, 7
      %v3774 = vsub.s32 1, %v3773
      %v3775 = vrot.slane %v3221, %v3774
      %v3776 = vlaneseq
      %v3777 = vshrl.u32 %v3776, 7
      %v3778 = vsub.s32 1, %v3777
      %v3779 = vrot.slane %v3220, %v3778
      %v3780 = vlaneseq
      %v3781 = vshrl.u32 %v3780, 7
      %v3782 = vsub.s32 1, %v3781
      %v3783 = vrot.slane %v3222, %v3782
      %v3784 = vlaneseq
      %v3785 = vshrl.u32 %v3784, 7
      %v3786 = vsub.s32 1, %v3785
      %v3787 = vrot.slane %v3230, %v3786
      %v3788 = vlaneseq
      %v3789 = vshrl.u32 %v3788, 7
      %v3790 = vsub.s32 1, %v3789
      %v3791 = vrot.slane %v3238, %v3790
      %v3792 = vlaneseq
      %v3793 = vshrl.u32 %v3792, 7
      %v3794 = vsub.s32 1, %v3793
      %v3795 = vrot.slane %v3237, %v3794
      %v3796 = vlaneseq
      %v3797 = vshrl.u32 %v3796, 7
      %v3798 = vsub.s32 1, %v3797
      %v3799 = vrot.slane %v3247, %v3798
      %v3800 = vlaneseq
      %v3801 = vshrl.u32 %v3800, 7
      %v3802 = vsub.s32 1, %v3801
      %v3803 = vrot.slane %v3255, %v3802
      %v3804 = vlaneseq
      %v3805 = vshrl.u32 %v3804, 7
      %v3806 = vsub.s32 1, %v3805
      %v3807 = vrot.slane %v3254, %v3806
      %v3808 = vlaneseq
      %v3809 = vshrl.u32 %v3808, 7
      %v3810 = vsub.s32 1, %v3809
      %v3811 = vrot.slane %v3256, %v3810
      %v3812 = vlaneseq
      %v3813 = vshrl.u32 %v3812, 7
      %v3814 = vsub.s32 1, %v3813
      %v3815 = vrot.slane %v3264, %v3814
      %v3816 = vlaneseq
      %v3817 = vshrl.u32 %v3816, 7
      %v3818 = vsub.s32 1, %v3817
      %v3819 = vrot.slane %v3272, %v3818
      %v3820 = vlaneseq
      %v3821 = vshrl.u32 %v3820, 7
      %v3822 = vsub.s32 1, %v3821
      %v3823 = vrot.slane %v3271, %v3822
      %v3824 = vlaneseq
      %v3825 = vshrl.u32 %v3824, 7
      %v3826 = vsub.s32 1, %v3825
      %v3827 = vrot.slane %v3281, %v3826
      %v3828 = vlaneseq
      %v3829 = vshrl.u32 %v3828, 7
      %v3830 = vsub.s32 1, %v3829
      %v3831 = vrot.slane %v3289, %v3830
      %v3832 = vlaneseq
      %v3833 = vshrl.u32 %v3832, 7
      %v3834 = vsub.s32 1, %v3833
      %v3835 = vrot.slane %v3288, %v3834
      %v3836 = vlaneseq
      %v3837 = vshrl.u32 %v3836, 7
      %v3838 = vsub.s32 1, %v3837
      %v3839 = vrot.slane %v3290, %v3838
      %v3840 = vlaneseq
      %v3841 = vshrl.u32 %v3840, 7
      %v3842 = vsub.s32 1, %v3841
      %v3843 = vrot.slane %v3298, %v3842
      %v3844 = vlaneseq
      %v3845 = vshrl.u32 %v3844, 7
      %v3846 = vsub.s32 1, %v3845
      %v3847 = vrot.slane %v3306, %v3846
      %v3848 = vlaneseq
      %v3849 = vshrl.u32 %v3848, 7
      %v3850 = vsub.s32 1, %v3849
      %v3851 = vrot.slane %v3305, %v3850
      %vm3852 = vcmask 1042434
      %v3853 = vsel %vm3852, %v3635, %v3631
      %vm3854 = vcmask 1043459
      %v3855 = vsel %vm3854, %v3639, %v3853
      %vm3856 = vcmask 1044484
      %v3857 = vsel %vm3856, %v3643, %v3855
      %vm3858 = vcmask 1045509
      %v3859 = vsel %vm3858, %v3647, %v3857
      %vm3860 = vcmask 1046534
      %v3861 = vsel %vm3860, %v3651, %v3859
      %vm3862 = vcmask 1047559
      %v3863 = vsel %vm3862, %v3655, %v3861
      %v3864 = vsel %vm3852, %v3663, %v3659
      %v3865 = vsel %vm3854, %v3667, %v3864
      %v3866 = vsel %vm3856, %v3671, %v3865
      %v3867 = vsel %vm3858, %v3675, %v3866
      %v3868 = vsel %vm3860, %v3679, %v3867
      %v3869 = vsel %vm3862, %v3683, %v3868
      %v3870 = vsel %vm3852, %v3691, %v3687
      %v3871 = vsel %vm3854, %v3695, %v3870
      %v3872 = vsel %vm3856, %v3699, %v3871
      %v3873 = vsel %vm3858, %v3703, %v3872
      %v3874 = vsel %vm3860, %v3707, %v3873
      %v3875 = vsel %vm3862, %v3711, %v3874
      %v3876 = vsel %vm3852, %v3719, %v3715
      %v3877 = vsel %vm3854, %v3723, %v3876
      %v3878 = vsel %vm3856, %v3727, %v3877
      %v3879 = vsel %vm3858, %v3731, %v3878
      %v3880 = vsel %vm3860, %v3735, %v3879
      %v3881 = vsel %vm3862, %v3739, %v3880
      %v3882 = vsel %vm3852, %v3747, %v3743
      %v3883 = vsel %vm3854, %v3751, %v3882
      %v3884 = vsel %vm3856, %v3755, %v3883
      %v3885 = vsel %vm3858, %v3759, %v3884
      %v3886 = vsel %vm3860, %v3763, %v3885
      %v3887 = vsel %vm3862, %v3767, %v3886
      %v3888 = vsel %vm3852, %v3775, %v3771
      %v3889 = vsel %vm3854, %v3779, %v3888
      %v3890 = vsel %vm3856, %v3783, %v3889
      %v3891 = vsel %vm3858, %v3787, %v3890
      %v3892 = vsel %vm3860, %v3791, %v3891
      %v3893 = vsel %vm3862, %v3795, %v3892
      %v3894 = vsel %vm3852, %v3803, %v3799
      %v3895 = vsel %vm3854, %v3807, %v3894
      %v3896 = vsel %vm3856, %v3811, %v3895
      %v3897 = vsel %vm3858, %v3815, %v3896
      %v3898 = vsel %vm3860, %v3819, %v3897
      %v3899 = vsel %vm3862, %v3823, %v3898
      %v3900 = vsel %vm3852, %v3831, %v3827
      %v3901 = vsel %vm3854, %v3835, %v3900
      %v3902 = vsel %vm3856, %v3839, %v3901
      %v3903 = vsel %vm3858, %v3843, %v3902
      %v3904 = vsel %vm3860, %v3847, %v3903
      %v3905 = vsel %vm3862, %v3851, %v3904
      %vm3914 = vcmask 1040384
      %v3915 = vsel %vm3914, 0.0, %v3863
      %v3916 = vsel %vm3914, 0.0, %v3869
      %v3917 = vsel %vm3914, 0.0, %v3875
      %v3918 = vsel %vm3914, 0.0, %v3881
      %v3919 = vsel %vm3914, 0.0, %v3887
      %v3920 = vsel %vm3914, 0.0, %v3893
      %v3921 = vsel %vm3914, 0.0, %v3899
      %v3922 = vsel %vm3914, 0.0, %v3905
      %v3931 = vcombine.high %v3915, %v3915
      %v3933 = vunpack.c.l.s4 1983009808
      %v3934 = vunpack.c.0.s8 %v3933
      %v3935 = vlaneseq
      %v3936 = vshrl.u32 %v3935, 7
      %v3937 = vsub.s32 %v3934, %v3936
      %v3938 = vrot.slane %v3915, %v3937
      %v3940 = vunpack.c.l.s4 1983009808
      %v3941 = vunpack.c.0.s8 %v3940
      %v3942 = vlaneseq
      %v3943 = vshrl.u32 %v3942, 7
      %v3944 = vsub.s32 %v3941, %v3943
      %v3945 = vrot.slane %v3931, %v3944
      %v3946 = vcombine.high %v3938, %v3938
      %v3947 = vcombine.high %v3945, %v3945
      %v3948 = vcombine.high %v3916, %v3916
      %v3950 = vunpack.c.l.s4 1983009808
      %v3951 = vunpack.c.0.s8 %v3950
      %v3952 = vlaneseq
      %v3953 = vshrl.u32 %v3952, 7
      %v3954 = vsub.s32 %v3951, %v3953
      %v3955 = vrot.slane %v3916, %v3954
      %v3957 = vunpack.c.l.s4 1983009808
      %v3958 = vunpack.c.0.s8 %v3957
      %v3959 = vlaneseq
      %v3960 = vshrl.u32 %v3959, 7
      %v3961 = vsub.s32 %v3958, %v3960
      %v3962 = vrot.slane %v3948, %v3961
      %v3963 = vcombine.high %v3955, %v3955
      %v3964 = vcombine.high %v3962, %v3962
      %v3965 = vcombine.high %v3917, %v3917
      %v3967 = vunpack.c.l.s4 1983009808
      %v3968 = vunpack.c.0.s8 %v3967
      %v3969 = vlaneseq
      %v3970 = vshrl.u32 %v3969, 7
      %v3971 = vsub.s32 %v3968, %v3970
      %v3972 = vrot.slane %v3917, %v3971
      %v3974 = vunpack.c.l.s4 1983009808
      %v3975 = vunpack.c.0.s8 %v3974
      %v3976 = vlaneseq
      %v3977 = vshrl.u32 %v3976, 7
      %v3978 = vsub.s32 %v3975, %v3977
      %v3979 = vrot.slane %v3965, %v3978
      %v3980 = vcombine.high %v3972, %v3972
      %v3981 = vcombine.high %v3979, %v3979
      %v3982 = vcombine.high %v3918, %v3918
      %v3984 = vunpack.c.l.s4 1983009808
      %v3985 = vunpack.c.0.s8 %v3984
      %v3986 = vlaneseq
      %v3987 = vshrl.u32 %v3986, 7
      %v3988 = vsub.s32 %v3985, %v3987
      %v3989 = vrot.slane %v3918, %v3988
      %v3991 = vunpack.c.l.s4 1983009808
      %v3992 = vunpack.c.0.s8 %v3991
      %v3993 = vlaneseq
      %v3994 = vshrl.u32 %v3993, 7
      %v3995 = vsub.s32 %v3992, %v3994
      %v3996 = vrot.slane %v3982, %v3995
      %v3997 = vcombine.high %v3989, %v3989
      %v3998 = vcombine.high %v3996, %v3996
      %v3999 = vcombine.high %v3919, %v3919
      %v4001 = vunpack.c.l.s4 1983009808
      %v4002 = vunpack.c.0.s8 %v4001
      %v4003 = vlaneseq
      %v4004 = vshrl.u32 %v4003, 7
      %v4005 = vsub.s32 %v4002, %v4004
      %v4006 = vrot.slane %v3919, %v4005
      %v4008 = vunpack.c.l.s4 1983009808
      %v4009 = vunpack.c.0.s8 %v4008
      %v4010 = vlaneseq
      %v4011 = vshrl.u32 %v4010, 7
      %v4012 = vsub.s32 %v4009, %v4011
      %v4013 = vrot.slane %v3999, %v4012
      %v4014 = vcombine.high %v4006, %v4006
      %v4015 = vcombine.high %v4013, %v4013
      %v4016 = vcombine.high %v3920, %v3920
      %v4018 = vunpack.c.l.s4 1983009808
      %v4019 = vunpack.c.0.s8 %v4018
      %v4020 = vlaneseq
      %v4021 = vshrl.u32 %v4020, 7
      %v4022 = vsub.s32 %v4019, %v4021
      %v4023 = vrot.slane %v3920, %v4022
      %v4025 = vunpack.c.l.s4 1983009808
      %v4026 = vunpack.c.0.s8 %v4025
      %v4027 = vlaneseq
      %v4028 = vshrl.u32 %v4027, 7
      %v4029 = vsub.s32 %v4026, %v4028
      %v4030 = vrot.slane %v4016, %v4029
      %v4031 = vcombine.high %v4023, %v4023
      %v4032 = vcombine.high %v4030, %v4030
      %v4033 = vcombine.high %v3921, %v3921
      %v4035 = vunpack.c.l.s4 1983009808
      %v4036 = vunpack.c.0.s8 %v4035
      %v4037 = vlaneseq
      %v4038 = vshrl.u32 %v4037, 7
      %v4039 = vsub.s32 %v4036, %v4038
      %v4040 = vrot.slane %v3921, %v4039
      %v4042 = vunpack.c.l.s4 1983009808
      %v4043 = vunpack.c.0.s8 %v4042
      %v4044 = vlaneseq
      %v4045 = vshrl.u32 %v4044, 7
      %v4046 = vsub.s32 %v4043, %v4045
      %v4047 = vrot.slane %v4033, %v4046
      %v4048 = vcombine.high %v4040, %v4040
      %v4049 = vcombine.high %v4047, %v4047
      %v4050 = vcombine.high %v3922, %v3922
      %v4052 = vunpack.c.l.s4 1983009808
      %v4053 = vunpack.c.0.s8 %v4052
      %v4054 = vlaneseq
      %v4055 = vshrl.u32 %v4054, 7
      %v4056 = vsub.s32 %v4053, %v4055
      %v4057 = vrot.slane %v3922, %v4056
      %v4059 = vunpack.c.l.s4 1983009808
      %v4060 = vunpack.c.0.s8 %v4059
      %v4061 = vlaneseq
      %v4062 = vshrl.u32 %v4061, 7
      %v4063 = vsub.s32 %v4060, %v4062
      %v4064 = vrot.slane %v4050, %v4063
      %v4065 = vcombine.high %v4057, %v4057
      %v4066 = vcombine.high %v4064, %v4064
      %v4067 = vrot.slane %v3938, 1
      %v4068 = vrot.slane %v3946, 1
      %v4069 = vrot.slane %v3945, 1
      %v4070 = vrot.slane %v3947, 1
      %v4071 = vrot.slane %v3955, 1
      %v4072 = vrot.slane %v3963, 1
      %v4073 = vrot.slane %v3962, 1
      %v4074 = vrot.slane %v3964, 1
      %v4075 = vrot.slane %v3972, 1
      %v4076 = vrot.slane %v3980, 1
      %v4077 = vrot.slane %v3979, 1
      %v4078 = vrot.slane %v3981, 1
      %v4079 = vrot.slane %v3989, 1
      %v4080 = vrot.slane %v3997, 1
      %v4081 = vrot.slane %v3996, 1
      %v4082 = vrot.slane %v3998, 1
      %v4083 = vrot.slane %v4006, 1
      %v4084 = vrot.slane %v4014, 1
      %v4085 = vrot.slane %v4013, 1
      %v4086 = vrot.slane %v4015, 1
      %v4087 = vrot.slane %v4023, 1
      %v4088 = vrot.slane %v4031, 1
      %v4089 = vrot.slane %v4030, 1
      %v4090 = vrot.slane %v4032, 1
      %v4091 = vrot.slane %v4040, 1
      %v4092 = vrot.slane %v4048, 1
      %v4093 = vrot.slane %v4047, 1
      %v4094 = vrot.slane %v4049, 1
      %v4095 = vrot.slane %v4057, 1
      %v4096 = vrot.slane %v4065, 1
      %v4097 = vrot.slane %v4064, 1
      %v4098 = vrot.slane %v4066, 1
      %v4163 = vmax.f32 %v3564, %v3938
      %v4164 = vmax.f32 %v3565, %v4067
      %v4165 = vmax.f32 %v3566, %v3946
      %v4166 = vmax.f32 %v3567, %v4068
      %v4167 = vmax.f32 %v3568, %v3945
      %v4168 = vmax.f32 %v3569, %v4069
      %v4169 = vmax.f32 %v3570, %v3947
      %v4170 = vmax.f32 %v3571, %v4070
      %v4171 = vmax.f32 %v3572, %v3955
      %v4172 = vmax.f32 %v3573, %v4071
      %v4173 = vmax.f32 %v3574, %v3963
      %v4174 = vmax.f32 %v3575, %v4072
      %v4175 = vmax.f32 %v3576, %v3962
      %v4176 = vmax.f32 %v3577, %v4073
      %v4177 = vmax.f32 %v3578, %v3964
      %v4178 = vmax.f32 %v3579, %v4074
      %v4179 = vmax.f32 %v3580, %v3972
      %v4180 = vmax.f32 %v3581, %v4075
      %v4181 = vmax.f32 %v3582, %v3980
      %v4182 = vmax.f32 %v3583, %v4076
      %v4183 = vmax.f32 %v3584, %v3979
      %v4184 = vmax.f32 %v3585, %v4077
      %v4185 = vmax.f32 %v3586, %v3981
      %v4186 = vmax.f32 %v3587, %v4078
      %v4187 = vmax.f32 %v3588, %v3989
      %v4188 = vmax.f32 %v3589, %v4079
      %v4189 = vmax.f32 %v3590, %v3997
      %v4190 = vmax.f32 %v3591, %v4080
      %v4191 = vmax.f32 %v3592, %v3996
      %v4192 = vmax.f32 %v3593, %v4081
      %v4193 = vmax.f32 %v3594, %v3998
      %v4194 = vmax.f32 %v3595, %v4082
      %v4195 = vmax.f32 %v3596, %v4006
      %v4196 = vmax.f32 %v3597, %v4083
      %v4197 = vmax.f32 %v3598, %v4014
      %v4198 = vmax.f32 %v3599, %v4084
      %v4199 = vmax.f32 %v3600, %v4013
      %v4200 = vmax.f32 %v3601, %v4085
      %v4201 = vmax.f32 %v3602, %v4015
      %v4202 = vmax.f32 %v3603, %v4086
      %v4203 = vmax.f32 %v3604, %v4023
      %v4204 = vmax.f32 %v3605, %v4087
      %v4205 = vmax.f32 %v3606, %v4031
      %v4206 = vmax.f32 %v3607, %v4088
      %v4207 = vmax.f32 %v3608, %v4030
      %v4208 = vmax.f32 %v3609, %v4089
      %v4209 = vmax.f32 %v3610, %v4032
      %v4210 = vmax.f32 %v3611, %v4090
      %v4211 = vmax.f32 %v3612, %v4040
      %v4212 = vmax.f32 %v3613, %v4091
      %v4213 = vmax.f32 %v3614, %v4048
      %v4214 = vmax.f32 %v3615, %v4092
      %v4215 = vmax.f32 %v3616, %v4047
      %v4216 = vmax.f32 %v3617, %v4093
      %v4217 = vmax.f32 %v3618, %v4049
      %v4218 = vmax.f32 %v3619, %v4094
      %v4219 = vmax.f32 %v3620, %v4057
      %v4220 = vmax.f32 %v3621, %v4095
      %v4221 = vmax.f32 %v3622, %v4065
      %v4222 = vmax.f32 %v3623, %v4096
      %v4223 = vmax.f32 %v3624, %v4064
      %v4224 = vmax.f32 %v3625, %v4097
      %v4225 = vmax.f32 %v3626, %v4066
      %v4226 = vmax.f32 %v3627, %v4098
      %v4227 = vpack.c.bf16 %v4163, %v4163
      %v4228 = vpack.c.bf16 %v4164, %v4164
      %v4229 = vpack.c.bf16 %v4165, %v4165
      %v4230 = vpack.c.bf16 %v4166, %v4166
      %v4231 = vpack.c.bf16 %v4167, %v4167
      %v4232 = vpack.c.bf16 %v4168, %v4168
      %v4233 = vpack.c.bf16 %v4169, %v4169
      %v4234 = vpack.c.bf16 %v4170, %v4170
      %v4235 = vpack.c.bf16 %v4171, %v4171
      %v4236 = vpack.c.bf16 %v4172, %v4172
      %v4237 = vpack.c.bf16 %v4173, %v4173
      %v4238 = vpack.c.bf16 %v4174, %v4174
      %v4239 = vpack.c.bf16 %v4175, %v4175
      %v4240 = vpack.c.bf16 %v4176, %v4176
      %v4241 = vpack.c.bf16 %v4177, %v4177
      %v4242 = vpack.c.bf16 %v4178, %v4178
      %v4243 = vpack.c.bf16 %v4179, %v4179
      %v4244 = vpack.c.bf16 %v4180, %v4180
      %v4245 = vpack.c.bf16 %v4181, %v4181
      %v4246 = vpack.c.bf16 %v4182, %v4182
      %v4247 = vpack.c.bf16 %v4183, %v4183
      %v4248 = vpack.c.bf16 %v4184, %v4184
      %v4249 = vpack.c.bf16 %v4185, %v4185
      %v4250 = vpack.c.bf16 %v4186, %v4186
      %v4251 = vpack.c.bf16 %v4187, %v4187
      %v4252 = vpack.c.bf16 %v4188, %v4188
      %v4253 = vpack.c.bf16 %v4189, %v4189
      %v4254 = vpack.c.bf16 %v4190, %v4190
      %v4255 = vpack.c.bf16 %v4191, %v4191
      %v4256 = vpack.c.bf16 %v4192, %v4192
      %v4257 = vpack.c.bf16 %v4193, %v4193
      %v4258 = vpack.c.bf16 %v4194, %v4194
      %v4259 = vpack.c.bf16 %v4195, %v4195
      %v4260 = vpack.c.bf16 %v4196, %v4196
      %v4261 = vpack.c.bf16 %v4197, %v4197
      %v4262 = vpack.c.bf16 %v4198, %v4198
      %v4263 = vpack.c.bf16 %v4199, %v4199
      %v4264 = vpack.c.bf16 %v4200, %v4200
      %v4265 = vpack.c.bf16 %v4201, %v4201
      %v4266 = vpack.c.bf16 %v4202, %v4202
      %v4267 = vpack.c.bf16 %v4203, %v4203
      %v4268 = vpack.c.bf16 %v4204, %v4204
      %v4269 = vpack.c.bf16 %v4205, %v4205
      %v4270 = vpack.c.bf16 %v4206, %v4206
      %v4271 = vpack.c.bf16 %v4207, %v4207
      %v4272 = vpack.c.bf16 %v4208, %v4208
      %v4273 = vpack.c.bf16 %v4209, %v4209
      %v4274 = vpack.c.bf16 %v4210, %v4210
      %v4275 = vpack.c.bf16 %v4211, %v4211
      %v4276 = vpack.c.bf16 %v4212, %v4212
      %v4277 = vpack.c.bf16 %v4213, %v4213
      %v4278 = vpack.c.bf16 %v4214, %v4214
      %v4279 = vpack.c.bf16 %v4215, %v4215
      %v4280 = vpack.c.bf16 %v4216, %v4216
      %v4281 = vpack.c.bf16 %v4217, %v4217
      %v4282 = vpack.c.bf16 %v4218, %v4218
      %v4283 = vpack.c.bf16 %v4219, %v4219
      %v4284 = vpack.c.bf16 %v4220, %v4220
      %v4285 = vpack.c.bf16 %v4221, %v4221
      %v4286 = vpack.c.bf16 %v4222, %v4222
      %v4287 = vpack.c.bf16 %v4223, %v4223
      %v4288 = vpack.c.bf16 %v4224, %v4224
      %v4289 = vpack.c.bf16 %v4225, %v4225
      %v4290 = vpack.c.bf16 %v4226, %v4226
      %v4355 = vunpack.c.l.b16 %v4227
      %v4356 = vunpack.c.l.b16 %v4228
      %v4357 = vunpack.c.l.b16 %v4229
      %v4358 = vunpack.c.l.b16 %v4230
      %v4359 = vunpack.c.l.b16 %v4231
      %v4360 = vunpack.c.l.b16 %v4232
      %v4361 = vunpack.c.l.b16 %v4233
      %v4362 = vunpack.c.l.b16 %v4234
      %v4363 = vunpack.c.l.b16 %v4235
      %v4364 = vunpack.c.l.b16 %v4236
      %v4365 = vunpack.c.l.b16 %v4237
      %v4366 = vunpack.c.l.b16 %v4238
      %v4367 = vunpack.c.l.b16 %v4239
      %v4368 = vunpack.c.l.b16 %v4240
      %v4369 = vunpack.c.l.b16 %v4241
      %v4370 = vunpack.c.l.b16 %v4242
      %v4371 = vunpack.c.l.b16 %v4243
      %v4372 = vunpack.c.l.b16 %v4244
      %v4373 = vunpack.c.l.b16 %v4245
      %v4374 = vunpack.c.l.b16 %v4246
      %v4375 = vunpack.c.l.b16 %v4247
      %v4376 = vunpack.c.l.b16 %v4248
      %v4377 = vunpack.c.l.b16 %v4249
      %v4378 = vunpack.c.l.b16 %v4250
      %v4379 = vunpack.c.l.b16 %v4251
      %v4380 = vunpack.c.l.b16 %v4252
      %v4381 = vunpack.c.l.b16 %v4253
      %v4382 = vunpack.c.l.b16 %v4254
      %v4383 = vunpack.c.l.b16 %v4255
      %v4384 = vunpack.c.l.b16 %v4256
      %v4385 = vunpack.c.l.b16 %v4257
      %v4386 = vunpack.c.l.b16 %v4258
      %v4387 = vunpack.c.l.b16 %v4259
      %v4388 = vunpack.c.l.b16 %v4260
      %v4389 = vunpack.c.l.b16 %v4261
      %v4390 = vunpack.c.l.b16 %v4262
      %v4391 = vunpack.c.l.b16 %v4263
      %v4392 = vunpack.c.l.b16 %v4264
      %v4393 = vunpack.c.l.b16 %v4265
      %v4394 = vunpack.c.l.b16 %v4266
      %v4395 = vunpack.c.l.b16 %v4267
      %v4396 = vunpack.c.l.b16 %v4268
      %v4397 = vunpack.c.l.b16 %v4269
      %v4398 = vunpack.c.l.b16 %v4270
      %v4399 = vunpack.c.l.b16 %v4271
      %v4400 = vunpack.c.l.b16 %v4272
      %v4401 = vunpack.c.l.b16 %v4273
      %v4402 = vunpack.c.l.b16 %v4274
      %v4403 = vunpack.c.l.b16 %v4275
      %v4404 = vunpack.c.l.b16 %v4276
      %v4405 = vunpack.c.l.b16 %v4277
      %v4406 = vunpack.c.l.b16 %v4278
      %v4407 = vunpack.c.l.b16 %v4279
      %v4408 = vunpack.c.l.b16 %v4280
      %v4409 = vunpack.c.l.b16 %v4281
      %v4410 = vunpack.c.l.b16 %v4282
      %v4411 = vunpack.c.l.b16 %v4283
      %v4412 = vunpack.c.l.b16 %v4284
      %v4413 = vunpack.c.l.b16 %v4285
      %v4414 = vunpack.c.l.b16 %v4286
      %v4415 = vunpack.c.l.b16 %v4287
      %v4416 = vunpack.c.l.b16 %v4288
      %v4417 = vunpack.c.l.b16 %v4289
      %v4418 = vunpack.c.l.b16 %v4290
      %v4419 = vpack.c.b16 %v4355, %v4355
      %v4420 = vpack.c.b16 %v4356, %v4356
      %v4421 = vpack.c.b16 %v4357, %v4357
      %v4422 = vpack.c.b16 %v4358, %v4358
      %v4423 = vpack.c.b16 %v4359, %v4359
      %v4424 = vpack.c.b16 %v4360, %v4360
      %v4425 = vpack.c.b16 %v4361, %v4361
      %v4426 = vpack.c.b16 %v4362, %v4362
      %v4427 = vpack.c.b16 %v4363, %v4363
      %v4428 = vpack.c.b16 %v4364, %v4364
      %v4429 = vpack.c.b16 %v4365, %v4365
      %v4430 = vpack.c.b16 %v4366, %v4366
      %v4431 = vpack.c.b16 %v4367, %v4367
      %v4432 = vpack.c.b16 %v4368, %v4368
      %v4433 = vpack.c.b16 %v4369, %v4369
      %v4434 = vpack.c.b16 %v4370, %v4370
      %v4435 = vpack.c.b16 %v4371, %v4371
      %v4436 = vpack.c.b16 %v4372, %v4372
      %v4437 = vpack.c.b16 %v4373, %v4373
      %v4438 = vpack.c.b16 %v4374, %v4374
      %v4439 = vpack.c.b16 %v4375, %v4375
      %v4440 = vpack.c.b16 %v4376, %v4376
      %v4441 = vpack.c.b16 %v4377, %v4377
      %v4442 = vpack.c.b16 %v4378, %v4378
      %v4443 = vpack.c.b16 %v4379, %v4379
      %v4444 = vpack.c.b16 %v4380, %v4380
      %v4445 = vpack.c.b16 %v4381, %v4381
      %v4446 = vpack.c.b16 %v4382, %v4382
      %v4447 = vpack.c.b16 %v4383, %v4383
      %v4448 = vpack.c.b16 %v4384, %v4384
      %v4449 = vpack.c.b16 %v4385, %v4385
      %v4450 = vpack.c.b16 %v4386, %v4386
      %v4451 = vpack.c.b16 %v4387, %v4387
      %v4452 = vpack.c.b16 %v4388, %v4388
      %v4453 = vpack.c.b16 %v4389, %v4389
      %v4454 = vpack.c.b16 %v4390, %v4390
      %v4455 = vpack.c.b16 %v4391, %v4391
      %v4456 = vpack.c.b16 %v4392, %v4392
      %v4457 = vpack.c.b16 %v4393, %v4393
      %v4458 = vpack.c.b16 %v4394, %v4394
      %v4459 = vpack.c.b16 %v4395, %v4395
      %v4460 = vpack.c.b16 %v4396, %v4396
      %v4461 = vpack.c.b16 %v4397, %v4397
      %v4462 = vpack.c.b16 %v4398, %v4398
      %v4463 = vpack.c.b16 %v4399, %v4399
      %v4464 = vpack.c.b16 %v4400, %v4400
      %v4465 = vpack.c.b16 %v4401, %v4401
      %v4466 = vpack.c.b16 %v4402, %v4402
      %v4467 = vpack.c.b16 %v4403, %v4403
      %v4468 = vpack.c.b16 %v4404, %v4404
      %v4469 = vpack.c.b16 %v4405, %v4405
      %v4470 = vpack.c.b16 %v4406, %v4406
      %v4471 = vpack.c.b16 %v4407, %v4407
      %v4472 = vpack.c.b16 %v4408, %v4408
      %v4473 = vpack.c.b16 %v4409, %v4409
      %v4474 = vpack.c.b16 %v4410, %v4410
      %v4475 = vpack.c.b16 %v4411, %v4411
      %v4476 = vpack.c.b16 %v4412, %v4412
      %v4477 = vpack.c.b16 %v4413, %v4413
      %v4478 = vpack.c.b16 %v4414, %v4414
      %v4479 = vpack.c.b16 %v4415, %v4415
      %v4480 = vpack.c.b16 %v4416, %v4416
      %v4481 = vpack.c.b16 %v4417, %v4417
      %v4482 = vpack.c.b16 %v4418, %v4418
      %v4483 = vunpack.c.l.b16 %v4419
      %v4484 = vunpack.c.l.b16 %v4420
      %v4485 = vunpack.c.l.b16 %v4421
      %v4486 = vunpack.c.l.b16 %v4422
      %v4487 = vunpack.c.l.b16 %v4423
      %v4488 = vunpack.c.l.b16 %v4424
      %v4489 = vunpack.c.l.b16 %v4425
      %v4490 = vunpack.c.l.b16 %v4426
      %v4491 = vunpack.c.l.b16 %v4427
      %v4492 = vunpack.c.l.b16 %v4428
      %v4493 = vunpack.c.l.b16 %v4429
      %v4494 = vunpack.c.l.b16 %v4430
      %v4495 = vunpack.c.l.b16 %v4431
      %v4496 = vunpack.c.l.b16 %v4432
      %v4497 = vunpack.c.l.b16 %v4433
      %v4498 = vunpack.c.l.b16 %v4434
      %v4499 = vunpack.c.l.b16 %v4435
      %v4500 = vunpack.c.l.b16 %v4436
      %v4501 = vunpack.c.l.b16 %v4437
      %v4502 = vunpack.c.l.b16 %v4438
      %v4503 = vunpack.c.l.b16 %v4439
      %v4504 = vunpack.c.l.b16 %v4440
      %v4505 = vunpack.c.l.b16 %v4441
      %v4506 = vunpack.c.l.b16 %v4442
      %v4507 = vunpack.c.l.b16 %v4443
      %v4508 = vunpack.c.l.b16 %v4444
      %v4509 = vunpack.c.l.b16 %v4445
      %v4510 = vunpack.c.l.b16 %v4446
      %v4511 = vunpack.c.l.b16 %v4447
      %v4512 = vunpack.c.l.b16 %v4448
      %v4513 = vunpack.c.l.b16 %v4449
      %v4514 = vunpack.c.l.b16 %v4450
      %v4515 = vunpack.c.l.b16 %v4451
      %v4516 = vunpack.c.l.b16 %v4452
      %v4517 = vunpack.c.l.b16 %v4453
      %v4518 = vunpack.c.l.b16 %v4454
      %v4519 = vunpack.c.l.b16 %v4455
      %v4520 = vunpack.c.l.b16 %v4456
      %v4521 = vunpack.c.l.b16 %v4457
      %v4522 = vunpack.c.l.b16 %v4458
      %v4523 = vunpack.c.l.b16 %v4459
      %v4524 = vunpack.c.l.b16 %v4460
      %v4525 = vunpack.c.l.b16 %v4461
      %v4526 = vunpack.c.l.b16 %v4462
      %v4527 = vunpack.c.l.b16 %v4463
      %v4528 = vunpack.c.l.b16 %v4464
      %v4529 = vunpack.c.l.b16 %v4465
      %v4530 = vunpack.c.l.b16 %v4466
      %v4531 = vunpack.c.l.b16 %v4467
      %v4532 = vunpack.c.l.b16 %v4468
      %v4533 = vunpack.c.l.b16 %v4469
      %v4534 = vunpack.c.l.b16 %v4470
      %v4535 = vunpack.c.l.b16 %v4471
      %v4536 = vunpack.c.l.b16 %v4472
      %v4537 = vunpack.c.l.b16 %v4473
      %v4538 = vunpack.c.l.b16 %v4474
      %v4539 = vunpack.c.l.b16 %v4475
      %v4540 = vunpack.c.l.b16 %v4476
      %v4541 = vunpack.c.l.b16 %v4477
      %v4542 = vunpack.c.l.b16 %v4478
      %v4543 = vunpack.c.l.b16 %v4479
      %v4544 = vunpack.c.l.b16 %v4480
      %v4545 = vunpack.c.l.b16 %v4481
      %v4546 = vunpack.c.l.b16 %v4482
      %v4547 = vrot.slane %v4484, 7
      %vm4548 = vcmask 1041409
      %v4549 = vsel %vm4548, %v4547, %v4483
      %v4550 = vrot.slane %v4485, 6
      %v4551 = vsel %vm3852, %v4550, %v4549
      %v4552 = vrot.slane %v4486, 5
      %v4553 = vsel %vm3854, %v4552, %v4551
      %v4554 = vrot.slane %v4487, 4
      %v4555 = vsel %vm3856, %v4554, %v4553
      %v4556 = vrot.slane %v4488, 3
      %v4557 = vsel %vm3858, %v4556, %v4555
      %v4558 = vrot.slane %v4489, 2
      %v4559 = vsel %vm3860, %v4558, %v4557
      %v4560 = vrot.slane %v4490, 1
      %v4561 = vsel %vm3862, %v4560, %v4559
      %v4562 = vrot.slane %v4492, 7
      %v4563 = vsel %vm4548, %v4562, %v4491
      %v4564 = vrot.slane %v4493, 6
      %v4565 = vsel %vm3852, %v4564, %v4563
      %v4566 = vrot.slane %v4494, 5
      %v4567 = vsel %vm3854, %v4566, %v4565
      %v4568 = vrot.slane %v4495, 4
      %v4569 = vsel %vm3856, %v4568, %v4567
      %v4570 = vrot.slane %v4496, 3
      %v4571 = vsel %vm3858, %v4570, %v4569
      %v4572 = vrot.slane %v4497, 2
      %v4573 = vsel %vm3860, %v4572, %v4571
      %v4574 = vrot.slane %v4498, 1
      %v4575 = vsel %vm3862, %v4574, %v4573
      %v4576 = vrot.slane %v4500, 7
      %v4577 = vsel %vm4548, %v4576, %v4499
      %v4578 = vrot.slane %v4501, 6
      %v4579 = vsel %vm3852, %v4578, %v4577
      %v4580 = vrot.slane %v4502, 5
      %v4581 = vsel %vm3854, %v4580, %v4579
      %v4582 = vrot.slane %v4503, 4
      %v4583 = vsel %vm3856, %v4582, %v4581
      %v4584 = vrot.slane %v4504, 3
      %v4585 = vsel %vm3858, %v4584, %v4583
      %v4586 = vrot.slane %v4505, 2
      %v4587 = vsel %vm3860, %v4586, %v4585
      %v4588 = vrot.slane %v4506, 1
      %v4589 = vsel %vm3862, %v4588, %v4587
      %v4590 = vrot.slane %v4508, 7
      %v4591 = vsel %vm4548, %v4590, %v4507
      %v4592 = vrot.slane %v4509, 6
      %v4593 = vsel %vm3852, %v4592, %v4591
      %v4594 = vrot.slane %v4510, 5
      %v4595 = vsel %vm3854, %v4594, %v4593
      %v4596 = vrot.slane %v4511, 4
      %v4597 = vsel %vm3856, %v4596, %v4595
      %v4598 = vrot.slane %v4512, 3
      %v4599 = vsel %vm3858, %v4598, %v4597
      %v4600 = vrot.slane %v4513, 2
      %v4601 = vsel %vm3860, %v4600, %v4599
      %v4602 = vrot.slane %v4514, 1
      %v4603 = vsel %vm3862, %v4602, %v4601
      %v4604 = vrot.slane %v4516, 7
      %v4605 = vsel %vm4548, %v4604, %v4515
      %v4606 = vrot.slane %v4517, 6
      %v4607 = vsel %vm3852, %v4606, %v4605
      %v4608 = vrot.slane %v4518, 5
      %v4609 = vsel %vm3854, %v4608, %v4607
      %v4610 = vrot.slane %v4519, 4
      %v4611 = vsel %vm3856, %v4610, %v4609
      %v4612 = vrot.slane %v4520, 3
      %v4613 = vsel %vm3858, %v4612, %v4611
      %v4614 = vrot.slane %v4521, 2
      %v4615 = vsel %vm3860, %v4614, %v4613
      %v4616 = vrot.slane %v4522, 1
      %v4617 = vsel %vm3862, %v4616, %v4615
      %v4618 = vrot.slane %v4524, 7
      %v4619 = vsel %vm4548, %v4618, %v4523
      %v4620 = vrot.slane %v4525, 6
      %v4621 = vsel %vm3852, %v4620, %v4619
      %v4622 = vrot.slane %v4526, 5
      %v4623 = vsel %vm3854, %v4622, %v4621
      %v4624 = vrot.slane %v4527, 4
      %v4625 = vsel %vm3856, %v4624, %v4623
      %v4626 = vrot.slane %v4528, 3
      %v4627 = vsel %vm3858, %v4626, %v4625
      %v4628 = vrot.slane %v4529, 2
      %v4629 = vsel %vm3860, %v4628, %v4627
      %v4630 = vrot.slane %v4530, 1
      %v4631 = vsel %vm3862, %v4630, %v4629
      %v4632 = vrot.slane %v4532, 7
      %v4633 = vsel %vm4548, %v4632, %v4531
      %v4634 = vrot.slane %v4533, 6
      %v4635 = vsel %vm3852, %v4634, %v4633
      %v4636 = vrot.slane %v4534, 5
      %v4637 = vsel %vm3854, %v4636, %v4635
      %v4638 = vrot.slane %v4535, 4
      %v4639 = vsel %vm3856, %v4638, %v4637
      %v4640 = vrot.slane %v4536, 3
      %v4641 = vsel %vm3858, %v4640, %v4639
      %v4642 = vrot.slane %v4537, 2
      %v4643 = vsel %vm3860, %v4642, %v4641
      %v4644 = vrot.slane %v4538, 1
      %v4645 = vsel %vm3862, %v4644, %v4643
      %v4646 = vrot.slane %v4540, 7
      %v4647 = vsel %vm4548, %v4646, %v4539
      %v4648 = vrot.slane %v4541, 6
      %v4649 = vsel %vm3852, %v4648, %v4647
      %v4650 = vrot.slane %v4542, 5
      %v4651 = vsel %vm3854, %v4650, %v4649
      %v4652 = vrot.slane %v4543, 4
      %v4653 = vsel %vm3856, %v4652, %v4651
      %v4654 = vrot.slane %v4544, 3
      %v4655 = vsel %vm3858, %v4654, %v4653
      %v4656 = vrot.slane %v4545, 2
      %v4657 = vsel %vm3860, %v4656, %v4655
      %v4658 = vrot.slane %v4546, 1
      %v4659 = vsel %vm3862, %v4658, %v4657
      %v4660 = vpack.c.b16 %v4561, %v4561
      %v4661 = vpack.c.b16 %v4575, %v4575
      %v4662 = vpack.c.b16 %v4589, %v4589
      %v4663 = vpack.c.b16 %v4603, %v4603
      %v4664 = vpack.c.b16 %v4617, %v4617
      %v4665 = vpack.c.b16 %v4631, %v4631
      %v4666 = vpack.c.b16 %v4645, %v4645
      %v4667 = vpack.c.b16 %v4659, %v4659
      %4676 = vst.msk [vmem:[%s221] sm:$0xf] %vm223, %v4660
      %4677 = vst.msk [vmem:[%s221 + $0x4] sm:$0xf] %vm223, %v4661
      %4678 = vst.msk [vmem:[%s221 + $0x8] sm:$0xf] %vm223, %v4662
      %4679 = vst.msk [vmem:[%s221 + $0xc] sm:$0xf] %vm223, %v4663
      %4680 = vst.msk [vmem:[%s221 + $0x10] sm:$0xf] %vm223, %v4664
      %4681 = vst.msk [vmem:[%s221 + $0x14] sm:$0xf] %vm223, %v4665
      %4682 = vst.msk [vmem:[%s221 + $0x18] sm:$0xf] %vm223, %v4666
      %4683 = vst.msk [vmem:[%s221 + $0x1c] sm:$0xf] %vm223, %v4667
      %p4684 = scmp.lt.s32.totalorder %s18, 1
      %s4685 = scalar_select %p4684, %s18, 1
      %p4686 = scmp.lt.s32.totalorder %s19, 0
      %s4687 = scalar_select %p4686, %s19, 0
      %s4688 = smul.addr %s4685, 8
      %s4689 = sadd.s32 %s4687, %s4688
      %s4690 = smul.addr %s4689, 4
      %s4691 = scalar_lea.vmem %s3, %s4690
      // Predicated region
      $region33: #{vgg_base_forward.4} parent=31 // pred_check
        %p4692 = pneg %p124
      $region34: #{vgg_base_forward.4} parent=31 // pred_check_branch
        %4694 = sbr.rel (%p4692) target = $region36
      $region35: #{vgg_base_forward.4} parent=31 // pred_region
        _
      $region36: #{vgg_base_forward.4} parent=31 // pred_fallthru
        _
    $region32: #{vgg_base_forward.4} parent=5 // pred_fallthru
      _
    %p4695 = scmp.le.s32.totalorder 2, %s9
    // Predicated region
    $region37: #{vgg_base_forward.4} parent=5 // pred_check
      %p4696 = pneg %p4695
    $region38: #{vgg_base_forward.4} parent=5 // pred_check_branch
      %4698 = sbr.rel (%p4696) target = $region40
    $region39: #{vgg_base_forward.4} parent=5 // pred_region
      %s4699 = ssub.s32 %s9, 2
      // Predicated region
      $region41: #{vgg_base_forward.4} parent=39 // pred_check
        %p4700 = pneg %p130
      $region42: #{vgg_base_forward.4} parent=39 // pred_check_branch
        %4702 = sbr.rel (%p4700) target = $region44
      $region43: #{vgg_base_forward.4} parent=39 // pred_region
        %p4703 = scmp.lt.s32.totalorder %s20, 1
        %s4704 = scalar_select %p4703, %s20, 1
        %p4705 = scmp.lt.s32.totalorder %s21, 0
        %s4706 = scalar_select %p4705, %s21, 0
        %s4707 = smul.addr %s4704, 8
        %s4708 = sadd.s32 %s4706, %s4707
        %s4709 = smul.addr %s4708, 4
        %s4710 = scalar_lea.vmem %s3, %s4709
      $region44: #{vgg_base_forward.4} parent=39 // pred_fallthru
        _
    $region40: #{vgg_base_forward.4} parent=5 // pred_fallthru
      _
  $region6: #{vgg_base_forward.4} parent=0 // loop_footer
    %s13 = sadd.s32 1, %s9
  $region7: #{vgg_base_forward.4} parent=0 // loop_footer_branch
    %8 = sbr.rel target = $region3
  $region8: #{vgg_base_forward.4} parent=0 // loop_exit
    _

// kernel: vgg_base_forward.3
$region0: #{vgg_base_forward.3}
  #allocation0 [shape = 'u32[]', space=smem, size = 0x4, offset = 0x4, fixed_abs, tag = 'smem constant byte address 0x4 - core index']
  #allocation1 [shape = 'u32[144,128]{1,0:T(1,128)}', space=vmem, size = 0x12000, scoped, tag = 'internal scratch']
  #allocation2 [shape = 'bf16[18,18,4]{2,1,0:T(8,128)(2,1)}', space=vmem, size = 0x1b000, scoped, tag = 'scratch operand']
  %s0 = inlined_call_operand.vmem [shape: bf16[2,16,16,4], index: 0, kind: input, shape index: {}]
  %s1 = inlined_call_operand.vmem [shape: bf16[36,8], index: 1, kind: input, shape index: {}]
  %s2 = inlined_call_operand.vmem [shape: f32[1,8], index: 2, kind: input, shape index: {}]
  %s3 = inlined_call_operand.vmem [shape: bf16[2,16,16,8], index: 3, kind: output, shape index: {}]
  %s4 = sld [smem:[#allocation0]]
  $region45: #{vgg_base_forward.3} parent=0
    _
  %s6 = ssub.s32 1, %s4
  %s7 = scalar_select 0, %s6, %s4
  loop: start=0, step=1, limit=4
  $region2: #{vgg_base_forward.3} parent=0 // loop_pre_header
    _
  $region3: #{vgg_base_forward.3} parent=0 // loop_header
    %s9 = sphi 0, %s13
    %p10 = scmp.ge.s32.totalorder %s9, 4
    %s16 = sphi 0, %s28
    %s17 = sphi 0, %s24
    %s18 = sphi 0, %s16
    %s19 = sphi 0, %s17
    %s20 = sphi 0, %s18
    %s21 = sphi 0, %s19
    %s31 = sphi 0, %s33
    %s34 = sphi 0, %s31
    %s35 = sphi 0, %s34
    %s51 = sphi 0, %s35
    %s57 = sphi 0, %s59
    %s60 = sphi 0, %s57
    %s61 = sphi 0, %s60
    %s77 = sphi 0, %s61
    %s83 = sphi 0, %s85
    %s86 = sphi 0, %s83
    %s87 = sphi 0, %s86
    %s103 = sphi 0, %s87
    %s111 = sphi 0, %s113
    %s114 = sphi 0, %s111
    %s115 = sphi 0, %s114
    %s131 = sphi 0, %s115
  $region4: #{vgg_base_forward.3} parent=0 // loop_header_branch
    %12 = sbr.rel (%p10) target = $region8
  $region5: #{vgg_base_forward.3} parent=0 // loop_body
    %s14 = ssub.s32 %s9, 1
    %s15 = ssub.s32 %s9, 2
    %s22 = sadd.s32 1, %s17
    %p23 = scmp.ge.s32.totalorder %s22, 1
    %s24 = scalar_select %p23, 0, %s22
    %s25 = sadd.s32 1, %s16
    %s26 = scalar_select %p23, %s25, %s16
    %p27 = scmp.ge.s32.totalorder %s26, 2
    %s28 = scalar_select %p27, 0, %s26
    %s29 = ssub.s32 %s16, %s28
    %p30 = scmp.eq.s32.totalorder %s29, 0
    %s32 = sadd.s32 %s31, 1
    %s33 = scalar_select %p30, %s31, %s32
    %p36 = pneg %p30
    %p37 = scmp.eq.s32.totalorder %s9, 1
    %p38 = por %p36, %p37
    %p39 = scmp.ne.s32.totalorder %s31, %s34
    %p40 = scmp.eq.s32.totalorder %s9, 0
    %p41 = por %p39, %p40
    %p42 = scmp.ne.s32.totalorder %s31, %s34
    %p43 = scmp.eq.s32.totalorder %s14, 1
    %p44 = por %p42, %p43
    %p45 = scmp.ne.s32.totalorder %s34, %s35
    %p46 = scmp.eq.s32.totalorder %s14, 0
    %p47 = por %p45, %p46
    %p48 = scmp.ne.s32.totalorder %s34, %s35
    %p49 = scmp.eq.s32.totalorder %s15, 1
    %p50 = por %p48, %p49
    %p52 = scmp.ne.s32.totalorder %s35, %s51
    %p53 = scmp.eq.s32.totalorder %s15, 0
    %p54 = por %p52, %p53
    %s55 = ssub.s32 %s17, %s24
    %p56 = scmp.eq.s32.totalorder %s55, 0
    %s58 = sadd.s32 %s57, 1
    %s59 = scalar_select %p56, %s57, %s58
    %p62 = pneg %p56
    %p63 = scmp.eq.s32.totalorder %s9, 1
    %p64 = por %p62, %p63
    %p65 = scmp.ne.s32.totalorder %s57, %s60
    %p66 = scmp.eq.s32.totalorder %s9, 0
    %p67 = por %p65, %p66
    %p68 = scmp.ne.s32.totalorder %s57, %s60
    %p69 = scmp.eq.s32.totalorder %s14, 1
    %p70 = por %p68, %p69
    %p71 = scmp.ne.s32.totalorder %s60, %s61
    %p72 = scmp.eq.s32.totalorder %s14, 0
    %p73 = por %p71, %p72
    %p74 = scmp.ne.s32.totalorder %s60, %s61
    %p75 = scmp.eq.s32.totalorder %s15, 1
    %p76 = por %p74, %p75
    %p78 = scmp.ne.s32.totalorder %s61, %s77
    %p79 = scmp.eq.s32.totalorder %s15, 0
    %p80 = por %p78, %p79
    %s81 = ssub.s32 %s17, %s24
    %p82 = scmp.eq.s32.totalorder %s81, 0
    %s84 = sadd.s32 %s83, 1
    %s85 = scalar_select %p82, %s83, %s84
    %p88 = pneg %p82
    %p89 = scmp.eq.s32.totalorder %s9, 1
    %p90 = por %p88, %p89
    %p91 = scmp.ne.s32.totalorder %s83, %s86
    %p92 = scmp.eq.s32.totalorder %s9, 0
    %p93 = por %p91, %p92
    %p94 = scmp.ne.s32.totalorder %s83, %s86
    %p95 = scmp.eq.s32.totalorder %s14, 1
    %p96 = por %p94, %p95
    %p97 = scmp.ne.s32.totalorder %s86, %s87
    %p98 = scmp.eq.s32.totalorder %s14, 0
    %p99 = por %p97, %p98
    %p100 = scmp.ne.s32.totalorder %s86, %s87
    %p101 = scmp.eq.s32.totalorder %s15, 1
    %p102 = por %p100, %p101
    %p104 = scmp.ne.s32.totalorder %s87, %s103
    %p105 = scmp.eq.s32.totalorder %s15, 0
    %p106 = por %p104, %p105
    %s107 = ssub.s32 %s16, %s28
    %s108 = ssub.s32 %s17, %s24
    %s109 = sor.u32 %s107, %s108
    %p110 = scmp.eq.s32.totalorder %s109, 0
    %s112 = sadd.s32 %s111, 1
    %s113 = scalar_select %p110, %s111, %s112
    %p116 = pneg %p110
    %p117 = scmp.eq.s32.totalorder %s9, 1
    %p118 = por %p116, %p117
    %p119 = scmp.ne.s32.totalorder %s111, %s114
    %p120 = scmp.eq.s32.totalorder %s9, 0
    %p121 = por %p119, %p120
    %p122 = scmp.ne.s32.totalorder %s111, %s114
    %p123 = scmp.eq.s32.totalorder %s14, 1
    %p124 = por %p122, %p123
    %p125 = scmp.ne.s32.totalorder %s114, %s115
    %p126 = scmp.eq.s32.totalorder %s14, 0
    %p127 = por %p125, %p126
    %p128 = scmp.ne.s32.totalorder %s114, %s115
    %p129 = scmp.eq.s32.totalorder %s15, 1
    %p130 = por %p128, %p129
    %p132 = scmp.ne.s32.totalorder %s115, %s131
    %p133 = scmp.eq.s32.totalorder %s15, 0
    %p134 = por %p132, %p133
    %p135 = scmp.le.s32.totalorder 1, %s9
    %p136 = scmp.lt.s32.totalorder %s9, 3
    %p137 = pnand %p135, %p136
    %p138 = pneg %p137
    // Predicated region
    $region9: #{vgg_base_forward.3} parent=5 // pred_check
      _
    $region10: #{vgg_base_forward.3} parent=5 // pred_check_branch
      %140 = sbr.rel (%p137) target = $region12
    $region11: #{vgg_base_forward.3} parent=5 // pred_region
      %s141 = ssub.s32 %s9, 1
      // Predicated region
      $region13: #{vgg_base_forward.3} parent=11 // pred_check
        %p142 = pneg %p73
      $region14: #{vgg_base_forward.3} parent=11 // pred_check_branch
        %144 = sbr.rel (%p142) target = $region16
      $region15: #{vgg_base_forward.3} parent=11 // pred_region
        %p145 = scmp.lt.s32.totalorder %s19, 0
        %s146 = scalar_select %p145, %s19, 0
        %s147 = smul.addr %s146, 4
        %s148 = scalar_lea.vmem %s1, %s147
      $region16: #{vgg_base_forward.3} parent=11 // pred_fallthru
        _
      // Predicated region
      $region17: #{vgg_base_forward.3} parent=11 // pred_check
        %p149 = pneg %p99
      $region18: #{vgg_base_forward.3} parent=11 // pred_check_branch
        %151 = sbr.rel (%p149) target = $region20
      $region19: #{vgg_base_forward.3} parent=11 // pred_region
        %p152 = scmp.lt.s32.totalorder %s19, 0
        %s153 = scalar_select %p152, %s19, 0
        %s154 = scalar_lea.vmem %s2, %s153
      $region20: #{vgg_base_forward.3} parent=11 // pred_fallthru
        _
    $region12: #{vgg_base_forward.3} parent=5 // pred_fallthru
      _
    %p155 = scmp.lt.s32.totalorder %s9, 2
    // Predicated region
    $region21: #{vgg_base_forward.3} parent=5 // pred_check
      %p156 = pneg %p155
    $region22: #{vgg_base_forward.3} parent=5 // pred_check_branch
      %158 = sbr.rel (%p156) target = $region24
    $region23: #{vgg_base_forward.3} parent=5 // pred_region
      // Predicated region
      $region25: #{vgg_base_forward.3} parent=23 // pred_check
        %p159 = pneg %p41
      $region26: #{vgg_base_forward.3} parent=23 // pred_check_branch
        %161 = sbr.rel (%p159) target = $region28
      $region27: #{vgg_base_forward.3} parent=23 // pred_region
        %p162 = scmp.lt.s32.totalorder %s16, 1
        %s163 = scalar_select %p162, %s16, 1
        %s164 = smul.addr %s163, 32
        %s165 = smul.addr %s164, 4
        %s166 = scalar_lea.vmem %s0, %s165
      $region28: #{vgg_base_forward.3} parent=23 // pred_fallthru
        _
    $region24: #{vgg_base_forward.3} parent=5 // pred_fallthru
      _
    %p167 = scmp.le.s32.totalorder 1, %s9
    %p168 = scmp.lt.s32.totalorder %s9, 3
    %p169 = pnand %p167, %p168
    %p170 = pneg %p169
    // Predicated region
    $region29: #{vgg_base_forward.3} parent=5 // pred_check
      _
    $region30: #{vgg_base_forward.3} parent=5 // pred_check_branch
      %172 = sbr.rel (%p169) target = $region32
    $region31: #{vgg_base_forward.3} parent=5 // pred_region
      %s173 = ssub.s32 %s9, 1
      %p174 = scmp.lt.s32.totalorder %s18, 1
      %s175 = scalar_select %p174, %s18, 1
      %s176 = smul.addr %s175, 32
      %s177 = smul.addr %s176, 4
      %s178 = scalar_lea.vmem %s0, %s177
      %p179 = pneg %p47
      %p180 = pneg %p44
      %p181 = scmp.lt.s32.totalorder %s19, 0
      %s182 = scalar_select %p181, %s19, 0
      %s183 = smul.addr %s182, 4
      %s184 = scalar_lea.vmem %s1, %s183
      %p185 = pneg %p73
      %p186 = pneg %p70
      %p187 = scmp.lt.s32.totalorder %s19, 0
      %s188 = scalar_select %p187, %s19, 0
      %s189 = scalar_lea.vmem %s2, %s188
      %p190 = pneg %p99
      %p191 = pneg %p96
      %p192 = pneg %p127
      %p193 = pneg %p124
      %p194 = scmp.lt.s32.totalorder %s18, 1
      %s195 = scalar_select %p194, %s18, 1
      %p196 = scmp.lt.s32.totalorder %s19, 0
      %s197 = scalar_select %p196, %s19, 0
      %s198 = smul.addr %s195, 32
      %s199 = sadd.s32 %s197, %s198
      %s200 = smul.addr %s199, 4
      %s201 = scalar_lea.vmem %s3, %s200
      %p202 = scmp.lt.s32.totalorder %s18, 1
      %s203 = scalar_select %p202, %s18, 1
      %s204 = smul.addr %s203, 32
      %s205 = smul.addr %s204, 4
      %s206 = scalar_lea.vmem %s0, %s205
      %p207 = scmp.lt.s32.totalorder %s19, 0
      %s208 = scalar_select %p207, %s19, 0
      %s209 = smul.addr %s208, 4
      %s210 = scalar_lea.vmem %s1, %s209
      %p211 = scmp.lt.s32.totalorder %s19, 0
      %s212 = scalar_select %p211, %s19, 0
      %s213 = scalar_lea.vmem %s2, %s212
      %p214 = scmp.lt.s32.totalorder %s18, 1
      %s215 = scalar_select %p214, %s18, 1
      %p216 = scmp.lt.s32.totalorder %s19, 0
      %s217 = scalar_select %p216, %s19, 0
      %s218 = smul.addr %s215, 32
      %s219 = sadd.s32 %s217, %s218
      %s220 = smul.addr %s219, 4
      %s221 = scalar_lea.vmem %s3, %s220
      %vm223 = vcmask 27648
      %224 = vst.msk [vmem:[#allocation2] sm:$0xf] %vm223, 0
      %225 = vst.msk [vmem:[#allocation2 + $0x4] sm:$0xf] %vm223, 0
      %vm226 = vcmask 24576
      %227 = vst.msk [vmem:[#allocation2 + $0x8] sm:$0x1] %vm226, 0
      %228 = vst.msk [vmem:[#allocation2 + $0xc] sm:$0xf] %vm223, 0
      %229 = vst.msk [vmem:[#allocation2 + $0x10] sm:$0xf] %vm223, 0
      %230 = vst.msk [vmem:[#allocation2 + $0x14] sm:$0x1] %vm226, 0
      %231 = vst.msk [vmem:[#allocation2 + $0x18] sm:$0xf] %vm223, 0
      %232 = vst.msk [vmem:[#allocation2 + $0x1c] sm:$0xf] %vm223, 0
      %233 = vst.msk [vmem:[#allocation2 + $0x20] sm:$0x1] %vm226, 0
      %234 = vst.msk [vmem:[#allocation2 + $0x24] sm:$0xf] %vm223, 0
      %235 = vst.msk [vmem:[#allocation2 + $0x28] sm:$0xf] %vm223, 0
      %236 = vst.msk [vmem:[#allocation2 + $0x2c] sm:$0x1] %vm226, 0
      %237 = vst.msk [vmem:[#allocation2 + $0x30] sm:$0xf] %vm223, 0
      %238 = vst.msk [vmem:[#allocation2 + $0x34] sm:$0xf] %vm223, 0
      %239 = vst.msk [vmem:[#allocation2 + $0x38] sm:$0x1] %vm226, 0
      %240 = vst.msk [vmem:[#allocation2 + $0x3c] sm:$0xf] %vm223, 0
      %241 = vst.msk [vmem:[#allocation2 + $0x40] sm:$0xf] %vm223, 0
      %242 = vst.msk [vmem:[#allocation2 + $0x44] sm:$0x1] %vm226, 0
      %243 = vst.msk [vmem:[#allocation2 + $0x48] sm:$0xf] %vm223, 0
      %244 = vst.msk [vmem:[#allocation2 + $0x4c] sm:$0xf] %vm223, 0
      %245 = vst.msk [vmem:[#allocation2 + $0x50] sm:$0x1] %vm226, 0
      %246 = vst.msk [vmem:[#allocation2 + $0x54] sm:$0xf] %vm223, 0
      %247 = vst.msk [vmem:[#allocation2 + $0x58] sm:$0xf] %vm223, 0
      %248 = vst.msk [vmem:[#allocation2 + $0x5c] sm:$0x1] %vm226, 0
      %249 = vst.msk [vmem:[#allocation2 + $0x60] sm:$0xf] %vm223, 0
      %250 = vst.msk [vmem:[#allocation2 + $0x64] sm:$0xf] %vm223, 0
      %251 = vst.msk [vmem:[#allocation2 + $0x68] sm:$0x1] %vm226, 0
      %252 = vst.msk [vmem:[#allocation2 + $0x6c] sm:$0xf] %vm223, 0
      %253 = vst.msk [vmem:[#allocation2 + $0x70] sm:$0xf] %vm223, 0
      %254 = vst.msk [vmem:[#allocation2 + $0x74] sm:$0x1] %vm226, 0
      %255 = vst.msk [vmem:[#allocation2 + $0x78] sm:$0xf] %vm223, 0
      %256 = vst.msk [vmem:[#allocation2 + $0x7c] sm:$0xf] %vm223, 0
      %257 = vst.msk [vmem:[#allocation2 + $0x80] sm:$0x1] %vm226, 0
      %258 = vst.msk [vmem:[#allocation2 + $0x84] sm:$0xf] %vm223, 0
      %259 = vst.msk [vmem:[#allocation2 + $0x88] sm:$0xf] %vm223, 0
      %260 = vst.msk [vmem:[#allocation2 + $0x8c] sm:$0x1] %vm226, 0
      %261 = vst.msk [vmem:[#allocation2 + $0x90] sm:$0xf] %vm223, 0
      %262 = vst.msk [vmem:[#allocation2 + $0x94] sm:$0xf] %vm223, 0
      %263 = vst.msk [vmem:[#allocation2 + $0x98] sm:$0x1] %vm226, 0
      %264 = vst.msk [vmem:[#allocation2 + $0x9c] sm:$0xf] %vm223, 0
      %265 = vst.msk [vmem:[#allocation2 + $0xa0] sm:$0xf] %vm223, 0
      %266 = vst.msk [vmem:[#allocation2 + $0xa4] sm:$0x1] %vm226, 0
      %267 = vst.msk [vmem:[#allocation2 + $0xa8] sm:$0xf] %vm223, 0
      %268 = vst.msk [vmem:[#allocation2 + $0xac] sm:$0xf] %vm223, 0
      %269 = vst.msk [vmem:[#allocation2 + $0xb0] sm:$0x1] %vm226, 0
      %270 = vst.msk [vmem:[#allocation2 + $0xb4] sm:$0xf] %vm223, 0
      %271 = vst.msk [vmem:[#allocation2 + $0xb8] sm:$0xf] %vm223, 0
      %272 = vst.msk [vmem:[#allocation2 + $0xbc] sm:$0x1] %vm226, 0
      %273 = vst.msk [vmem:[#allocation2 + $0xc0] sm:$0xf] %vm223, 0
      %274 = vst.msk [vmem:[#allocation2 + $0xc4] sm:$0xf] %vm223, 0
      %275 = vst.msk [vmem:[#allocation2 + $0xc8] sm:$0x1] %vm226, 0
      %276 = vst.msk [vmem:[#allocation2 + $0xcc] sm:$0xf] %vm223, 0
      %277 = vst.msk [vmem:[#allocation2 + $0xd0] sm:$0xf] %vm223, 0
      %278 = vst.msk [vmem:[#allocation2 + $0xd4] sm:$0x1] %vm226, 0
      %v279 = vld [vmem:[%s206] sm:$0xf]
      %v280 = vld [vmem:[%s206 + $0x4] sm:$0xf]
      %v281 = vld [vmem:[%s206 + $0x8] sm:$0xf]
      %v282 = vld [vmem:[%s206 + $0xc] sm:$0xf]
      %v283 = vld [vmem:[%s206 + $0x10] sm:$0xf]
      %v284 = vld [vmem:[%s206 + $0x14] sm:$0xf]
      %v285 = vld [vmem:[%s206 + $0x18] sm:$0xf]
      %v286 = vld [vmem:[%s206 + $0x1c] sm:$0xf]
      %v287 = vld [vmem:[%s206 + $0x20] sm:$0xf]
      %v288 = vld [vmem:[%s206 + $0x24] sm:$0xf]
      %v289 = vld [vmem:[%s206 + $0x28] sm:$0xf]
      %v290 = vld [vmem:[%s206 + $0x2c] sm:$0xf]
      %v291 = vld [vmem:[%s206 + $0x30] sm:$0xf]
      %v292 = vld [vmem:[%s206 + $0x34] sm:$0xf]
      %v293 = vld [vmem:[%s206 + $0x38] sm:$0xf]
      %v294 = vld [vmem:[%s206 + $0x3c] sm:$0xf]
      %v295 = vld [vmem:[%s206 + $0x40] sm:$0xf]
      %v296 = vld [vmem:[%s206 + $0x44] sm:$0xf]
      %v297 = vld [vmem:[%s206 + $0x48] sm:$0xf]
      %v298 = vld [vmem:[%s206 + $0x4c] sm:$0xf]
      %v299 = vld [vmem:[%s206 + $0x50] sm:$0xf]
      %v300 = vld [vmem:[%s206 + $0x54] sm:$0xf]
      %v301 = vld [vmem:[%s206 + $0x58] sm:$0xf]
      %v302 = vld [vmem:[%s206 + $0x5c] sm:$0xf]
      %v303 = vld [vmem:[%s206 + $0x60] sm:$0xf]
      %v304 = vld [vmem:[%s206 + $0x64] sm:$0xf]
      %v305 = vld [vmem:[%s206 + $0x68] sm:$0xf]
      %v306 = vld [vmem:[%s206 + $0x6c] sm:$0xf]
      %v307 = vld [vmem:[%s206 + $0x70] sm:$0xf]
      %v308 = vld [vmem:[%s206 + $0x74] sm:$0xf]
      %v309 = vld [vmem:[%s206 + $0x78] sm:$0xf]
      %v310 = vld [vmem:[%s206 + $0x7c] sm:$0xf]
      %vm311 = vsmask.f32 256
      %vm312 = vsmask.f32 4368
      %vm313 = vmor %vm311, %vm312
      %v315 = vshrl.u32 %v279, 16
      %v317 = vrot.slane %v315, 7
      %v318 = vshll.u32 %v279, 16
      %v320 = vor.u32 %v317, %v318
      %v321 = vrot.slane %v317, 4
      %v323 = vshrl.u32 %v280, 16
      %v325 = vrot.slane %v323, 7
      %v326 = vshll.u32 %v280, 16
      %v328 = vor.u32 %v325, %v326
      %v329 = vsel %vm313, %v321, %v328
      %v330 = vrot.slane %v325, 4
      %v332 = vshrl.u32 %v281, 16
      %v334 = vrot.slane %v332, 7
      %v335 = vshll.u32 %v281, 16
      %v337 = vor.u32 %v334, %v335
      %v338 = vrot.slane %v334, 4
      %v340 = vshrl.u32 %v282, 16
      %v342 = vrot.slane %v340, 7
      %v343 = vshll.u32 %v282, 16
      %v345 = vor.u32 %v342, %v343
      %v346 = vsel %vm313, %v338, %v345
      %v347 = vrot.slane %v342, 4
      %v349 = vshrl.u32 %v283, 16
      %v351 = vrot.slane %v349, 7
      %v352 = vshll.u32 %v283, 16
      %v354 = vor.u32 %v351, %v352
      %v355 = vrot.slane %v351, 4
      %v357 = vshrl.u32 %v284, 16
      %v359 = vrot.slane %v357, 7
      %v360 = vshll.u32 %v284, 16
      %v362 = vor.u32 %v359, %v360
      %v363 = vsel %vm313, %v355, %v362
      %v364 = vrot.slane %v359, 4
      %v366 = vshrl.u32 %v285, 16
      %v368 = vrot.slane %v366, 7
      %v369 = vshll.u32 %v285, 16
      %v371 = vor.u32 %v368, %v369
      %v372 = vrot.slane %v368, 4
      %v374 = vshrl.u32 %v286, 16
      %v376 = vrot.slane %v374, 7
      %v377 = vshll.u32 %v286, 16
      %v379 = vor.u32 %v376, %v377
      %v380 = vsel %vm313, %v372, %v379
      %v381 = vrot.slane %v376, 4
      %v383 = vshrl.u32 %v287, 16
      %v385 = vrot.slane %v383, 7
      %v386 = vshll.u32 %v287, 16
      %v388 = vor.u32 %v385, %v386
      %v389 = vrot.slane %v385, 4
      %v391 = vshrl.u32 %v288, 16
      %v393 = vrot.slane %v391, 7
      %v394 = vshll.u32 %v288, 16
      %v396 = vor.u32 %v393, %v394
      %v397 = vsel %vm313, %v389, %v396
      %v398 = vrot.slane %v393, 4
      %v400 = vshrl.u32 %v289, 16
      %v402 = vrot.slane %v400, 7
      %v403 = vshll.u32 %v289, 16
      %v405 = vor.u32 %v402, %v403
      %v406 = vrot.slane %v402, 4
      %v408 = vshrl.u32 %v290, 16
      %v410 = vrot.slane %v408, 7
      %v411 = vshll.u32 %v290, 16
      %v413 = vor.u32 %v410, %v411
      %v414 = vsel %vm313, %v406, %v413
      %v415 = vrot.slane %v410, 4
      %v417 = vshrl.u32 %v291, 16
      %v419 = vrot.slane %v417, 7
      %v420 = vshll.u32 %v291, 16
      %v422 = vor.u32 %v419, %v420
      %v423 = vrot.slane %v419, 4
      %v425 = vshrl.u32 %v292, 16
      %v427 = vrot.slane %v425, 7
      %v428 = vshll.u32 %v292, 16
      %v430 = vor.u32 %v427, %v428
      %v431 = vsel %vm313, %v423, %v430
      %v432 = vrot.slane %v427, 4
      %v434 = vshrl.u32 %v293, 16
      %v436 = vrot.slane %v434, 7
      %v437 = vshll.u32 %v293, 16
      %v439 = vor.u32 %v436, %v437
      %v440 = vrot.slane %v436, 4
      %v442 = vshrl.u32 %v294, 16
      %v444 = vrot.slane %v442, 7
      %v445 = vshll.u32 %v294, 16
      %v447 = vor.u32 %v444, %v445
      %v448 = vsel %vm313, %v440, %v447
      %v449 = vrot.slane %v444, 4
      %v451 = vshrl.u32 %v295, 16
      %v453 = vrot.slane %v451, 7
      %v454 = vshll.u32 %v295, 16
      %v456 = vor.u32 %v453, %v454
      %v457 = vrot.slane %v453, 4
      %v459 = vshrl.u32 %v296, 16
      %v461 = vrot.slane %v459, 7
      %v462 = vshll.u32 %v296, 16
      %v464 = vor.u32 %v461, %v462
      %v465 = vsel %vm313, %v457, %v464
      %v466 = vrot.slane %v461, 4
      %v468 = vshrl.u32 %v297, 16
      %v470 = vrot.slane %v468, 7
      %v471 = vshll.u32 %v297, 16
      %v473 = vor.u32 %v470, %v471
      %v474 = vrot.slane %v470, 4
      %v476 = vshrl.u32 %v298, 16
      %v478 = vrot.slane %v476, 7
      %v479 = vshll.u32 %v298, 16
      %v481 = vor.u32 %v478, %v479
      %v482 = vsel %vm313, %v474, %v481
      %v483 = vrot.slane %v478, 4
      %v485 = vshrl.u32 %v299, 16
      %v487 = vrot.slane %v485, 7
      %v488 = vshll.u32 %v299, 16
      %v490 = vor.u32 %v487, %v488
      %v491 = vrot.slane %v487, 4
      %v493 = vshrl.u32 %v300, 16
      %v495 = vrot.slane %v493, 7
      %v496 = vshll.u32 %v300, 16
      %v498 = vor.u32 %v495, %v496
      %v499 = vsel %vm313, %v491, %v498
      %v500 = vrot.slane %v495, 4
      %v502 = vshrl.u32 %v301, 16
      %v504 = vrot.slane %v502, 7
      %v505 = vshll.u32 %v301, 16
      %v507 = vor.u32 %v504, %v505
      %v508 = vrot.slane %v504, 4
      %v510 = vshrl.u32 %v302, 16
      %v512 = vrot.slane %v510, 7
      %v513 = vshll.u32 %v302, 16
      %v515 = vor.u32 %v512, %v513
      %v516 = vsel %vm313, %v508, %v515
      %v517 = vrot.slane %v512, 4
      %v519 = vshrl.u32 %v303, 16
      %v521 = vrot.slane %v519, 7
      %v522 = vshll.u32 %v303, 16
      %v524 = vor.u32 %v521, %v522
      %v525 = vrot.slane %v521, 4
      %v527 = vshrl.u32 %v304, 16
      %v529 = vrot.slane %v527, 7
      %v530 = vshll.u32 %v304, 16
      %v532 = vor.u32 %v529, %v530
      %v533 = vsel %vm313, %v525, %v532
      %v534 = vrot.slane %v529, 4
      %v536 = vshrl.u32 %v305, 16
      %v538 = vrot.slane %v536, 7
      %v539 = vshll.u32 %v305, 16
      %v541 = vor.u32 %v538, %v539
      %v542 = vrot.slane %v538, 4
      %v544 = vshrl.u32 %v306, 16
      %v546 = vrot.slane %v544, 7
      %v547 = vshll.u32 %v306, 16
      %v549 = vor.u32 %v546, %v547
      %v550 = vsel %vm313, %v542, %v549
      %v551 = vrot.slane %v546, 4
      %v553 = vshrl.u32 %v307, 16
      %v555 = vrot.slane %v553, 7
      %v556 = vshll.u32 %v307, 16
      %v558 = vor.u32 %v555, %v556
      %v559 = vrot.slane %v555, 4
      %v561 = vshrl.u32 %v308, 16
      %v563 = vrot.slane %v561, 7
      %v564 = vshll.u32 %v308, 16
      %v566 = vor.u32 %v563, %v564
      %v567 = vsel %vm313, %v559, %v566
      %v568 = vrot.slane %v563, 4
      %v570 = vshrl.u32 %v309, 16
      %v572 = vrot.slane %v570, 7
      %v573 = vshll.u32 %v309, 16
      %v575 = vor.u32 %v572, %v573
      %v576 = vrot.slane %v572, 4
      %v578 = vshrl.u32 %v310, 16
      %v580 = vrot.slane %v578, 7
      %v581 = vshll.u32 %v310, 16
      %v583 = vor.u32 %v580, %v581
      %v584 = vsel %vm313, %v576, %v583
      %v585 = vrot.slane %v580, 4
      %s634 = scalar_lea.vmem [#allocation2], 12
      %vm635 = vcmask 27648
      %vm636 = vsmask.f32 7938
      %vm637 = vmand %vm635, %vm636
      %v638 = vld [vmem:[%s634] sm:$0xf]
      %v639 = vsel %vm637, %v320, %v638
      %640 = vst [vmem:[%s634] sm:$0xf] %v639
      %641 = vst.msk [vmem:[%s634 + $0x4] sm:$0xf] %vm223, %v329
      %vm642 = vcmask 24576
      %vm643 = vmand %vm642, %vm311
      %v644 = vld [vmem:[%s634 + $0x8] sm:$0x1]
      %v645 = vsel %vm643, %v330, %v644
      %646 = vst [vmem:[%s634 + $0x8] sm:$0x1] %v645
      %v647 = vld [vmem:[%s634 + $0xc] sm:$0xf]
      %v648 = vsel %vm637, %v337, %v647
      %649 = vst [vmem:[%s634 + $0xc] sm:$0xf] %v648
      %650 = vst.msk [vmem:[%s634 + $0x10] sm:$0xf] %vm223, %v346
      %v651 = vld [vmem:[%s634 + $0x14] sm:$0x1]
      %v652 = vsel %vm643, %v347, %v651
      %653 = vst [vmem:[%s634 + $0x14] sm:$0x1] %v652
      %v654 = vld [vmem:[%s634 + $0x18] sm:$0xf]
      %v655 = vsel %vm637, %v354, %v654
      %656 = vst [vmem:[%s634 + $0x18] sm:$0xf] %v655
      %657 = vst.msk [vmem:[%s634 + $0x1c] sm:$0xf] %vm223, %v363
      %v658 = vld [vmem:[%s634 + $0x20] sm:$0x1]
      %v659 = vsel %vm643, %v364, %v658
      %660 = vst [vmem:[%s634 + $0x20] sm:$0x1] %v659
      %v661 = vld [vmem:[%s634 + $0x24] sm:$0xf]
      %v662 = vsel %vm637, %v371, %v661
      %663 = vst [vmem:[%s634 + $0x24] sm:$0xf] %v662
      %664 = vst.msk [vmem:[%s634 + $0x28] sm:$0xf] %vm223, %v380
      %v665 = vld [vmem:[%s634 + $0x2c] sm:$0x1]
      %v666 = vsel %vm643, %v381, %v665
      %667 = vst [vmem:[%s634 + $0x2c] sm:$0x1] %v666
      %v668 = vld [vmem:[%s634 + $0x30] sm:$0xf]
      %v669 = vsel %vm637, %v388, %v668
      %670 = vst [vmem:[%s634 + $0x30] sm:$0xf] %v669
      %671 = vst.msk [vmem:[%s634 + $0x34] sm:$0xf] %vm223, %v397
      %v672 = vld [vmem:[%s634 + $0x38] sm:$0x1]
      %v673 = vsel %vm643, %v398, %v672
      %674 = vst [vmem:[%s634 + $0x38] sm:$0x1] %v673
      %v675 = vld [vmem:[%s634 + $0x3c] sm:$0xf]
      %v676 = vsel %vm637, %v405, %v675
      %677 = vst [vmem:[%s634 + $0x3c] sm:$0xf] %v676
      %678 = vst.msk [vmem:[%s634 + $0x40] sm:$0xf] %vm223, %v414
      %v679 = vld [vmem:[%s634 + $0x44] sm:$0x1]
      %v680 = vsel %vm643, %v415, %v679
      %681 = vst [vmem:[%s634 + $0x44] sm:$0x1] %v680
      %v682 = vld [vmem:[%s634 + $0x48] sm:$0xf]
      %v683 = vsel %vm637, %v422, %v682
      %684 = vst [vmem:[%s634 + $0x48] sm:$0xf] %v683
      %685 = vst.msk [vmem:[%s634 + $0x4c] sm:$0xf] %vm223, %v431
      %v686 = vld [vmem:[%s634 + $0x50] sm:$0x1]
      %v687 = vsel %vm643, %v432, %v686
      %688 = vst [vmem:[%s634 + $0x50] sm:$0x1] %v687
      %v689 = vld [vmem:[%s634 + $0x54] sm:$0xf]
      %v690 = vsel %vm637, %v439, %v689
      %691 = vst [vmem:[%s634 + $0x54] sm:$0xf] %v690
      %692 = vst.msk [vmem:[%s634 + $0x58] sm:$0xf] %vm223, %v448
      %v693 = vld [vmem:[%s634 + $0x5c] sm:$0x1]
      %v694 = vsel %vm643, %v449, %v693
      %695 = vst [vmem:[%s634 + $0x5c] sm:$0x1] %v694
      %v696 = vld [vmem:[%s634 + $0x60] sm:$0xf]
      %v697 = vsel %vm637, %v456, %v696
      %698 = vst [vmem:[%s634 + $0x60] sm:$0xf] %v697
      %699 = vst.msk [vmem:[%s634 + $0x64] sm:$0xf] %vm223, %v465
      %v700 = vld [vmem:[%s634 + $0x68] sm:$0x1]
      %v701 = vsel %vm643, %v466, %v700
      %702 = vst [vmem:[%s634 + $0x68] sm:$0x1] %v701
      %v703 = vld [vmem:[%s634 + $0x6c] sm:$0xf]
      %v704 = vsel %vm637, %v473, %v703
      %705 = vst [vmem:[%s634 + $0x6c] sm:$0xf] %v704
      %706 = vst.msk [vmem:[%s634 + $0x70] sm:$0xf] %vm223, %v482
      %v707 = vld [vmem:[%s634 + $0x74] sm:$0x1]
      %v708 = vsel %vm643, %v483, %v707
      %709 = vst [vmem:[%s634 + $0x74] sm:$0x1] %v708
      %v710 = vld [vmem:[%s634 + $0x78] sm:$0xf]
      %v711 = vsel %vm637, %v490, %v710
      %712 = vst [vmem:[%s634 + $0x78] sm:$0xf] %v711
      %713 = vst.msk [vmem:[%s634 + $0x7c] sm:$0xf] %vm223, %v499
      %v714 = vld [vmem:[%s634 + $0x80] sm:$0x1]
      %v715 = vsel %vm643, %v500, %v714
      %716 = vst [vmem:[%s634 + $0x80] sm:$0x1] %v715
      %v717 = vld [vmem:[%s634 + $0x84] sm:$0xf]
      %v718 = vsel %vm637, %v507, %v717
      %719 = vst [vmem:[%s634 + $0x84] sm:$0xf] %v718
      %720 = vst.msk [vmem:[%s634 + $0x88] sm:$0xf] %vm223, %v516
      %v721 = vld [vmem:[%s634 + $0x8c] sm:$0x1]
      %v722 = vsel %vm643, %v517, %v721
      %723 = vst [vmem:[%s634 + $0x8c] sm:$0x1] %v722
      %v724 = vld [vmem:[%s634 + $0x90] sm:$0xf]
      %v725 = vsel %vm637, %v524, %v724
      %726 = vst [vmem:[%s634 + $0x90] sm:$0xf] %v725
      %727 = vst.msk [vmem:[%s634 + $0x94] sm:$0xf] %vm223, %v533
      %v728 = vld [vmem:[%s634 + $0x98] sm:$0x1]
      %v729 = vsel %vm643, %v534, %v728
      %730 = vst [vmem:[%s634 + $0x98] sm:$0x1] %v729
      %v731 = vld [vmem:[%s634 + $0x9c] sm:$0xf]
      %v732 = vsel %vm637, %v541, %v731
      %733 = vst [vmem:[%s634 + $0x9c] sm:$0xf] %v732
      %734 = vst.msk [vmem:[%s634 + $0xa0] sm:$0xf] %vm223, %v550
      %v735 = vld [vmem:[%s634 + $0xa4] sm:$0x1]
      %v736 = vsel %vm643, %v551, %v735
      %737 = vst [vmem:[%s634 + $0xa4] sm:$0x1] %v736
      %v738 = vld [vmem:[%s634 + $0xa8] sm:$0xf]
      %v739 = vsel %vm637, %v558, %v738
      %740 = vst [vmem:[%s634 + $0xa8] sm:$0xf] %v739
      %741 = vst.msk [vmem:[%s634 + $0xac] sm:$0xf] %vm223, %v567
      %v742 = vld [vmem:[%s634 + $0xb0] sm:$0x1]
      %v743 = vsel %vm643, %v568, %v742
      %744 = vst [vmem:[%s634 + $0xb0] sm:$0x1] %v743
      %v745 = vld [vmem:[%s634 + $0xb4] sm:$0xf]
      %v746 = vsel %vm637, %v575, %v745
      %747 = vst [vmem:[%s634 + $0xb4] sm:$0xf] %v746
      %748 = vst.msk [vmem:[%s634 + $0xb8] sm:$0xf] %vm223, %v584
      %v749 = vld [vmem:[%s634 + $0xbc] sm:$0x1]
      %v750 = vsel %vm643, %v585, %v749
      %751 = vst [vmem:[%s634 + $0xbc] sm:$0x1] %v750
      %v752 = vld [vmem:[#allocation2] sm:$0xf]
      %v753 = vld [vmem:[#allocation2 + $0x4] sm:$0xf]
      %v754 = vld [vmem:[#allocation2 + $0xc] sm:$0xf]
      %v755 = vld [vmem:[#allocation2 + $0x10] sm:$0xf]
      %v756 = vld [vmem:[#allocation2 + $0x18] sm:$0xf]
      %v757 = vld [vmem:[#allocation2 + $0x1c] sm:$0xf]
      %v758 = vld [vmem:[#allocation2 + $0x24] sm:$0xf]
      %v759 = vld [vmem:[#allocation2 + $0x28] sm:$0xf]
      %v760 = vld [vmem:[#allocation2 + $0x30] sm:$0xf]
      %v761 = vld [vmem:[#allocation2 + $0x34] sm:$0xf]
      %v762 = vld [vmem:[#allocation2 + $0x3c] sm:$0xf]
      %v763 = vld [vmem:[#allocation2 + $0x40] sm:$0xf]
      %v764 = vld [vmem:[#allocation2 + $0x48] sm:$0xf]
      %v765 = vld [vmem:[#allocation2 + $0x4c] sm:$0xf]
      %v766 = vld [vmem:[#allocation2 + $0x54] sm:$0xf]
      %v767 = vld [vmem:[#allocation2 + $0x58] sm:$0xf]
      %v768 = vld [vmem:[#allocation2 + $0x60] sm:$0xf]
      %v769 = vld [vmem:[#allocation2 + $0x64] sm:$0xf]
      %v770 = vld [vmem:[#allocation2 + $0x6c] sm:$0xf]
      %v771 = vld [vmem:[#allocation2 + $0x70] sm:$0xf]
      %v772 = vld [vmem:[#allocation2 + $0x78] sm:$0xf]
      %v773 = vld [vmem:[#allocation2 + $0x7c] sm:$0xf]
      %v774 = vld [vmem:[#allocation2 + $0x84] sm:$0xf]
      %v775 = vld [vmem:[#allocation2 + $0x88] sm:$0xf]
      %v776 = vld [vmem:[#allocation2 + $0x90] sm:$0xf]
      %v777 = vld [vmem:[#allocation2 + $0x94] sm:$0xf]
      %v778 = vld [vmem:[#allocation2 + $0x9c] sm:$0xf]
      %v779 = vld [vmem:[#allocation2 + $0xa0] sm:$0xf]
      %v780 = vld [vmem:[#allocation2 + $0xa8] sm:$0xf]
      %v781 = vld [vmem:[#allocation2 + $0xac] sm:$0xf]
      %v782 = vld [vmem:[#allocation2 + $0xb4] sm:$0xf]
      %v783 = vld [vmem:[#allocation2 + $0xb8] sm:$0xf]
      %v784 = vld [vmem:[#allocation2 + $0x8] sm:$0x1]
      %v785 = vld [vmem:[#allocation2 + $0x14] sm:$0x1]
      %v786 = vld [vmem:[#allocation2 + $0x20] sm:$0x1]
      %v787 = vld [vmem:[#allocation2 + $0x2c] sm:$0x1]
      %v788 = vld [vmem:[#allocation2 + $0x38] sm:$0x1]
      %v789 = vld [vmem:[#allocation2 + $0x44] sm:$0x1]
      %v790 = vld [vmem:[#allocation2 + $0x50] sm:$0x1]
      %v791 = vld [vmem:[#allocation2 + $0x5c] sm:$0x1]
      %v792 = vld [vmem:[#allocation2 + $0x68] sm:$0x1]
      %v793 = vld [vmem:[#allocation2 + $0x74] sm:$0x1]
      %v794 = vld [vmem:[#allocation2 + $0x80] sm:$0x1]
      %v795 = vld [vmem:[#allocation2 + $0x8c] sm:$0x1]
      %v796 = vld [vmem:[#allocation2 + $0x98] sm:$0x1]
      %v797 = vld [vmem:[#allocation2 + $0xa4] sm:$0x1]
      %v798 = vld [vmem:[#allocation2 + $0xb0] sm:$0x1]
      %v799 = vld [vmem:[#allocation2 + $0xbc] sm:$0x1]
      %v800 = vld [vmem:[#allocation2] sm:$0xe]
      %v801 = vld [vmem:[#allocation2 + $0xc] sm:$0xe]
      %v802 = vld [vmem:[#allocation2 + $0x18] sm:$0xe]
      %v803 = vld [vmem:[#allocation2 + $0x24] sm:$0xe]
      %v804 = vld [vmem:[#allocation2 + $0x30] sm:$0xe]
      %v805 = vld [vmem:[#allocation2 + $0x3c] sm:$0xe]
      %v806 = vld [vmem:[#allocation2 + $0x48] sm:$0xe]
      %v807 = vld [vmem:[#allocation2 + $0x54] sm:$0xe]
      %v808 = vld [vmem:[#allocation2 + $0x60] sm:$0xe]
      %v809 = vld [vmem:[#allocation2 + $0x6c] sm:$0xe]
      %v810 = vld [vmem:[#allocation2 + $0x78] sm:$0xe]
      %v811 = vld [vmem:[#allocation2 + $0x84] sm:$0xe]
      %v812 = vld [vmem:[#allocation2 + $0x90] sm:$0xe]
      %v813 = vld [vmem:[#allocation2 + $0x9c] sm:$0xe]
      %v814 = vld [vmem:[#allocation2 + $0xa8] sm:$0xe]
      %v815 = vld [vmem:[#allocation2 + $0xb4] sm:$0xe]
      %v816 = vld [vmem:[%s634] sm:$0xf]
      %v817 = vld [vmem:[%s634 + $0x4] sm:$0xf]
      %v818 = vld [vmem:[%s634 + $0xc] sm:$0xf]
      %v819 = vld [vmem:[%s634 + $0x10] sm:$0xf]
      %v820 = vld [vmem:[%s634 + $0x18] sm:$0xf]
      %v821 = vld [vmem:[%s634 + $0x1c] sm:$0xf]
      %v822 = vld [vmem:[%s634 + $0x24] sm:$0xf]
      %v823 = vld [vmem:[%s634 + $0x28] sm:$0xf]
      %v824 = vld [vmem:[%s634 + $0x30] sm:$0xf]
      %v825 = vld [vmem:[%s634 + $0x34] sm:$0xf]
      %v826 = vld [vmem:[%s634 + $0x3c] sm:$0xf]
      %v827 = vld [vmem:[%s634 + $0x40] sm:$0xf]
      %v828 = vld [vmem:[%s634 + $0x48] sm:$0xf]
      %v829 = vld [vmem:[%s634 + $0x4c] sm:$0xf]
      %v830 = vld [vmem:[%s634 + $0x54] sm:$0xf]
      %v831 = vld [vmem:[%s634 + $0x58] sm:$0xf]
      %v832 = vld [vmem:[%s634 + $0x60] sm:$0xf]
      %v833 = vld [vmem:[%s634 + $0x64] sm:$0xf]
      %v834 = vld [vmem:[%s634 + $0x6c] sm:$0xf]
      %v835 = vld [vmem:[%s634 + $0x70] sm:$0xf]
      %v836 = vld [vmem:[%s634 + $0x78] sm:$0xf]
      %v837 = vld [vmem:[%s634 + $0x7c] sm:$0xf]
      %v838 = vld [vmem:[%s634 + $0x84] sm:$0xf]
      %v839 = vld [vmem:[%s634 + $0x88] sm:$0xf]
      %v840 = vld [vmem:[%s634 + $0x90] sm:$0xf]
      %v841 = vld [vmem:[%s634 + $0x94] sm:$0xf]
      %v842 = vld [vmem:[%s634 + $0x9c] sm:$0xf]
      %v843 = vld [vmem:[%s634 + $0xa0] sm:$0xf]
      %v844 = vld [vmem:[%s634 + $0xa8] sm:$0xf]
      %v845 = vld [vmem:[%s634 + $0xac] sm:$0xf]
      %v846 = vld [vmem:[%s634 + $0xb4] sm:$0xf]
      %v847 = vld [vmem:[%s634 + $0xb8] sm:$0xf]
      %v848 = vld [vmem:[%s634 + $0x8] sm:$0x1]
      %v849 = vld [vmem:[%s634 + $0x14] sm:$0x1]
      %v850 = vld [vmem:[%s634 + $0x20] sm:$0x1]
      %v851 = vld [vmem:[%s634 + $0x2c] sm:$0x1]
      %v852 = vld [vmem:[%s634 + $0x38] sm:$0x1]
      %v853 = vld [vmem:[%s634 + $0x44] sm:$0x1]
      %v854 = vld [vmem:[%s634 + $0x50] sm:$0x1]
      %v855 = vld [vmem:[%s634 + $0x5c] sm:$0x1]
      %v856 = vld [vmem:[%s634 + $0x68] sm:$0x1]
      %v857 = vld [vmem:[%s634 + $0x74] sm:$0x1]
      %v858 = vld [vmem:[%s634 + $0x80] sm:$0x1]
      %v859 = vld [vmem:[%s634 + $0x8c] sm:$0x1]
      %v860 = vld [vmem:[%s634 + $0x98] sm:$0x1]
      %v861 = vld [vmem:[%s634 + $0xa4] sm:$0x1]
      %v862 = vld [vmem:[%s634 + $0xb0] sm:$0x1]
      %v863 = vld [vmem:[%s634 + $0xbc] sm:$0x1]
      %v864 = vld [vmem:[%s634] sm:$0xe]
      %v865 = vld [vmem:[%s634 + $0xc] sm:$0xe]
      %v866 = vld [vmem:[%s634 + $0x18] sm:$0xe]
      %v867 = vld [vmem:[%s634 + $0x24] sm:$0xe]
      %v868 = vld [vmem:[%s634 + $0x30] sm:$0xe]
      %v869 = vld [vmem:[%s634 + $0x3c] sm:$0xe]
      %v870 = vld [vmem:[%s634 + $0x48] sm:$0xe]
      %v871 = vld [vmem:[%s634 + $0x54] sm:$0xe]
      %v872 = vld [vmem:[%s634 + $0x60] sm:$0xe]
      %v873 = vld [vmem:[%s634 + $0x6c] sm:$0xe]
      %v874 = vld [vmem:[%s634 + $0x78] sm:$0xe]
      %v875 = vld [vmem:[%s634 + $0x84] sm:$0xe]
      %v876 = vld [vmem:[%s634 + $0x90] sm:$0xe]
      %v877 = vld [vmem:[%s634 + $0x9c] sm:$0xe]
      %v878 = vld [vmem:[%s634 + $0xa8] sm:$0xe]
      %v879 = vld [vmem:[%s634 + $0xb4] sm:$0xe]
      %s880 = scalar_lea.vmem [#allocation2], 24
      %v881 = vld [vmem:[%s880] sm:$0xf]
      %v882 = vld [vmem:[%s880 + $0x4] sm:$0xf]
      %v883 = vld [vmem:[%s880 + $0xc] sm:$0xf]
      %v884 = vld [vmem:[%s880 + $0x10] sm:$0xf]
      %v885 = vld [vmem:[%s880 + $0x18] sm:$0xf]
      %v886 = vld [vmem:[%s880 + $0x1c] sm:$0xf]
      %v887 = vld [vmem:[%s880 + $0x24] sm:$0xf]
      %v888 = vld [vmem:[%s880 + $0x28] sm:$0xf]
      %v889 = vld [vmem:[%s880 + $0x30] sm:$0xf]
      %v890 = vld [vmem:[%s880 + $0x34] sm:$0xf]
      %v891 = vld [vmem:[%s880 + $0x3c] sm:$0xf]
      %v892 = vld [vmem:[%s880 + $0x40] sm:$0xf]
      %v893 = vld [vmem:[%s880 + $0x48] sm:$0xf]
      %v894 = vld [vmem:[%s880 + $0x4c] sm:$0xf]
      %v895 = vld [vmem:[%s880 + $0x54] sm:$0xf]
      %v896 = vld [vmem:[%s880 + $0x58] sm:$0xf]
      %v897 = vld [vmem:[%s880 + $0x60] sm:$0xf]
      %v898 = vld [vmem:[%s880 + $0x64] sm:$0xf]
      %v899 = vld [vmem:[%s880 + $0x6c] sm:$0xf]
      %v900 = vld [vmem:[%s880 + $0x70] sm:$0xf]
      %v901 = vld [vmem:[%s880 + $0x78] sm:$0xf]
      %v902 = vld [vmem:[%s880 + $0x7c] sm:$0xf]
      %v903 = vld [vmem:[%s880 + $0x84] sm:$0xf]
      %v904 = vld [vmem:[%s880 + $0x88] sm:$0xf]
      %v905 = vld [vmem:[%s880 + $0x90] sm:$0xf]
      %v906 = vld [vmem:[%s880 + $0x94] sm:$0xf]
      %v907 = vld [vmem:[%s880 + $0x9c] sm:$0xf]
      %v908 = vld [vmem:[%s880 + $0xa0] sm:$0xf]
      %v909 = vld [vmem:[%s880 + $0xa8] sm:$0xf]
      %v910 = vld [vmem:[%s880 + $0xac] sm:$0xf]
      %v911 = vld [vmem:[%s880 + $0xb4] sm:$0xf]
      %v912 = vld [vmem:[%s880 + $0xb8] sm:$0xf]
      %v913 = vld [vmem:[%s880 + $0x8] sm:$0x1]
      %v914 = vld [vmem:[%s880 + $0x14] sm:$0x1]
      %v915 = vld [vmem:[%s880 + $0x20] sm:$0x1]
      %v916 = vld [vmem:[%s880 + $0x2c] sm:$0x1]
      %v917 = vld [vmem:[%s880 + $0x38] sm:$0x1]
      %v918 = vld [vmem:[%s880 + $0x44] sm:$0x1]
      %v919 = vld [vmem:[%s880 + $0x50] sm:$0x1]
      %v920 = vld [vmem:[%s880 + $0x5c] sm:$0x1]
      %v921 = vld [vmem:[%s880 + $0x68] sm:$0x1]
      %v922 = vld [vmem:[%s880 + $0x74] sm:$0x1]
      %v923 = vld [vmem:[%s880 + $0x80] sm:$0x1]
      %v924 = vld [vmem:[%s880 + $0x8c] sm:$0x1]
      %v925 = vld [vmem:[%s880 + $0x98] sm:$0x1]
      %v926 = vld [vmem:[%s880 + $0xa4] sm:$0x1]
      %v927 = vld [vmem:[%s880 + $0xb0] sm:$0x1]
      %v928 = vld [vmem:[%s880 + $0xbc] sm:$0x1]
      %v929 = vld [vmem:[%s880] sm:$0xe]
      %v930 = vld [vmem:[%s880 + $0xc] sm:$0xe]
      %v931 = vld [vmem:[%s880 + $0x18] sm:$0xe]
      %v932 = vld [vmem:[%s880 + $0x24] sm:$0xe]
      %v933 = vld [vmem:[%s880 + $0x30] sm:$0xe]
      %v934 = vld [vmem:[%s880 + $0x3c] sm:$0xe]
      %v935 = vld [vmem:[%s880 + $0x48] sm:$0xe]
      %v936 = vld [vmem:[%s880 + $0x54] sm:$0xe]
      %v937 = vld [vmem:[%s880 + $0x60] sm:$0xe]
      %v938 = vld [vmem:[%s880 + $0x6c] sm:$0xe]
      %v939 = vld [vmem:[%s880 + $0x78] sm:$0xe]
      %v940 = vld [vmem:[%s880 + $0x84] sm:$0xe]
      %v941 = vld [vmem:[%s880 + $0x90] sm:$0xe]
      %v942 = vld [vmem:[%s880 + $0x9c] sm:$0xe]
      %v943 = vld [vmem:[%s880 + $0xa8] sm:$0xe]
      %v944 = vld [vmem:[%s880 + $0xb4] sm:$0xe]
      %v977 = vunpack.c.l.b16 %v752
      %v978 = vunpack.c.l.b16 %v753
      %v979 = vunpack.c.l.b16 %v754
      %v980 = vunpack.c.l.b16 %v755
      %v981 = vunpack.c.l.b16 %v756
      %v982 = vunpack.c.l.b16 %v757
      %v983 = vunpack.c.l.b16 %v758
      %v984 = vunpack.c.l.b16 %v759
      %v985 = vunpack.c.l.b16 %v760
      %v986 = vunpack.c.l.b16 %v761
      %v987 = vunpack.c.l.b16 %v762
      %v988 = vunpack.c.l.b16 %v763
      %v989 = vunpack.c.l.b16 %v764
      %v990 = vunpack.c.l.b16 %v765
      %v991 = vunpack.c.l.b16 %v766
      %v992 = vunpack.c.l.b16 %v767
      %v993 = vunpack.c.l.b16 %v768
      %v994 = vunpack.c.l.b16 %v769
      %v995 = vunpack.c.l.b16 %v770
      %v996 = vunpack.c.l.b16 %v771
      %v997 = vunpack.c.l.b16 %v772
      %v998 = vunpack.c.l.b16 %v773
      %v999 = vunpack.c.l.b16 %v774
      %v1000 = vunpack.c.l.b16 %v775
      %v1001 = vunpack.c.l.b16 %v776
      %v1002 = vunpack.c.l.b16 %v777
      %v1003 = vunpack.c.l.b16 %v778
      %v1004 = vunpack.c.l.b16 %v779
      %v1005 = vunpack.c.l.b16 %v780
      %v1006 = vunpack.c.l.b16 %v781
      %v1007 = vunpack.c.l.b16 %v782
      %v1008 = vunpack.c.l.b16 %v783
      %v1009 = vpack.c.b16 %v978, %v977
      %v1010 = vpack.c.b16 %v980, %v979
      %v1011 = vpack.c.b16 %v982, %v981
      %v1012 = vpack.c.b16 %v984, %v983
      %v1013 = vpack.c.b16 %v986, %v985
      %v1014 = vpack.c.b16 %v988, %v987
      %v1015 = vpack.c.b16 %v990, %v989
      %v1016 = vpack.c.b16 %v992, %v991
      %v1017 = vpack.c.b16 %v994, %v993
      %v1018 = vpack.c.b16 %v996, %v995
      %v1019 = vpack.c.b16 %v998, %v997
      %v1020 = vpack.c.b16 %v1000, %v999
      %v1021 = vpack.c.b16 %v1002, %v1001
      %v1022 = vpack.c.b16 %v1004, %v1003
      %v1023 = vpack.c.b16 %v1006, %v1005
      %v1024 = vpack.c.b16 %v1008, %v1007
      %v1041 = vunpack.c.l.b16 %v784
      %v1042 = vunpack.c.l.b16 %v785
      %v1043 = vunpack.c.l.b16 %v786
      %v1044 = vunpack.c.l.b16 %v787
      %v1045 = vunpack.c.l.b16 %v788
      %v1046 = vunpack.c.l.b16 %v789
      %v1047 = vunpack.c.l.b16 %v790
      %v1048 = vunpack.c.l.b16 %v791
      %v1049 = vunpack.c.l.b16 %v792
      %v1050 = vunpack.c.l.b16 %v793
      %v1051 = vunpack.c.l.b16 %v794
      %v1052 = vunpack.c.l.b16 %v795
      %v1053 = vunpack.c.l.b16 %v796
      %v1054 = vunpack.c.l.b16 %v797
      %v1055 = vunpack.c.l.b16 %v798
      %v1056 = vunpack.c.l.b16 %v799
      %v1057 = vpack.c.b16 %v1041, %v1041
      %v1058 = vpack.c.b16 %v1042, %v1042
      %v1059 = vpack.c.b16 %v1043, %v1043
      %v1060 = vpack.c.b16 %v1044, %v1044
      %v1061 = vpack.c.b16 %v1045, %v1045
      %v1062 = vpack.c.b16 %v1046, %v1046
      %v1063 = vpack.c.b16 %v1047, %v1047
      %v1064 = vpack.c.b16 %v1048, %v1048
      %v1065 = vpack.c.b16 %v1049, %v1049
      %v1066 = vpack.c.b16 %v1050, %v1050
      %v1067 = vpack.c.b16 %v1051, %v1051
      %v1068 = vpack.c.b16 %v1052, %v1052
      %v1069 = vpack.c.b16 %v1053, %v1053
      %v1070 = vpack.c.b16 %v1054, %v1054
      %v1071 = vpack.c.b16 %v1055, %v1055
      %v1072 = vpack.c.b16 %v1056, %v1056
      %vm1073 = vsmask.f32 7424
      %v1075 = vshrl.u32 %v1009, 16
      %v1077 = vshll.u32 %v1009, 16
      %v1079 = vrot.slane %v1077, 1
      %v1080 = vor.u32 %v1075, %v1079
      %v1082 = vshll.u32 %v1057, 16
      %v1084 = vrot.slane %v1082, 1
      %v1085 = vsel %vm1073, %v1080, %v1084
      %v1087 = vshrl.u32 %v1010, 16
      %v1089 = vshll.u32 %v1010, 16
      %v1091 = vrot.slane %v1089, 1
      %v1092 = vor.u32 %v1087, %v1091
      %v1094 = vshll.u32 %v1058, 16
      %v1096 = vrot.slane %v1094, 1
      %v1097 = vsel %vm1073, %v1092, %v1096
      %v1099 = vshrl.u32 %v1011, 16
      %v1101 = vshll.u32 %v1011, 16
      %v1103 = vrot.slane %v1101, 1
      %v1104 = vor.u32 %v1099, %v1103
      %v1106 = vshll.u32 %v1059, 16
      %v1108 = vrot.slane %v1106, 1
      %v1109 = vsel %vm1073, %v1104, %v1108
      %v1111 = vshrl.u32 %v1012, 16
      %v1113 = vshll.u32 %v1012, 16
      %v1115 = vrot.slane %v1113, 1
      %v1116 = vor.u32 %v1111, %v1115
      %v1118 = vshll.u32 %v1060, 16
      %v1120 = vrot.slane %v1118, 1
      %v1121 = vsel %vm1073, %v1116, %v1120
      %v1123 = vshrl.u32 %v1013, 16
      %v1125 = vshll.u32 %v1013, 16
      %v1127 = vrot.slane %v1125, 1
      %v1128 = vor.u32 %v1123, %v1127
      %v1130 = vshll.u32 %v1061, 16
      %v1132 = vrot.slane %v1130, 1
      %v1133 = vsel %vm1073, %v1128, %v1132
      %v1135 = vshrl.u32 %v1014, 16
      %v1137 = vshll.u32 %v1014, 16
      %v1139 = vrot.slane %v1137, 1
      %v1140 = vor.u32 %v1135, %v1139
      %v1142 = vshll.u32 %v1062, 16
      %v1144 = vrot.slane %v1142, 1
      %v1145 = vsel %vm1073, %v1140, %v1144
      %v1147 = vshrl.u32 %v1015, 16
      %v1149 = vshll.u32 %v1015, 16
      %v1151 = vrot.slane %v1149, 1
      %v1152 = vor.u32 %v1147, %v1151
      %v1154 = vshll.u32 %v1063, 16
      %v1156 = vrot.slane %v1154, 1
      %v1157 = vsel %vm1073, %v1152, %v1156
      %v1159 = vshrl.u32 %v1016, 16
      %v1161 = vshll.u32 %v1016, 16
      %v1163 = vrot.slane %v1161, 1
      %v1164 = vor.u32 %v1159, %v1163
      %v1166 = vshll.u32 %v1064, 16
      %v1168 = vrot.slane %v1166, 1
      %v1169 = vsel %vm1073, %v1164, %v1168
      %v1171 = vshrl.u32 %v1017, 16
      %v1173 = vshll.u32 %v1017, 16
      %v1175 = vrot.slane %v1173, 1
      %v1176 = vor.u32 %v1171, %v1175
      %v1178 = vshll.u32 %v1065, 16
      %v1180 = vrot.slane %v1178, 1
      %v1181 = vsel %vm1073, %v1176, %v1180
      %v1183 = vshrl.u32 %v1018, 16
      %v1185 = vshll.u32 %v1018, 16
      %v1187 = vrot.slane %v1185, 1
      %v1188 = vor.u32 %v1183, %v1187
      %v1190 = vshll.u32 %v1066, 16
      %v1192 = vrot.slane %v1190, 1
      %v1193 = vsel %vm1073, %v1188, %v1192
      %v1195 = vshrl.u32 %v1019, 16
      %v1197 = vshll.u32 %v1019, 16
      %v1199 = vrot.slane %v1197, 1
      %v1200 = vor.u32 %v1195, %v1199
      %v1202 = vshll.u32 %v1067, 16
      %v1204 = vrot.slane %v1202, 1
      %v1205 = vsel %vm1073, %v1200, %v1204
      %v1207 = vshrl.u32 %v1020, 16
      %v1209 = vshll.u32 %v1020, 16
      %v1211 = vrot.slane %v1209, 1
      %v1212 = vor.u32 %v1207, %v1211
      %v1214 = vshll.u32 %v1068, 16
      %v1216 = vrot.slane %v1214, 1
      %v1217 = vsel %vm1073, %v1212, %v1216
      %v1219 = vshrl.u32 %v1021, 16
      %v1221 = vshll.u32 %v1021, 16
      %v1223 = vrot.slane %v1221, 1
      %v1224 = vor.u32 %v1219, %v1223
      %v1226 = vshll.u32 %v1069, 16
      %v1228 = vrot.slane %v1226, 1
      %v1229 = vsel %vm1073, %v1224, %v1228
      %v1231 = vshrl.u32 %v1022, 16
      %v1233 = vshll.u32 %v1022, 16
      %v1235 = vrot.slane %v1233, 1
      %v1236 = vor.u32 %v1231, %v1235
      %v1238 = vshll.u32 %v1070, 16
      %v1240 = vrot.slane %v1238, 1
      %v1241 = vsel %vm1073, %v1236, %v1240
      %v1243 = vshrl.u32 %v1023, 16
      %v1245 = vshll.u32 %v1023, 16
      %v1247 = vrot.slane %v1245, 1
      %v1248 = vor.u32 %v1243, %v1247
      %v1250 = vshll.u32 %v1071, 16
      %v1252 = vrot.slane %v1250, 1
      %v1253 = vsel %vm1073, %v1248, %v1252
      %v1255 = vshrl.u32 %v1024, 16
      %v1257 = vshll.u32 %v1024, 16
      %v1259 = vrot.slane %v1257, 1
      %v1260 = vor.u32 %v1255, %v1259
      %v1262 = vshll.u32 %v1072, 16
      %v1264 = vrot.slane %v1262, 1
      %v1265 = vsel %vm1073, %v1260, %v1264
      %1266 = vrot.lane.b32.xlu0 %v1085, 4
      %v1267 = vpop.permute.xlu0 %1266
      %1268 = vrot.lane.b32.xlu0 %v1097, 4
      %v1269 = vpop.permute.xlu0 %1268
      %1270 = vrot.lane.b32.xlu0 %v1109, 4
      %v1271 = vpop.permute.xlu0 %1270
      %1272 = vrot.lane.b32.xlu0 %v1121, 4
      %v1273 = vpop.permute.xlu0 %1272
      %1274 = vrot.lane.b32.xlu0 %v1133, 4
      %v1275 = vpop.permute.xlu0 %1274
      %1276 = vrot.lane.b32.xlu0 %v1145, 4
      %v1277 = vpop.permute.xlu0 %1276
      %1278 = vrot.lane.b32.xlu0 %v1157, 4
      %v1279 = vpop.permute.xlu0 %1278
      %1280 = vrot.lane.b32.xlu0 %v1169, 4
      %v1281 = vpop.permute.xlu0 %1280
      %1282 = vrot.lane.b32.xlu0 %v1181, 4
      %v1283 = vpop.permute.xlu0 %1282
      %1284 = vrot.lane.b32.xlu0 %v1193, 4
      %v1285 = vpop.permute.xlu0 %1284
      %1286 = vrot.lane.b32.xlu0 %v1205, 4
      %v1287 = vpop.permute.xlu0 %1286
      %1288 = vrot.lane.b32.xlu0 %v1217, 4
      %v1289 = vpop.permute.xlu0 %1288
      %1290 = vrot.lane.b32.xlu0 %v1229, 4
      %v1291 = vpop.permute.xlu0 %1290
      %1292 = vrot.lane.b32.xlu0 %v1241, 4
      %v1293 = vpop.permute.xlu0 %1292
      %1294 = vrot.lane.b32.xlu0 %v1253, 4
      %v1295 = vpop.permute.xlu0 %1294
      %1296 = vrot.lane.b32.xlu0 %v1265, 4
      %v1297 = vpop.permute.xlu0 %1296
      %v1314 = vunpack.c.l.b16 %v800
      %v1315 = vunpack.c.l.b16 %v801
      %v1316 = vunpack.c.l.b16 %v802
      %v1317 = vunpack.c.l.b16 %v803
      %v1318 = vunpack.c.l.b16 %v804
      %v1319 = vunpack.c.l.b16 %v805
      %v1320 = vunpack.c.l.b16 %v806
      %v1321 = vunpack.c.l.b16 %v807
      %v1322 = vunpack.c.l.b16 %v808
      %v1323 = vunpack.c.l.b16 %v809
      %v1324 = vunpack.c.l.b16 %v810
      %v1325 = vunpack.c.l.b16 %v811
      %v1326 = vunpack.c.l.b16 %v812
      %v1327 = vunpack.c.l.b16 %v813
      %v1328 = vunpack.c.l.b16 %v814
      %v1329 = vunpack.c.l.b16 %v815
      %v1330 = vpack.c.b16 %v978, %v1314
      %v1331 = vpack.c.b16 %v980, %v1315
      %v1332 = vpack.c.b16 %v982, %v1316
      %v1333 = vpack.c.b16 %v984, %v1317
      %v1334 = vpack.c.b16 %v986, %v1318
      %v1335 = vpack.c.b16 %v988, %v1319
      %v1336 = vpack.c.b16 %v990, %v1320
      %v1337 = vpack.c.b16 %v992, %v1321
      %v1338 = vpack.c.b16 %v994, %v1322
      %v1339 = vpack.c.b16 %v996, %v1323
      %v1340 = vpack.c.b16 %v998, %v1324
      %v1341 = vpack.c.b16 %v1000, %v1325
      %v1342 = vpack.c.b16 %v1002, %v1326
      %v1343 = vpack.c.b16 %v1004, %v1327
      %v1344 = vpack.c.b16 %v1006, %v1328
      %v1345 = vpack.c.b16 %v1008, %v1329
      %vm1346 = vcmask 1046528
      %v1347 = vrot.slane %v1330, 1
      %v1348 = vrot.slane %v1057, 1
      %v1349 = vsel %vm1346, %v1347, %v1348
      %v1350 = vrot.slane %v1331, 1
      %v1351 = vrot.slane %v1058, 1
      %v1352 = vsel %vm1346, %v1350, %v1351
      %v1353 = vrot.slane %v1332, 1
      %v1354 = vrot.slane %v1059, 1
      %v1355 = vsel %vm1346, %v1353, %v1354
      %v1356 = vrot.slane %v1333, 1
      %v1357 = vrot.slane %v1060, 1
      %v1358 = vsel %vm1346, %v1356, %v1357
      %v1359 = vrot.slane %v1334, 1
      %v1360 = vrot.slane %v1061, 1
      %v1361 = vsel %vm1346, %v1359, %v1360
      %v1362 = vrot.slane %v1335, 1
      %v1363 = vrot.slane %v1062, 1
      %v1364 = vsel %vm1346, %v1362, %v1363
      %v1365 = vrot.slane %v1336, 1
      %v1366 = vrot.slane %v1063, 1
      %v1367 = vsel %vm1346, %v1365, %v1366
      %v1368 = vrot.slane %v1337, 1
      %v1369 = vrot.slane %v1064, 1
      %v1370 = vsel %vm1346, %v1368, %v1369
      %v1371 = vrot.slane %v1338, 1
      %v1372 = vrot.slane %v1065, 1
      %v1373 = vsel %vm1346, %v1371, %v1372
      %v1374 = vrot.slane %v1339, 1
      %v1375 = vrot.slane %v1066, 1
      %v1376 = vsel %vm1346, %v1374, %v1375
      %v1377 = vrot.slane %v1340, 1
      %v1378 = vrot.slane %v1067, 1
      %v1379 = vsel %vm1346, %v1377, %v1378
      %v1380 = vrot.slane %v1341, 1
      %v1381 = vrot.slane %v1068, 1
      %v1382 = vsel %vm1346, %v1380, %v1381
      %v1383 = vrot.slane %v1342, 1
      %v1384 = vrot.slane %v1069, 1
      %v1385 = vsel %vm1346, %v1383, %v1384
      %v1386 = vrot.slane %v1343, 1
      %v1387 = vrot.slane %v1070, 1
      %v1388 = vsel %vm1346, %v1386, %v1387
      %v1389 = vrot.slane %v1344, 1
      %v1390 = vrot.slane %v1071, 1
      %v1391 = vsel %vm1346, %v1389, %v1390
      %v1392 = vrot.slane %v1345, 1
      %v1393 = vrot.slane %v1072, 1
      %v1394 = vsel %vm1346, %v1392, %v1393
      %1395 = vrot.lane.b32.xlu0 %v1349, 8
      %v1396 = vpop.permute.xlu0 %1395
      %1397 = vrot.lane.b32.xlu0 %v1352, 8
      %v1398 = vpop.permute.xlu0 %1397
      %1399 = vrot.lane.b32.xlu0 %v1355, 8
      %v1400 = vpop.permute.xlu0 %1399
      %1401 = vrot.lane.b32.xlu0 %v1358, 8
      %v1402 = vpop.permute.xlu0 %1401
      %1403 = vrot.lane.b32.xlu0 %v1361, 8
      %v1404 = vpop.permute.xlu0 %1403
      %1405 = vrot.lane.b32.xlu0 %v1364, 8
      %v1406 = vpop.permute.xlu0 %1405
      %1407 = vrot.lane.b32.xlu0 %v1367, 8
      %v1408 = vpop.permute.xlu0 %1407
      %1409 = vrot.lane.b32.xlu0 %v1370, 8
      %v1410 = vpop.permute.xlu0 %1409
      %1411 = vrot.lane.b32.xlu0 %v1373, 8
      %v1412 = vpop.permute.xlu0 %1411
      %1413 = vrot.lane.b32.xlu0 %v1376, 8
      %v1414 = vpop.permute.xlu0 %1413
      %1415 = vrot.lane.b32.xlu0 %v1379, 8
      %v1416 = vpop.permute.xlu0 %1415
      %1417 = vrot.lane.b32.xlu0 %v1382, 8
      %v1418 = vpop.permute.xlu0 %1417
      %1419 = vrot.lane.b32.xlu0 %v1385, 8
      %v1420 = vpop.permute.xlu0 %1419
      %1421 = vrot.lane.b32.xlu0 %v1388, 8
      %v1422 = vpop.permute.xlu0 %1421
      %1423 = vrot.lane.b32.xlu0 %v1391, 8
      %v1424 = vpop.permute.xlu0 %1423
      %1425 = vrot.lane.b32.xlu0 %v1394, 8
      %v1426 = vpop.permute.xlu0 %1425
      %v1459 = vunpack.c.l.b16 %v816
      %v1460 = vunpack.c.l.b16 %v817
      %v1461 = vunpack.c.l.b16 %v818
      %v1462 = vunpack.c.l.b16 %v819
      %v1463 = vunpack.c.l.b16 %v820
      %v1464 = vunpack.c.l.b16 %v821
      %v1465 = vunpack.c.l.b16 %v822
      %v1466 = vunpack.c.l.b16 %v823
      %v1467 = vunpack.c.l.b16 %v824
      %v1468 = vunpack.c.l.b16 %v825
      %v1469 = vunpack.c.l.b16 %v826
      %v1470 = vunpack.c.l.b16 %v827
      %v1471 = vunpack.c.l.b16 %v828
      %v1472 = vunpack.c.l.b16 %v829
      %v1473 = vunpack.c.l.b16 %v830
      %v1474 = vunpack.c.l.b16 %v831
      %v1475 = vunpack.c.l.b16 %v832
      %v1476 = vunpack.c.l.b16 %v833
      %v1477 = vunpack.c.l.b16 %v834
      %v1478 = vunpack.c.l.b16 %v835
      %v1479 = vunpack.c.l.b16 %v836
      %v1480 = vunpack.c.l.b16 %v837
      %v1481 = vunpack.c.l.b16 %v838
      %v1482 = vunpack.c.l.b16 %v839
      %v1483 = vunpack.c.l.b16 %v840
      %v1484 = vunpack.c.l.b16 %v841
      %v1485 = vunpack.c.l.b16 %v842
      %v1486 = vunpack.c.l.b16 %v843
      %v1487 = vunpack.c.l.b16 %v844
      %v1488 = vunpack.c.l.b16 %v845
      %v1489 = vunpack.c.l.b16 %v846
      %v1490 = vunpack.c.l.b16 %v847
      %v1491 = vpack.c.b16 %v1460, %v1459
      %v1492 = vpack.c.b16 %v1462, %v1461
      %v1493 = vpack.c.b16 %v1464, %v1463
      %v1494 = vpack.c.b16 %v1466, %v1465
      %v1495 = vpack.c.b16 %v1468, %v1467
      %v1496 = vpack.c.b16 %v1470, %v1469
      %v1497 = vpack.c.b16 %v1472, %v1471
      %v1498 = vpack.c.b16 %v1474, %v1473
      %v1499 = vpack.c.b16 %v1476, %v1475
      %v1500 = vpack.c.b16 %v1478, %v1477
      %v1501 = vpack.c.b16 %v1480, %v1479
      %v1502 = vpack.c.b16 %v1482, %v1481
      %v1503 = vpack.c.b16 %v1484, %v1483
      %v1504 = vpack.c.b16 %v1486, %v1485
      %v1505 = vpack.c.b16 %v1488, %v1487
      %v1506 = vpack.c.b16 %v1490, %v1489
      %1507 = vrot.lane.b32.xlu0 %v1491, 12
      %v1508 = vpop.permute.xlu0 %1507
      %1509 = vrot.lane.b32.xlu0 %v1492, 12
      %v1510 = vpop.permute.xlu0 %1509
      %1511 = vrot.lane.b32.xlu0 %v1493, 12
      %v1512 = vpop.permute.xlu0 %1511
      %1513 = vrot.lane.b32.xlu0 %v1494, 12
      %v1514 = vpop.permute.xlu0 %1513
      %1515 = vrot.lane.b32.xlu0 %v1495, 12
      %v1516 = vpop.permute.xlu0 %1515
      %1517 = vrot.lane.b32.xlu0 %v1496, 12
      %v1518 = vpop.permute.xlu0 %1517
      %1519 = vrot.lane.b32.xlu0 %v1497, 12
      %v1520 = vpop.permute.xlu0 %1519
      %1521 = vrot.lane.b32.xlu0 %v1498, 12
      %v1522 = vpop.permute.xlu0 %1521
      %1523 = vrot.lane.b32.xlu0 %v1499, 12
      %v1524 = vpop.permute.xlu0 %1523
      %1525 = vrot.lane.b32.xlu0 %v1500, 12
      %v1526 = vpop.permute.xlu0 %1525
      %1527 = vrot.lane.b32.xlu0 %v1501, 12
      %v1528 = vpop.permute.xlu0 %1527
      %1529 = vrot.lane.b32.xlu0 %v1502, 12
      %v1530 = vpop.permute.xlu0 %1529
      %1531 = vrot.lane.b32.xlu0 %v1503, 12
      %v1532 = vpop.permute.xlu0 %1531
      %1533 = vrot.lane.b32.xlu0 %v1504, 12
      %v1534 = vpop.permute.xlu0 %1533
      %1535 = vrot.lane.b32.xlu0 %v1505, 12
      %v1536 = vpop.permute.xlu0 %1535
      %1537 = vrot.lane.b32.xlu0 %v1506, 12
      %v1538 = vpop.permute.xlu0 %1537
      %v1555 = vunpack.c.l.b16 %v848
      %v1556 = vunpack.c.l.b16 %v849
      %v1557 = vunpack.c.l.b16 %v850
      %v1558 = vunpack.c.l.b16 %v851
      %v1559 = vunpack.c.l.b16 %v852
      %v1560 = vunpack.c.l.b16 %v853
      %v1561 = vunpack.c.l.b16 %v854
      %v1562 = vunpack.c.l.b16 %v855
      %v1563 = vunpack.c.l.b16 %v856
      %v1564 = vunpack.c.l.b16 %v857
      %v1565 = vunpack.c.l.b16 %v858
      %v1566 = vunpack.c.l.b16 %v859
      %v1567 = vunpack.c.l.b16 %v860
      %v1568 = vunpack.c.l.b16 %v861
      %v1569 = vunpack.c.l.b16 %v862
      %v1570 = vunpack.c.l.b16 %v863
      %v1571 = vpack.c.b16 %v1555, %v1555
      %v1572 = vpack.c.b16 %v1556, %v1556
      %v1573 = vpack.c.b16 %v1557, %v1557
      %v1574 = vpack.c.b16 %v1558, %v1558
      %v1575 = vpack.c.b16 %v1559, %v1559
      %v1576 = vpack.c.b16 %v1560, %v1560
      %v1577 = vpack.c.b16 %v1561, %v1561
      %v1578 = vpack.c.b16 %v1562, %v1562
      %v1579 = vpack.c.b16 %v1563, %v1563
      %v1580 = vpack.c.b16 %v1564, %v1564
      %v1581 = vpack.c.b16 %v1565, %v1565
      %v1582 = vpack.c.b16 %v1566, %v1566
      %v1583 = vpack.c.b16 %v1567, %v1567
      %v1584 = vpack.c.b16 %v1568, %v1568
      %v1585 = vpack.c.b16 %v1569, %v1569
      %v1586 = vpack.c.b16 %v1570, %v1570
      %v1588 = vshrl.u32 %v1491, 16
      %v1590 = vshll.u32 %v1491, 16
      %v1592 = vrot.slane %v1590, 1
      %v1593 = vor.u32 %v1588, %v1592
      %v1595 = vshll.u32 %v1571, 16
      %v1597 = vrot.slane %v1595, 1
      %v1598 = vsel %vm1073, %v1593, %v1597
      %v1600 = vshrl.u32 %v1492, 16
      %v1602 = vshll.u32 %v1492, 16
      %v1604 = vrot.slane %v1602, 1
      %v1605 = vor.u32 %v1600, %v1604
      %v1607 = vshll.u32 %v1572, 16
      %v1609 = vrot.slane %v1607, 1
      %v1610 = vsel %vm1073, %v1605, %v1609
      %v1612 = vshrl.u32 %v1493, 16
      %v1614 = vshll.u32 %v1493, 16
      %v1616 = vrot.slane %v1614, 1
      %v1617 = vor.u32 %v1612, %v1616
      %v1619 = vshll.u32 %v1573, 16
      %v1621 = vrot.slane %v1619, 1
      %v1622 = vsel %vm1073, %v1617, %v1621
      %v1624 = vshrl.u32 %v1494, 16
      %v1626 = vshll.u32 %v1494, 16
      %v1628 = vrot.slane %v1626, 1
      %v1629 = vor.u32 %v1624, %v1628
      %v1631 = vshll.u32 %v1574, 16
      %v1633 = vrot.slane %v1631, 1
      %v1634 = vsel %vm1073, %v1629, %v1633
      %v1636 = vshrl.u32 %v1495, 16
      %v1638 = vshll.u32 %v1495, 16
      %v1640 = vrot.slane %v1638, 1
      %v1641 = vor.u32 %v1636, %v1640
      %v1643 = vshll.u32 %v1575, 16
      %v1645 = vrot.slane %v1643, 1
      %v1646 = vsel %vm1073, %v1641, %v1645
      %v1648 = vshrl.u32 %v1496, 16
      %v1650 = vshll.u32 %v1496, 16
      %v1652 = vrot.slane %v1650, 1
      %v1653 = vor.u32 %v1648, %v1652
      %v1655 = vshll.u32 %v1576, 16
      %v1657 = vrot.slane %v1655, 1
      %v1658 = vsel %vm1073, %v1653, %v1657
      %v1660 = vshrl.u32 %v1497, 16
      %v1662 = vshll.u32 %v1497, 16
      %v1664 = vrot.slane %v1662, 1
      %v1665 = vor.u32 %v1660, %v1664
      %v1667 = vshll.u32 %v1577, 16
      %v1669 = vrot.slane %v1667, 1
      %v1670 = vsel %vm1073, %v1665, %v1669
      %v1672 = vshrl.u32 %v1498, 16
      %v1674 = vshll.u32 %v1498, 16
      %v1676 = vrot.slane %v1674, 1
      %v1677 = vor.u32 %v1672, %v1676
      %v1679 = vshll.u32 %v1578, 16
      %v1681 = vrot.slane %v1679, 1
      %v1682 = vsel %vm1073, %v1677, %v1681
      %v1684 = vshrl.u32 %v1499, 16
      %v1686 = vshll.u32 %v1499, 16
      %v1688 = vrot.slane %v1686, 1
      %v1689 = vor.u32 %v1684, %v1688
      %v1691 = vshll.u32 %v1579, 16
      %v1693 = vrot.slane %v1691, 1
      %v1694 = vsel %vm1073, %v1689, %v1693
      %v1696 = vshrl.u32 %v1500, 16
      %v1698 = vshll.u32 %v1500, 16
      %v1700 = vrot.slane %v1698, 1
      %v1701 = vor.u32 %v1696, %v1700
      %v1703 = vshll.u32 %v1580, 16
      %v1705 = vrot.slane %v1703, 1
      %v1706 = vsel %vm1073, %v1701, %v1705
      %v1708 = vshrl.u32 %v1501, 16
      %v1710 = vshll.u32 %v1501, 16
      %v1712 = vrot.slane %v1710, 1
      %v1713 = vor.u32 %v1708, %v1712
      %v1715 = vshll.u32 %v1581, 16
      %v1717 = vrot.slane %v1715, 1
      %v1718 = vsel %vm1073, %v1713, %v1717
      %v1720 = vshrl.u32 %v1502, 16
      %v1722 = vshll.u32 %v1502, 16
      %v1724 = vrot.slane %v1722, 1
      %v1725 = vor.u32 %v1720, %v1724
      %v1727 = vshll.u32 %v1582, 16
      %v1729 = vrot.slane %v1727, 1
      %v1730 = vsel %vm1073, %v1725, %v1729
      %v1732 = vshrl.u32 %v1503, 16
      %v1734 = vshll.u32 %v1503, 16
      %v1736 = vrot.slane %v1734, 1
      %v1737 = vor.u32 %v1732, %v1736
      %v1739 = vshll.u32 %v1583, 16
      %v1741 = vrot.slane %v1739, 1
      %v1742 = vsel %vm1073, %v1737, %v1741
      %v1744 = vshrl.u32 %v1504, 16
      %v1746 = vshll.u32 %v1504, 16
      %v1748 = vrot.slane %v1746, 1
      %v1749 = vor.u32 %v1744, %v1748
      %v1751 = vshll.u32 %v1584, 16
      %v1753 = vrot.slane %v1751, 1
      %v1754 = vsel %vm1073, %v1749, %v1753
      %v1756 = vshrl.u32 %v1505, 16
      %v1758 = vshll.u32 %v1505, 16
      %v1760 = vrot.slane %v1758, 1
      %v1761 = vor.u32 %v1756, %v1760
      %v1763 = vshll.u32 %v1585, 16
      %v1765 = vrot.slane %v1763, 1
      %v1766 = vsel %vm1073, %v1761, %v1765
      %v1768 = vshrl.u32 %v1506, 16
      %v1770 = vshll.u32 %v1506, 16
      %v1772 = vrot.slane %v1770, 1
      %v1773 = vor.u32 %v1768, %v1772
      %v1775 = vshll.u32 %v1586, 16
      %v1777 = vrot.slane %v1775, 1
      %v1778 = vsel %vm1073, %v1773, %v1777
      %1779 = vrot.lane.b32.xlu0 %v1598, 16
      %v1780 = vpop.permute.xlu0 %1779
      %1781 = vrot.lane.b32.xlu0 %v1610, 16
      %v1782 = vpop.permute.xlu0 %1781
      %1783 = vrot.lane.b32.xlu0 %v1622, 16
      %v1784 = vpop.permute.xlu0 %1783
      %1785 = vrot.lane.b32.xlu0 %v1634, 16
      %v1786 = vpop.permute.xlu0 %1785
      %1787 = vrot.lane.b32.xlu0 %v1646, 16
      %v1788 = vpop.permute.xlu0 %1787
      %1789 = vrot.lane.b32.xlu0 %v1658, 16
      %v1790 = vpop.permute.xlu0 %1789
      %1791 = vrot.lane.b32.xlu0 %v1670, 16
      %v1792 = vpop.permute.xlu0 %1791
      %1793 = vrot.lane.b32.xlu0 %v1682, 16
      %v1794 = vpop.permute.xlu0 %1793
      %1795 = vrot.lane.b32.xlu0 %v1694, 16
      %v1796 = vpop.permute.xlu0 %1795
      %1797 = vrot.lane.b32.xlu0 %v1706, 16
      %v1798 = vpop.permute.xlu0 %1797
      %1799 = vrot.lane.b32.xlu0 %v1718, 16
      %v1800 = vpop.permute.xlu0 %1799
      %1801 = vrot.lane.b32.xlu0 %v1730, 16
      %v1802 = vpop.permute.xlu0 %1801
      %1803 = vrot.lane.b32.xlu0 %v1742, 16
      %v1804 = vpop.permute.xlu0 %1803
      %1805 = vrot.lane.b32.xlu0 %v1754, 16
      %v1806 = vpop.permute.xlu0 %1805
      %1807 = vrot.lane.b32.xlu0 %v1766, 16
      %v1808 = vpop.permute.xlu0 %1807
      %1809 = vrot.lane.b32.xlu0 %v1778, 16
      %v1810 = vpop.permute.xlu0 %1809
      %v1827 = vunpack.c.l.b16 %v864
      %v1828 = vunpack.c.l.b16 %v865
      %v1829 = vunpack.c.l.b16 %v866
      %v1830 = vunpack.c.l.b16 %v867
      %v1831 = vunpack.c.l.b16 %v868
      %v1832 = vunpack.c.l.b16 %v869
      %v1833 = vunpack.c.l.b16 %v870
      %v1834 = vunpack.c.l.b16 %v871
      %v1835 = vunpack.c.l.b16 %v872
      %v1836 = vunpack.c.l.b16 %v873
      %v1837 = vunpack.c.l.b16 %v874
      %v1838 = vunpack.c.l.b16 %v875
      %v1839 = vunpack.c.l.b16 %v876
      %v1840 = vunpack.c.l.b16 %v877
      %v1841 = vunpack.c.l.b16 %v878
      %v1842 = vunpack.c.l.b16 %v879
      %v1843 = vpack.c.b16 %v1460, %v1827
      %v1844 = vpack.c.b16 %v1462, %v1828
      %v1845 = vpack.c.b16 %v1464, %v1829
      %v1846 = vpack.c.b16 %v1466, %v1830
      %v1847 = vpack.c.b16 %v1468, %v1831
      %v1848 = vpack.c.b16 %v1470, %v1832
      %v1849 = vpack.c.b16 %v1472, %v1833
      %v1850 = vpack.c.b16 %v1474, %v1834
      %v1851 = vpack.c.b16 %v1476, %v1835
      %v1852 = vpack.c.b16 %v1478, %v1836
      %v1853 = vpack.c.b16 %v1480, %v1837
      %v1854 = vpack.c.b16 %v1482, %v1838
      %v1855 = vpack.c.b16 %v1484, %v1839
      %v1856 = vpack.c.b16 %v1486, %v1840
      %v1857 = vpack.c.b16 %v1488, %v1841
      %v1858 = vpack.c.b16 %v1490, %v1842
      %v1859 = vrot.slane %v1843, 1
      %v1860 = vrot.slane %v1571, 1
      %v1861 = vsel %vm1346, %v1859, %v1860
      %v1862 = vrot.slane %v1844, 1
      %v1863 = vrot.slane %v1572, 1
      %v1864 = vsel %vm1346, %v1862, %v1863
      %v1865 = vrot.slane %v1845, 1
      %v1866 = vrot.slane %v1573, 1
      %v1867 = vsel %vm1346, %v1865, %v1866
      %v1868 = vrot.slane %v1846, 1
      %v1869 = vrot.slane %v1574, 1
      %v1870 = vsel %vm1346, %v1868, %v1869
      %v1871 = vrot.slane %v1847, 1
      %v1872 = vrot.slane %v1575, 1
      %v1873 = vsel %vm1346, %v1871, %v1872
      %v1874 = vrot.slane %v1848, 1
      %v1875 = vrot.slane %v1576, 1
      %v1876 = vsel %vm1346, %v1874, %v1875
      %v1877 = vrot.slane %v1849, 1
      %v1878 = vrot.slane %v1577, 1
      %v1879 = vsel %vm1346, %v1877, %v1878
      %v1880 = vrot.slane %v1850, 1
      %v1881 = vrot.slane %v1578, 1
      %v1882 = vsel %vm1346, %v1880, %v1881
      %v1883 = vrot.slane %v1851, 1
      %v1884 = vrot.slane %v1579, 1
      %v1885 = vsel %vm1346, %v1883, %v1884
      %v1886 = vrot.slane %v1852, 1
      %v1887 = vrot.slane %v1580, 1
      %v1888 = vsel %vm1346, %v1886, %v1887
      %v1889 = vrot.slane %v1853, 1
      %v1890 = vrot.slane %v1581, 1
      %v1891 = vsel %vm1346, %v1889, %v1890
      %v1892 = vrot.slane %v1854, 1
      %v1893 = vrot.slane %v1582, 1
      %v1894 = vsel %vm1346, %v1892, %v1893
      %v1895 = vrot.slane %v1855, 1
      %v1896 = vrot.slane %v1583, 1
      %v1897 = vsel %vm1346, %v1895, %v1896
      %v1898 = vrot.slane %v1856, 1
      %v1899 = vrot.slane %v1584, 1
      %v1900 = vsel %vm1346, %v1898, %v1899
      %v1901 = vrot.slane %v1857, 1
      %v1902 = vrot.slane %v1585, 1
      %v1903 = vsel %vm1346, %v1901, %v1902
      %v1904 = vrot.slane %v1858, 1
      %v1905 = vrot.slane %v1586, 1
      %v1906 = vsel %vm1346, %v1904, %v1905
      %1907 = vrot.lane.b32.xlu0 %v1861, 20
      %v1908 = vpop.permute.xlu0 %1907
      %1909 = vrot.lane.b32.xlu0 %v1864, 20
      %v1910 = vpop.permute.xlu0 %1909
      %1911 = vrot.lane.b32.xlu0 %v1867, 20
      %v1912 = vpop.permute.xlu0 %1911
      %1913 = vrot.lane.b32.xlu0 %v1870, 20
      %v1914 = vpop.permute.xlu0 %1913
      %1915 = vrot.lane.b32.xlu0 %v1873, 20
      %v1916 = vpop.permute.xlu0 %1915
      %1917 = vrot.lane.b32.xlu0 %v1876, 20
      %v1918 = vpop.permute.xlu0 %1917
      %1919 = vrot.lane.b32.xlu0 %v1879, 20
      %v1920 = vpop.permute.xlu0 %1919
      %1921 = vrot.lane.b32.xlu0 %v1882, 20
      %v1922 = vpop.permute.xlu0 %1921
      %1923 = vrot.lane.b32.xlu0 %v1885, 20
      %v1924 = vpop.permute.xlu0 %1923
      %1925 = vrot.lane.b32.xlu0 %v1888, 20
      %v1926 = vpop.permute.xlu0 %1925
      %1927 = vrot.lane.b32.xlu0 %v1891, 20
      %v1928 = vpop.permute.xlu0 %1927
      %1929 = vrot.lane.b32.xlu0 %v1894, 20
      %v1930 = vpop.permute.xlu0 %1929
      %1931 = vrot.lane.b32.xlu0 %v1897, 20
      %v1932 = vpop.permute.xlu0 %1931
      %1933 = vrot.lane.b32.xlu0 %v1900, 20
      %v1934 = vpop.permute.xlu0 %1933
      %1935 = vrot.lane.b32.xlu0 %v1903, 20
      %v1936 = vpop.permute.xlu0 %1935
      %1937 = vrot.lane.b32.xlu0 %v1906, 20
      %v1938 = vpop.permute.xlu0 %1937
      %v1971 = vunpack.c.l.b16 %v881
      %v1972 = vunpack.c.l.b16 %v882
      %v1973 = vunpack.c.l.b16 %v883
      %v1974 = vunpack.c.l.b16 %v884
      %v1975 = vunpack.c.l.b16 %v885
      %v1976 = vunpack.c.l.b16 %v886
      %v1977 = vunpack.c.l.b16 %v887
      %v1978 = vunpack.c.l.b16 %v888
      %v1979 = vunpack.c.l.b16 %v889
      %v1980 = vunpack.c.l.b16 %v890
      %v1981 = vunpack.c.l.b16 %v891
      %v1982 = vunpack.c.l.b16 %v892
      %v1983 = vunpack.c.l.b16 %v893
      %v1984 = vunpack.c.l.b16 %v894
      %v1985 = vunpack.c.l.b16 %v895
      %v1986 = vunpack.c.l.b16 %v896
      %v1987 = vunpack.c.l.b16 %v897
      %v1988 = vunpack.c.l.b16 %v898
      %v1989 = vunpack.c.l.b16 %v899
      %v1990 = vunpack.c.l.b16 %v900
      %v1991 = vunpack.c.l.b16 %v901
      %v1992 = vunpack.c.l.b16 %v902
      %v1993 = vunpack.c.l.b16 %v903
      %v1994 = vunpack.c.l.b16 %v904
      %v1995 = vunpack.c.l.b16 %v905
      %v1996 = vunpack.c.l.b16 %v906
      %v1997 = vunpack.c.l.b16 %v907
      %v1998 = vunpack.c.l.b16 %v908
      %v1999 = vunpack.c.l.b16 %v909
      %v2000 = vunpack.c.l.b16 %v910
      %v2001 = vunpack.c.l.b16 %v911
      %v2002 = vunpack.c.l.b16 %v912
      %v2003 = vpack.c.b16 %v1972, %v1971
      %v2004 = vpack.c.b16 %v1974, %v1973
      %v2005 = vpack.c.b16 %v1976, %v1975
      %v2006 = vpack.c.b16 %v1978, %v1977
      %v2007 = vpack.c.b16 %v1980, %v1979
      %v2008 = vpack.c.b16 %v1982, %v1981
      %v2009 = vpack.c.b16 %v1984, %v1983
      %v2010 = vpack.c.b16 %v1986, %v1985
      %v2011 = vpack.c.b16 %v1988, %v1987
      %v2012 = vpack.c.b16 %v1990, %v1989
      %v2013 = vpack.c.b16 %v1992, %v1991
      %v2014 = vpack.c.b16 %v1994, %v1993
      %v2015 = vpack.c.b16 %v1996, %v1995
      %v2016 = vpack.c.b16 %v1998, %v1997
      %v2017 = vpack.c.b16 %v2000, %v1999
      %v2018 = vpack.c.b16 %v2002, %v2001
      %2019 = vrot.lane.b32.xlu0 %v2003, 24
      %v2020 = vpop.permute.xlu0 %2019
      %2021 = vrot.lane.b32.xlu0 %v2004, 24
      %v2022 = vpop.permute.xlu0 %2021
      %2023 = vrot.lane.b32.xlu0 %v2005, 24
      %v2024 = vpop.permute.xlu0 %2023
      %2025 = vrot.lane.b32.xlu0 %v2006, 24
      %v2026 = vpop.permute.xlu0 %2025
      %2027 = vrot.lane.b32.xlu0 %v2007, 24
      %v2028 = vpop.permute.xlu0 %2027
      %2029 = vrot.lane.b32.xlu0 %v2008, 24
      %v2030 = vpop.permute.xlu0 %2029
      %2031 = vrot.lane.b32.xlu0 %v2009, 24
      %v2032 = vpop.permute.xlu0 %2031
      %2033 = vrot.lane.b32.xlu0 %v2010, 24
      %v2034 = vpop.permute.xlu0 %2033
      %2035 = vrot.lane.b32.xlu0 %v2011, 24
      %v2036 = vpop.permute.xlu0 %2035
      %2037 = vrot.lane.b32.xlu0 %v2012, 24
      %v2038 = vpop.permute.xlu0 %2037
      %2039 = vrot.lane.b32.xlu0 %v2013, 24
      %v2040 = vpop.permute.xlu0 %2039
      %2041 = vrot.lane.b32.xlu0 %v2014, 24
      %v2042 = vpop.permute.xlu0 %2041
      %2043 = vrot.lane.b32.xlu0 %v2015, 24
      %v2044 = vpop.permute.xlu0 %2043
      %2045 = vrot.lane.b32.xlu0 %v2016, 24
      %v2046 = vpop.permute.xlu0 %2045
      %2047 = vrot.lane.b32.xlu0 %v2017, 24
      %v2048 = vpop.permute.xlu0 %2047
      %2049 = vrot.lane.b32.xlu0 %v2018, 24
      %v2050 = vpop.permute.xlu0 %2049
      %v2067 = vunpack.c.l.b16 %v913
      %v2068 = vunpack.c.l.b16 %v914
      %v2069 = vunpack.c.l.b16 %v915
      %v2070 = vunpack.c.l.b16 %v916
      %v2071 = vunpack.c.l.b16 %v917
      %v2072 = vunpack.c.l.b16 %v918
      %v2073 = vunpack.c.l.b16 %v919
      %v2074 = vunpack.c.l.b16 %v920
      %v2075 = vunpack.c.l.b16 %v921
      %v2076 = vunpack.c.l.b16 %v922
      %v2077 = vunpack.c.l.b16 %v923
      %v2078 = vunpack.c.l.b16 %v924
      %v2079 = vunpack.c.l.b16 %v925
      %v2080 = vunpack.c.l.b16 %v926
      %v2081 = vunpack.c.l.b16 %v927
      %v2082 = vunpack.c.l.b16 %v928
      %v2083 = vpack.c.b16 %v2067, %v2067
      %v2084 = vpack.c.b16 %v2068, %v2068
      %v2085 = vpack.c.b16 %v2069, %v2069
      %v2086 = vpack.c.b16 %v2070, %v2070
      %v2087 = vpack.c.b16 %v2071, %v2071
      %v2088 = vpack.c.b16 %v2072, %v2072
      %v2089 = vpack.c.b16 %v2073, %v2073
      %v2090 = vpack.c.b16 %v2074, %v2074
      %v2091 = vpack.c.b16 %v2075, %v2075
      %v2092 = vpack.c.b16 %v2076, %v2076
      %v2093 = vpack.c.b16 %v2077, %v2077
      %v2094 = vpack.c.b16 %v2078, %v2078
      %v2095 = vpack.c.b16 %v2079, %v2079
      %v2096 = vpack.c.b16 %v2080, %v2080
      %v2097 = vpack.c.b16 %v2081, %v2081
      %v2098 = vpack.c.b16 %v2082, %v2082
      %v2100 = vshrl.u32 %v2003, 16
      %v2102 = vshll.u32 %v2003, 16
      %v2104 = vrot.slane %v2102, 1
      %v2105 = vor.u32 %v2100, %v2104
      %v2107 = vshll.u32 %v2083, 16
      %v2109 = vrot.slane %v2107, 1
      %v2110 = vsel %vm1073, %v2105, %v2109
      %v2112 = vshrl.u32 %v2004, 16
      %v2114 = vshll.u32 %v2004, 16
      %v2116 = vrot.slane %v2114, 1
      %v2117 = vor.u32 %v2112, %v2116
      %v2119 = vshll.u32 %v2084, 16
      %v2121 = vrot.slane %v2119, 1
      %v2122 = vsel %vm1073, %v2117, %v2121
      %v2124 = vshrl.u32 %v2005, 16
      %v2126 = vshll.u32 %v2005, 16
      %v2128 = vrot.slane %v2126, 1
      %v2129 = vor.u32 %v2124, %v2128
      %v2131 = vshll.u32 %v2085, 16
      %v2133 = vrot.slane %v2131, 1
      %v2134 = vsel %vm1073, %v2129, %v2133
      %v2136 = vshrl.u32 %v2006, 16
      %v2138 = vshll.u32 %v2006, 16
      %v2140 = vrot.slane %v2138, 1
      %v2141 = vor.u32 %v2136, %v2140
      %v2143 = vshll.u32 %v2086, 16
      %v2145 = vrot.slane %v2143, 1
      %v2146 = vsel %vm1073, %v2141, %v2145
      %v2148 = vshrl.u32 %v2007, 16
      %v2150 = vshll.u32 %v2007, 16
      %v2152 = vrot.slane %v2150, 1
      %v2153 = vor.u32 %v2148, %v2152
      %v2155 = vshll.u32 %v2087, 16
      %v2157 = vrot.slane %v2155, 1
      %v2158 = vsel %vm1073, %v2153, %v2157
      %v2160 = vshrl.u32 %v2008, 16
      %v2162 = vshll.u32 %v2008, 16
      %v2164 = vrot.slane %v2162, 1
      %v2165 = vor.u32 %v2160, %v2164
      %v2167 = vshll.u32 %v2088, 16
      %v2169 = vrot.slane %v2167, 1
      %v2170 = vsel %vm1073, %v2165, %v2169
      %v2172 = vshrl.u32 %v2009, 16
      %v2174 = vshll.u32 %v2009, 16
      %v2176 = vrot.slane %v2174, 1
      %v2177 = vor.u32 %v2172, %v2176
      %v2179 = vshll.u32 %v2089, 16
      %v2181 = vrot.slane %v2179, 1
      %v2182 = vsel %vm1073, %v2177, %v2181
      %v2184 = vshrl.u32 %v2010, 16
      %v2186 = vshll.u32 %v2010, 16
      %v2188 = vrot.slane %v2186, 1
      %v2189 = vor.u32 %v2184, %v2188
      %v2191 = vshll.u32 %v2090, 16
      %v2193 = vrot.slane %v2191, 1
      %v2194 = vsel %vm1073, %v2189, %v2193
      %v2196 = vshrl.u32 %v2011, 16
      %v2198 = vshll.u32 %v2011, 16
      %v2200 = vrot.slane %v2198, 1
      %v2201 = vor.u32 %v2196, %v2200
      %v2203 = vshll.u32 %v2091, 16
      %v2205 = vrot.slane %v2203, 1
      %v2206 = vsel %vm1073, %v2201, %v2205
      %v2208 = vshrl.u32 %v2012, 16
      %v2210 = vshll.u32 %v2012, 16
      %v2212 = vrot.slane %v2210, 1
      %v2213 = vor.u32 %v2208, %v2212
      %v2215 = vshll.u32 %v2092, 16
      %v2217 = vrot.slane %v2215, 1
      %v2218 = vsel %vm1073, %v2213, %v2217
      %v2220 = vshrl.u32 %v2013, 16
      %v2222 = vshll.u32 %v2013, 16
      %v2224 = vrot.slane %v2222, 1
      %v2225 = vor.u32 %v2220, %v2224
      %v2227 = vshll.u32 %v2093, 16
      %v2229 = vrot.slane %v2227, 1
      %v2230 = vsel %vm1073, %v2225, %v2229
      %v2232 = vshrl.u32 %v2014, 16
      %v2234 = vshll.u32 %v2014, 16
      %v2236 = vrot.slane %v2234, 1
      %v2237 = vor.u32 %v2232, %v2236
      %v2239 = vshll.u32 %v2094, 16
      %v2241 = vrot.slane %v2239, 1
      %v2242 = vsel %vm1073, %v2237, %v2241
      %v2244 = vshrl.u32 %v2015, 16
      %v2246 = vshll.u32 %v2015, 16
      %v2248 = vrot.slane %v2246, 1
      %v2249 = vor.u32 %v2244, %v2248
      %v2251 = vshll.u32 %v2095, 16
      %v2253 = vrot.slane %v2251, 1
      %v2254 = vsel %vm1073, %v2249, %v2253
      %v2256 = vshrl.u32 %v2016, 16
      %v2258 = vshll.u32 %v2016, 16
      %v2260 = vrot.slane %v2258, 1
      %v2261 = vor.u32 %v2256, %v2260
      %v2263 = vshll.u32 %v2096, 16
      %v2265 = vrot.slane %v2263, 1
      %v2266 = vsel %vm1073, %v2261, %v2265
      %v2268 = vshrl.u32 %v2017, 16
      %v2270 = vshll.u32 %v2017, 16
      %v2272 = vrot.slane %v2270, 1
      %v2273 = vor.u32 %v2268, %v2272
      %v2275 = vshll.u32 %v2097, 16
      %v2277 = vrot.slane %v2275, 1
      %v2278 = vsel %vm1073, %v2273, %v2277
      %v2280 = vshrl.u32 %v2018, 16
      %v2282 = vshll.u32 %v2018, 16
      %v2284 = vrot.slane %v2282, 1
      %v2285 = vor.u32 %v2280, %v2284
      %v2287 = vshll.u32 %v2098, 16
      %v2289 = vrot.slane %v2287, 1
      %v2290 = vsel %vm1073, %v2285, %v2289
      %2291 = vrot.lane.b32.xlu0 %v2110, 28
      %v2292 = vpop.permute.xlu0 %2291
      %2293 = vrot.lane.b32.xlu0 %v2122, 28
      %v2294 = vpop.permute.xlu0 %2293
      %2295 = vrot.lane.b32.xlu0 %v2134, 28
      %v2296 = vpop.permute.xlu0 %2295
      %2297 = vrot.lane.b32.xlu0 %v2146, 28
      %v2298 = vpop.permute.xlu0 %2297
      %2299 = vrot.lane.b32.xlu0 %v2158, 28
      %v2300 = vpop.permute.xlu0 %2299
      %2301 = vrot.lane.b32.xlu0 %v2170, 28
      %v2302 = vpop.permute.xlu0 %2301
      %2303 = vrot.lane.b32.xlu0 %v2182, 28
      %v2304 = vpop.permute.xlu0 %2303
      %2305 = vrot.lane.b32.xlu0 %v2194, 28
      %v2306 = vpop.permute.xlu0 %2305
      %2307 = vrot.lane.b32.xlu0 %v2206, 28
      %v2308 = vpop.permute.xlu0 %2307
      %2309 = vrot.lane.b32.xlu0 %v2218, 28
      %v2310 = vpop.permute.xlu0 %2309
      %2311 = vrot.lane.b32.xlu0 %v2230, 28
      %v2312 = vpop.permute.xlu0 %2311
      %2313 = vrot.lane.b32.xlu0 %v2242, 28
      %v2314 = vpop.permute.xlu0 %2313
      %2315 = vrot.lane.b32.xlu0 %v2254, 28
      %v2316 = vpop.permute.xlu0 %2315
      %2317 = vrot.lane.b32.xlu0 %v2266, 28
      %v2318 = vpop.permute.xlu0 %2317
      %2319 = vrot.lane.b32.xlu0 %v2278, 28
      %v2320 = vpop.permute.xlu0 %2319
      %2321 = vrot.lane.b32.xlu0 %v2290, 28
      %v2322 = vpop.permute.xlu0 %2321
      %v2339 = vunpack.c.l.b16 %v929
      %v2340 = vunpack.c.l.b16 %v930
      %v2341 = vunpack.c.l.b16 %v931
      %v2342 = vunpack.c.l.b16 %v932
      %v2343 = vunpack.c.l.b16 %v933
      %v2344 = vunpack.c.l.b16 %v934
      %v2345 = vunpack.c.l.b16 %v935
      %v2346 = vunpack.c.l.b16 %v936
      %v2347 = vunpack.c.l.b16 %v937
      %v2348 = vunpack.c.l.b16 %v938
      %v2349 = vunpack.c.l.b16 %v939
      %v2350 = vunpack.c.l.b16 %v940
      %v2351 = vunpack.c.l.b16 %v941
      %v2352 = vunpack.c.l.b16 %v942
      %v2353 = vunpack.c.l.b16 %v943
      %v2354 = vunpack.c.l.b16 %v944
      %v2355 = vpack.c.b16 %v1972, %v2339
      %v2356 = vpack.c.b16 %v1974, %v2340
      %v2357 = vpack.c.b16 %v1976, %v2341
      %v2358 = vpack.c.b16 %v1978, %v2342
      %v2359 = vpack.c.b16 %v1980, %v2343
      %v2360 = vpack.c.b16 %v1982, %v2344
      %v2361 = vpack.c.b16 %v1984, %v2345
      %v2362 = vpack.c.b16 %v1986, %v2346
      %v2363 = vpack.c.b16 %v1988, %v2347
      %v2364 = vpack.c.b16 %v1990, %v2348
      %v2365 = vpack.c.b16 %v1992, %v2349
      %v2366 = vpack.c.b16 %v1994, %v2350
      %v2367 = vpack.c.b16 %v1996, %v2351
      %v2368 = vpack.c.b16 %v1998, %v2352
      %v2369 = vpack.c.b16 %v2000, %v2353
      %v2370 = vpack.c.b16 %v2002, %v2354
      %v2371 = vrot.slane %v2355, 1
      %v2372 = vrot.slane %v2083, 1
      %v2373 = vsel %vm1346, %v2371, %v2372
      %v2374 = vrot.slane %v2356, 1
      %v2375 = vrot.slane %v2084, 1
      %v2376 = vsel %vm1346, %v2374, %v2375
      %v2377 = vrot.slane %v2357, 1
      %v2378 = vrot.slane %v2085, 1
      %v2379 = vsel %vm1346, %v2377, %v2378
      %v2380 = vrot.slane %v2358, 1
      %v2381 = vrot.slane %v2086, 1
      %v2382 = vsel %vm1346, %v2380, %v2381
      %v2383 = vrot.slane %v2359, 1
      %v2384 = vrot.slane %v2087, 1
      %v2385 = vsel %vm1346, %v2383, %v2384
      %v2386 = vrot.slane %v2360, 1
      %v2387 = vrot.slane %v2088, 1
      %v2388 = vsel %vm1346, %v2386, %v2387
      %v2389 = vrot.slane %v2361, 1
      %v2390 = vrot.slane %v2089, 1
      %v2391 = vsel %vm1346, %v2389, %v2390
      %v2392 = vrot.slane %v2362, 1
      %v2393 = vrot.slane %v2090, 1
      %v2394 = vsel %vm1346, %v2392, %v2393
      %v2395 = vrot.slane %v2363, 1
      %v2396 = vrot.slane %v2091, 1
      %v2397 = vsel %vm1346, %v2395, %v2396
      %v2398 = vrot.slane %v2364, 1
      %v2399 = vrot.slane %v2092, 1
      %v2400 = vsel %vm1346, %v2398, %v2399
      %v2401 = vrot.slane %v2365, 1
      %v2402 = vrot.slane %v2093, 1
      %v2403 = vsel %vm1346, %v2401, %v2402
      %v2404 = vrot.slane %v2366, 1
      %v2405 = vrot.slane %v2094, 1
      %v2406 = vsel %vm1346, %v2404, %v2405
      %v2407 = vrot.slane %v2367, 1
      %v2408 = vrot.slane %v2095, 1
      %v2409 = vsel %vm1346, %v2407, %v2408
      %v2410 = vrot.slane %v2368, 1
      %v2411 = vrot.slane %v2096, 1
      %v2412 = vsel %vm1346, %v2410, %v2411
      %v2413 = vrot.slane %v2369, 1
      %v2414 = vrot.slane %v2097, 1
      %v2415 = vsel %vm1346, %v2413, %v2414
      %v2416 = vrot.slane %v2370, 1
      %v2417 = vrot.slane %v2098, 1
      %v2418 = vsel %vm1346, %v2416, %v2417
      %2419 = vrot.lane.b32.xlu0 %v2373, 32
      %v2420 = vpop.permute.xlu0 %2419
      %2421 = vrot.lane.b32.xlu0 %v2376, 32
      %v2422 = vpop.permute.xlu0 %2421
      %2423 = vrot.lane.b32.xlu0 %v2379, 32
      %v2424 = vpop.permute.xlu0 %2423
      %2425 = vrot.lane.b32.xlu0 %v2382, 32
      %v2426 = vpop.permute.xlu0 %2425
      %2427 = vrot.lane.b32.xlu0 %v2385, 32
      %v2428 = vpop.permute.xlu0 %2427
      %2429 = vrot.lane.b32.xlu0 %v2388, 32
      %v2430 = vpop.permute.xlu0 %2429
      %2431 = vrot.lane.b32.xlu0 %v2391, 32
      %v2432 = vpop.permute.xlu0 %2431
      %2433 = vrot.lane.b32.xlu0 %v2394, 32
      %v2434 = vpop.permute.xlu0 %2433
      %2435 = vrot.lane.b32.xlu0 %v2397, 32
      %v2436 = vpop.permute.xlu0 %2435
      %2437 = vrot.lane.b32.xlu0 %v2400, 32
      %v2438 = vpop.permute.xlu0 %2437
      %2439 = vrot.lane.b32.xlu0 %v2403, 32
      %v2440 = vpop.permute.xlu0 %2439
      %2441 = vrot.lane.b32.xlu0 %v2406, 32
      %v2442 = vpop.permute.xlu0 %2441
      %2443 = vrot.lane.b32.xlu0 %v2409, 32
      %v2444 = vpop.permute.xlu0 %2443
      %2445 = vrot.lane.b32.xlu0 %v2412, 32
      %v2446 = vpop.permute.xlu0 %2445
      %2447 = vrot.lane.b32.xlu0 %v2415, 32
      %v2448 = vpop.permute.xlu0 %2447
      %2449 = vrot.lane.b32.xlu0 %v2418, 32
      %v2450 = vpop.permute.xlu0 %2449
      %vm2451 = vcmask 31744
      %v2453 = vsel %vm2451, %v1009, %v1267
      %v2455 = vsel %vm2451, %v1010, %v1269
      %v2457 = vsel %vm2451, %v1011, %v1271
      %v2459 = vsel %vm2451, %v1012, %v1273
      %v2461 = vsel %vm2451, %v1013, %v1275
      %v2463 = vsel %vm2451, %v1014, %v1277
      %v2465 = vsel %vm2451, %v1015, %v1279
      %v2467 = vsel %vm2451, %v1016, %v1281
      %v2469 = vsel %vm2451, %v1017, %v1283
      %v2471 = vsel %vm2451, %v1018, %v1285
      %v2473 = vsel %vm2451, %v1019, %v1287
      %v2475 = vsel %vm2451, %v1020, %v1289
      %v2477 = vsel %vm2451, %v1021, %v1291
      %v2479 = vsel %vm2451, %v1022, %v1293
      %v2481 = vsel %vm2451, %v1023, %v1295
      %v2483 = vsel %vm2451, %v1024, %v1297
      %vm2484 = vcmask 64512
      %v2486 = vsel %vm2484, %v2453, %v1396
      %v2488 = vsel %vm2484, %v2455, %v1398
      %v2490 = vsel %vm2484, %v2457, %v1400
      %v2492 = vsel %vm2484, %v2459, %v1402
      %v2494 = vsel %vm2484, %v2461, %v1404
      %v2496 = vsel %vm2484, %v2463, %v1406
      %v2498 = vsel %vm2484, %v2465, %v1408
      %v2500 = vsel %vm2484, %v2467, %v1410
      %v2502 = vsel %vm2484, %v2469, %v1412
      %v2504 = vsel %vm2484, %v2471, %v1414
      %v2506 = vsel %vm2484, %v2473, %v1416
      %v2508 = vsel %vm2484, %v2475, %v1418
      %v2510 = vsel %vm2484, %v2477, %v1420
      %v2512 = vsel %vm2484, %v2479, %v1422
      %v2514 = vsel %vm2484, %v2481, %v1424
      %v2516 = vsel %vm2484, %v2483, %v1426
      %vm2517 = vcmask 97280
      %v2519 = vsel %vm2517, %v2486, %v1508
      %v2521 = vsel %vm2517, %v2488, %v1510
      %v2523 = vsel %vm2517, %v2490, %v1512
      %v2525 = vsel %vm2517, %v2492, %v1514
      %v2527 = vsel %vm2517, %v2494, %v1516
      %v2529 = vsel %vm2517, %v2496, %v1518
      %v2531 = vsel %vm2517, %v2498, %v1520
      %v2533 = vsel %vm2517, %v2500, %v1522
      %v2535 = vsel %vm2517, %v2502, %v1524
      %v2537 = vsel %vm2517, %v2504, %v1526
      %v2539 = vsel %vm2517, %v2506, %v1528
      %v2541 = vsel %vm2517, %v2508, %v1530
      %v2543 = vsel %vm2517, %v2510, %v1532
      %v2545 = vsel %vm2517, %v2512, %v1534
      %v2547 = vsel %vm2517, %v2514, %v1536
      %v2549 = vsel %vm2517, %v2516, %v1538
      %vm2550 = vcmask 130048
      %v2552 = vsel %vm2550, %v2519, %v1780
      %v2554 = vsel %vm2550, %v2521, %v1782
      %v2556 = vsel %vm2550, %v2523, %v1784
      %v2558 = vsel %vm2550, %v2525, %v1786
      %v2560 = vsel %vm2550, %v2527, %v1788
      %v2562 = vsel %vm2550, %v2529, %v1790
      %v2564 = vsel %vm2550, %v2531, %v1792
      %v2566 = vsel %vm2550, %v2533, %v1794
      %v2568 = vsel %vm2550, %v2535, %v1796
      %v2570 = vsel %vm2550, %v2537, %v1798
      %v2572 = vsel %vm2550, %v2539, %v1800
      %v2574 = vsel %vm2550, %v2541, %v1802
      %v2576 = vsel %vm2550, %v2543, %v1804
      %v2578 = vsel %vm2550, %v2545, %v1806
      %v2580 = vsel %vm2550, %v2547, %v1808
      %v2582 = vsel %vm2550, %v2549, %v1810
      %vm2583 = vcmask 162816
      %v2585 = vsel %vm2583, %v2552, %v1908
      %v2587 = vsel %vm2583, %v2554, %v1910
      %v2589 = vsel %vm2583, %v2556, %v1912
      %v2591 = vsel %vm2583, %v2558, %v1914
      %v2593 = vsel %vm2583, %v2560, %v1916
      %v2595 = vsel %vm2583, %v2562, %v1918
      %v2597 = vsel %vm2583, %v2564, %v1920
      %v2599 = vsel %vm2583, %v2566, %v1922
      %v2601 = vsel %vm2583, %v2568, %v1924
      %v2603 = vsel %vm2583, %v2570, %v1926
      %v2605 = vsel %vm2583, %v2572, %v1928
      %v2607 = vsel %vm2583, %v2574, %v1930
      %v2609 = vsel %vm2583, %v2576, %v1932
      %v2611 = vsel %vm2583, %v2578, %v1934
      %v2613 = vsel %vm2583, %v2580, %v1936
      %v2615 = vsel %vm2583, %v2582, %v1938
      %vm2616 = vcmask 195584
      %v2618 = vsel %vm2616, %v2585, %v2020
      %v2620 = vsel %vm2616, %v2587, %v2022
      %v2622 = vsel %vm2616, %v2589, %v2024
      %v2624 = vsel %vm2616, %v2591, %v2026
      %v2626 = vsel %vm2616, %v2593, %v2028
      %v2628 = vsel %vm2616, %v2595, %v2030
      %v2630 = vsel %vm2616, %v2597, %v2032
      %v2632 = vsel %vm2616, %v2599, %v2034
      %v2634 = vsel %vm2616, %v2601, %v2036
      %v2636 = vsel %vm2616, %v2603, %v2038
      %v2638 = vsel %vm2616, %v2605, %v2040
      %v2640 = vsel %vm2616, %v2607, %v2042
      %v2642 = vsel %vm2616, %v2609, %v2044
      %v2644 = vsel %vm2616, %v2611, %v2046
      %v2646 = vsel %vm2616, %v2613, %v2048
      %v2648 = vsel %vm2616, %v2615, %v2050
      %vm2649 = vcmask 228352
      %v2651 = vsel %vm2649, %v2618, %v2292
      %v2653 = vsel %vm2649, %v2620, %v2294
      %v2655 = vsel %vm2649, %v2622, %v2296
      %v2657 = vsel %vm2649, %v2624, %v2298
      %v2659 = vsel %vm2649, %v2626, %v2300
      %v2661 = vsel %vm2649, %v2628, %v2302
      %v2663 = vsel %vm2649, %v2630, %v2304
      %v2665 = vsel %vm2649, %v2632, %v2306
      %v2667 = vsel %vm2649, %v2634, %v2308
      %v2669 = vsel %vm2649, %v2636, %v2310
      %v2671 = vsel %vm2649, %v2638, %v2312
      %v2673 = vsel %vm2649, %v2640, %v2314
      %v2675 = vsel %vm2649, %v2642, %v2316
      %v2677 = vsel %vm2649, %v2644, %v2318
      %v2679 = vsel %vm2649, %v2646, %v2320
      %v2681 = vsel %vm2649, %v2648, %v2322
      %vm2682 = vcmask 261120
      %v2684 = vsel %vm2682, %v2651, %v2420
      %v2686 = vsel %vm2682, %v2653, %v2422
      %v2688 = vsel %vm2682, %v2655, %v2424
      %v2690 = vsel %vm2682, %v2657, %v2426
      %v2692 = vsel %vm2682, %v2659, %v2428
      %v2694 = vsel %vm2682, %v2661, %v2430
      %v2696 = vsel %vm2682, %v2663, %v2432
      %v2698 = vsel %vm2682, %v2665, %v2434
      %v2700 = vsel %vm2682, %v2667, %v2436
      %v2702 = vsel %vm2682, %v2669, %v2438
      %v2704 = vsel %vm2682, %v2671, %v2440
      %v2706 = vsel %vm2682, %v2673, %v2442
      %v2708 = vsel %vm2682, %v2675, %v2444
      %v2710 = vsel %vm2682, %v2677, %v2446
      %v2712 = vsel %vm2682, %v2679, %v2448
      %v2714 = vsel %vm2682, %v2681, %v2450
      %v2715 = vld [vmem:[%s210] sm:$0xf]
      %v2716 = vld [vmem:[%s210 + $0x4] sm:$0xf]
      %v2717 = vld [vmem:[%s210 + $0x8] sm:$0xf]
      %v2718 = vld [vmem:[%s210 + $0xc] sm:$0xf]
      %v2719 = vld [vmem:[%s210 + $0x10] sm:$0x3]
      %v2720 = vld [vmem:[%s213] sm:$0x1]
      %v2722 = vlaneseq
      %v2723 = vshrl.u32 %v2722, 7
      %v2724 = vsub.s32 0, %v2723
      %v2725 = vrot.slane %v2720, %v2724
      %v2732 = vunpack.c.l.b16 %v2715
      %v2733 = vunpack.c.l.b16 %v2716
      %v2734 = vunpack.c.l.b16 %v2717
      %v2735 = vunpack.c.l.b16 %v2718
      %v2736 = vunpack.c.l.b16 %v2719
      %v2737 = vpack.c.b16 %v2733, %v2732
      %v2738 = vpack.c.b16 %v2735, %v2734
      %v2739 = vpack.c.b16 %v2736, %v2736
      %vm2742 = vcmask 293888
      %v2743 = vsel %vm2742, %v2684, 0
      %v2745 = vsel %vm2742, %v2686, 0
      %v2747 = vsel %vm2742, %v2688, 0
      %v2749 = vsel %vm2742, %v2690, 0
      %v2751 = vsel %vm2742, %v2692, 0
      %v2753 = vsel %vm2742, %v2694, 0
      %v2755 = vsel %vm2742, %v2696, 0
      %v2757 = vsel %vm2742, %v2698, 0
      %v2759 = vsel %vm2742, %v2700, 0
      %v2761 = vsel %vm2742, %v2702, 0
      %v2763 = vsel %vm2742, %v2704, 0
      %v2765 = vsel %vm2742, %v2706, 0
      %v2767 = vsel %vm2742, %v2708, 0
      %v2769 = vsel %vm2742, %v2710, 0
      %v2771 = vsel %vm2742, %v2712, 0
      %v2773 = vsel %vm2742, %v2714, 0
      %vm2775 = vcmask 1041408
      %v2777 = vsel %vm2775, %v2739, 0
      %2779 = vmatprep.subr.bf16.mxu0 0
      %2780 = vmatpush1.bf16.msra.mxu0 0
      %2781 = vmatprep.subr.bf16.mxu0 0
      %2782 = vmatpush1.bf16.msra.mxu0 0
      %2783 = vmatprep.subr.bf16.mxu0 0
      %2784 = vmatpush1.bf16.msra.mxu0 0
      %2785 = vmatprep.subr.bf16.mxu0 0
      %2786 = vmatpush1.bf16.msra.mxu0 0
      %2787 = vmatprep.subr.bf16.mxu0 0
      %2788 = vmatpush1.bf16.msra.mxu0 0
      %2789 = vmatprep.subr.bf16.mxu0 0
      %2790 = vmatpush1.bf16.msra.mxu0 %v2777
      %2791 = vmatprep.subr.bf16.mxu0 0
      %2792 = vmatpush1.bf16.msra.mxu0 %v2738
      %2793 = vmatprep.subr.bf16.mxu0 0
      %2794 = vmatpush1.bf16.msra.mxu0 %v2737
      %2795 = vmatprep.subr.bf16.mxu0 0
      %2796 = vmatpush2.bf16.msra.mxu0 0
      %2797 = vmatprep.subr.bf16.mxu0 0
      %2798 = vmatpush2.bf16.msra.mxu0 0
      %2799 = vmatprep.subr.bf16.mxu0 0
      %2800 = vmatpush2.bf16.msra.mxu0 0
      %2801 = vmatprep.subr.bf16.mxu0 0
      %2802 = vmatpush2.bf16.msra.mxu0 0
      %2803 = vmatprep.subr.bf16.mxu0 0
      %2804 = vmatpush2.bf16.msra.mxu0 0
      %2805 = vmatprep.subr.bf16.mxu0 0
      %2806 = vmatpush2.bf16.msra.mxu0 0
      %2807 = vmatprep.subr.bf16.mxu0 0
      %2808 = vmatpush2.bf16.msra.mxu0 0
      %2809 = vmatprep.subr.bf16.mxu0 0
      %2810 = vmatpush2.bf16.msra.mxu0 0
      %2811 = vmatprep.mubr.bf16.mxu0 0
      %2812 = vmatmul.mubr.bf16.gmra.mxu0 %v2743
      %v2813 = vpop.f32.mrf.mxu0
      %v2814 = vadd.f32 %v2725, %v2813
      %v2815 = vpop.f32.mrf.mxu0
      %v2816 = vpop.f32.mrf.mxu0
      %v2817 = vadd.f32 %v2725, %v2816
      %v2818 = vpop.f32.mrf.mxu0
      %2819 = vmatprep.mubr.bf16.mxu0 0
      %2820 = vmatmul.mubr.bf16.gmra.mxu0 %v2745
      %v2821 = vpop.f32.mrf.mxu0
      %v2822 = vadd.f32 %v2725, %v2821
      %v2823 = vpop.f32.mrf.mxu0
      %v2824 = vpop.f32.mrf.mxu0
      %v2825 = vadd.f32 %v2725, %v2824
      %v2826 = vpop.f32.mrf.mxu0
      %2827 = vmatprep.mubr.bf16.mxu0 0
      %2828 = vmatmul.mubr.bf16.gmra.mxu0 %v2747
      %v2829 = vpop.f32.mrf.mxu0
      %v2830 = vadd.f32 %v2725, %v2829
      %v2831 = vpop.f32.mrf.mxu0
      %v2832 = vpop.f32.mrf.mxu0
      %v2833 = vadd.f32 %v2725, %v2832
      %v2834 = vpop.f32.mrf.mxu0
      %2835 = vmatprep.mubr.bf16.mxu0 0
      %2836 = vmatmul.mubr.bf16.gmra.mxu0 %v2749
      %v2837 = vpop.f32.mrf.mxu0
      %v2838 = vadd.f32 %v2725, %v2837
      %v2839 = vpop.f32.mrf.mxu0
      %v2840 = vpop.f32.mrf.mxu0
      %v2841 = vadd.f32 %v2725, %v2840
      %v2842 = vpop.f32.mrf.mxu0
      %2843 = vmatprep.mubr.bf16.mxu0 0
      %2844 = vmatmul.mubr.bf16.gmra.mxu0 %v2751
      %v2845 = vpop.f32.mrf.mxu0
      %v2846 = vadd.f32 %v2725, %v2845
      %v2847 = vpop.f32.mrf.mxu0
      %v2848 = vpop.f32.mrf.mxu0
      %v2849 = vadd.f32 %v2725, %v2848
      %v2850 = vpop.f32.mrf.mxu0
      %2851 = vmatprep.mubr.bf16.mxu0 0
      %2852 = vmatmul.mubr.bf16.gmra.mxu0 %v2753
      %v2853 = vpop.f32.mrf.mxu0
      %v2854 = vadd.f32 %v2725, %v2853
      %v2855 = vpop.f32.mrf.mxu0
      %v2856 = vpop.f32.mrf.mxu0
      %v2857 = vadd.f32 %v2725, %v2856
      %v2858 = vpop.f32.mrf.mxu0
      %2859 = vmatprep.mubr.bf16.mxu0 0
      %2860 = vmatmul.mubr.bf16.gmra.mxu0 %v2755
      %v2861 = vpop.f32.mrf.mxu0
      %v2862 = vadd.f32 %v2725, %v2861
      %v2863 = vpop.f32.mrf.mxu0
      %v2864 = vpop.f32.mrf.mxu0
      %v2865 = vadd.f32 %v2725, %v2864
      %v2866 = vpop.f32.mrf.mxu0
      %2867 = vmatprep.mubr.bf16.mxu0 0
      %2868 = vmatmul.mubr.bf16.gmra.mxu0 %v2757
      %v2869 = vpop.f32.mrf.mxu0
      %v2870 = vadd.f32 %v2725, %v2869
      %v2871 = vpop.f32.mrf.mxu0
      %v2872 = vpop.f32.mrf.mxu0
      %v2873 = vadd.f32 %v2725, %v2872
      %v2874 = vpop.f32.mrf.mxu0
      %2875 = vmatprep.mubr.bf16.mxu0 0
      %2876 = vmatmul.mubr.bf16.gmra.mxu0 %v2759
      %v2877 = vpop.f32.mrf.mxu0
      %v2878 = vadd.f32 %v2725, %v2877
      %v2879 = vpop.f32.mrf.mxu0
      %v2880 = vpop.f32.mrf.mxu0
      %v2881 = vadd.f32 %v2725, %v2880
      %v2882 = vpop.f32.mrf.mxu0
      %2883 = vmatprep.mubr.bf16.mxu0 0
      %2884 = vmatmul.mubr.bf16.gmra.mxu0 %v2761
      %v2885 = vpop.f32.mrf.mxu0
      %v2886 = vadd.f32 %v2725, %v2885
      %v2887 = vpop.f32.mrf.mxu0
      %v2888 = vpop.f32.mrf.mxu0
      %v2889 = vadd.f32 %v2725, %v2888
      %v2890 = vpop.f32.mrf.mxu0
      %2891 = vmatprep.mubr.bf16.mxu0 0
      %2892 = vmatmul.mubr.bf16.gmra.mxu0 %v2763
      %v2893 = vpop.f32.mrf.mxu0
      %v2894 = vadd.f32 %v2725, %v2893
      %v2895 = vpop.f32.mrf.mxu0
      %v2896 = vpop.f32.mrf.mxu0
      %v2897 = vadd.f32 %v2725, %v2896
      %v2898 = vpop.f32.mrf.mxu0
      %2899 = vmatprep.mubr.bf16.mxu0 0
      %2900 = vmatmul.mubr.bf16.gmra.mxu0 %v2765
      %v2901 = vpop.f32.mrf.mxu0
      %v2902 = vadd.f32 %v2725, %v2901
      %v2903 = vpop.f32.mrf.mxu0
      %v2904 = vpop.f32.mrf.mxu0
      %v2905 = vadd.f32 %v2725, %v2904
      %v2906 = vpop.f32.mrf.mxu0
      %2907 = vmatprep.mubr.bf16.mxu0 0
      %2908 = vmatmul.mubr.bf16.gmra.mxu0 %v2767
      %v2909 = vpop.f32.mrf.mxu0
      %v2910 = vadd.f32 %v2725, %v2909
      %v2911 = vpop.f32.mrf.mxu0
      %v2912 = vpop.f32.mrf.mxu0
      %v2913 = vadd.f32 %v2725, %v2912
      %v2914 = vpop.f32.mrf.mxu0
      %2915 = vmatprep.mubr.bf16.mxu0 0
      %2916 = vmatmul.mubr.bf16.gmra.mxu0 %v2769
      %v2917 = vpop.f32.mrf.mxu0
      %v2918 = vadd.f32 %v2725, %v2917
      %v2919 = vpop.f32.mrf.mxu0
      %v2920 = vpop.f32.mrf.mxu0
      %v2921 = vadd.f32 %v2725, %v2920
      %v2922 = vpop.f32.mrf.mxu0
      %2923 = vmatprep.mubr.bf16.mxu0 0
      %2924 = vmatmul.mubr.bf16.gmra.mxu0 %v2771
      %v2925 = vpop.f32.mrf.mxu0
      %v2926 = vadd.f32 %v2725, %v2925
      %v2927 = vpop.f32.mrf.mxu0
      %v2928 = vpop.f32.mrf.mxu0
      %v2929 = vadd.f32 %v2725, %v2928
      %v2930 = vpop.f32.mrf.mxu0
      %2931 = vmatprep.mubr.bf16.mxu0 0
      %2932 = vmatmul.mubr.bf16.gmra.mxu0 %v2773
      %v2933 = vpop.f32.mrf.mxu0
      %v2934 = vadd.f32 %v2725, %v2933
      %v2935 = vpop.f32.mrf.mxu0
      %v2936 = vpop.f32.mrf.mxu0
      %v2937 = vadd.f32 %v2725, %v2936
      %v2938 = vpop.f32.mrf.mxu0
      %2939 = vdwg.mxu0
      %v2940 = vmax.f32 %v2814, 0.0
      %v2941 = vmax.f32 %v2817, 0.0
      %v2942 = vmax.f32 %v2822, 0.0
      %v2943 = vmax.f32 %v2825, 0.0
      %v2944 = vmax.f32 %v2830, 0.0
      %v2945 = vmax.f32 %v2833, 0.0
      %v2946 = vmax.f32 %v2838, 0.0
      %v2947 = vmax.f32 %v2841, 0.0
      %v2948 = vmax.f32 %v2846, 0.0
      %v2949 = vmax.f32 %v2849, 0.0
      %v2950 = vmax.f32 %v2854, 0.0
      %v2951 = vmax.f32 %v2857, 0.0
      %v2952 = vmax.f32 %v2862, 0.0
      %v2953 = vmax.f32 %v2865, 0.0
      %v2954 = vmax.f32 %v2870, 0.0
      %v2955 = vmax.f32 %v2873, 0.0
      %v2956 = vmax.f32 %v2878, 0.0
      %v2957 = vmax.f32 %v2881, 0.0
      %v2958 = vmax.f32 %v2886, 0.0
      %v2959 = vmax.f32 %v2889, 0.0
      %v2960 = vmax.f32 %v2894, 0.0
      %v2961 = vmax.f32 %v2897, 0.0
      %v2962 = vmax.f32 %v2902, 0.0
      %v2963 = vmax.f32 %v2905, 0.0
      %v2964 = vmax.f32 %v2910, 0.0
      %v2965 = vmax.f32 %v2913, 0.0
      %v2966 = vmax.f32 %v2918, 0.0
      %v2967 = vmax.f32 %v2921, 0.0
      %v2968 = vmax.f32 %v2926, 0.0
      %v2969 = vmax.f32 %v2929, 0.0
      %v2970 = vmax.f32 %v2934, 0.0
      %v2971 = vmax.f32 %v2937, 0.0
      %v2972 = vpack.c.bf16 %v2941, %v2940
      %v2973 = vpack.c.bf16 %v2943, %v2942
      %v2974 = vpack.c.bf16 %v2945, %v2944
      %v2975 = vpack.c.bf16 %v2947, %v2946
      %v2976 = vpack.c.bf16 %v2949, %v2948
      %v2977 = vpack.c.bf16 %v2951, %v2950
      %v2978 = vpack.c.bf16 %v2953, %v2952
      %v2979 = vpack.c.bf16 %v2955, %v2954
      %v2980 = vpack.c.bf16 %v2957, %v2956
      %v2981 = vpack.c.bf16 %v2959, %v2958
      %v2982 = vpack.c.bf16 %v2961, %v2960
      %v2983 = vpack.c.bf16 %v2963, %v2962
      %v2984 = vpack.c.bf16 %v2965, %v2964
      %v2985 = vpack.c.bf16 %v2967, %v2966
      %v2986 = vpack.c.bf16 %v2969, %v2968
      %v2987 = vpack.c.bf16 %v2971, %v2970
      %v3004 = vunpack.c.l.b16 %v2972
      %v3005 = vunpack.c.h.b16 %v2972
      %v3006 = vunpack.c.l.b16 %v2973
      %v3007 = vunpack.c.h.b16 %v2973
      %v3008 = vunpack.c.l.b16 %v2974
      %v3009 = vunpack.c.h.b16 %v2974
      %v3010 = vunpack.c.l.b16 %v2975
      %v3011 = vunpack.c.h.b16 %v2975
      %v3012 = vunpack.c.l.b16 %v2976
      %v3013 = vunpack.c.h.b16 %v2976
      %v3014 = vunpack.c.l.b16 %v2977
      %v3015 = vunpack.c.h.b16 %v2977
      %v3016 = vunpack.c.l.b16 %v2978
      %v3017 = vunpack.c.h.b16 %v2978
      %v3018 = vunpack.c.l.b16 %v2979
      %v3019 = vunpack.c.h.b16 %v2979
      %v3020 = vunpack.c.l.b16 %v2980
      %v3021 = vunpack.c.h.b16 %v2980
      %v3022 = vunpack.c.l.b16 %v2981
      %v3023 = vunpack.c.h.b16 %v2981
      %v3024 = vunpack.c.l.b16 %v2982
      %v3025 = vunpack.c.h.b16 %v2982
      %v3026 = vunpack.c.l.b16 %v2983
      %v3027 = vunpack.c.h.b16 %v2983
      %v3028 = vunpack.c.l.b16 %v2984
      %v3029 = vunpack.c.h.b16 %v2984
      %v3030 = vunpack.c.l.b16 %v2985
      %v3031 = vunpack.c.h.b16 %v2985
      %v3032 = vunpack.c.l.b16 %v2986
      %v3033 = vunpack.c.h.b16 %v2986
      %v3034 = vunpack.c.l.b16 %v2987
      %v3035 = vunpack.c.h.b16 %v2987
      %v3036 = vpack.c.b16 %v3004, %v3004
      %v3037 = vpack.c.b16 %v3005, %v3005
      %v3038 = vpack.c.b16 %v3006, %v3006
      %v3039 = vpack.c.b16 %v3007, %v3007
      %v3040 = vpack.c.b16 %v3008, %v3008
      %v3041 = vpack.c.b16 %v3009, %v3009
      %v3042 = vpack.c.b16 %v3010, %v3010
      %v3043 = vpack.c.b16 %v3011, %v3011
      %v3044 = vpack.c.b16 %v3012, %v3012
      %v3045 = vpack.c.b16 %v3013, %v3013
      %v3046 = vpack.c.b16 %v3014, %v3014
      %v3047 = vpack.c.b16 %v3015, %v3015
      %v3048 = vpack.c.b16 %v3016, %v3016
      %v3049 = vpack.c.b16 %v3017, %v3017
      %v3050 = vpack.c.b16 %v3018, %v3018
      %v3051 = vpack.c.b16 %v3019, %v3019
      %v3052 = vpack.c.b16 %v3020, %v3020
      %v3053 = vpack.c.b16 %v3021, %v3021
      %v3054 = vpack.c.b16 %v3022, %v3022
      %v3055 = vpack.c.b16 %v3023, %v3023
      %v3056 = vpack.c.b16 %v3024, %v3024
      %v3057 = vpack.c.b16 %v3025, %v3025
      %v3058 = vpack.c.b16 %v3026, %v3026
      %v3059 = vpack.c.b16 %v3027, %v3027
      %v3060 = vpack.c.b16 %v3028, %v3028
      %v3061 = vpack.c.b16 %v3029, %v3029
      %v3062 = vpack.c.b16 %v3030, %v3030
      %v3063 = vpack.c.b16 %v3031, %v3031
      %v3064 = vpack.c.b16 %v3032, %v3032
      %v3065 = vpack.c.b16 %v3033, %v3033
      %v3066 = vpack.c.b16 %v3034, %v3034
      %v3067 = vpack.c.b16 %v3035, %v3035
      %vm3100 = vcmask 60416
      %3101 = vst.msk [vmem:[%s221] sm:$0xf] %vm3100, %v3036
      %3102 = vst.msk [vmem:[%s221 + $0x4] sm:$0xf] %vm3100, %v3037
      %3103 = vst.msk [vmem:[%s221 + $0x8] sm:$0xf] %vm3100, %v3038
      %3104 = vst.msk [vmem:[%s221 + $0xc] sm:$0xf] %vm3100, %v3039
      %3105 = vst.msk [vmem:[%s221 + $0x10] sm:$0xf] %vm3100, %v3040
      %3106 = vst.msk [vmem:[%s221 + $0x14] sm:$0xf] %vm3100, %v3041
      %3107 = vst.msk [vmem:[%s221 + $0x18] sm:$0xf] %vm3100, %v3042
      %3108 = vst.msk [vmem:[%s221 + $0x1c] sm:$0xf] %vm3100, %v3043
      %3109 = vst.msk [vmem:[%s221 + $0x20] sm:$0xf] %vm3100, %v3044
      %3110 = vst.msk [vmem:[%s221 + $0x24] sm:$0xf] %vm3100, %v3045
      %3111 = vst.msk [vmem:[%s221 + $0x28] sm:$0xf] %vm3100, %v3046
      %3112 = vst.msk [vmem:[%s221 + $0x2c] sm:$0xf] %vm3100, %v3047
      %3113 = vst.msk [vmem:[%s221 + $0x30] sm:$0xf] %vm3100, %v3048
      %3114 = vst.msk [vmem:[%s221 + $0x34] sm:$0xf] %vm3100, %v3049
      %3115 = vst.msk [vmem:[%s221 + $0x38] sm:$0xf] %vm3100, %v3050
      %3116 = vst.msk [vmem:[%s221 + $0x3c] sm:$0xf] %vm3100, %v3051
      %3117 = vst.msk [vmem:[%s221 + $0x40] sm:$0xf] %vm3100, %v3052
      %3118 = vst.msk [vmem:[%s221 + $0x44] sm:$0xf] %vm3100, %v3053
      %3119 = vst.msk [vmem:[%s221 + $0x48] sm:$0xf] %vm3100, %v3054
      %3120 = vst.msk [vmem:[%s221 + $0x4c] sm:$0xf] %vm3100, %v3055
      %3121 = vst.msk [vmem:[%s221 + $0x50] sm:$0xf] %vm3100, %v3056
      %3122 = vst.msk [vmem:[%s221 + $0x54] sm:$0xf] %vm3100, %v3057
      %3123 = vst.msk [vmem:[%s221 + $0x58] sm:$0xf] %vm3100, %v3058
      %3124 = vst.msk [vmem:[%s221 + $0x5c] sm:$0xf] %vm3100, %v3059
      %3125 = vst.msk [vmem:[%s221 + $0x60] sm:$0xf] %vm3100, %v3060
      %3126 = vst.msk [vmem:[%s221 + $0x64] sm:$0xf] %vm3100, %v3061
      %3127 = vst.msk [vmem:[%s221 + $0x68] sm:$0xf] %vm3100, %v3062
      %3128 = vst.msk [vmem:[%s221 + $0x6c] sm:$0xf] %vm3100, %v3063
      %3129 = vst.msk [vmem:[%s221 + $0x70] sm:$0xf] %vm3100, %v3064
      %3130 = vst.msk [vmem:[%s221 + $0x74] sm:$0xf] %vm3100, %v3065
      %3131 = vst.msk [vmem:[%s221 + $0x78] sm:$0xf] %vm3100, %v3066
      %3132 = vst.msk [vmem:[%s221 + $0x7c] sm:$0xf] %vm3100, %v3067
      %p3133 = scmp.lt.s32.totalorder %s18, 1
      %s3134 = scalar_select %p3133, %s18, 1
      %p3135 = scmp.lt.s32.totalorder %s19, 0
      %s3136 = scalar_select %p3135, %s19, 0
      %s3137 = smul.addr %s3134, 32
      %s3138 = sadd.s32 %s3136, %s3137
      %s3139 = smul.addr %s3138, 4
      %s3140 = scalar_lea.vmem %s3, %s3139
      // Predicated region
      $region33: #{vgg_base_forward.3} parent=31 // pred_check
        %p3141 = pneg %p124
      $region34: #{vgg_base_forward.3} parent=31 // pred_check_branch
        %3143 = sbr.rel (%p3141) target = $region36
      $region35: #{vgg_base_forward.3} parent=31 // pred_region
        _
      $region36: #{vgg_base_forward.3} parent=31 // pred_fallthru
        _
    $region32: #{vgg_base_forward.3} parent=5 // pred_fallthru
      _
    %p3144 = scmp.le.s32.totalorder 2, %s9
    // Predicated region
    $region37: #{vgg_base_forward.3} parent=5 // pred_check
      %p3145 = pneg %p3144
    $region38: #{vgg_base_forward.3} parent=5 // pred_check_branch
      %3147 = sbr.rel (%p3145) target = $region40
    $region39: #{vgg_base_forward.3} parent=5 // pred_region
      %s3148 = ssub.s32 %s9, 2
      // Predicated region
      $region41: #{vgg_base_forward.3} parent=39 // pred_check
        %p3149 = pneg %p130
      $region42: #{vgg_base_forward.3} parent=39 // pred_check_branch
        %3151 = sbr.rel (%p3149) target = $region44
      $region43: #{vgg_base_forward.3} parent=39 // pred_region
        %p3152 = scmp.lt.s32.totalorder %s20, 1
        %s3153 = scalar_select %p3152, %s20, 1
        %p3154 = scmp.lt.s32.totalorder %s21, 0
        %s3155 = scalar_select %p3154, %s21, 0
        %s3156 = smul.addr %s3153, 32
        %s3157 = sadd.s32 %s3155, %s3156
        %s3158 = smul.addr %s3157, 4
        %s3159 = scalar_lea.vmem %s3, %s3158
      $region44: #{vgg_base_forward.3} parent=39 // pred_fallthru
        _
    $region40: #{vgg_base_forward.3} parent=5 // pred_fallthru
      _
  $region6: #{vgg_base_forward.3} parent=0 // loop_footer
    %s13 = sadd.s32 1, %s9
  $region7: #{vgg_base_forward.3} parent=0 // loop_footer_branch
    %8 = sbr.rel target = $region3
  $region8: #{vgg_base_forward.3} parent=0 // loop_exit
    _

</llo_original>
